<compile_context>
chip_gen: v7x
topology: tpu7x:2x2x1
jax: 0.10.0
libtpu: 0.0.40
codegen_flags: <defaults>
</compile_context>

<pallas_src>
import jax
import jax.numpy as jnp
import numpy as np
from jax import lax
from jax.experimental import pallas as pl
from jax.experimental.pallas import tpu as pltpu

_EPS = 1e-5  # nn.GroupNorm default eps


def _round_up(v, m):
    return ((v + m - 1) // m) * m


def init_params(key, Cin, Cout, Tc, Ce):
    """Deterministic synthetic parameters (shapes follow ResnetBlock.__init__)."""
    ks = jax.random.split(key, 6)

    def unif(k, shape, scale):
        return jax.random.uniform(k, shape, jnp.float32, -1.0, 1.0) * scale

    return dict(
        # nn.Linear(time_channels, out_channels)
        time_w=unif(ks[0], (Tc, Cout), 1.0 / np.sqrt(Tc)),
        time_b=unif(ks[1], (1, Cout), 1.0 / np.sqrt(Tc)),
        # MyConv2d zeroes every conv bias in __init__, so only weights matter.
        conv1_w=unif(ks[2], (3, 3, Cin, Cout), 1.0 / np.sqrt(9 * Cin)),            # init_scale=1
        conv2_w=unif(ks[3], (3, 3, Cout, Cout), 1.0 / np.sqrt(9 * Cout)) * 1e-3,   # init_scale=0.001
        extra_w=unif(ks[4], (Ce, Cout), 1.0 / np.sqrt(Ce)),                        # 1x1, init_scale=1
        skip_w=unif(ks[5], (Cin, Cout), 1.0 / np.sqrt(Cin)) * 0.1,                 # 1x1, init_scale=0.1
        # nn.GroupNorm default affine init (weight=1, bias=0)
        gn1_g=jnp.ones((Cin,), jnp.float32),
        gn1_b=jnp.zeros((Cin,), jnp.float32),
        gn2_g=jnp.ones((Cout,), jnp.float32),
        gn2_b=jnp.zeros((Cout,), jnp.float32),
    )


@jax.jit
def resnet_block_pallas(x_nchw, t_embed, extra_nchw, params):
    B, Cin, H, W = map(int, x_nchw.shape)
    Cout = int(params["conv1_w"].shape[-1])
    Ce = int(extra_nchw.shape[1])
    G1 = min(Cin // 4, 32)
    G2 = min(Cout // 4, 32)
    HW = H * W
    n1 = float(HW * (Cin // G1))     # elements per GroupNorm group (norm1)
    n2 = float(HW * (Cout // G2))    # elements per GroupNorm group (norm2)
    use_skip = Cin != Cout
    f32, bf16 = jnp.float32, jnp.bfloat16
    out_dtype = f32  # TODO(synk): bf16 output halves HBM writeback if the consumer tolerates it.

    # Padded-scratch geometry: the activation lives at rows [BASE, BASE+HW);
    # the zero border rows cover every row a shifted 3x3 tap can touch.
    BASE = _round_up(W + 1, 8)               # sublane-aligned data store
    TOT = _round_up(BASE + HW + W + 1, 8)    # total scratch rows

    # ---------------- plain-JAX glue (traced once per shape under jit) ----------------
    x2d = x_nchw.transpose(0, 2, 3, 1).reshape(B, HW, Cin).astype(f32)
    # TODO(synk): bilinear resize of extra_feats stays in JAX glue (jax.image.resize
    # matches torchvision align_corners=False bilinear for up-sampling).
    extra_rs = jax.image.resize(extra_nchw.astype(f32), (B, Ce, H, W), method="bilinear")
    ex2d = extra_rs.transpose(0, 2, 3, 1).reshape(B, HW, Ce).astype(bf16)
    # Tiny time Linear precomputed here; streamed as one (1, Cout) row per sample.
    te = jnp.dot(t_embed.astype(f32), params["time_w"].astype(f32)) + params["time_b"].astype(f32)
    te3 = te.reshape(B, 1, Cout)

    def gn_consts(C, G, gamma, beta, n):
        one_hot = jax.nn.one_hot(jnp.arange(C) // (C // G), G, dtype=f32)   # (C, G)
        return (one_hot / n,                        # reducer, pre-scaled by 1/n
                one_hot.T,                          # (G, C) per-group scatter
                gamma.reshape(1, C).astype(f32),
                beta.reshape(1, C).astype(f32))

    R1, S1, g1c, b1c = gn_consts(Cin, G1, params["gn1_g"], params["gn1_b"], n1)
    R2, S2, g2c, b2c = gn_consts(Cout, G2, params["gn2_g"], params["gn2_b"], n2)
    K1 = params["conv1_w"].reshape(9, Cin, Cout).astype(bf16)      # tap index i = dy*3 + dx
    K2 = params["conv2_w"].reshape(9, Cout, Cout).astype(bf16)
    WE = params["extra_w"].astype(bf16)                            # dense 1x1 (Ce, Cout)
    # W-boundary fixup masks: zero the dx=0 / dx=2 tap contribution where the
    # flattened +/-1 row shift wraps into the neighbouring image row.
    col = jnp.arange(HW, dtype=jnp.int32) % W
    mask_l = (col != 0).astype(f32).reshape(HW, 1)
    mask_r = (col != W - 1).astype(f32).reshape(HW, 1)

    const_arrays = [R1, S1, g1c, b1c, K1, R2, S2, g2c, b2c, K2, WE, mask_l, mask_r]
    if use_skip:
        const_arrays.append(params["skip_w"].astype(bf16))         # (Cin, Cout), only when needed

    # ---------------- the Pallas kernel: one batch sample per grid step ----------------
    def kernel(x_ref, ex_ref, te_ref,
               r1_ref, s1_ref, g1_ref, b1_ref, k1_ref,
               r2_ref, s2_ref, g2_ref, b2_ref, k2_ref,
               we_ref, ml_ref, mr_ref, *rest):
        if use_skip:
            ws_ref, o_ref, pad1, pad2 = rest
        else:
            o_ref, pad1, pad2 = rest

        x = x_ref[0]                              # (HW, Cin) f32
        m_l = ml_ref[...]                         # (HW, 1) f32
        m_r = mr_ref[...]

        def gn_silu(v, r_ref, s_ref, g_ref, b_ref):
            # GroupNorm stats via two fused (M=2) indicator matmuls, f32 throughout.
            s = jnp.sum(v, axis=0, keepdims=True)                   # (1, C)
            ss = jnp.sum(v * v, axis=0, keepdims=True)
            red = jnp.dot(jnp.concatenate([s, ss], axis=0), r_ref[...],
                          preferred_element_type=f32)               # (2, G): [mean, E[x^2]]
            mean_g = red[0:1]
            var_g = jnp.maximum(red[1:2] - mean_g * mean_g, 0.0)    # guard single-pass variance
            sc = jnp.dot(jnp.concatenate([mean_g, var_g], axis=0), s_ref[...],
                         preferred_element_type=f32)                # (2, C)
            a = lax.rsqrt(sc[1:2] + _EPS) * g_ref[...]              # fused scale
            b = b_ref[...] - sc[0:1] * a                            # fused shift
            h = v * a + b
            return h * jax.nn.sigmoid(h)                            # SiLU

        def conv3x3(pad_ref, k_ref):
            # 9 shifted dense matmuls (full-density MXU, M = H*W): the dy shift is
            # absorbed by the zero border rows, dx by a +/-1 row shift + W mask.
            acc = None
            for dx in range(3):
                part = None
                for dy in range(3):
                    start = BASE + (dy - 1) * W + (dx - 1)          # static slice start
                    t = jnp.dot(pad_ref[pl.ds(start, HW), :], k_ref[dy * 3 + dx],
                                preferred_element_type=f32)
                    part = t if part is None else part + t
                if dx == 0:
                    part = part * m_l
                elif dx == 2:
                    part = part * m_r
                acc = part if acc is None else acc + part
            return acc

        # Zero only the border rows of the bf16 padded scratch (interior fully
        # overwritten each step).  Done every step so each TensorCore's private
        # scratch is initialized under megacore batch splitting.
        pad1[pl.ds(0, BASE), :] = jnp.zeros((BASE, Cin), bf16)
        pad1[pl.ds(BASE + HW, TOT - BASE - HW), :] = jnp.zeros((TOT - BASE - HW, Cin), bf16)
        pad2[pl.ds(0, BASE), :] = jnp.zeros((BASE, Cout), bf16)
        pad2[pl.ds(BASE + HW, TOT - BASE - HW), :] = jnp.zeros((TOT - BASE - HW, Cout), bf16)

        # norm1 -> SiLU -> conv1 (3x3, padding=1, zero bias)
        y = gn_silu(x, r1_ref, s1_ref, g1_ref, b1_ref)
        pad1[pl.ds(BASE, HW), :] = y.astype(bf16)                   # single bf16 store
        h1 = conv3x3(pad1, k1_ref)

        # + time embedding (per-channel) + extra_feats through a dense 1x1 conv
        h1 = h1 + te_ref[0]
        h1 = h1 + jnp.dot(ex_ref[0], we_ref[...], preferred_element_type=f32)

        # norm2 -> SiLU -> (dropout = Identity) -> conv2 (3x3, padding=1, zero bias)
        z = gn_silu(h1, r2_ref, s2_ref, g2_ref, b2_ref)
        pad2[pl.ds(BASE, HW), :] = z.astype(bf16)
        h2 = conv3x3(pad2, k2_ref)

        # skip (1x1 conv iff Cin != Cout, else identity) + residual add
        if use_skip:
            skip = jnp.dot(x.astype(bf16), ws_ref[...], preferred_element_type=f32)
        else:
            skip = x
        o_ref[0] = (skip + h2).astype(o_ref.dtype)

    # ---------------- VMEM budget: actual need + headroom, capped per device ----------------
    const_bytes = sum(int(np.prod(a.shape)) * a.dtype.itemsize for a in const_arrays)
    io_step = (HW * Cin * 4 + HW * Ce * 2 + Cout * 4
               + HW * Cout * np.dtype(out_dtype).itemsize)
    scratch_bytes = TOT * (Cin + Cout) * 2                          # bf16 scratch
    need = 2 * const_bytes + 2 * io_step + scratch_bytes            # x2 = default double buffering
    try:
        vmem_cap = int(pltpu.get_tpu_info().vmem_capacity_bytes)
    except Exception:           # budget heuristic only; fall back to smallest (v7x per-core) VMEM
        vmem_cap = 64 << 20
    vmem_limit = int(min(max(need + (4 << 20), 16 << 20), (vmem_cap * 9) // 10))

    def const_spec(arr):
        shp = tuple(int(d) for d in arr.shape)
        return pl.BlockSpec(shp, lambda b, _n=len(shp): (0,) * _n)

    grid_spec = pltpu.PrefetchScalarGridSpec(
        num_scalar_prefetch=0,
        grid=(B,),
        in_specs=[
            pl.BlockSpec((1, HW, Cin), lambda b: (b, 0, 0)),
            pl.BlockSpec((1, HW, Ce), lambda b: (b, 0, 0)),
            pl.BlockSpec((1, 1, Cout), lambda b: (b, 0, 0)),
        ] + [const_spec(a) for a in const_arrays],
        out_specs=pl.BlockSpec((1, HW, Cout), lambda b: (b, 0, 0)),
        scratch_shapes=[
            pltpu.VMEM((TOT, Cin), bf16),     # H/W-bordered conv1 input
            pltpu.VMEM((TOT, Cout), bf16),    # H/W-bordered conv2 input
        ],
    )
    out2d = pl.pallas_call(
        kernel,
        out_shape=jax.ShapeDtypeStruct((B, HW, Cout), out_dtype),
        grid_spec=grid_spec,
        compiler_params=pltpu.CompilerParams(
            dimension_semantics=("parallel",),   # lets v7x's 2 TCs split the batch
            vmem_limit_bytes=vmem_limit,
        ),
    )(x2d, ex2d, te3, *const_arrays)

    # back to NCHW
    return out2d.reshape(B, H, W, Cout).transpose(0, 3, 1, 2)


def resnet_block_ref(x, t_embed, extra, params, eps=_EPS):
    """Pure-JAX NCHW reference mirroring the PyTorch forward (for validation)."""
    B, Cin, H, W = x.shape
    G1 = min(Cin // 4, 32)
    Cout = params["conv1_w"].shape[-1]
    G2 = min(Cout // 4, 32)
    hp = lax.Precision.HIGHEST

    def group_norm(v, G, gamma, beta):
        b, c, h, w = v.shape
        vg = v.reshape(b, G, -1)
        m = vg.mean(axis=-1, keepdims=True)
        var = vg.var(axis=-1, keepdims=True)
        vn = ((vg - m) / jnp.sqrt(var + eps)).reshape(b, c, h, w)
        return vn * gamma[None, :, None, None] + beta[None, :, None, None]

    def conv3x3(v, w):  # w: (kh, kw, Ci, Co)
        return lax.conv_general_dilated(v, w, (1, 1), ((1, 1), (1, 1)),
                                        dimension_numbers=("NCHW", "HWIO", "NCHW"),
                                        precision=hp)

    t = jnp.dot(t_embed, params["time_w"], precision=hp) + params["time_b"][0]
    ex = jax.image.resize(extra, (B, extra.shape[1], H, W), method="bilinear")
    ex = jnp.einsum("bchw,co->bohw", ex, params["extra_w"], precision=hp)
    y = group_norm(x, G1, params["gn1_g"], params["gn1_b"])
    y = y * jax.nn.sigmoid(y)
    y = conv3x3(y, params["conv1_w"])
    y = y + t[:, :, None, None] + ex
    y = group_norm(y, G2, params["gn2_g"], params["gn2_b"])
    y = y * jax.nn.sigmoid(y)
    y = conv3x3(y, params["conv2_w"])
    if Cin != Cout:
        skip = jnp.einsum("bchw,co->bohw", x, params["skip_w"], precision=hp)
    else:
        skip = x
    return skip + y


if __name__ == "__main__":
    B, Cin, Cout, Tc, Ce, H, W = 2, 4, 8, 16, 4, 16, 16
    He, We = 8, 8  # extra_feats arrive at a different resolution -> bilinear resize

    key = jax.random.PRNGKey(0)
    kx, kt, ke, kp = jax.random.split(key, 4)
    x = jax.random.normal(kx, (B, Cin, H, W), jnp.float32)
    t_embed = jax.random.normal(kt, (B, Tc), jnp.float32)
    extra = jax.random.normal(ke, (B, Ce, He, We), jnp.float32)
    params = init_params(kp, Cin, Cout, Tc, Ce)

    out = jax.block_until_ready(resnet_block_pallas(x, t_embed, extra, params))
    assert out.shape == (B, Cout, H, W)

    ref = resnet_block_ref(x, t_embed, extra, params)
    np.testing.assert_allclose(np.asarray(out), np.asarray(ref), atol=5e-3, rtol=5e-3)
    print("KERNEL_OK")
</pallas_src>

<mosaic_0001>
module attributes {stable_mosaic.version = 11 : i64} {
  func.func @kernel(%arg0: i32, %arg1: memref<1x256x4xf32, #tpu.memory_space<vmem>>, %arg2: memref<1x256x4xbf16, #tpu.memory_space<vmem>>, %arg3: memref<1x1x8xf32, #tpu.memory_space<vmem>>, %arg4: memref<4x1xf32, #tpu.memory_space<vmem>>, %arg5: memref<1x4xf32, #tpu.memory_space<vmem>>, %arg6: memref<1x4xf32, #tpu.memory_space<vmem>>, %arg7: memref<1x4xf32, #tpu.memory_space<vmem>>, %arg8: memref<9x4x8xbf16, #tpu.memory_space<vmem>>, %arg9: memref<8x2xf32, #tpu.memory_space<vmem>>, %arg10: memref<2x8xf32, #tpu.memory_space<vmem>>, %arg11: memref<1x8xf32, #tpu.memory_space<vmem>>, %arg12: memref<1x8xf32, #tpu.memory_space<vmem>>, %arg13: memref<9x8x8xbf16, #tpu.memory_space<vmem>>, %arg14: memref<4x8xbf16, #tpu.memory_space<vmem>>, %arg15: memref<256x1xf32, #tpu.memory_space<vmem>>, %arg16: memref<256x1xf32, #tpu.memory_space<vmem>>, %arg17: memref<4x8xbf16, #tpu.memory_space<vmem>>, %arg18: memref<1x256x8xf32, #tpu.memory_space<vmem>>, %arg19: memref<304x4xbf16, #tpu.memory_space<vmem>>, %arg20: memref<304x8xbf16, #tpu.memory_space<vmem>>) attributes {dimension_semantics = [#tpu.dimension_semantics<parallel>], iteration_bounds = array<i64: 2>, scalar_prefetch = 0 : i64, scratch_operands = 2 : i64, tpu.core_type = #tpu.core_type<tc>, window_params = [{transform_indices = @transform_0, window_bounds = array<i64: 1, 256, 4>}, {transform_indices = @transform_1, window_bounds = array<i64: 1, 256, 4>}, {transform_indices = @transform_2, window_bounds = array<i64: 1, 1, 8>}, {pipeline_mode = #tpu.pipeline_mode<synchronous>, transform_indices = @transform_3, window_bounds = array<i64: 4, 1>}, {pipeline_mode = #tpu.pipeline_mode<synchronous>, transform_indices = @transform_4, window_bounds = array<i64: 1, 4>}, {pipeline_mode = #tpu.pipeline_mode<synchronous>, transform_indices = @transform_5, window_bounds = array<i64: 1, 4>}, {pipeline_mode = #tpu.pipeline_mode<synchronous>, transform_indices = @transform_6, window_bounds = array<i64: 1, 4>}, {pipeline_mode = #tpu.pipeline_mode<synchronous>, transform_indices = @transform_7, window_bounds = array<i64: 9, 4, 8>}, {pipeline_mode = #tpu.pipeline_mode<synchronous>, transform_indices = @transform_8, window_bounds = array<i64: 8, 2>}, {pipeline_mode = #tpu.pipeline_mode<synchronous>, transform_indices = @transform_9, window_bounds = array<i64: 2, 8>}, {pipeline_mode = #tpu.pipeline_mode<synchronous>, transform_indices = @transform_10, window_bounds = array<i64: 1, 8>}, {pipeline_mode = #tpu.pipeline_mode<synchronous>, transform_indices = @transform_11, window_bounds = array<i64: 1, 8>}, {pipeline_mode = #tpu.pipeline_mode<synchronous>, transform_indices = @transform_12, window_bounds = array<i64: 9, 8, 8>}, {pipeline_mode = #tpu.pipeline_mode<synchronous>, transform_indices = @transform_13, window_bounds = array<i64: 4, 8>}, {pipeline_mode = #tpu.pipeline_mode<synchronous>, transform_indices = @transform_14, window_bounds = array<i64: 256, 1>}, {pipeline_mode = #tpu.pipeline_mode<synchronous>, transform_indices = @transform_15, window_bounds = array<i64: 256, 1>}, {pipeline_mode = #tpu.pipeline_mode<synchronous>, transform_indices = @transform_16, window_bounds = array<i64: 4, 8>}, {transform_indices = @transform_17, window_bounds = array<i64: 1, 256, 8>}]} {
    %c0 = arith.constant 0 : index
    %c0_0 = arith.constant 0 : index
    %c0_1 = arith.constant 0 : index
    %0 = vector.load %arg1[%c0, %c0_0, %c0_1] : memref<1x256x4xf32, #tpu.memory_space<vmem>>, vector<1x256x4xf32>
    %1 = vector.shape_cast %0 : vector<1x256x4xf32> to vector<256x4xf32>
    %c0_2 = arith.constant 0 : index
    %c0_3 = arith.constant 0 : index
    %2 = vector.load %arg15[%c0_2, %c0_3] : memref<256x1xf32, #tpu.memory_space<vmem>>, vector<256x1xf32>
    %c0_4 = arith.constant 0 : index
    %c0_5 = arith.constant 0 : index
    %3 = vector.load %arg16[%c0_4, %c0_5] : memref<256x1xf32, #tpu.memory_space<vmem>>, vector<256x1xf32>
    %cst = arith.constant 0.000000e+00 : bf16
    %4 = vector.broadcast %cst : bf16 to vector<24x4xbf16>
    %c0_6 = arith.constant 0 : index
    %c0_7 = arith.constant 0 : index
    %5 = vector.load %arg19[%c0_6, %c0_7] : memref<304x4xbf16, #tpu.memory_space<vmem>>, vector<24x4xbf16>
    tpu.vector_store %arg19[%c0_6, %c0_7], %4 {strides = array<i32>} : memref<304x4xbf16, #tpu.memory_space<vmem>>, vector<24x4xbf16>,
    %cst_8 = arith.constant 0.000000e+00 : bf16
    %6 = vector.broadcast %cst_8 : bf16 to vector<24x4xbf16>
    %c280 = arith.constant 280 : index
    %c0_9 = arith.constant 0 : index
    %7 = vector.load %arg19[%c280, %c0_9] : memref<304x4xbf16, #tpu.memory_space<vmem>>, vector<24x4xbf16>
    tpu.vector_store %arg19[%c280, %c0_9], %6 {strides = array<i32>} : memref<304x4xbf16, #tpu.memory_space<vmem>>, vector<24x4xbf16>,
    %cst_10 = arith.constant 0.000000e+00 : bf16
    %8 = vector.broadcast %cst_10 : bf16 to vector<24x8xbf16>
    %c0_11 = arith.constant 0 : index
    %c0_12 = arith.constant 0 : index
    %9 = vector.load %arg20[%c0_11, %c0_12] : memref<304x8xbf16, #tpu.memory_space<vmem>>, vector<24x8xbf16>
    tpu.vector_store %arg20[%c0_11, %c0_12], %8 {strides = array<i32>} : memref<304x8xbf16, #tpu.memory_space<vmem>>, vector<24x8xbf16>,
    %cst_13 = arith.constant 0.000000e+00 : bf16
    %10 = vector.broadcast %cst_13 : bf16 to vector<24x8xbf16>
    %c280_14 = arith.constant 280 : index
    %c0_15 = arith.constant 0 : index
    %11 = vector.load %arg20[%c280_14, %c0_15] : memref<304x8xbf16, #tpu.memory_space<vmem>>, vector<24x8xbf16>
    tpu.vector_store %arg20[%c280_14, %c0_15], %10 {strides = array<i32>} : memref<304x8xbf16, #tpu.memory_space<vmem>>, vector<24x8xbf16>,
    %cst_16 = arith.constant dense<0.000000e+00> : vector<4xf32>
    %12 = vector.multi_reduction <add>, %1, %cst_16 [0] : vector<256x4xf32> to vector<4xf32>
    %13 = vector.shape_cast %12 : vector<4xf32> to vector<1x4xf32>
    %14 = arith.mulf %1, %1 : vector<256x4xf32>
    %cst_17 = arith.constant dense<0.000000e+00> : vector<4xf32>
    %15 = vector.multi_reduction <add>, %14, %cst_17 [0] : vector<256x4xf32> to vector<4xf32>
    %16 = vector.shape_cast %15 : vector<4xf32> to vector<1x4xf32>
    %17 = tpu.concatenate %13, %16 in 0 : vector<1x4xf32>, vector<1x4xf32> -> vector<2x4xf32>
    %c0_18 = arith.constant 0 : index
    %c0_19 = arith.constant 0 : index
    %18 = vector.load %arg4[%c0_18, %c0_19] : memref<4x1xf32, #tpu.memory_space<vmem>>, vector<4x1xf32>
    %cst_20 = arith.constant dense<0.000000e+00> : vector<2x1xf32>
    %19 = tpu.matmul %17, %18, %cst_20 {dimension_numbers = #tpu.dot_dimension_numbers<[1], [0], [0], [1], [0, 0, 1, 1], [], []>} : vector<2x4xf32>, vector<4x1xf32>, vector<2x1xf32> -> vector<2x1xf32>
    %20 = vector.extract_strided_slice %19 {offsets = [0, 0], sizes = [1, 1], strides = [1, 1]} : vector<2x1xf32> to vector<1x1xf32>
    %21 = vector.extract_strided_slice %19 {offsets = [1, 0], sizes = [1, 1], strides = [1, 1]} : vector<2x1xf32> to vector<1x1xf32>
    %22 = arith.mulf %20, %20 : vector<1x1xf32>
    %23 = arith.subf %21, %22 : vector<1x1xf32>
    %cst_21 = arith.constant 0.000000e+00 : f32
    %24 = vector.broadcast %cst_21 : f32 to vector<1x1xf32>
    %25 = arith.maximumf %23, %24 : vector<1x1xf32>
    %26 = tpu.concatenate %20, %25 in 0 : vector<1x1xf32>, vector<1x1xf32> -> vector<2x1xf32>
    %c0_22 = arith.constant 0 : index
    %c0_23 = arith.constant 0 : index
    %27 = vector.load %arg5[%c0_22, %c0_23] : memref<1x4xf32, #tpu.memory_space<vmem>>, vector<1x4xf32>
    %cst_24 = arith.constant dense<0.000000e+00> : vector<2x4xf32>
    %28 = tpu.matmul %26, %27, %cst_24 {dimension_numbers = #tpu.dot_dimension_numbers<[1], [0], [0], [1], [0, 0, 1, 1], [], []>} : vector<2x1xf32>, vector<1x4xf32>, vector<2x4xf32> -> vector<2x4xf32>
    %29 = vector.extract_strided_slice %28 {offsets = [1, 0], sizes = [1, 4], strides = [1, 1]} : vector<2x4xf32> to vector<1x4xf32>
    %cst_25 = arith.constant 9.99999974E-6 : f32
    %30 = vector.broadcast %cst_25 : f32 to vector<1x4xf32>
    %31 = arith.addf %29, %30 : vector<1x4xf32>
    %32 = math.rsqrt %31 : vector<1x4xf32>
    %c0_26 = arith.constant 0 : index
    %c0_27 = arith.constant 0 : index
    %33 = vector.load %arg6[%c0_26, %c0_27] : memref<1x4xf32, #tpu.memory_space<vmem>>, vector<1x4xf32>
    %34 = arith.mulf %32, %33 : vector<1x4xf32>
    %c0_28 = arith.constant 0 : index
    %c0_29 = arith.constant 0 : index
    %35 = vector.load %arg7[%c0_28, %c0_29] : memref<1x4xf32, #tpu.memory_space<vmem>>, vector<1x4xf32>
    %36 = vector.extract_strided_slice %28 {offsets = [0, 0], sizes = [1, 4], strides = [1, 1]} : vector<2x4xf32> to vector<1x4xf32>
    %37 = arith.mulf %36, %34 : vector<1x4xf32>
    %38 = arith.subf %35, %37 : vector<1x4xf32>
    %39 = vector.broadcast %34 : vector<1x4xf32> to vector<256x4xf32>
    %40 = arith.mulf %1, %39 : vector<256x4xf32>
    %41 = vector.broadcast %38 : vector<1x4xf32> to vector<256x4xf32>
    %42 = arith.addf %40, %41 : vector<256x4xf32>
    %43 = arith.negf %42 : vector<256x4xf32>
    %44 = math.exp %43 : vector<256x4xf32>
    %cst_30 = arith.constant 1.000000e+00 : f32
    %45 = vector.broadcast %cst_30 : f32 to vector<256x4xf32>
    %46 = arith.addf %45, %44 : vector<256x4xf32>
    %47 = arith.divf %45, %46 : vector<256x4xf32>
    %48 = arith.mulf %42, %47 : vector<256x4xf32>
    %49 = arith.truncf %48 : vector<256x4xf32> to vector<256x4xbf16>
    %c24 = arith.constant 24 : index
    %c0_31 = arith.constant 0 : index
    %50 = vector.load %arg19[%c24, %c0_31] : memref<304x4xbf16, #tpu.memory_space<vmem>>, vector<256x4xbf16>
    tpu.vector_store %arg19[%c24, %c0_31], %49 {strides = array<i32>} : memref<304x4xbf16, #tpu.memory_space<vmem>>, vector<256x4xbf16>,
    %c7 = arith.constant 7 : index
    %c0_32 = arith.constant 0 : index
    %51 = vector.load %arg19[%c7, %c0_32] : memref<304x4xbf16, #tpu.memory_space<vmem>>, vector<256x4xbf16>
    %c0_33 = arith.constant 0 : index
    %c0_34 = arith.constant 0 : index
    %c0_35 = arith.constant 0 : index
    %52 = vector.load %arg8[%c0_33, %c0_34, %c0_35] : memref<9x4x8xbf16, #tpu.memory_space<vmem>>, vector<1x4x8xbf16>
    %53 = vector.shape_cast %52 : vector<1x4x8xbf16> to vector<4x8xbf16>
    %cst_36 = arith.constant dense<0.000000e+00> : vector<256x8xf32>
    %54 = tpu.matmul %51, %53, %cst_36 {dimension_numbers = #tpu.dot_dimension_numbers<[1], [0], [0], [1], [0, 0, 1, 1], [], []>} : vector<256x4xbf16>, vector<4x8xbf16>, vector<256x8xf32> -> vector<256x8xf32>
    %c23 = arith.constant 23 : index
    %c0_37 = arith.constant 0 : index
    %55 = vector.load %arg19[%c23, %c0_37] : memref<304x4xbf16, #tpu.memory_space<vmem>>, vector<256x4xbf16>
    %c3 = arith.constant 3 : index
    %c0_38 = arith.constant 0 : index
    %c0_39 = arith.constant 0 : index
    %56 = vector.load %arg8[%c3, %c0_38, %c0_39] : memref<9x4x8xbf16, #tpu.memory_space<vmem>>, vector<1x4x8xbf16>
    %57 = vector.shape_cast %56 : vector<1x4x8xbf16> to vector<4x8xbf16>
    %cst_40 = arith.constant dense<0.000000e+00> : vector<256x8xf32>
    %58 = tpu.matmul %55, %57, %cst_40 {dimension_numbers = #tpu.dot_dimension_numbers<[1], [0], [0], [1], [0, 0, 1, 1], [], []>} : vector<256x4xbf16>, vector<4x8xbf16>, vector<256x8xf32> -> vector<256x8xf32>
    %59 = arith.addf %54, %58 : vector<256x8xf32>
    %c39 = arith.constant 39 : index
    %c0_41 = arith.constant 0 : index
    %60 = vector.load %arg19[%c39, %c0_41] : memref<304x4xbf16, #tpu.memory_space<vmem>>, vector<256x4xbf16>
    %c6 = arith.constant 6 : index
    %c0_42 = arith.constant 0 : index
    %c0_43 = arith.constant 0 : index
    %61 = vector.load %arg8[%c6, %c0_42, %c0_43] : memref<9x4x8xbf16, #tpu.memory_space<vmem>>, vector<1x4x8xbf16>
    %62 = vector.shape_cast %61 : vector<1x4x8xbf16> to vector<4x8xbf16>
    %cst_44 = arith.constant dense<0.000000e+00> : vector<256x8xf32>
    %63 = tpu.matmul %60, %62, %cst_44 {dimension_numbers = #tpu.dot_dimension_numbers<[1], [0], [0], [1], [0, 0, 1, 1], [], []>} : vector<256x4xbf16>, vector<4x8xbf16>, vector<256x8xf32> -> vector<256x8xf32>
    %64 = arith.addf %59, %63 : vector<256x8xf32>
    %65 = vector.broadcast %2 : vector<256x1xf32> to vector<256x8xf32>
    %66 = arith.mulf %64, %65 : vector<256x8xf32>
    %c8 = arith.constant 8 : index
    %c0_45 = arith.constant 0 : index
    %67 = vector.load %arg19[%c8, %c0_45] : memref<304x4xbf16, #tpu.memory_space<vmem>>, vector<256x4xbf16>
    %c1 = arith.constant 1 : index
    %c0_46 = arith.constant 0 : index
    %c0_47 = arith.constant 0 : index
    %68 = vector.load %arg8[%c1, %c0_46, %c0_47] : memref<9x4x8xbf16, #tpu.memory_space<vmem>>, vector<1x4x8xbf16>
    %69 = vector.shape_cast %68 : vector<1x4x8xbf16> to vector<4x8xbf16>
    %cst_48 = arith.constant dense<0.000000e+00> : vector<256x8xf32>
    %70 = tpu.matmul %67, %69, %cst_48 {dimension_numbers = #tpu.dot_dimension_numbers<[1], [0], [0], [1], [0, 0, 1, 1], [], []>} : vector<256x4xbf16>, vector<4x8xbf16>, vector<256x8xf32> -> vector<256x8xf32>
    %c24_49 = arith.constant 24 : index
    %c0_50 = arith.constant 0 : index
    %71 = vector.load %arg19[%c24_49, %c0_50] : memref<304x4xbf16, #tpu.memory_space<vmem>>, vector<256x4xbf16>
    %c4 = arith.constant 4 : index
    %c0_51 = arith.constant 0 : index
    %c0_52 = arith.constant 0 : index
    %72 = vector.load %arg8[%c4, %c0_51, %c0_52] : memref<9x4x8xbf16, #tpu.memory_space<vmem>>, vector<1x4x8xbf16>
    %73 = vector.shape_cast %72 : vector<1x4x8xbf16> to vector<4x8xbf16>
    %cst_53 = arith.constant dense<0.000000e+00> : vector<256x8xf32>
    %74 = tpu.matmul %71, %73, %cst_53 {dimension_numbers = #tpu.dot_dimension_numbers<[1], [0], [0], [1], [0, 0, 1, 1], [], []>} : vector<256x4xbf16>, vector<4x8xbf16>, vector<256x8xf32> -> vector<256x8xf32>
    %75 = arith.addf %70, %74 : vector<256x8xf32>
    %c40 = arith.constant 40 : index
    %c0_54 = arith.constant 0 : index
    %76 = vector.load %arg19[%c40, %c0_54] : memref<304x4xbf16, #tpu.memory_space<vmem>>, vector<256x4xbf16>
    %c7_55 = arith.constant 7 : index
    %c0_56 = arith.constant 0 : index
    %c0_57 = arith.constant 0 : index
    %77 = vector.load %arg8[%c7_55, %c0_56, %c0_57] : memref<9x4x8xbf16, #tpu.memory_space<vmem>>, vector<1x4x8xbf16>
    %78 = vector.shape_cast %77 : vector<1x4x8xbf16> to vector<4x8xbf16>
    %cst_58 = arith.constant dense<0.000000e+00> : vector<256x8xf32>
    %79 = tpu.matmul %76, %78, %cst_58 {dimension_numbers = #tpu.dot_dimension_numbers<[1], [0], [0], [1], [0, 0, 1, 1], [], []>} : vector<256x4xbf16>, vector<4x8xbf16>, vector<256x8xf32> -> vector<256x8xf32>
    %80 = arith.addf %75, %79 : vector<256x8xf32>
    %81 = arith.addf %66, %80 : vector<256x8xf32>
    %c9 = arith.constant 9 : index
    %c0_59 = arith.constant 0 : index
    %82 = vector.load %arg19[%c9, %c0_59] : memref<304x4xbf16, #tpu.memory_space<vmem>>, vector<256x4xbf16>
    %c2 = arith.constant 2 : index
    %c0_60 = arith.constant 0 : index
    %c0_61 = arith.constant 0 : index
    %83 = vector.load %arg8[%c2, %c0_60, %c0_61] : memref<9x4x8xbf16, #tpu.memory_space<vmem>>, vector<1x4x8xbf16>
    %84 = vector.shape_cast %83 : vector<1x4x8xbf16> to vector<4x8xbf16>
    %cst_62 = arith.constant dense<0.000000e+00> : vector<256x8xf32>
    %85 = tpu.matmul %82, %84, %cst_62 {dimension_numbers = #tpu.dot_dimension_numbers<[1], [0], [0], [1], [0, 0, 1, 1], [], []>} : vector<256x4xbf16>, vector<4x8xbf16>, vector<256x8xf32> -> vector<256x8xf32>
    %c25 = arith.constant 25 : index
    %c0_63 = arith.constant 0 : index
    %86 = vector.load %arg19[%c25, %c0_63] : memref<304x4xbf16, #tpu.memory_space<vmem>>, vector<256x4xbf16>
    %c5 = arith.constant 5 : index
    %c0_64 = arith.constant 0 : index
    %c0_65 = arith.constant 0 : index
    %87 = vector.load %arg8[%c5, %c0_64, %c0_65] : memref<9x4x8xbf16, #tpu.memory_space<vmem>>, vector<1x4x8xbf16>
    %88 = vector.shape_cast %87 : vector<1x4x8xbf16> to vector<4x8xbf16>
    %cst_66 = arith.constant dense<0.000000e+00> : vector<256x8xf32>
    %89 = tpu.matmul %86, %88, %cst_66 {dimension_numbers = #tpu.dot_dimension_numbers<[1], [0], [0], [1], [0, 0, 1, 1], [], []>} : vector<256x4xbf16>, vector<4x8xbf16>, vector<256x8xf32> -> vector<256x8xf32>
    %90 = arith.addf %85, %89 : vector<256x8xf32>
    %c41 = arith.constant 41 : index
    %c0_67 = arith.constant 0 : index
    %91 = vector.load %arg19[%c41, %c0_67] : memref<304x4xbf16, #tpu.memory_space<vmem>>, vector<256x4xbf16>
    %c8_68 = arith.constant 8 : index
    %c0_69 = arith.constant 0 : index
    %c0_70 = arith.constant 0 : index
    %92 = vector.load %arg8[%c8_68, %c0_69, %c0_70] : memref<9x4x8xbf16, #tpu.memory_space<vmem>>, vector<1x4x8xbf16>
    %93 = vector.shape_cast %92 : vector<1x4x8xbf16> to vector<4x8xbf16>
    %cst_71 = arith.constant dense<0.000000e+00> : vector<256x8xf32>
    %94 = tpu.matmul %91, %93, %cst_71 {dimension_numbers = #tpu.dot_dimension_numbers<[1], [0], [0], [1], [0, 0, 1, 1], [], []>} : vector<256x4xbf16>, vector<4x8xbf16>, vector<256x8xf32> -> vector<256x8xf32>
    %95 = arith.addf %90, %94 : vector<256x8xf32>
    %96 = vector.broadcast %3 : vector<256x1xf32> to vector<256x8xf32>
    %97 = arith.mulf %95, %96 : vector<256x8xf32>
    %98 = arith.addf %81, %97 : vector<256x8xf32>
    %c0_72 = arith.constant 0 : index
    %c0_73 = arith.constant 0 : index
    %c0_74 = arith.constant 0 : index
    %99 = vector.load %arg3[%c0_72, %c0_73, %c0_74] : memref<1x1x8xf32, #tpu.memory_space<vmem>>, vector<1x1x8xf32>
    %100 = vector.shape_cast %99 : vector<1x1x8xf32> to vector<1x8xf32>
    %101 = vector.broadcast %100 : vector<1x8xf32> to vector<256x8xf32>
    %102 = arith.addf %98, %101 : vector<256x8xf32>
    %c0_75 = arith.constant 0 : index
    %c0_76 = arith.constant 0 : index
    %c0_77 = arith.constant 0 : index
    %103 = vector.load %arg2[%c0_75, %c0_76, %c0_77] : memref<1x256x4xbf16, #tpu.memory_space<vmem>>, vector<1x256x4xbf16>
    %104 = vector.shape_cast %103 : vector<1x256x4xbf16> to vector<256x4xbf16>
    %c0_78 = arith.constant 0 : index
    %c0_79 = arith.constant 0 : index
    %105 = vector.load %arg14[%c0_78, %c0_79] : memref<4x8xbf16, #tpu.memory_space<vmem>>, vector<4x8xbf16>
    %cst_80 = arith.constant dense<0.000000e+00> : vector<256x8xf32>
    %106 = tpu.matmul %104, %105, %cst_80 {dimension_numbers = #tpu.dot_dimension_numbers<[1], [0], [0], [1], [0, 0, 1, 1], [], []>} : vector<256x4xbf16>, vector<4x8xbf16>, vector<256x8xf32> -> vector<256x8xf32>
    %107 = arith.addf %102, %106 : vector<256x8xf32>
    %cst_81 = arith.constant dense<0.000000e+00> : vector<8xf32>
    %108 = vector.multi_reduction <add>, %107, %cst_81 [0] : vector<256x8xf32> to vector<8xf32>
    %109 = vector.shape_cast %108 : vector<8xf32> to vector<1x8xf32>
    %110 = arith.mulf %107, %107 : vector<256x8xf32>
    %cst_82 = arith.constant dense<0.000000e+00> : vector<8xf32>
    %111 = vector.multi_reduction <add>, %110, %cst_82 [0] : vector<256x8xf32> to vector<8xf32>
    %112 = vector.shape_cast %111 : vector<8xf32> to vector<1x8xf32>
    %113 = tpu.concatenate %109, %112 in 0 : vector<1x8xf32>, vector<1x8xf32> -> vector<2x8xf32>
    %c0_83 = arith.constant 0 : index
    %c0_84 = arith.constant 0 : index
    %114 = vector.load %arg9[%c0_83, %c0_84] : memref<8x2xf32, #tpu.memory_space<vmem>>, vector<8x2xf32>
    %cst_85 = arith.constant dense<0.000000e+00> : vector<2x2xf32>
    %115 = tpu.matmul %113, %114, %cst_85 {dimension_numbers = #tpu.dot_dimension_numbers<[1], [0], [0], [1], [0, 0, 1, 1], [], []>} : vector<2x8xf32>, vector<8x2xf32>, vector<2x2xf32> -> vector<2x2xf32>
    %116 = vector.extract_strided_slice %115 {offsets = [0, 0], sizes = [1, 2], strides = [1, 1]} : vector<2x2xf32> to vector<1x2xf32>
    %117 = vector.extract_strided_slice %115 {offsets = [1, 0], sizes = [1, 2], strides = [1, 1]} : vector<2x2xf32> to vector<1x2xf32>
    %118 = arith.mulf %116, %116 : vector<1x2xf32>
    %119 = arith.subf %117, %118 : vector<1x2xf32>
    %cst_86 = arith.constant 0.000000e+00 : f32
    %120 = vector.broadcast %cst_86 : f32 to vector<1x2xf32>
    %121 = arith.maximumf %119, %120 : vector<1x2xf32>
    %122 = tpu.concatenate %116, %121 in 0 : vector<1x2xf32>, vector<1x2xf32> -> vector<2x2xf32>
    %c0_87 = arith.constant 0 : index
    %c0_88 = arith.constant 0 : index
    %123 = vector.load %arg10[%c0_87, %c0_88] : memref<2x8xf32, #tpu.memory_space<vmem>>, vector<2x8xf32>
    %cst_89 = arith.constant dense<0.000000e+00> : vector<2x8xf32>
    %124 = tpu.matmul %122, %123, %cst_89 {dimension_numbers = #tpu.dot_dimension_numbers<[1], [0], [0], [1], [0, 0, 1, 1], [], []>} : vector<2x2xf32>, vector<2x8xf32>, vector<2x8xf32> -> vector<2x8xf32>
    %125 = vector.extract_strided_slice %124 {offsets = [1, 0], sizes = [1, 8], strides = [1, 1]} : vector<2x8xf32> to vector<1x8xf32>
    %cst_90 = arith.constant 9.99999974E-6 : f32
    %126 = vector.broadcast %cst_90 : f32 to vector<1x8xf32>
    %127 = arith.addf %125, %126 : vector<1x8xf32>
    %128 = math.rsqrt %127 : vector<1x8xf32>
    %c0_91 = arith.constant 0 : index
    %c0_92 = arith.constant 0 : index
    %129 = vector.load %arg11[%c0_91, %c0_92] : memref<1x8xf32, #tpu.memory_space<vmem>>, vector<1x8xf32>
    %130 = arith.mulf %128, %129 : vector<1x8xf32>
    %c0_93 = arith.constant 0 : index
    %c0_94 = arith.constant 0 : index
    %131 = vector.load %arg12[%c0_93, %c0_94] : memref<1x8xf32, #tpu.memory_space<vmem>>, vector<1x8xf32>
    %132 = vector.extract_strided_slice %124 {offsets = [0, 0], sizes = [1, 8], strides = [1, 1]} : vector<2x8xf32> to vector<1x8xf32>
    %133 = arith.mulf %132, %130 : vector<1x8xf32>
    %134 = arith.subf %131, %133 : vector<1x8xf32>
    %135 = vector.broadcast %130 : vector<1x8xf32> to vector<256x8xf32>
    %136 = arith.mulf %107, %135 : vector<256x8xf32>
    %137 = vector.broadcast %134 : vector<1x8xf32> to vector<256x8xf32>
    %138 = arith.addf %136, %137 : vector<256x8xf32>
    %139 = arith.negf %138 : vector<256x8xf32>
    %140 = math.exp %139 : vector<256x8xf32>
    %cst_95 = arith.constant 1.000000e+00 : f32
    %141 = vector.broadcast %cst_95 : f32 to vector<256x8xf32>
    %142 = arith.addf %141, %140 : vector<256x8xf32>
    %143 = arith.divf %141, %142 : vector<256x8xf32>
    %144 = arith.mulf %138, %143 : vector<256x8xf32>
    %145 = arith.truncf %144 : vector<256x8xf32> to vector<256x8xbf16>
    %c24_96 = arith.constant 24 : index
    %c0_97 = arith.constant 0 : index
    %146 = vector.load %arg20[%c24_96, %c0_97] : memref<304x8xbf16, #tpu.memory_space<vmem>>, vector<256x8xbf16>
    tpu.vector_store %arg20[%c24_96, %c0_97], %145 {strides = array<i32>} : memref<304x8xbf16, #tpu.memory_space<vmem>>, vector<256x8xbf16>,
    %c7_98 = arith.constant 7 : index
    %c0_99 = arith.constant 0 : index
    %147 = vector.load %arg20[%c7_98, %c0_99] : memref<304x8xbf16, #tpu.memory_space<vmem>>, vector<256x8xbf16>
    %c0_100 = arith.constant 0 : index
    %c0_101 = arith.constant 0 : index
    %c0_102 = arith.constant 0 : index
    %148 = vector.load %arg13[%c0_100, %c0_101, %c0_102] : memref<9x8x8xbf16, #tpu.memory_space<vmem>>, vector<1x8x8xbf16>
    %149 = vector.shape_cast %148 : vector<1x8x8xbf16> to vector<8x8xbf16>
    %cst_103 = arith.constant dense<0.000000e+00> : vector<256x8xf32>
    %150 = tpu.matmul %147, %149, %cst_103 {dimension_numbers = #tpu.dot_dimension_numbers<[1], [0], [0], [1], [0, 0, 1, 1], [], []>} : vector<256x8xbf16>, vector<8x8xbf16>, vector<256x8xf32> -> vector<256x8xf32>
    %c23_104 = arith.constant 23 : index
    %c0_105 = arith.constant 0 : index
    %151 = vector.load %arg20[%c23_104, %c0_105] : memref<304x8xbf16, #tpu.memory_space<vmem>>, vector<256x8xbf16>
    %c3_106 = arith.constant 3 : index
    %c0_107 = arith.constant 0 : index
    %c0_108 = arith.constant 0 : index
    %152 = vector.load %arg13[%c3_106, %c0_107, %c0_108] : memref<9x8x8xbf16, #tpu.memory_space<vmem>>, vector<1x8x8xbf16>
    %153 = vector.shape_cast %152 : vector<1x8x8xbf16> to vector<8x8xbf16>
    %cst_109 = arith.constant dense<0.000000e+00> : vector<256x8xf32>
    %154 = tpu.matmul %151, %153, %cst_109 {dimension_numbers = #tpu.dot_dimension_numbers<[1], [0], [0], [1], [0, 0, 1, 1], [], []>} : vector<256x8xbf16>, vector<8x8xbf16>, vector<256x8xf32> -> vector<256x8xf32>
    %155 = arith.addf %150, %154 : vector<256x8xf32>
    %c39_110 = arith.constant 39 : index
    %c0_111 = arith.constant 0 : index
    %156 = vector.load %arg20[%c39_110, %c0_111] : memref<304x8xbf16, #tpu.memory_space<vmem>>, vector<256x8xbf16>
    %c6_112 = arith.constant 6 : index
    %c0_113 = arith.constant 0 : index
    %c0_114 = arith.constant 0 : index
    %157 = vector.load %arg13[%c6_112, %c0_113, %c0_114] : memref<9x8x8xbf16, #tpu.memory_space<vmem>>, vector<1x8x8xbf16>
    %158 = vector.shape_cast %157 : vector<1x8x8xbf16> to vector<8x8xbf16>
    %cst_115 = arith.constant dense<0.000000e+00> : vector<256x8xf32>
    %159 = tpu.matmul %156, %158, %cst_115 {dimension_numbers = #tpu.dot_dimension_numbers<[1], [0], [0], [1], [0, 0, 1, 1], [], []>} : vector<256x8xbf16>, vector<8x8xbf16>, vector<256x8xf32> -> vector<256x8xf32>
    %160 = arith.addf %155, %159 : vector<256x8xf32>
    %161 = vector.broadcast %2 : vector<256x1xf32> to vector<256x8xf32>
    %162 = arith.mulf %160, %161 : vector<256x8xf32>
    %c8_116 = arith.constant 8 : index
    %c0_117 = arith.constant 0 : index
    %163 = vector.load %arg20[%c8_116, %c0_117] : memref<304x8xbf16, #tpu.memory_space<vmem>>, vector<256x8xbf16>
    %c1_118 = arith.constant 1 : index
    %c0_119 = arith.constant 0 : index
    %c0_120 = arith.constant 0 : index
    %164 = vector.load %arg13[%c1_118, %c0_119, %c0_120] : memref<9x8x8xbf16, #tpu.memory_space<vmem>>, vector<1x8x8xbf16>
    %165 = vector.shape_cast %164 : vector<1x8x8xbf16> to vector<8x8xbf16>
    %cst_121 = arith.constant dense<0.000000e+00> : vector<256x8xf32>
    %166 = tpu.matmul %163, %165, %cst_121 {dimension_numbers = #tpu.dot_dimension_numbers<[1], [0], [0], [1], [0, 0, 1, 1], [], []>} : vector<256x8xbf16>, vector<8x8xbf16>, vector<256x8xf32> -> vector<256x8xf32>
    %c24_122 = arith.constant 24 : index
    %c0_123 = arith.constant 0 : index
    %167 = vector.load %arg20[%c24_122, %c0_123] : memref<304x8xbf16, #tpu.memory_space<vmem>>, vector<256x8xbf16>
    %c4_124 = arith.constant 4 : index
    %c0_125 = arith.constant 0 : index
    %c0_126 = arith.constant 0 : index
    %168 = vector.load %arg13[%c4_124, %c0_125, %c0_126] : memref<9x8x8xbf16, #tpu.memory_space<vmem>>, vector<1x8x8xbf16>
    %169 = vector.shape_cast %168 : vector<1x8x8xbf16> to vector<8x8xbf16>
    %cst_127 = arith.constant dense<0.000000e+00> : vector<256x8xf32>
    %170 = tpu.matmul %167, %169, %cst_127 {dimension_numbers = #tpu.dot_dimension_numbers<[1], [0], [0], [1], [0, 0, 1, 1], [], []>} : vector<256x8xbf16>, vector<8x8xbf16>, vector<256x8xf32> -> vector<256x8xf32>
    %171 = arith.addf %166, %170 : vector<256x8xf32>
    %c40_128 = arith.constant 40 : index
    %c0_129 = arith.constant 0 : index
    %172 = vector.load %arg20[%c40_128, %c0_129] : memref<304x8xbf16, #tpu.memory_space<vmem>>, vector<256x8xbf16>
    %c7_130 = arith.constant 7 : index
    %c0_131 = arith.constant 0 : index
    %c0_132 = arith.constant 0 : index
    %173 = vector.load %arg13[%c7_130, %c0_131, %c0_132] : memref<9x8x8xbf16, #tpu.memory_space<vmem>>, vector<1x8x8xbf16>
    %174 = vector.shape_cast %173 : vector<1x8x8xbf16> to vector<8x8xbf16>
    %cst_133 = arith.constant dense<0.000000e+00> : vector<256x8xf32>
    %175 = tpu.matmul %172, %174, %cst_133 {dimension_numbers = #tpu.dot_dimension_numbers<[1], [0], [0], [1], [0, 0, 1, 1], [], []>} : vector<256x8xbf16>, vector<8x8xbf16>, vector<256x8xf32> -> vector<256x8xf32>
    %176 = arith.addf %171, %175 : vector<256x8xf32>
    %177 = arith.addf %162, %176 : vector<256x8xf32>
    %c9_134 = arith.constant 9 : index
    %c0_135 = arith.constant 0 : index
    %178 = vector.load %arg20[%c9_134, %c0_135] : memref<304x8xbf16, #tpu.memory_space<vmem>>, vector<256x8xbf16>
    %c2_136 = arith.constant 2 : index
    %c0_137 = arith.constant 0 : index
    %c0_138 = arith.constant 0 : index
    %179 = vector.load %arg13[%c2_136, %c0_137, %c0_138] : memref<9x8x8xbf16, #tpu.memory_space<vmem>>, vector<1x8x8xbf16>
    %180 = vector.shape_cast %179 : vector<1x8x8xbf16> to vector<8x8xbf16>
    %cst_139 = arith.constant dense<0.000000e+00> : vector<256x8xf32>
    %181 = tpu.matmul %178, %180, %cst_139 {dimension_numbers = #tpu.dot_dimension_numbers<[1], [0], [0], [1], [0, 0, 1, 1], [], []>} : vector<256x8xbf16>, vector<8x8xbf16>, vector<256x8xf32> -> vector<256x8xf32>
    %c25_140 = arith.constant 25 : index
    %c0_141 = arith.constant 0 : index
    %182 = vector.load %arg20[%c25_140, %c0_141] : memref<304x8xbf16, #tpu.memory_space<vmem>>, vector<256x8xbf16>
    %c5_142 = arith.constant 5 : index
    %c0_143 = arith.constant 0 : index
    %c0_144 = arith.constant 0 : index
    %183 = vector.load %arg13[%c5_142, %c0_143, %c0_144] : memref<9x8x8xbf16, #tpu.memory_space<vmem>>, vector<1x8x8xbf16>
    %184 = vector.shape_cast %183 : vector<1x8x8xbf16> to vector<8x8xbf16>
    %cst_145 = arith.constant dense<0.000000e+00> : vector<256x8xf32>
    %185 = tpu.matmul %182, %184, %cst_145 {dimension_numbers = #tpu.dot_dimension_numbers<[1], [0], [0], [1], [0, 0, 1, 1], [], []>} : vector<256x8xbf16>, vector<8x8xbf16>, vector<256x8xf32> -> vector<256x8xf32>
    %186 = arith.addf %181, %185 : vector<256x8xf32>
    %c41_146 = arith.constant 41 : index
    %c0_147 = arith.constant 0 : index
    %187 = vector.load %arg20[%c41_146, %c0_147] : memref<304x8xbf16, #tpu.memory_space<vmem>>, vector<256x8xbf16>
    %c8_148 = arith.constant 8 : index
    %c0_149 = arith.constant 0 : index
    %c0_150 = arith.constant 0 : index
    %188 = vector.load %arg13[%c8_148, %c0_149, %c0_150] : memref<9x8x8xbf16, #tpu.memory_space<vmem>>, vector<1x8x8xbf16>
    %189 = vector.shape_cast %188 : vector<1x8x8xbf16> to vector<8x8xbf16>
    %cst_151 = arith.constant dense<0.000000e+00> : vector<256x8xf32>
    %190 = tpu.matmul %187, %189, %cst_151 {dimension_numbers = #tpu.dot_dimension_numbers<[1], [0], [0], [1], [0, 0, 1, 1], [], []>} : vector<256x8xbf16>, vector<8x8xbf16>, vector<256x8xf32> -> vector<256x8xf32>
    %191 = arith.addf %186, %190 : vector<256x8xf32>
    %192 = vector.broadcast %3 : vector<256x1xf32> to vector<256x8xf32>
    %193 = arith.mulf %191, %192 : vector<256x8xf32>
    %194 = arith.addf %177, %193 : vector<256x8xf32>
    %195 = arith.truncf %1 : vector<256x4xf32> to vector<256x4xbf16>
    %c0_152 = arith.constant 0 : index
    %c0_153 = arith.constant 0 : index
    %196 = vector.load %arg17[%c0_152, %c0_153] : memref<4x8xbf16, #tpu.memory_space<vmem>>, vector<4x8xbf16>
    %cst_154 = arith.constant dense<0.000000e+00> : vector<256x8xf32>
    %197 = tpu.matmul %195, %196, %cst_154 {dimension_numbers = #tpu.dot_dimension_numbers<[1], [0], [0], [1], [0, 0, 1, 1], [], []>} : vector<256x4xbf16>, vector<4x8xbf16>, vector<256x8xf32> -> vector<256x8xf32>
    %198 = arith.addf %197, %194 : vector<256x8xf32>
    %c0_155 = arith.constant 0 : index
    %c0_156 = arith.constant 0 : index
    %c0_157 = arith.constant 0 : index
    %199 = vector.load %arg18[%c0_155, %c0_156, %c0_157] : memref<1x256x8xf32, #tpu.memory_space<vmem>>, vector<1x256x8xf32>
    %200 = vector.shape_cast %199 : vector<1x256x8xf32> to vector<256x8xf32>
    %201 = vector.shape_cast %198 : vector<256x8xf32> to vector<1x256x8xf32>
    tpu.vector_store %arg18[%c0_155, %c0_156, %c0_157], %201 {strides = array<i32>} : memref<1x256x8xf32, #tpu.memory_space<vmem>>, vector<1x256x8xf32>,
    return
  }
  func.func @transform_0(%arg0: i32) -> (i32, i32, i32) {
    %c0_i32 = arith.constant 0 : i32
    %c0_i32_0 = arith.constant 0 : i32
    %c0_i32_1 = arith.constant 0 : i32
    return %arg0, %c0_i32, %c0_i32_0 : i32, i32, i32
  }
  func.func @transform_1(%arg0: i32) -> (i32, i32, i32) {
    %c0_i32 = arith.constant 0 : i32
    %c0_i32_0 = arith.constant 0 : i32
    %c0_i32_1 = arith.constant 0 : i32
    return %arg0, %c0_i32, %c0_i32_0 : i32, i32, i32
  }
  func.func @transform_2(%arg0: i32) -> (i32, i32, i32) {
    %c0_i32 = arith.constant 0 : i32
    %c0_i32_0 = arith.constant 0 : i32
    %c0_i32_1 = arith.constant 0 : i32
    return %arg0, %c0_i32, %c0_i32_0 : i32, i32, i32
  }
  func.func @transform_3(%arg0: i32) -> (i32, i32) {
    %c0_i32 = arith.constant 0 : i32
    %c0_i32_0 = arith.constant 0 : i32
    %c0_i32_1 = arith.constant 0 : i32
    return %c0_i32, %c0_i32_0 : i32, i32
  }
  func.func @transform_4(%arg0: i32) -> (i32, i32) {
    %c0_i32 = arith.constant 0 : i32
    %c0_i32_0 = arith.constant 0 : i32
    %c0_i32_1 = arith.constant 0 : i32
    return %c0_i32, %c0_i32_0 : i32, i32
  }
  func.func @transform_5(%arg0: i32) -> (i32, i32) {
    %c0_i32 = arith.constant 0 : i32
    %c0_i32_0 = arith.constant 0 : i32
    %c0_i32_1 = arith.constant 0 : i32
    return %c0_i32, %c0_i32_0 : i32, i32
  }
  func.func @transform_6(%arg0: i32) -> (i32, i32) {
    %c0_i32 = arith.constant 0 : i32
    %c0_i32_0 = arith.constant 0 : i32
    %c0_i32_1 = arith.constant 0 : i32
    return %c0_i32, %c0_i32_0 : i32, i32
  }
  func.func @transform_7(%arg0: i32) -> (i32, i32, i32) {
    %c0_i32 = arith.constant 0 : i32
    %c0_i32_0 = arith.constant 0 : i32
    %c0_i32_1 = arith.constant 0 : i32
    %c0_i32_2 = arith.constant 0 : i32
    return %c0_i32, %c0_i32_0, %c0_i32_1 : i32, i32, i32
  }
  func.func @transform_8(%arg0: i32) -> (i32, i32) {
    %c0_i32 = arith.constant 0 : i32
    %c0_i32_0 = arith.constant 0 : i32
    %c0_i32_1 = arith.constant 0 : i32
    return %c0_i32, %c0_i32_0 : i32, i32
  }
  func.func @transform_9(%arg0: i32) -> (i32, i32) {
    %c0_i32 = arith.constant 0 : i32
    %c0_i32_0 = arith.constant 0 : i32
    %c0_i32_1 = arith.constant 0 : i32
    return %c0_i32, %c0_i32_0 : i32, i32
  }
  func.func @transform_10(%arg0: i32) -> (i32, i32) {
    %c0_i32 = arith.constant 0 : i32
    %c0_i32_0 = arith.constant 0 : i32
    %c0_i32_1 = arith.constant 0 : i32
    return %c0_i32, %c0_i32_0 : i32, i32
  }
  func.func @transform_11(%arg0: i32) -> (i32, i32) {
    %c0_i32 = arith.constant 0 : i32
    %c0_i32_0 = arith.constant 0 : i32
    %c0_i32_1 = arith.constant 0 : i32
    return %c0_i32, %c0_i32_0 : i32, i32
  }
  func.func @transform_12(%arg0: i32) -> (i32, i32, i32) {
    %c0_i32 = arith.constant 0 : i32
    %c0_i32_0 = arith.constant 0 : i32
    %c0_i32_1 = arith.constant 0 : i32
    %c0_i32_2 = arith.constant 0 : i32
    return %c0_i32, %c0_i32_0, %c0_i32_1 : i32, i32, i32
  }
  func.func @transform_13(%arg0: i32) -> (i32, i32) {
    %c0_i32 = arith.constant 0 : i32
    %c0_i32_0 = arith.constant 0 : i32
    %c0_i32_1 = arith.constant 0 : i32
    return %c0_i32, %c0_i32_0 : i32, i32
  }
  func.func @transform_14(%arg0: i32) -> (i32, i32) {
    %c0_i32 = arith.constant 0 : i32
    %c0_i32_0 = arith.constant 0 : i32
    %c0_i32_1 = arith.constant 0 : i32
    return %c0_i32, %c0_i32_0 : i32, i32
  }
  func.func @transform_15(%arg0: i32) -> (i32, i32) {
    %c0_i32 = arith.constant 0 : i32
    %c0_i32_0 = arith.constant 0 : i32
    %c0_i32_1 = arith.constant 0 : i32
    return %c0_i32, %c0_i32_0 : i32, i32
  }
  func.func @transform_16(%arg0: i32) -> (i32, i32) {
    %c0_i32 = arith.constant 0 : i32
    %c0_i32_0 = arith.constant 0 : i32
    %c0_i32_1 = arith.constant 0 : i32
    return %c0_i32, %c0_i32_0 : i32, i32
  }
  func.func @transform_17(%arg0: i32) -> (i32, i32, i32) {
    %c0_i32 = arith.constant 0 : i32
    %c0_i32_0 = arith.constant 0 : i32
    %c0_i32_1 = arith.constant 0 : i32
    return %arg0, %c0_i32, %c0_i32_0 : i32, i32, i32
  }
}

</mosaic_0001>

<llo_original>
// kernel: resnet_block_pallas.1
$region0: #{resnet_block_pallas.1}
  #allocation0 [shape = 'u32[]', space=smem, size = 0x4, offset = 0x4, fixed_abs, tag = 'smem constant byte address 0x4 - core index']
  #allocation1 [shape = 'u32[144,128]{1,0:T(1,128)}', space=vmem, size = 0x12000, scoped, tag = 'internal scratch']
  #allocation2 [shape = 'bf16[304,4]{1,0:T(16,128)(2,1)}', space=vmem, size = 0x13000, scoped, tag = 'scratch operand']
  #allocation3 [shape = 'bf16[304,8]{1,0:T(16,128)(2,1)}', space=vmem, size = 0x13000, scoped, tag = 'scratch operand']
  %s0 = inlined_call_operand.vmem [shape: f32[2,256,4], index: 0, kind: input, shape index: {}]
  %s1 = inlined_call_operand.vmem [shape: bf16[2,256,4], index: 1, kind: input, shape index: {}]
  %s2 = inlined_call_operand.vmem [shape: f32[2,1,8], index: 2, kind: input, shape index: {}]
  %s3 = inlined_call_operand.vmem [shape: f32[4,1], index: 3, kind: input, shape index: {}]
  %s4 = inlined_call_operand.vmem [shape: f32[1,4], index: 4, kind: input, shape index: {}]
  %s5 = inlined_call_operand.vmem [shape: f32[1,4], index: 5, kind: input, shape index: {}]
  %s6 = inlined_call_operand.vmem [shape: f32[1,4], index: 6, kind: input, shape index: {}]
  %s7 = inlined_call_operand.vmem [shape: bf16[9,4,8], index: 7, kind: input, shape index: {}]
  %s8 = inlined_call_operand.vmem [shape: f32[8,2], index: 8, kind: input, shape index: {}]
  %s9 = inlined_call_operand.vmem [shape: f32[2,8], index: 9, kind: input, shape index: {}]
  %s10 = inlined_call_operand.vmem [shape: f32[1,8], index: 10, kind: input, shape index: {}]
  %s11 = inlined_call_operand.vmem [shape: f32[1,8], index: 11, kind: input, shape index: {}]
  %s12 = inlined_call_operand.vmem [shape: bf16[9,8,8], index: 12, kind: input, shape index: {}]
  %s13 = inlined_call_operand.vmem [shape: bf16[4,8], index: 13, kind: input, shape index: {}]
  %s14 = inlined_call_operand.vmem [shape: f32[256,1], index: 14, kind: input, shape index: {}]
  %s15 = inlined_call_operand.vmem [shape: f32[256,1], index: 15, kind: input, shape index: {}]
  %s16 = inlined_call_operand.vmem [shape: bf16[4,8], index: 16, kind: input, shape index: {}]
  %s17 = inlined_call_operand.vmem [shape: f32[2,256,8], index: 17, kind: output, shape index: {}]
  %s18 = sld [smem:[#allocation0]]
  $region101: #{resnet_block_pallas.1} parent=0
    _
  %s20 = ssub.s32 1, %s18
  %s21 = scalar_select 0, %s20, %s18
  loop: start=0, step=1, limit=4
  $region2: #{resnet_block_pallas.1} parent=0 // loop_pre_header
    _
  $region3: #{resnet_block_pallas.1} parent=0 // loop_header
    %s23 = sphi 0, %s27
    %p24 = scmp.ge.s32.totalorder %s23, 4
    %s33 = sphi 0, %s35
    %s36 = sphi 0, %s33
    %s37 = sphi 0, %s36
    %s53 = sphi 0, %s37
    %s59 = sphi 0, %s61
    %s62 = sphi 0, %s59
    %s63 = sphi 0, %s62
    %s79 = sphi 0, %s63
    %s85 = sphi 0, %s87
    %s88 = sphi 0, %s85
    %s89 = sphi 0, %s88
    %s105 = sphi 0, %s89
    %s109 = sphi 0, %s109
    %s111 = sphi 0, %s109
    %s112 = sphi 0, %s111
    %s126 = sphi 0, %s112
    %s130 = sphi 0, %s130
    %s132 = sphi 0, %s130
    %s133 = sphi 0, %s132
    %s147 = sphi 0, %s133
    %s151 = sphi 0, %s151
    %s153 = sphi 0, %s151
    %s154 = sphi 0, %s153
    %s168 = sphi 0, %s154
    %s172 = sphi 0, %s172
    %s174 = sphi 0, %s172
    %s175 = sphi 0, %s174
    %s189 = sphi 0, %s175
    %s193 = sphi 0, %s193
    %s195 = sphi 0, %s193
    %s196 = sphi 0, %s195
    %s210 = sphi 0, %s196
    %s214 = sphi 0, %s214
    %s216 = sphi 0, %s214
    %s217 = sphi 0, %s216
    %s231 = sphi 0, %s217
    %s235 = sphi 0, %s235
    %s237 = sphi 0, %s235
    %s238 = sphi 0, %s237
    %s252 = sphi 0, %s238
    %s256 = sphi 0, %s256
    %s258 = sphi 0, %s256
    %s259 = sphi 0, %s258
    %s273 = sphi 0, %s259
    %s277 = sphi 0, %s277
    %s279 = sphi 0, %s277
    %s280 = sphi 0, %s279
    %s294 = sphi 0, %s280
    %s298 = sphi 0, %s298
    %s300 = sphi 0, %s298
    %s301 = sphi 0, %s300
    %s315 = sphi 0, %s301
    %s319 = sphi 0, %s319
    %s321 = sphi 0, %s319
    %s322 = sphi 0, %s321
    %s336 = sphi 0, %s322
    %s340 = sphi 0, %s340
    %s342 = sphi 0, %s340
    %s343 = sphi 0, %s342
    %s357 = sphi 0, %s343
    %s361 = sphi 0, %s361
    %s363 = sphi 0, %s361
    %s364 = sphi 0, %s363
    %s378 = sphi 0, %s364
    %s382 = sphi 0, %s382
    %s384 = sphi 0, %s382
    %s385 = sphi 0, %s384
    %s399 = sphi 0, %s385
    %s405 = sphi 0, %s407
    %s408 = sphi 0, %s405
    %s409 = sphi 0, %s408
    %s425 = sphi 0, %s409
  $region4: #{resnet_block_pallas.1} parent=0 // loop_header_branch
    %26 = sbr.rel (%p24) target = $region8
  $region5: #{resnet_block_pallas.1} parent=0 // loop_body
    %s28 = ssub.s32 %s23, 1
    %s29 = ssub.s32 %s23, 2
    %s30 = sadd.s32 %s23, 1
    %s31 = ssub.s32 %s23, %s30
    %p32 = scmp.eq.s32.totalorder %s31, 0
    %s34 = sadd.s32 %s33, 1
    %s35 = scalar_select %p32, %s33, %s34
    %p38 = pneg %p32
    %p39 = scmp.eq.s32.totalorder %s23, 1
    %p40 = por %p38, %p39
    %p41 = scmp.ne.s32.totalorder %s33, %s36
    %p42 = scmp.eq.s32.totalorder %s23, 0
    %p43 = por %p41, %p42
    %p44 = scmp.ne.s32.totalorder %s33, %s36
    %p45 = scmp.eq.s32.totalorder %s28, 1
    %p46 = por %p44, %p45
    %p47 = scmp.ne.s32.totalorder %s36, %s37
    %p48 = scmp.eq.s32.totalorder %s28, 0
    %p49 = por %p47, %p48
    %p50 = scmp.ne.s32.totalorder %s36, %s37
    %p51 = scmp.eq.s32.totalorder %s29, 1
    %p52 = por %p50, %p51
    %p54 = scmp.ne.s32.totalorder %s37, %s53
    %p55 = scmp.eq.s32.totalorder %s29, 0
    %p56 = por %p54, %p55
    %s57 = ssub.s32 %s23, %s30
    %p58 = scmp.eq.s32.totalorder %s57, 0
    %s60 = sadd.s32 %s59, 1
    %s61 = scalar_select %p58, %s59, %s60
    %p64 = pneg %p58
    %p65 = scmp.eq.s32.totalorder %s23, 1
    %p66 = por %p64, %p65
    %p67 = scmp.ne.s32.totalorder %s59, %s62
    %p68 = scmp.eq.s32.totalorder %s23, 0
    %p69 = por %p67, %p68
    %p70 = scmp.ne.s32.totalorder %s59, %s62
    %p71 = scmp.eq.s32.totalorder %s28, 1
    %p72 = por %p70, %p71
    %p73 = scmp.ne.s32.totalorder %s62, %s63
    %p74 = scmp.eq.s32.totalorder %s28, 0
    %p75 = por %p73, %p74
    %p76 = scmp.ne.s32.totalorder %s62, %s63
    %p77 = scmp.eq.s32.totalorder %s29, 1
    %p78 = por %p76, %p77
    %p80 = scmp.ne.s32.totalorder %s63, %s79
    %p81 = scmp.eq.s32.totalorder %s29, 0
    %p82 = por %p80, %p81
    %s83 = ssub.s32 %s23, %s30
    %p84 = scmp.eq.s32.totalorder %s83, 0
    %s86 = sadd.s32 %s85, 1
    %s87 = scalar_select %p84, %s85, %s86
    %p90 = pneg %p84
    %p91 = scmp.eq.s32.totalorder %s23, 1
    %p92 = por %p90, %p91
    %p93 = scmp.ne.s32.totalorder %s85, %s88
    %p94 = scmp.eq.s32.totalorder %s23, 0
    %p95 = por %p93, %p94
    %p96 = scmp.ne.s32.totalorder %s85, %s88
    %p97 = scmp.eq.s32.totalorder %s28, 1
    %p98 = por %p96, %p97
    %p99 = scmp.ne.s32.totalorder %s88, %s89
    %p100 = scmp.eq.s32.totalorder %s28, 0
    %p101 = por %p99, %p100
    %p102 = scmp.ne.s32.totalorder %s88, %s89
    %p103 = scmp.eq.s32.totalorder %s29, 1
    %p104 = por %p102, %p103
    %p106 = scmp.ne.s32.totalorder %s89, %s105
    %p107 = scmp.eq.s32.totalorder %s29, 0
    %p108 = por %p106, %p107
    %s110 = sadd.s32 %s109, 1
    %p113 = scmp.eq.s32.totalorder %s23, 1
    %p114 = scmp.ne.s32.totalorder %s109, %s111
    %p115 = scmp.eq.s32.totalorder %s23, 0
    %p116 = por %p114, %p115
    %p117 = scmp.ne.s32.totalorder %s109, %s111
    %p118 = scmp.eq.s32.totalorder %s28, 1
    %p119 = por %p117, %p118
    %p120 = scmp.ne.s32.totalorder %s111, %s112
    %p121 = scmp.eq.s32.totalorder %s28, 0
    %p122 = por %p120, %p121
    %p123 = scmp.ne.s32.totalorder %s111, %s112
    %p124 = scmp.eq.s32.totalorder %s29, 1
    %p125 = por %p123, %p124
    %p127 = scmp.ne.s32.totalorder %s112, %s126
    %p128 = scmp.eq.s32.totalorder %s29, 0
    %p129 = por %p127, %p128
    %s131 = sadd.s32 %s130, 1
    %p134 = scmp.eq.s32.totalorder %s23, 1
    %p135 = scmp.ne.s32.totalorder %s130, %s132
    %p136 = scmp.eq.s32.totalorder %s23, 0
    %p137 = por %p135, %p136
    %p138 = scmp.ne.s32.totalorder %s130, %s132
    %p139 = scmp.eq.s32.totalorder %s28, 1
    %p140 = por %p138, %p139
    %p141 = scmp.ne.s32.totalorder %s132, %s133
    %p142 = scmp.eq.s32.totalorder %s28, 0
    %p143 = por %p141, %p142
    %p144 = scmp.ne.s32.totalorder %s132, %s133
    %p145 = scmp.eq.s32.totalorder %s29, 1
    %p146 = por %p144, %p145
    %p148 = scmp.ne.s32.totalorder %s133, %s147
    %p149 = scmp.eq.s32.totalorder %s29, 0
    %p150 = por %p148, %p149
    %s152 = sadd.s32 %s151, 1
    %p155 = scmp.eq.s32.totalorder %s23, 1
    %p156 = scmp.ne.s32.totalorder %s151, %s153
    %p157 = scmp.eq.s32.totalorder %s23, 0
    %p158 = por %p156, %p157
    %p159 = scmp.ne.s32.totalorder %s151, %s153
    %p160 = scmp.eq.s32.totalorder %s28, 1
    %p161 = por %p159, %p160
    %p162 = scmp.ne.s32.totalorder %s153, %s154
    %p163 = scmp.eq.s32.totalorder %s28, 0
    %p164 = por %p162, %p163
    %p165 = scmp.ne.s32.totalorder %s153, %s154
    %p166 = scmp.eq.s32.totalorder %s29, 1
    %p167 = por %p165, %p166
    %p169 = scmp.ne.s32.totalorder %s154, %s168
    %p170 = scmp.eq.s32.totalorder %s29, 0
    %p171 = por %p169, %p170
    %s173 = sadd.s32 %s172, 1
    %p176 = scmp.eq.s32.totalorder %s23, 1
    %p177 = scmp.ne.s32.totalorder %s172, %s174
    %p178 = scmp.eq.s32.totalorder %s23, 0
    %p179 = por %p177, %p178
    %p180 = scmp.ne.s32.totalorder %s172, %s174
    %p181 = scmp.eq.s32.totalorder %s28, 1
    %p182 = por %p180, %p181
    %p183 = scmp.ne.s32.totalorder %s174, %s175
    %p184 = scmp.eq.s32.totalorder %s28, 0
    %p185 = por %p183, %p184
    %p186 = scmp.ne.s32.totalorder %s174, %s175
    %p187 = scmp.eq.s32.totalorder %s29, 1
    %p188 = por %p186, %p187
    %p190 = scmp.ne.s32.totalorder %s175, %s189
    %p191 = scmp.eq.s32.totalorder %s29, 0
    %p192 = por %p190, %p191
    %s194 = sadd.s32 %s193, 1
    %p197 = scmp.eq.s32.totalorder %s23, 1
    %p198 = scmp.ne.s32.totalorder %s193, %s195
    %p199 = scmp.eq.s32.totalorder %s23, 0
    %p200 = por %p198, %p199
    %p201 = scmp.ne.s32.totalorder %s193, %s195
    %p202 = scmp.eq.s32.totalorder %s28, 1
    %p203 = por %p201, %p202
    %p204 = scmp.ne.s32.totalorder %s195, %s196
    %p205 = scmp.eq.s32.totalorder %s28, 0
    %p206 = por %p204, %p205
    %p207 = scmp.ne.s32.totalorder %s195, %s196
    %p208 = scmp.eq.s32.totalorder %s29, 1
    %p209 = por %p207, %p208
    %p211 = scmp.ne.s32.totalorder %s196, %s210
    %p212 = scmp.eq.s32.totalorder %s29, 0
    %p213 = por %p211, %p212
    %s215 = sadd.s32 %s214, 1
    %p218 = scmp.eq.s32.totalorder %s23, 1
    %p219 = scmp.ne.s32.totalorder %s214, %s216
    %p220 = scmp.eq.s32.totalorder %s23, 0
    %p221 = por %p219, %p220
    %p222 = scmp.ne.s32.totalorder %s214, %s216
    %p223 = scmp.eq.s32.totalorder %s28, 1
    %p224 = por %p222, %p223
    %p225 = scmp.ne.s32.totalorder %s216, %s217
    %p226 = scmp.eq.s32.totalorder %s28, 0
    %p227 = por %p225, %p226
    %p228 = scmp.ne.s32.totalorder %s216, %s217
    %p229 = scmp.eq.s32.totalorder %s29, 1
    %p230 = por %p228, %p229
    %p232 = scmp.ne.s32.totalorder %s217, %s231
    %p233 = scmp.eq.s32.totalorder %s29, 0
    %p234 = por %p232, %p233
    %s236 = sadd.s32 %s235, 1
    %p239 = scmp.eq.s32.totalorder %s23, 1
    %p240 = scmp.ne.s32.totalorder %s235, %s237
    %p241 = scmp.eq.s32.totalorder %s23, 0
    %p242 = por %p240, %p241
    %p243 = scmp.ne.s32.totalorder %s235, %s237
    %p244 = scmp.eq.s32.totalorder %s28, 1
    %p245 = por %p243, %p244
    %p246 = scmp.ne.s32.totalorder %s237, %s238
    %p247 = scmp.eq.s32.totalorder %s28, 0
    %p248 = por %p246, %p247
    %p249 = scmp.ne.s32.totalorder %s237, %s238
    %p250 = scmp.eq.s32.totalorder %s29, 1
    %p251 = por %p249, %p250
    %p253 = scmp.ne.s32.totalorder %s238, %s252
    %p254 = scmp.eq.s32.totalorder %s29, 0
    %p255 = por %p253, %p254
    %s257 = sadd.s32 %s256, 1
    %p260 = scmp.eq.s32.totalorder %s23, 1
    %p261 = scmp.ne.s32.totalorder %s256, %s258
    %p262 = scmp.eq.s32.totalorder %s23, 0
    %p263 = por %p261, %p262
    %p264 = scmp.ne.s32.totalorder %s256, %s258
    %p265 = scmp.eq.s32.totalorder %s28, 1
    %p266 = por %p264, %p265
    %p267 = scmp.ne.s32.totalorder %s258, %s259
    %p268 = scmp.eq.s32.totalorder %s28, 0
    %p269 = por %p267, %p268
    %p270 = scmp.ne.s32.totalorder %s258, %s259
    %p271 = scmp.eq.s32.totalorder %s29, 1
    %p272 = por %p270, %p271
    %p274 = scmp.ne.s32.totalorder %s259, %s273
    %p275 = scmp.eq.s32.totalorder %s29, 0
    %p276 = por %p274, %p275
    %s278 = sadd.s32 %s277, 1
    %p281 = scmp.eq.s32.totalorder %s23, 1
    %p282 = scmp.ne.s32.totalorder %s277, %s279
    %p283 = scmp.eq.s32.totalorder %s23, 0
    %p284 = por %p282, %p283
    %p285 = scmp.ne.s32.totalorder %s277, %s279
    %p286 = scmp.eq.s32.totalorder %s28, 1
    %p287 = por %p285, %p286
    %p288 = scmp.ne.s32.totalorder %s279, %s280
    %p289 = scmp.eq.s32.totalorder %s28, 0
    %p290 = por %p288, %p289
    %p291 = scmp.ne.s32.totalorder %s279, %s280
    %p292 = scmp.eq.s32.totalorder %s29, 1
    %p293 = por %p291, %p292
    %p295 = scmp.ne.s32.totalorder %s280, %s294
    %p296 = scmp.eq.s32.totalorder %s29, 0
    %p297 = por %p295, %p296
    %s299 = sadd.s32 %s298, 1
    %p302 = scmp.eq.s32.totalorder %s23, 1
    %p303 = scmp.ne.s32.totalorder %s298, %s300
    %p304 = scmp.eq.s32.totalorder %s23, 0
    %p305 = por %p303, %p304
    %p306 = scmp.ne.s32.totalorder %s298, %s300
    %p307 = scmp.eq.s32.totalorder %s28, 1
    %p308 = por %p306, %p307
    %p309 = scmp.ne.s32.totalorder %s300, %s301
    %p310 = scmp.eq.s32.totalorder %s28, 0
    %p311 = por %p309, %p310
    %p312 = scmp.ne.s32.totalorder %s300, %s301
    %p313 = scmp.eq.s32.totalorder %s29, 1
    %p314 = por %p312, %p313
    %p316 = scmp.ne.s32.totalorder %s301, %s315
    %p317 = scmp.eq.s32.totalorder %s29, 0
    %p318 = por %p316, %p317
    %s320 = sadd.s32 %s319, 1
    %p323 = scmp.eq.s32.totalorder %s23, 1
    %p324 = scmp.ne.s32.totalorder %s319, %s321
    %p325 = scmp.eq.s32.totalorder %s23, 0
    %p326 = por %p324, %p325
    %p327 = scmp.ne.s32.totalorder %s319, %s321
    %p328 = scmp.eq.s32.totalorder %s28, 1
    %p329 = por %p327, %p328
    %p330 = scmp.ne.s32.totalorder %s321, %s322
    %p331 = scmp.eq.s32.totalorder %s28, 0
    %p332 = por %p330, %p331
    %p333 = scmp.ne.s32.totalorder %s321, %s322
    %p334 = scmp.eq.s32.totalorder %s29, 1
    %p335 = por %p333, %p334
    %p337 = scmp.ne.s32.totalorder %s322, %s336
    %p338 = scmp.eq.s32.totalorder %s29, 0
    %p339 = por %p337, %p338
    %s341 = sadd.s32 %s340, 1
    %p344 = scmp.eq.s32.totalorder %s23, 1
    %p345 = scmp.ne.s32.totalorder %s340, %s342
    %p346 = scmp.eq.s32.totalorder %s23, 0
    %p347 = por %p345, %p346
    %p348 = scmp.ne.s32.totalorder %s340, %s342
    %p349 = scmp.eq.s32.totalorder %s28, 1
    %p350 = por %p348, %p349
    %p351 = scmp.ne.s32.totalorder %s342, %s343
    %p352 = scmp.eq.s32.totalorder %s28, 0
    %p353 = por %p351, %p352
    %p354 = scmp.ne.s32.totalorder %s342, %s343
    %p355 = scmp.eq.s32.totalorder %s29, 1
    %p356 = por %p354, %p355
    %p358 = scmp.ne.s32.totalorder %s343, %s357
    %p359 = scmp.eq.s32.totalorder %s29, 0
    %p360 = por %p358, %p359
    %s362 = sadd.s32 %s361, 1
    %p365 = scmp.eq.s32.totalorder %s23, 1
    %p366 = scmp.ne.s32.totalorder %s361, %s363
    %p367 = scmp.eq.s32.totalorder %s23, 0
    %p368 = por %p366, %p367
    %p369 = scmp.ne.s32.totalorder %s361, %s363
    %p370 = scmp.eq.s32.totalorder %s28, 1
    %p371 = por %p369, %p370
    %p372 = scmp.ne.s32.totalorder %s363, %s364
    %p373 = scmp.eq.s32.totalorder %s28, 0
    %p374 = por %p372, %p373
    %p375 = scmp.ne.s32.totalorder %s363, %s364
    %p376 = scmp.eq.s32.totalorder %s29, 1
    %p377 = por %p375, %p376
    %p379 = scmp.ne.s32.totalorder %s364, %s378
    %p380 = scmp.eq.s32.totalorder %s29, 0
    %p381 = por %p379, %p380
    %s383 = sadd.s32 %s382, 1
    %p386 = scmp.eq.s32.totalorder %s23, 1
    %p387 = scmp.ne.s32.totalorder %s382, %s384
    %p388 = scmp.eq.s32.totalorder %s23, 0
    %p389 = por %p387, %p388
    %p390 = scmp.ne.s32.totalorder %s382, %s384
    %p391 = scmp.eq.s32.totalorder %s28, 1
    %p392 = por %p390, %p391
    %p393 = scmp.ne.s32.totalorder %s384, %s385
    %p394 = scmp.eq.s32.totalorder %s28, 0
    %p395 = por %p393, %p394
    %p396 = scmp.ne.s32.totalorder %s384, %s385
    %p397 = scmp.eq.s32.totalorder %s29, 1
    %p398 = por %p396, %p397
    %p400 = scmp.ne.s32.totalorder %s385, %s399
    %p401 = scmp.eq.s32.totalorder %s29, 0
    %p402 = por %p400, %p401
    %s403 = ssub.s32 %s23, %s30
    %p404 = scmp.eq.s32.totalorder %s403, 0
    %s406 = sadd.s32 %s405, 1
    %s407 = scalar_select %p404, %s405, %s406
    %p410 = pneg %p404
    %p411 = scmp.eq.s32.totalorder %s23, 1
    %p412 = por %p410, %p411
    %p413 = scmp.ne.s32.totalorder %s405, %s408
    %p414 = scmp.eq.s32.totalorder %s23, 0
    %p415 = por %p413, %p414
    %p416 = scmp.ne.s32.totalorder %s405, %s408
    %p417 = scmp.eq.s32.totalorder %s28, 1
    %p418 = por %p416, %p417
    %p419 = scmp.ne.s32.totalorder %s408, %s409
    %p420 = scmp.eq.s32.totalorder %s28, 0
    %p421 = por %p419, %p420
    %p422 = scmp.ne.s32.totalorder %s408, %s409
    %p423 = scmp.eq.s32.totalorder %s29, 1
    %p424 = por %p422, %p423
    %p426 = scmp.ne.s32.totalorder %s409, %s425
    %p427 = scmp.eq.s32.totalorder %s29, 0
    %p428 = por %p426, %p427
    %p429 = scmp.le.s32.totalorder 1, %s23
    %p430 = scmp.lt.s32.totalorder %s23, 3
    %p431 = pnand %p429, %p430
    %p432 = pneg %p431
    // Predicated region
    $region9: #{resnet_block_pallas.1} parent=5 // pred_check
      _
    $region10: #{resnet_block_pallas.1} parent=5 // pred_check_branch
      %434 = sbr.rel (%p431) target = $region12
    $region11: #{resnet_block_pallas.1} parent=5 // pred_region
      %s435 = ssub.s32 %s23, 1
      // Predicated region
      $region13: #{resnet_block_pallas.1} parent=11 // pred_check
        %p436 = pneg %p122
      $region14: #{resnet_block_pallas.1} parent=11 // pred_check_branch
        %438 = sbr.rel (%p436) target = $region16
      $region15: #{resnet_block_pallas.1} parent=11 // pred_region
        _
      $region16: #{resnet_block_pallas.1} parent=11 // pred_fallthru
        _
      // Predicated region
      $region17: #{resnet_block_pallas.1} parent=11 // pred_check
        %p439 = pneg %p143
      $region18: #{resnet_block_pallas.1} parent=11 // pred_check_branch
        %441 = sbr.rel (%p439) target = $region20
      $region19: #{resnet_block_pallas.1} parent=11 // pred_region
        _
      $region20: #{resnet_block_pallas.1} parent=11 // pred_fallthru
        _
      // Predicated region
      $region21: #{resnet_block_pallas.1} parent=11 // pred_check
        %p442 = pneg %p164
      $region22: #{resnet_block_pallas.1} parent=11 // pred_check_branch
        %444 = sbr.rel (%p442) target = $region24
      $region23: #{resnet_block_pallas.1} parent=11 // pred_region
        _
      $region24: #{resnet_block_pallas.1} parent=11 // pred_fallthru
        _
      // Predicated region
      $region25: #{resnet_block_pallas.1} parent=11 // pred_check
        %p445 = pneg %p185
      $region26: #{resnet_block_pallas.1} parent=11 // pred_check_branch
        %447 = sbr.rel (%p445) target = $region28
      $region27: #{resnet_block_pallas.1} parent=11 // pred_region
        _
      $region28: #{resnet_block_pallas.1} parent=11 // pred_fallthru
        _
      // Predicated region
      $region29: #{resnet_block_pallas.1} parent=11 // pred_check
        %p448 = pneg %p206
      $region30: #{resnet_block_pallas.1} parent=11 // pred_check_branch
        %450 = sbr.rel (%p448) target = $region32
      $region31: #{resnet_block_pallas.1} parent=11 // pred_region
        _
      $region32: #{resnet_block_pallas.1} parent=11 // pred_fallthru
        _
      // Predicated region
      $region33: #{resnet_block_pallas.1} parent=11 // pred_check
        %p451 = pneg %p227
      $region34: #{resnet_block_pallas.1} parent=11 // pred_check_branch
        %453 = sbr.rel (%p451) target = $region36
      $region35: #{resnet_block_pallas.1} parent=11 // pred_region
        _
      $region36: #{resnet_block_pallas.1} parent=11 // pred_fallthru
        _
      // Predicated region
      $region37: #{resnet_block_pallas.1} parent=11 // pred_check
        %p454 = pneg %p248
      $region38: #{resnet_block_pallas.1} parent=11 // pred_check_branch
        %456 = sbr.rel (%p454) target = $region40
      $region39: #{resnet_block_pallas.1} parent=11 // pred_region
        _
      $region40: #{resnet_block_pallas.1} parent=11 // pred_fallthru
        _
      // Predicated region
      $region41: #{resnet_block_pallas.1} parent=11 // pred_check
        %p457 = pneg %p269
      $region42: #{resnet_block_pallas.1} parent=11 // pred_check_branch
        %459 = sbr.rel (%p457) target = $region44
      $region43: #{resnet_block_pallas.1} parent=11 // pred_region
        _
      $region44: #{resnet_block_pallas.1} parent=11 // pred_fallthru
        _
      // Predicated region
      $region45: #{resnet_block_pallas.1} parent=11 // pred_check
        %p460 = pneg %p290
      $region46: #{resnet_block_pallas.1} parent=11 // pred_check_branch
        %462 = sbr.rel (%p460) target = $region48
      $region47: #{resnet_block_pallas.1} parent=11 // pred_region
        _
      $region48: #{resnet_block_pallas.1} parent=11 // pred_fallthru
        _
      // Predicated region
      $region49: #{resnet_block_pallas.1} parent=11 // pred_check
        %p463 = pneg %p311
      $region50: #{resnet_block_pallas.1} parent=11 // pred_check_branch
        %465 = sbr.rel (%p463) target = $region52
      $region51: #{resnet_block_pallas.1} parent=11 // pred_region
        _
      $region52: #{resnet_block_pallas.1} parent=11 // pred_fallthru
        _
      // Predicated region
      $region53: #{resnet_block_pallas.1} parent=11 // pred_check
        %p466 = pneg %p332
      $region54: #{resnet_block_pallas.1} parent=11 // pred_check_branch
        %468 = sbr.rel (%p466) target = $region56
      $region55: #{resnet_block_pallas.1} parent=11 // pred_region
        _
      $region56: #{resnet_block_pallas.1} parent=11 // pred_fallthru
        _
      // Predicated region
      $region57: #{resnet_block_pallas.1} parent=11 // pred_check
        %p469 = pneg %p353
      $region58: #{resnet_block_pallas.1} parent=11 // pred_check_branch
        %471 = sbr.rel (%p469) target = $region60
      $region59: #{resnet_block_pallas.1} parent=11 // pred_region
        _
      $region60: #{resnet_block_pallas.1} parent=11 // pred_fallthru
        _
      // Predicated region
      $region61: #{resnet_block_pallas.1} parent=11 // pred_check
        %p472 = pneg %p374
      $region62: #{resnet_block_pallas.1} parent=11 // pred_check_branch
        %474 = sbr.rel (%p472) target = $region64
      $region63: #{resnet_block_pallas.1} parent=11 // pred_region
        _
      $region64: #{resnet_block_pallas.1} parent=11 // pred_fallthru
        _
      // Predicated region
      $region65: #{resnet_block_pallas.1} parent=11 // pred_check
        %p475 = pneg %p395
      $region66: #{resnet_block_pallas.1} parent=11 // pred_check_branch
        %477 = sbr.rel (%p475) target = $region68
      $region67: #{resnet_block_pallas.1} parent=11 // pred_region
        _
      $region68: #{resnet_block_pallas.1} parent=11 // pred_fallthru
        _
    $region12: #{resnet_block_pallas.1} parent=5 // pred_fallthru
      _
    %p478 = scmp.lt.s32.totalorder %s23, 2
    // Predicated region
    $region69: #{resnet_block_pallas.1} parent=5 // pred_check
      %p479 = pneg %p478
    $region70: #{resnet_block_pallas.1} parent=5 // pred_check_branch
      %481 = sbr.rel (%p479) target = $region72
    $region71: #{resnet_block_pallas.1} parent=5 // pred_region
      // Predicated region
      $region73: #{resnet_block_pallas.1} parent=71 // pred_check
        %p482 = pneg %p43
      $region74: #{resnet_block_pallas.1} parent=71 // pred_check_branch
        %484 = sbr.rel (%p482) target = $region76
      $region75: #{resnet_block_pallas.1} parent=71 // pred_region
        %p485 = scmp.lt.s32.totalorder %s23, 1
        %s486 = scalar_select %p485, %s23, 1
        %s487 = smul.addr %s486, 32
        %s488 = smul.addr %s487, 8
        %s489 = scalar_lea.vmem %s0, %s488
      $region76: #{resnet_block_pallas.1} parent=71 // pred_fallthru
        _
      // Predicated region
      $region77: #{resnet_block_pallas.1} parent=71 // pred_check
        %p490 = pneg %p69
      $region78: #{resnet_block_pallas.1} parent=71 // pred_check_branch
        %492 = sbr.rel (%p490) target = $region80
      $region79: #{resnet_block_pallas.1} parent=71 // pred_region
        %p493 = scmp.lt.s32.totalorder %s23, 1
        %s494 = scalar_select %p493, %s23, 1
        %s495 = smul.addr %s494, 32
        %s496 = smul.addr %s495, 4
        %s497 = scalar_lea.vmem %s1, %s496
      $region80: #{resnet_block_pallas.1} parent=71 // pred_fallthru
        _
      // Predicated region
      $region81: #{resnet_block_pallas.1} parent=71 // pred_check
        %p498 = pneg %p95
      $region82: #{resnet_block_pallas.1} parent=71 // pred_check_branch
        %500 = sbr.rel (%p498) target = $region84
      $region83: #{resnet_block_pallas.1} parent=71 // pred_region
        %p501 = scmp.lt.s32.totalorder %s23, 1
        %s502 = scalar_select %p501, %s23, 1
        %s503 = scalar_lea.vmem %s2, %s502
      $region84: #{resnet_block_pallas.1} parent=71 // pred_fallthru
        _
    $region72: #{resnet_block_pallas.1} parent=5 // pred_fallthru
      _
    %p504 = scmp.le.s32.totalorder 1, %s23
    %p505 = scmp.lt.s32.totalorder %s23, 3
    %p506 = pnand %p504, %p505
    %p507 = pneg %p506
    // Predicated region
    $region85: #{resnet_block_pallas.1} parent=5 // pred_check
      _
    $region86: #{resnet_block_pallas.1} parent=5 // pred_check_branch
      %509 = sbr.rel (%p506) target = $region88
    $region87: #{resnet_block_pallas.1} parent=5 // pred_region
      %s510 = ssub.s32 %s23, 1
      %p511 = scmp.lt.s32.totalorder %s28, 1
      %s512 = scalar_select %p511, %s28, 1
      %s513 = smul.addr %s512, 32
      %s514 = smul.addr %s513, 8
      %s515 = scalar_lea.vmem %s0, %s514
      %p516 = pneg %p49
      %p517 = pneg %p46
      %p518 = scmp.lt.s32.totalorder %s28, 1
      %s519 = scalar_select %p518, %s28, 1
      %s520 = smul.addr %s519, 32
      %s521 = smul.addr %s520, 4
      %s522 = scalar_lea.vmem %s1, %s521
      %p523 = pneg %p75
      %p524 = pneg %p72
      %p525 = scmp.lt.s32.totalorder %s28, 1
      %s526 = scalar_select %p525, %s28, 1
      %s527 = scalar_lea.vmem %s2, %s526
      %p528 = pneg %p101
      %p529 = pneg %p98
      %p530 = pneg %p122
      %p531 = pneg %p119
      %p532 = pneg %p143
      %p533 = pneg %p140
      %p534 = pneg %p164
      %p535 = pneg %p161
      %p536 = pneg %p185
      %p537 = pneg %p182
      %p538 = pneg %p206
      %p539 = pneg %p203
      %p540 = pneg %p227
      %p541 = pneg %p224
      %p542 = pneg %p248
      %p543 = pneg %p245
      %p544 = pneg %p269
      %p545 = pneg %p266
      %p546 = pneg %p290
      %p547 = pneg %p287
      %p548 = pneg %p311
      %p549 = pneg %p308
      %p550 = pneg %p332
      %p551 = pneg %p329
      %p552 = pneg %p353
      %p553 = pneg %p350
      %p554 = pneg %p374
      %p555 = pneg %p371
      %p556 = pneg %p395
      %p557 = pneg %p392
      %p558 = pneg %p421
      %p559 = pneg %p418
      %p560 = scmp.lt.s32.totalorder %s28, 1
      %s561 = scalar_select %p560, %s28, 1
      %s562 = smul.addr %s561, 32
      %s563 = smul.addr %s562, 8
      %s564 = scalar_lea.vmem %s17, %s563
      %p565 = scmp.lt.s32.totalorder %s28, 1
      %s566 = scalar_select %p565, %s28, 1
      %s567 = smul.addr %s566, 32
      %s568 = smul.addr %s567, 8
      %s569 = scalar_lea.vmem %s0, %s568
      %p570 = scmp.lt.s32.totalorder %s28, 1
      %s571 = scalar_select %p570, %s28, 1
      %s572 = smul.addr %s571, 32
      %s573 = smul.addr %s572, 4
      %s574 = scalar_lea.vmem %s1, %s573
      %p575 = scmp.lt.s32.totalorder %s28, 1
      %s576 = scalar_select %p575, %s28, 1
      %s577 = scalar_lea.vmem %s2, %s576
      %p578 = scmp.lt.s32.totalorder %s28, 1
      %s579 = scalar_select %p578, %s28, 1
      %s580 = smul.addr %s579, 32
      %s581 = smul.addr %s580, 8
      %s582 = scalar_lea.vmem %s17, %s581
      %v584 = vld [vmem:[%s569] sm:$0xff]
      %v585 = vld [vmem:[%s569 + $0x8] sm:$0xff]
      %v586 = vld [vmem:[%s569 + $0x10] sm:$0xff]
      %v587 = vld [vmem:[%s569 + $0x18] sm:$0xff]
      %v588 = vld [vmem:[%s569 + $0x20] sm:$0xff]
      %v589 = vld [vmem:[%s569 + $0x28] sm:$0xff]
      %v590 = vld [vmem:[%s569 + $0x30] sm:$0xff]
      %v591 = vld [vmem:[%s569 + $0x38] sm:$0xff]
      %v592 = vld [vmem:[%s569 + $0x40] sm:$0xff]
      %v593 = vld [vmem:[%s569 + $0x48] sm:$0xff]
      %v594 = vld [vmem:[%s569 + $0x50] sm:$0xff]
      %v595 = vld [vmem:[%s569 + $0x58] sm:$0xff]
      %v596 = vld [vmem:[%s569 + $0x60] sm:$0xff]
      %v597 = vld [vmem:[%s569 + $0x68] sm:$0xff]
      %v598 = vld [vmem:[%s569 + $0x70] sm:$0xff]
      %v599 = vld [vmem:[%s569 + $0x78] sm:$0xff]
      %v600 = vld [vmem:[%s569 + $0x80] sm:$0xff]
      %v601 = vld [vmem:[%s569 + $0x88] sm:$0xff]
      %v602 = vld [vmem:[%s569 + $0x90] sm:$0xff]
      %v603 = vld [vmem:[%s569 + $0x98] sm:$0xff]
      %v604 = vld [vmem:[%s569 + $0xa0] sm:$0xff]
      %v605 = vld [vmem:[%s569 + $0xa8] sm:$0xff]
      %v606 = vld [vmem:[%s569 + $0xb0] sm:$0xff]
      %v607 = vld [vmem:[%s569 + $0xb8] sm:$0xff]
      %v608 = vld [vmem:[%s569 + $0xc0] sm:$0xff]
      %v609 = vld [vmem:[%s569 + $0xc8] sm:$0xff]
      %v610 = vld [vmem:[%s569 + $0xd0] sm:$0xff]
      %v611 = vld [vmem:[%s569 + $0xd8] sm:$0xff]
      %v612 = vld [vmem:[%s569 + $0xe0] sm:$0xff]
      %v613 = vld [vmem:[%s569 + $0xe8] sm:$0xff]
      %v614 = vld [vmem:[%s569 + $0xf0] sm:$0xff]
      %v615 = vld [vmem:[%s569 + $0xf8] sm:$0xff]
      %v616 = vld [vmem:[%s14] sm:$0xff]
      %v617 = vld [vmem:[%s14 + $0x8] sm:$0xff]
      %v618 = vld [vmem:[%s14 + $0x10] sm:$0xff]
      %v619 = vld [vmem:[%s14 + $0x18] sm:$0xff]
      %v620 = vld [vmem:[%s14 + $0x20] sm:$0xff]
      %v621 = vld [vmem:[%s14 + $0x28] sm:$0xff]
      %v622 = vld [vmem:[%s14 + $0x30] sm:$0xff]
      %v623 = vld [vmem:[%s14 + $0x38] sm:$0xff]
      %v624 = vld [vmem:[%s14 + $0x40] sm:$0xff]
      %v625 = vld [vmem:[%s14 + $0x48] sm:$0xff]
      %v626 = vld [vmem:[%s14 + $0x50] sm:$0xff]
      %v627 = vld [vmem:[%s14 + $0x58] sm:$0xff]
      %v628 = vld [vmem:[%s14 + $0x60] sm:$0xff]
      %v629 = vld [vmem:[%s14 + $0x68] sm:$0xff]
      %v630 = vld [vmem:[%s14 + $0x70] sm:$0xff]
      %v631 = vld [vmem:[%s14 + $0x78] sm:$0xff]
      %v632 = vld [vmem:[%s14 + $0x80] sm:$0xff]
      %v633 = vld [vmem:[%s14 + $0x88] sm:$0xff]
      %v634 = vld [vmem:[%s14 + $0x90] sm:$0xff]
      %v635 = vld [vmem:[%s14 + $0x98] sm:$0xff]
      %v636 = vld [vmem:[%s14 + $0xa0] sm:$0xff]
      %v637 = vld [vmem:[%s14 + $0xa8] sm:$0xff]
      %v638 = vld [vmem:[%s14 + $0xb0] sm:$0xff]
      %v639 = vld [vmem:[%s14 + $0xb8] sm:$0xff]
      %v640 = vld [vmem:[%s14 + $0xc0] sm:$0xff]
      %v641 = vld [vmem:[%s14 + $0xc8] sm:$0xff]
      %v642 = vld [vmem:[%s14 + $0xd0] sm:$0xff]
      %v643 = vld [vmem:[%s14 + $0xd8] sm:$0xff]
      %v644 = vld [vmem:[%s14 + $0xe0] sm:$0xff]
      %v645 = vld [vmem:[%s14 + $0xe8] sm:$0xff]
      %v646 = vld [vmem:[%s14 + $0xf0] sm:$0xff]
      %v647 = vld [vmem:[%s14 + $0xf8] sm:$0xff]
      %v648 = vld [vmem:[%s15] sm:$0xff]
      %v649 = vld [vmem:[%s15 + $0x8] sm:$0xff]
      %v650 = vld [vmem:[%s15 + $0x10] sm:$0xff]
      %v651 = vld [vmem:[%s15 + $0x18] sm:$0xff]
      %v652 = vld [vmem:[%s15 + $0x20] sm:$0xff]
      %v653 = vld [vmem:[%s15 + $0x28] sm:$0xff]
      %v654 = vld [vmem:[%s15 + $0x30] sm:$0xff]
      %v655 = vld [vmem:[%s15 + $0x38] sm:$0xff]
      %v656 = vld [vmem:[%s15 + $0x40] sm:$0xff]
      %v657 = vld [vmem:[%s15 + $0x48] sm:$0xff]
      %v658 = vld [vmem:[%s15 + $0x50] sm:$0xff]
      %v659 = vld [vmem:[%s15 + $0x58] sm:$0xff]
      %v660 = vld [vmem:[%s15 + $0x60] sm:$0xff]
      %v661 = vld [vmem:[%s15 + $0x68] sm:$0xff]
      %v662 = vld [vmem:[%s15 + $0x70] sm:$0xff]
      %v663 = vld [vmem:[%s15 + $0x78] sm:$0xff]
      %v664 = vld [vmem:[%s15 + $0x80] sm:$0xff]
      %v665 = vld [vmem:[%s15 + $0x88] sm:$0xff]
      %v666 = vld [vmem:[%s15 + $0x90] sm:$0xff]
      %v667 = vld [vmem:[%s15 + $0x98] sm:$0xff]
      %v668 = vld [vmem:[%s15 + $0xa0] sm:$0xff]
      %v669 = vld [vmem:[%s15 + $0xa8] sm:$0xff]
      %v670 = vld [vmem:[%s15 + $0xb0] sm:$0xff]
      %v671 = vld [vmem:[%s15 + $0xb8] sm:$0xff]
      %v672 = vld [vmem:[%s15 + $0xc0] sm:$0xff]
      %v673 = vld [vmem:[%s15 + $0xc8] sm:$0xff]
      %v674 = vld [vmem:[%s15 + $0xd0] sm:$0xff]
      %v675 = vld [vmem:[%s15 + $0xd8] sm:$0xff]
      %v676 = vld [vmem:[%s15 + $0xe0] sm:$0xff]
      %v677 = vld [vmem:[%s15 + $0xe8] sm:$0xff]
      %v678 = vld [vmem:[%s15 + $0xf0] sm:$0xff]
      %v679 = vld [vmem:[%s15 + $0xf8] sm:$0xff]
      %vm680 = vcmask 31744
      %681 = vst.msk [vmem:[#allocation2] sm:$0xff] %vm680, 0
      %vm682 = vcmask 27648
      %683 = vst.msk [vmem:[#allocation2 + $0x8] sm:$0xf] %vm682, 0
      %vm684 = vcmask 31748
      %685 = vst.msk [vmem:[#allocation2 + $0x88] sm:$0xf0] %vm684, 0
      %686 = vst.msk [vmem:[#allocation2 + $0x90] sm:$0xff] %vm680, 0
      %vm687 = vcmask 64512
      %688 = vst.msk [vmem:[#allocation3] sm:$0xff] %vm687, 0
      %vm689 = vcmask 60416
      %690 = vst.msk [vmem:[#allocation3 + $0x8] sm:$0xf] %vm689, 0
      %vm691 = vcmask 64516
      %692 = vst.msk [vmem:[#allocation3 + $0x88] sm:$0xf0] %vm691, 0
      %693 = vst.msk [vmem:[#allocation3 + $0x90] sm:$0xff] %vm687, 0
      %v694 = vsel %vm680, %v584, 0.0
      %v695 = vsel %vm680, %v585, 0.0
      %v696 = vadd.f32 %v694, %v695
      %v697 = vsel %vm680, %v586, 0.0
      %v698 = vadd.f32 %v696, %v697
      %v699 = vsel %vm680, %v587, 0.0
      %v700 = vadd.f32 %v698, %v699
      %v701 = vsel %vm680, %v588, 0.0
      %v702 = vadd.f32 %v700, %v701
      %v703 = vsel %vm680, %v589, 0.0
      %v704 = vadd.f32 %v702, %v703
      %v705 = vsel %vm680, %v590, 0.0
      %v706 = vadd.f32 %v704, %v705
      %v707 = vsel %vm680, %v591, 0.0
      %v708 = vadd.f32 %v706, %v707
      %v709 = vsel %vm680, %v592, 0.0
      %v710 = vadd.f32 %v708, %v709
      %v711 = vsel %vm680, %v593, 0.0
      %v712 = vadd.f32 %v710, %v711
      %v713 = vsel %vm680, %v594, 0.0
      %v714 = vadd.f32 %v712, %v713
      %v715 = vsel %vm680, %v595, 0.0
      %v716 = vadd.f32 %v714, %v715
      %v717 = vsel %vm680, %v596, 0.0
      %v718 = vadd.f32 %v716, %v717
      %v719 = vsel %vm680, %v597, 0.0
      %v720 = vadd.f32 %v718, %v719
      %v721 = vsel %vm680, %v598, 0.0
      %v722 = vadd.f32 %v720, %v721
      %v723 = vsel %vm680, %v599, 0.0
      %v724 = vadd.f32 %v722, %v723
      %v725 = vsel %vm680, %v600, 0.0
      %v726 = vadd.f32 %v724, %v725
      %v727 = vsel %vm680, %v601, 0.0
      %v728 = vadd.f32 %v726, %v727
      %v729 = vsel %vm680, %v602, 0.0
      %v730 = vadd.f32 %v728, %v729
      %v731 = vsel %vm680, %v603, 0.0
      %v732 = vadd.f32 %v730, %v731
      %v733 = vsel %vm680, %v604, 0.0
      %v734 = vadd.f32 %v732, %v733
      %v735 = vsel %vm680, %v605, 0.0
      %v736 = vadd.f32 %v734, %v735
      %v737 = vsel %vm680, %v606, 0.0
      %v738 = vadd.f32 %v736, %v737
      %v739 = vsel %vm680, %v607, 0.0
      %v740 = vadd.f32 %v738, %v739
      %v741 = vsel %vm680, %v608, 0.0
      %v742 = vadd.f32 %v740, %v741
      %v743 = vsel %vm680, %v609, 0.0
      %v744 = vadd.f32 %v742, %v743
      %v745 = vsel %vm680, %v610, 0.0
      %v746 = vadd.f32 %v744, %v745
      %v747 = vsel %vm680, %v611, 0.0
      %v748 = vadd.f32 %v746, %v747
      %v749 = vsel %vm680, %v612, 0.0
      %v750 = vadd.f32 %v748, %v749
      %v751 = vsel %vm680, %v613, 0.0
      %v752 = vadd.f32 %v750, %v751
      %v753 = vsel %vm680, %v614, 0.0
      %v754 = vadd.f32 %v752, %v753
      %v755 = vsel %vm680, %v615, 0.0
      %v756 = vadd.f32 %v754, %v755
      %v757 = vrot.slane %v756, 4
      %v758 = vadd.f32 %v756, %v757
      %v759 = vrot.slane %v758, 2
      %v760 = vadd.f32 %v758, %v759
      %v761 = vrot.slane %v760, 1
      %v762 = vadd.f32 %v760, %v761
      %v763 = vmul.f32 %v584, %v584
      %v764 = vmul.f32 %v585, %v585
      %v765 = vmul.f32 %v586, %v586
      %v766 = vmul.f32 %v587, %v587
      %v767 = vmul.f32 %v588, %v588
      %v768 = vmul.f32 %v589, %v589
      %v769 = vmul.f32 %v590, %v590
      %v770 = vmul.f32 %v591, %v591
      %v771 = vmul.f32 %v592, %v592
      %v772 = vmul.f32 %v593, %v593
      %v773 = vmul.f32 %v594, %v594
      %v774 = vmul.f32 %v595, %v595
      %v775 = vmul.f32 %v596, %v596
      %v776 = vmul.f32 %v597, %v597
      %v777 = vmul.f32 %v598, %v598
      %v778 = vmul.f32 %v599, %v599
      %v779 = vmul.f32 %v600, %v600
      %v780 = vmul.f32 %v601, %v601
      %v781 = vmul.f32 %v602, %v602
      %v782 = vmul.f32 %v603, %v603
      %v783 = vmul.f32 %v604, %v604
      %v784 = vmul.f32 %v605, %v605
      %v785 = vmul.f32 %v606, %v606
      %v786 = vmul.f32 %v607, %v607
      %v787 = vmul.f32 %v608, %v608
      %v788 = vmul.f32 %v609, %v609
      %v789 = vmul.f32 %v610, %v610
      %v790 = vmul.f32 %v611, %v611
      %v791 = vmul.f32 %v612, %v612
      %v792 = vmul.f32 %v613, %v613
      %v793 = vmul.f32 %v614, %v614
      %v794 = vmul.f32 %v615, %v615
      %v795 = vsel %vm680, %v763, 0.0
      %v796 = vsel %vm680, %v764, 0.0
      %v797 = vadd.f32 %v795, %v796
      %v798 = vsel %vm680, %v765, 0.0
      %v799 = vadd.f32 %v797, %v798
      %v800 = vsel %vm680, %v766, 0.0
      %v801 = vadd.f32 %v799, %v800
      %v802 = vsel %vm680, %v767, 0.0
      %v803 = vadd.f32 %v801, %v802
      %v804 = vsel %vm680, %v768, 0.0
      %v805 = vadd.f32 %v803, %v804
      %v806 = vsel %vm680, %v769, 0.0
      %v807 = vadd.f32 %v805, %v806
      %v808 = vsel %vm680, %v770, 0.0
      %v809 = vadd.f32 %v807, %v808
      %v810 = vsel %vm680, %v771, 0.0
      %v811 = vadd.f32 %v809, %v810
      %v812 = vsel %vm680, %v772, 0.0
      %v813 = vadd.f32 %v811, %v812
      %v814 = vsel %vm680, %v773, 0.0
      %v815 = vadd.f32 %v813, %v814
      %v816 = vsel %vm680, %v774, 0.0
      %v817 = vadd.f32 %v815, %v816
      %v818 = vsel %vm680, %v775, 0.0
      %v819 = vadd.f32 %v817, %v818
      %v820 = vsel %vm680, %v776, 0.0
      %v821 = vadd.f32 %v819, %v820
      %v822 = vsel %vm680, %v777, 0.0
      %v823 = vadd.f32 %v821, %v822
      %v824 = vsel %vm680, %v778, 0.0
      %v825 = vadd.f32 %v823, %v824
      %v826 = vsel %vm680, %v779, 0.0
      %v827 = vadd.f32 %v825, %v826
      %v828 = vsel %vm680, %v780, 0.0
      %v829 = vadd.f32 %v827, %v828
      %v830 = vsel %vm680, %v781, 0.0
      %v831 = vadd.f32 %v829, %v830
      %v832 = vsel %vm680, %v782, 0.0
      %v833 = vadd.f32 %v831, %v832
      %v834 = vsel %vm680, %v783, 0.0
      %v835 = vadd.f32 %v833, %v834
      %v836 = vsel %vm680, %v784, 0.0
      %v837 = vadd.f32 %v835, %v836
      %v838 = vsel %vm680, %v785, 0.0
      %v839 = vadd.f32 %v837, %v838
      %v840 = vsel %vm680, %v786, 0.0
      %v841 = vadd.f32 %v839, %v840
      %v842 = vsel %vm680, %v787, 0.0
      %v843 = vadd.f32 %v841, %v842
      %v844 = vsel %vm680, %v788, 0.0
      %v845 = vadd.f32 %v843, %v844
      %v846 = vsel %vm680, %v789, 0.0
      %v847 = vadd.f32 %v845, %v846
      %v848 = vsel %vm680, %v790, 0.0
      %v849 = vadd.f32 %v847, %v848
      %v850 = vsel %vm680, %v791, 0.0
      %v851 = vadd.f32 %v849, %v850
      %v852 = vsel %vm680, %v792, 0.0
      %v853 = vadd.f32 %v851, %v852
      %v854 = vsel %vm680, %v793, 0.0
      %v855 = vadd.f32 %v853, %v854
      %v856 = vsel %vm680, %v794, 0.0
      %v857 = vadd.f32 %v855, %v856
      %v858 = vrot.slane %v857, 4
      %v859 = vadd.f32 %v857, %v858
      %v860 = vrot.slane %v859, 2
      %v861 = vadd.f32 %v859, %v860
      %v862 = vrot.slane %v861, 1
      %v863 = vadd.f32 %v861, %v862
      %vm864 = vcmask 1040384
      %v865 = vsel %vm864, %v762, %v863
      %v866 = vld [vmem:[%s3] sm:$0xf]
      %v868 = vsel %vm680, %v865, 0
      %vm870 = vcmask 1043456
      %v872 = vsel %vm870, %v866, 0
      %874 = vmatprep.subr.mxu0 0.0
      %875 = vmatpush1.msra.mxu0 %v872
      %876 = vmatprep.subr.mxu0 0.0
      %877 = vmatpush1.msra.mxu0 0.0
      %878 = vmatprep.subr.mxu0 0.0
      %879 = vmatpush1.msra.mxu0 0.0
      %880 = vmatprep.subr.mxu0 0.0
      %881 = vmatpush1.msra.mxu0 0.0
      %882 = vmatprep.subr.mxu0 0.0
      %883 = vmatpush1.msra.mxu0 0.0
      %884 = vmatprep.subr.mxu0 0.0
      %885 = vmatpush1.msra.mxu0 0.0
      %886 = vmatprep.subr.mxu0 0.0
      %887 = vmatpush1.msra.mxu0 0.0
      %888 = vmatprep.subr.mxu0 0.0
      %889 = vmatpush1.msra.mxu0 0.0
      %890 = vmatprep.subr.mxu0 0.0
      %891 = vmatpush1.msra.mxu0 0.0
      %892 = vmatprep.subr.mxu0 0.0
      %893 = vmatpush1.msra.mxu0 0.0
      %894 = vmatprep.subr.mxu0 0.0
      %895 = vmatpush1.msra.mxu0 0.0
      %896 = vmatprep.subr.mxu0 0.0
      %897 = vmatpush1.msra.mxu0 0.0
      %898 = vmatprep.subr.mxu0 0.0
      %899 = vmatpush1.msra.mxu0 0.0
      %900 = vmatprep.subr.mxu0 0.0
      %901 = vmatpush1.msra.mxu0 0.0
      %902 = vmatprep.subr.mxu0 0.0
      %903 = vmatpush1.msra.mxu0 0.0
      %904 = vmatprep.subr.mxu0 0.0
      %905 = vmatpush1.msra.mxu0 0.0
      %906 = vmatprep.subr.mxu0 0.0
      %907 = vmatpush1.msra.mxu0 0.0
      %908 = vmatprep.subr.mxu0 0.0
      %909 = vmatpush1.msra.mxu0 0.0
      %910 = vmatprep.subr.mxu0 0.0
      %911 = vmatpush1.msra.mxu0 0.0
      %912 = vmatprep.subr.mxu0 0.0
      %913 = vmatpush1.msra.mxu0 0.0
      %914 = vmatprep.subr.mxu0 0.0
      %915 = vmatpush1.msra.mxu0 0.0
      %916 = vmatprep.subr.mxu0 0.0
      %917 = vmatpush1.msra.mxu0 0.0
      %918 = vmatprep.subr.mxu0 0.0
      %919 = vmatpush1.msra.mxu0 0.0
      %920 = vmatprep.subr.mxu0 0.0
      %921 = vmatpush1.msra.mxu0 0.0
      %922 = vmatprep.subr.mxu0 0.0
      %923 = vmatpush1.msra.mxu0 0.0
      %924 = vmatprep.subr.mxu0 0.0
      %925 = vmatpush1.msra.mxu0 0.0
      %926 = vmatprep.subr.mxu0 0.0
      %927 = vmatpush1.msra.mxu0 0.0
      %928 = vmatprep.subr.mxu0 0.0
      %929 = vmatpush1.msra.mxu0 0.0
      %930 = vmatprep.subr.mxu0 0.0
      %931 = vmatpush1.msra.mxu0 0.0
      %932 = vmatprep.subr.mxu0 0.0
      %933 = vmatpush1.msra.mxu0 0.0
      %934 = vmatprep.subr.mxu0 0.0
      %935 = vmatpush1.msra.mxu0 0.0
      %936 = vmatprep.subr.mxu0 0.0
      %937 = vmatpush1.msra.mxu0 0.0
      %938 = vmatprep.mubr.f32.mxu0 0.0
      %939 = vmatmul.mubr.f32.gmra.mrb[0].mxu0 %v868
      %v940 = vpop.f32.mrb[0].mxu0
      %v941 = vadd.f32 0.0, %v940
      %v942 = vpop.f32.mrb[0].mxu0
      %943 = vdwg.mxu0
      %v944 = vmul.f32 %v941, %v941
      %v946 = vrot.slane %v944, 7
      %v948 = vsub.f32 %v941, %v946
      %v949 = vmax.f32 %v948, 0.0
      %v950 = vsel %vm864, %v941, %v949
      %v951 = vld [vmem:[%s4] sm:$0x1]
      %vm952 = vcmask 7168
      %v954 = vsel %vm952, %v950, 0
      %v957 = vsel %vm864, %v951, 0
      %959 = vmatprep.subr.mxu0 0.0
      %960 = vmatpush1.msra.mxu0 %v957
      %961 = vmatprep.subr.mxu0 0.0
      %962 = vmatpush1.msra.mxu0 0.0
      %963 = vmatprep.subr.mxu0 0.0
      %964 = vmatpush1.msra.mxu0 0.0
      %965 = vmatprep.subr.mxu0 0.0
      %966 = vmatpush1.msra.mxu0 0.0
      %967 = vmatprep.subr.mxu0 0.0
      %968 = vmatpush1.msra.mxu0 0.0
      %969 = vmatprep.subr.mxu0 0.0
      %970 = vmatpush1.msra.mxu0 0.0
      %971 = vmatprep.subr.mxu0 0.0
      %972 = vmatpush1.msra.mxu0 0.0
      %973 = vmatprep.subr.mxu0 0.0
      %974 = vmatpush1.msra.mxu0 0.0
      %975 = vmatprep.subr.mxu0 0.0
      %976 = vmatpush1.msra.mxu0 0.0
      %977 = vmatprep.subr.mxu0 0.0
      %978 = vmatpush1.msra.mxu0 0.0
      %979 = vmatprep.subr.mxu0 0.0
      %980 = vmatpush1.msra.mxu0 0.0
      %981 = vmatprep.subr.mxu0 0.0
      %982 = vmatpush1.msra.mxu0 0.0
      %983 = vmatprep.subr.mxu0 0.0
      %984 = vmatpush1.msra.mxu0 0.0
      %985 = vmatprep.subr.mxu0 0.0
      %986 = vmatpush1.msra.mxu0 0.0
      %987 = vmatprep.subr.mxu0 0.0
      %988 = vmatpush1.msra.mxu0 0.0
      %989 = vmatprep.subr.mxu0 0.0
      %990 = vmatpush1.msra.mxu0 0.0
      %991 = vmatprep.subr.mxu0 0.0
      %992 = vmatpush1.msra.mxu0 0.0
      %993 = vmatprep.subr.mxu0 0.0
      %994 = vmatpush1.msra.mxu0 0.0
      %995 = vmatprep.subr.mxu0 0.0
      %996 = vmatpush1.msra.mxu0 0.0
      %997 = vmatprep.subr.mxu0 0.0
      %998 = vmatpush1.msra.mxu0 0.0
      %999 = vmatprep.subr.mxu0 0.0
      %1000 = vmatpush1.msra.mxu0 0.0
      %1001 = vmatprep.subr.mxu0 0.0
      %1002 = vmatpush1.msra.mxu0 0.0
      %1003 = vmatprep.subr.mxu0 0.0
      %1004 = vmatpush1.msra.mxu0 0.0
      %1005 = vmatprep.subr.mxu0 0.0
      %1006 = vmatpush1.msra.mxu0 0.0
      %1007 = vmatprep.subr.mxu0 0.0
      %1008 = vmatpush1.msra.mxu0 0.0
      %1009 = vmatprep.subr.mxu0 0.0
      %1010 = vmatpush1.msra.mxu0 0.0
      %1011 = vmatprep.subr.mxu0 0.0
      %1012 = vmatpush1.msra.mxu0 0.0
      %1013 = vmatprep.subr.mxu0 0.0
      %1014 = vmatpush1.msra.mxu0 0.0
      %1015 = vmatprep.subr.mxu0 0.0
      %1016 = vmatpush1.msra.mxu0 0.0
      %1017 = vmatprep.subr.mxu0 0.0
      %1018 = vmatpush1.msra.mxu0 0.0
      %1019 = vmatprep.subr.mxu0 0.0
      %1020 = vmatpush1.msra.mxu0 0.0
      %1021 = vmatprep.subr.mxu0 0.0
      %1022 = vmatpush1.msra.mxu0 0.0
      %1023 = vmatprep.mubr.f32.mxu0 0.0
      %1024 = vmatmul.mubr.f32.gmra.mrb[0].mxu0 %v954
      %v1025 = vpop.f32.mrb[0].mxu0
      %v1026 = vadd.f32 0.0, %v1025
      %v1027 = vpop.f32.mrb[0].mxu0
      %1028 = vdwg.mxu0
      %v1029 = vadd.f32 %v1026, 1e-05
      %v1030 = vrsqrt.pop %v1029
      %v1031 = vld [vmem:[%s5] sm:$0x1]
      %v1033 = vlaneseq
      %v1034 = vshrl.u32 %v1033, 7
      %v1035 = vsub.s32 0, %v1034
      %v1036 = vrot.slane %v1031, %v1035
      %v1038 = vmul.f32 %v1030, %v1036
      %v1039 = vld [vmem:[%s6] sm:$0x1]
      %v1041 = vrot.slane %v1038, 1
      %v1043 = vmul.f32 %v1026, %v1041
      %v1044 = vsub.f32 %v1039, %v1043
      %v1045 = vlaneseq
      %v1046 = vshrl.u32 %v1045, 7
      %v1047 = vsub.s32 1, %v1046
      %v1048 = vrot.slane %v1038, %v1047
      %v1049 = vmul.f32 %v584, %v1048
      %v1050 = vmul.f32 %v585, %v1048
      %v1051 = vmul.f32 %v586, %v1048
      %v1052 = vmul.f32 %v587, %v1048
      %v1053 = vmul.f32 %v588, %v1048
      %v1054 = vmul.f32 %v589, %v1048
      %v1055 = vmul.f32 %v590, %v1048
      %v1056 = vmul.f32 %v591, %v1048
      %v1057 = vmul.f32 %v592, %v1048
      %v1058 = vmul.f32 %v593, %v1048
      %v1059 = vmul.f32 %v594, %v1048
      %v1060 = vmul.f32 %v595, %v1048
      %v1061 = vmul.f32 %v596, %v1048
      %v1062 = vmul.f32 %v597, %v1048
      %v1063 = vmul.f32 %v598, %v1048
      %v1064 = vmul.f32 %v599, %v1048
      %v1065 = vmul.f32 %v600, %v1048
      %v1066 = vmul.f32 %v601, %v1048
      %v1067 = vmul.f32 %v602, %v1048
      %v1068 = vmul.f32 %v603, %v1048
      %v1069 = vmul.f32 %v604, %v1048
      %v1070 = vmul.f32 %v605, %v1048
      %v1071 = vmul.f32 %v606, %v1048
      %v1072 = vmul.f32 %v607, %v1048
      %v1073 = vmul.f32 %v608, %v1048
      %v1074 = vmul.f32 %v609, %v1048
      %v1075 = vmul.f32 %v610, %v1048
      %v1076 = vmul.f32 %v611, %v1048
      %v1077 = vmul.f32 %v612, %v1048
      %v1078 = vmul.f32 %v613, %v1048
      %v1079 = vmul.f32 %v614, %v1048
      %v1080 = vmul.f32 %v615, %v1048
      %v1082 = vlaneseq
      %v1083 = vshrl.u32 %v1082, 7
      %v1084 = vsub.s32 0, %v1083
      %v1085 = vrot.slane %v1044, %v1084
      %v1087 = vadd.f32 %v1049, %v1085
      %v1088 = vadd.f32 %v1050, %v1085
      %v1089 = vadd.f32 %v1051, %v1085
      %v1090 = vadd.f32 %v1052, %v1085
      %v1091 = vadd.f32 %v1053, %v1085
      %v1092 = vadd.f32 %v1054, %v1085
      %v1093 = vadd.f32 %v1055, %v1085
      %v1094 = vadd.f32 %v1056, %v1085
      %v1095 = vadd.f32 %v1057, %v1085
      %v1096 = vadd.f32 %v1058, %v1085
      %v1097 = vadd.f32 %v1059, %v1085
      %v1098 = vadd.f32 %v1060, %v1085
      %v1099 = vadd.f32 %v1061, %v1085
      %v1100 = vadd.f32 %v1062, %v1085
      %v1101 = vadd.f32 %v1063, %v1085
      %v1102 = vadd.f32 %v1064, %v1085
      %v1103 = vadd.f32 %v1065, %v1085
      %v1104 = vadd.f32 %v1066, %v1085
      %v1105 = vadd.f32 %v1067, %v1085
      %v1106 = vadd.f32 %v1068, %v1085
      %v1107 = vadd.f32 %v1069, %v1085
      %v1108 = vadd.f32 %v1070, %v1085
      %v1109 = vadd.f32 %v1071, %v1085
      %v1110 = vadd.f32 %v1072, %v1085
      %v1111 = vadd.f32 %v1073, %v1085
      %v1112 = vadd.f32 %v1074, %v1085
      %v1113 = vadd.f32 %v1075, %v1085
      %v1114 = vadd.f32 %v1076, %v1085
      %v1115 = vadd.f32 %v1077, %v1085
      %v1116 = vadd.f32 %v1078, %v1085
      %v1117 = vadd.f32 %v1079, %v1085
      %v1118 = vadd.f32 %v1080, %v1085
      %v1119 = vxor.u32 %v1087, 2147483648
      %v1120 = vxor.u32 %v1088, 2147483648
      %v1121 = vxor.u32 %v1089, 2147483648
      %v1122 = vxor.u32 %v1090, 2147483648
      %v1123 = vxor.u32 %v1091, 2147483648
      %v1124 = vxor.u32 %v1092, 2147483648
      %v1125 = vxor.u32 %v1093, 2147483648
      %v1126 = vxor.u32 %v1094, 2147483648
      %v1127 = vxor.u32 %v1095, 2147483648
      %v1128 = vxor.u32 %v1096, 2147483648
      %v1129 = vxor.u32 %v1097, 2147483648
      %v1130 = vxor.u32 %v1098, 2147483648
      %v1131 = vxor.u32 %v1099, 2147483648
      %v1132 = vxor.u32 %v1100, 2147483648
      %v1133 = vxor.u32 %v1101, 2147483648
      %v1134 = vxor.u32 %v1102, 2147483648
      %v1135 = vxor.u32 %v1103, 2147483648
      %v1136 = vxor.u32 %v1104, 2147483648
      %v1137 = vxor.u32 %v1105, 2147483648
      %v1138 = vxor.u32 %v1106, 2147483648
      %v1139 = vxor.u32 %v1107, 2147483648
      %v1140 = vxor.u32 %v1108, 2147483648
      %v1141 = vxor.u32 %v1109, 2147483648
      %v1142 = vxor.u32 %v1110, 2147483648
      %v1143 = vxor.u32 %v1111, 2147483648
      %v1144 = vxor.u32 %v1112, 2147483648
      %v1145 = vxor.u32 %v1113, 2147483648
      %v1146 = vxor.u32 %v1114, 2147483648
      %v1147 = vxor.u32 %v1115, 2147483648
      %v1148 = vxor.u32 %v1116, 2147483648
      %v1149 = vxor.u32 %v1117, 2147483648
      %v1150 = vxor.u32 %v1118, 2147483648
      %v1151 = vmul.f32 %v1119, 1.442695
      %v1152 = vpow.pop %v1151
      %v1153 = vmul.f32 %v1120, 1.442695
      %v1154 = vpow.pop %v1153
      %v1155 = vmul.f32 %v1121, 1.442695
      %v1156 = vpow.pop %v1155
      %v1157 = vmul.f32 %v1122, 1.442695
      %v1158 = vpow.pop %v1157
      %v1159 = vmul.f32 %v1123, 1.442695
      %v1160 = vpow.pop %v1159
      %v1161 = vmul.f32 %v1124, 1.442695
      %v1162 = vpow.pop %v1161
      %v1163 = vmul.f32 %v1125, 1.442695
      %v1164 = vpow.pop %v1163
      %v1165 = vmul.f32 %v1126, 1.442695
      %v1166 = vpow.pop %v1165
      %v1167 = vmul.f32 %v1127, 1.442695
      %v1168 = vpow.pop %v1167
      %v1169 = vmul.f32 %v1128, 1.442695
      %v1170 = vpow.pop %v1169
      %v1171 = vmul.f32 %v1129, 1.442695
      %v1172 = vpow.pop %v1171
      %v1173 = vmul.f32 %v1130, 1.442695
      %v1174 = vpow.pop %v1173
      %v1175 = vmul.f32 %v1131, 1.442695
      %v1176 = vpow.pop %v1175
      %v1177 = vmul.f32 %v1132, 1.442695
      %v1178 = vpow.pop %v1177
      %v1179 = vmul.f32 %v1133, 1.442695
      %v1180 = vpow.pop %v1179
      %v1181 = vmul.f32 %v1134, 1.442695
      %v1182 = vpow.pop %v1181
      %v1183 = vmul.f32 %v1135, 1.442695
      %v1184 = vpow.pop %v1183
      %v1185 = vmul.f32 %v1136, 1.442695
      %v1186 = vpow.pop %v1185
      %v1187 = vmul.f32 %v1137, 1.442695
      %v1188 = vpow.pop %v1187
      %v1189 = vmul.f32 %v1138, 1.442695
      %v1190 = vpow.pop %v1189
      %v1191 = vmul.f32 %v1139, 1.442695
      %v1192 = vpow.pop %v1191
      %v1193 = vmul.f32 %v1140, 1.442695
      %v1194 = vpow.pop %v1193
      %v1195 = vmul.f32 %v1141, 1.442695
      %v1196 = vpow.pop %v1195
      %v1197 = vmul.f32 %v1142, 1.442695
      %v1198 = vpow.pop %v1197
      %v1199 = vmul.f32 %v1143, 1.442695
      %v1200 = vpow.pop %v1199
      %v1201 = vmul.f32 %v1144, 1.442695
      %v1202 = vpow.pop %v1201
      %v1203 = vmul.f32 %v1145, 1.442695
      %v1204 = vpow.pop %v1203
      %v1205 = vmul.f32 %v1146, 1.442695
      %v1206 = vpow.pop %v1205
      %v1207 = vmul.f32 %v1147, 1.442695
      %v1208 = vpow.pop %v1207
      %v1209 = vmul.f32 %v1148, 1.442695
      %v1210 = vpow.pop %v1209
      %v1211 = vmul.f32 %v1149, 1.442695
      %v1212 = vpow.pop %v1211
      %v1213 = vmul.f32 %v1150, 1.442695
      %v1214 = vpow.pop %v1213
      %v1215 = vadd.f32 %v1152, 1.0
      %v1216 = vadd.f32 %v1154, 1.0
      %v1217 = vadd.f32 %v1156, 1.0
      %v1218 = vadd.f32 %v1158, 1.0
      %v1219 = vadd.f32 %v1160, 1.0
      %v1220 = vadd.f32 %v1162, 1.0
      %v1221 = vadd.f32 %v1164, 1.0
      %v1222 = vadd.f32 %v1166, 1.0
      %v1223 = vadd.f32 %v1168, 1.0
      %v1224 = vadd.f32 %v1170, 1.0
      %v1225 = vadd.f32 %v1172, 1.0
      %v1226 = vadd.f32 %v1174, 1.0
      %v1227 = vadd.f32 %v1176, 1.0
      %v1228 = vadd.f32 %v1178, 1.0
      %v1229 = vadd.f32 %v1180, 1.0
      %v1230 = vadd.f32 %v1182, 1.0
      %v1231 = vadd.f32 %v1184, 1.0
      %v1232 = vadd.f32 %v1186, 1.0
      %v1233 = vadd.f32 %v1188, 1.0
      %v1234 = vadd.f32 %v1190, 1.0
      %v1235 = vadd.f32 %v1192, 1.0
      %v1236 = vadd.f32 %v1194, 1.0
      %v1237 = vadd.f32 %v1196, 1.0
      %v1238 = vadd.f32 %v1198, 1.0
      %v1239 = vadd.f32 %v1200, 1.0
      %v1240 = vadd.f32 %v1202, 1.0
      %v1241 = vadd.f32 %v1204, 1.0
      %v1242 = vadd.f32 %v1206, 1.0
      %v1243 = vadd.f32 %v1208, 1.0
      %v1244 = vadd.f32 %v1210, 1.0
      %v1245 = vadd.f32 %v1212, 1.0
      %v1246 = vadd.f32 %v1214, 1.0
      %v1247 = vrcp.pop %v1215
      %v1248 = vmul.f32 1.0, %v1247
      %v1249 = vrcp.pop %v1216
      %v1250 = vmul.f32 1.0, %v1249
      %v1251 = vrcp.pop %v1217
      %v1252 = vmul.f32 1.0, %v1251
      %v1253 = vrcp.pop %v1218
      %v1254 = vmul.f32 1.0, %v1253
      %v1255 = vrcp.pop %v1219
      %v1256 = vmul.f32 1.0, %v1255
      %v1257 = vrcp.pop %v1220
      %v1258 = vmul.f32 1.0, %v1257
      %v1259 = vrcp.pop %v1221
      %v1260 = vmul.f32 1.0, %v1259
      %v1261 = vrcp.pop %v1222
      %v1262 = vmul.f32 1.0, %v1261
      %v1263 = vrcp.pop %v1223
      %v1264 = vmul.f32 1.0, %v1263
      %v1265 = vrcp.pop %v1224
      %v1266 = vmul.f32 1.0, %v1265
      %v1267 = vrcp.pop %v1225
      %v1268 = vmul.f32 1.0, %v1267
      %v1269 = vrcp.pop %v1226
      %v1270 = vmul.f32 1.0, %v1269
      %v1271 = vrcp.pop %v1227
      %v1272 = vmul.f32 1.0, %v1271
      %v1273 = vrcp.pop %v1228
      %v1274 = vmul.f32 1.0, %v1273
      %v1275 = vrcp.pop %v1229
      %v1276 = vmul.f32 1.0, %v1275
      %v1277 = vrcp.pop %v1230
      %v1278 = vmul.f32 1.0, %v1277
      %v1279 = vrcp.pop %v1231
      %v1280 = vmul.f32 1.0, %v1279
      %v1281 = vrcp.pop %v1232
      %v1282 = vmul.f32 1.0, %v1281
      %v1283 = vrcp.pop %v1233
      %v1284 = vmul.f32 1.0, %v1283
      %v1285 = vrcp.pop %v1234
      %v1286 = vmul.f32 1.0, %v1285
      %v1287 = vrcp.pop %v1235
      %v1288 = vmul.f32 1.0, %v1287
      %v1289 = vrcp.pop %v1236
      %v1290 = vmul.f32 1.0, %v1289
      %v1291 = vrcp.pop %v1237
      %v1292 = vmul.f32 1.0, %v1291
      %v1293 = vrcp.pop %v1238
      %v1294 = vmul.f32 1.0, %v1293
      %v1295 = vrcp.pop %v1239
      %v1296 = vmul.f32 1.0, %v1295
      %v1297 = vrcp.pop %v1240
      %v1298 = vmul.f32 1.0, %v1297
      %v1299 = vrcp.pop %v1241
      %v1300 = vmul.f32 1.0, %v1299
      %v1301 = vrcp.pop %v1242
      %v1302 = vmul.f32 1.0, %v1301
      %v1303 = vrcp.pop %v1243
      %v1304 = vmul.f32 1.0, %v1303
      %v1305 = vrcp.pop %v1244
      %v1306 = vmul.f32 1.0, %v1305
      %v1307 = vrcp.pop %v1245
      %v1308 = vmul.f32 1.0, %v1307
      %v1309 = vrcp.pop %v1246
      %v1310 = vmul.f32 1.0, %v1309
      %v1311 = vmul.f32 %v1087, %v1248
      %v1312 = vmul.f32 %v1088, %v1250
      %v1313 = vmul.f32 %v1089, %v1252
      %v1314 = vmul.f32 %v1090, %v1254
      %v1315 = vmul.f32 %v1091, %v1256
      %v1316 = vmul.f32 %v1092, %v1258
      %v1317 = vmul.f32 %v1093, %v1260
      %v1318 = vmul.f32 %v1094, %v1262
      %v1319 = vmul.f32 %v1095, %v1264
      %v1320 = vmul.f32 %v1096, %v1266
      %v1321 = vmul.f32 %v1097, %v1268
      %v1322 = vmul.f32 %v1098, %v1270
      %v1323 = vmul.f32 %v1099, %v1272
      %v1324 = vmul.f32 %v1100, %v1274
      %v1325 = vmul.f32 %v1101, %v1276
      %v1326 = vmul.f32 %v1102, %v1278
      %v1327 = vmul.f32 %v1103, %v1280
      %v1328 = vmul.f32 %v1104, %v1282
      %v1329 = vmul.f32 %v1105, %v1284
      %v1330 = vmul.f32 %v1106, %v1286
      %v1331 = vmul.f32 %v1107, %v1288
      %v1332 = vmul.f32 %v1108, %v1290
      %v1333 = vmul.f32 %v1109, %v1292
      %v1334 = vmul.f32 %v1110, %v1294
      %v1335 = vmul.f32 %v1111, %v1296
      %v1336 = vmul.f32 %v1112, %v1298
      %v1337 = vmul.f32 %v1113, %v1300
      %v1338 = vmul.f32 %v1114, %v1302
      %v1339 = vmul.f32 %v1115, %v1304
      %v1340 = vmul.f32 %v1116, %v1306
      %v1341 = vmul.f32 %v1117, %v1308
      %v1342 = vmul.f32 %v1118, %v1310
      %v1343 = vpack.c.bf16 %v1312, %v1311
      %v1344 = vpack.c.bf16 %v1314, %v1313
      %v1345 = vpack.c.bf16 %v1316, %v1315
      %v1346 = vpack.c.bf16 %v1318, %v1317
      %v1347 = vpack.c.bf16 %v1320, %v1319
      %v1348 = vpack.c.bf16 %v1322, %v1321
      %v1349 = vpack.c.bf16 %v1324, %v1323
      %v1350 = vpack.c.bf16 %v1326, %v1325
      %v1351 = vpack.c.bf16 %v1328, %v1327
      %v1352 = vpack.c.bf16 %v1330, %v1329
      %v1353 = vpack.c.bf16 %v1332, %v1331
      %v1354 = vpack.c.bf16 %v1334, %v1333
      %v1355 = vpack.c.bf16 %v1336, %v1335
      %v1356 = vpack.c.bf16 %v1338, %v1337
      %v1357 = vpack.c.bf16 %v1340, %v1339
      %v1358 = vpack.c.bf16 %v1342, %v1341
      %vm1375 = vcmask 1043456
      %v1376 = vrot.slane %v1343, 4
      %v1377 = vrot.slane %v1344, 4
      %v1378 = vsel %vm1375, %v1376, %v1377
      %v1379 = vrot.slane %v1345, 4
      %v1380 = vsel %vm1375, %v1377, %v1379
      %v1381 = vrot.slane %v1346, 4
      %v1382 = vsel %vm1375, %v1379, %v1381
      %v1383 = vrot.slane %v1347, 4
      %v1384 = vsel %vm1375, %v1381, %v1383
      %v1385 = vrot.slane %v1348, 4
      %v1386 = vsel %vm1375, %v1383, %v1385
      %v1387 = vrot.slane %v1349, 4
      %v1388 = vsel %vm1375, %v1385, %v1387
      %v1389 = vrot.slane %v1350, 4
      %v1390 = vsel %vm1375, %v1387, %v1389
      %v1391 = vrot.slane %v1351, 4
      %v1392 = vsel %vm1375, %v1389, %v1391
      %v1393 = vrot.slane %v1352, 4
      %v1394 = vsel %vm1375, %v1391, %v1393
      %v1395 = vrot.slane %v1353, 4
      %v1396 = vsel %vm1375, %v1393, %v1395
      %v1397 = vrot.slane %v1354, 4
      %v1398 = vsel %vm1375, %v1395, %v1397
      %v1399 = vrot.slane %v1355, 4
      %v1400 = vsel %vm1375, %v1397, %v1399
      %v1401 = vrot.slane %v1356, 4
      %v1402 = vsel %vm1375, %v1399, %v1401
      %v1403 = vrot.slane %v1357, 4
      %v1404 = vsel %vm1375, %v1401, %v1403
      %v1405 = vrot.slane %v1358, 4
      %v1406 = vsel %vm1375, %v1403, %v1405
      %1424 = vst.msk [vmem:[#allocation2 + $0x8] sm:$0xf0] %vm684, %v1376
      %1425 = vst.msk [vmem:[#allocation2 + $0x10] sm:$0xff] %vm680, %v1378
      %1426 = vst.msk [vmem:[#allocation2 + $0x18] sm:$0xff] %vm680, %v1380
      %1427 = vst.msk [vmem:[#allocation2 + $0x20] sm:$0xff] %vm680, %v1382
      %1428 = vst.msk [vmem:[#allocation2 + $0x28] sm:$0xff] %vm680, %v1384
      %1429 = vst.msk [vmem:[#allocation2 + $0x30] sm:$0xff] %vm680, %v1386
      %1430 = vst.msk [vmem:[#allocation2 + $0x38] sm:$0xff] %vm680, %v1388
      %1431 = vst.msk [vmem:[#allocation2 + $0x40] sm:$0xff] %vm680, %v1390
      %1432 = vst.msk [vmem:[#allocation2 + $0x48] sm:$0xff] %vm680, %v1392
      %1433 = vst.msk [vmem:[#allocation2 + $0x50] sm:$0xff] %vm680, %v1394
      %1434 = vst.msk [vmem:[#allocation2 + $0x58] sm:$0xff] %vm680, %v1396
      %1435 = vst.msk [vmem:[#allocation2 + $0x60] sm:$0xff] %vm680, %v1398
      %1436 = vst.msk [vmem:[#allocation2 + $0x68] sm:$0xff] %vm680, %v1400
      %1437 = vst.msk [vmem:[#allocation2 + $0x70] sm:$0xff] %vm680, %v1402
      %1438 = vst.msk [vmem:[#allocation2 + $0x78] sm:$0xff] %vm680, %v1404
      %1439 = vst.msk [vmem:[#allocation2 + $0x80] sm:$0xff] %vm680, %v1406
      %1440 = vst.msk [vmem:[#allocation2 + $0x88] sm:$0xf] %vm682, %v1405
      %v1441 = vld [vmem:[#allocation2] sm:$0xf8]
      %v1442 = vld [vmem:[#allocation2 + $0x8] sm:$0xff]
      %v1443 = vld [vmem:[#allocation2 + $0x10] sm:$0xff]
      %v1444 = vld [vmem:[#allocation2 + $0x18] sm:$0xff]
      %v1445 = vld [vmem:[#allocation2 + $0x20] sm:$0xff]
      %v1446 = vld [vmem:[#allocation2 + $0x28] sm:$0xff]
      %v1447 = vld [vmem:[#allocation2 + $0x30] sm:$0xff]
      %v1448 = vld [vmem:[#allocation2 + $0x38] sm:$0xff]
      %v1449 = vld [vmem:[#allocation2 + $0x40] sm:$0xff]
      %v1450 = vld [vmem:[#allocation2 + $0x48] sm:$0xff]
      %v1451 = vld [vmem:[#allocation2 + $0x50] sm:$0xff]
      %v1452 = vld [vmem:[#allocation2 + $0x58] sm:$0xff]
      %v1453 = vld [vmem:[#allocation2 + $0x60] sm:$0xff]
      %v1454 = vld [vmem:[#allocation2 + $0x68] sm:$0xff]
      %v1455 = vld [vmem:[#allocation2 + $0x70] sm:$0xff]
      %v1456 = vld [vmem:[#allocation2 + $0x78] sm:$0xff]
      %v1457 = vld [vmem:[#allocation2 + $0x80] sm:$0xf]
      %v1458 = vld [vmem:[%s7] sm:$0x3]
      %v1459 = vld [vmem:[#allocation2 + $0x8] sm:$0xf8]
      %v1460 = vld [vmem:[#allocation2 + $0x80] sm:$0xff]
      %v1461 = vld [vmem:[#allocation2 + $0x88] sm:$0xf]
      %s1462 = scalar_lea.vmem %s7, 6
      %v1463 = vld [vmem:[%s1462] sm:$0x3]
      %vm1464 = vsmask.f32 4352
      %v1466 = vshrl.u32 %v1459, 16
      %v1468 = vrot.slane %v1466, 3
      %v1469 = vshll.u32 %v1459, 16
      %v1471 = vrot.slane %v1469, 4
      %v1472 = vor.u32 %v1468, %v1471
      %v1474 = vshrl.u32 %v1443, 16
      %v1476 = vrot.slane %v1474, 3
      %v1477 = vshll.u32 %v1443, 16
      %v1479 = vrot.slane %v1477, 4
      %v1480 = vor.u32 %v1476, %v1479
      %v1481 = vsel %vm1464, %v1472, %v1480
      %v1483 = vshrl.u32 %v1444, 16
      %v1485 = vrot.slane %v1483, 3
      %v1486 = vshll.u32 %v1444, 16
      %v1488 = vrot.slane %v1486, 4
      %v1489 = vor.u32 %v1485, %v1488
      %v1490 = vsel %vm1464, %v1480, %v1489
      %v1492 = vshrl.u32 %v1445, 16
      %v1494 = vrot.slane %v1492, 3
      %v1495 = vshll.u32 %v1445, 16
      %v1497 = vrot.slane %v1495, 4
      %v1498 = vor.u32 %v1494, %v1497
      %v1499 = vsel %vm1464, %v1489, %v1498
      %v1501 = vshrl.u32 %v1446, 16
      %v1503 = vrot.slane %v1501, 3
      %v1504 = vshll.u32 %v1446, 16
      %v1506 = vrot.slane %v1504, 4
      %v1507 = vor.u32 %v1503, %v1506
      %v1508 = vsel %vm1464, %v1498, %v1507
      %v1510 = vshrl.u32 %v1447, 16
      %v1512 = vrot.slane %v1510, 3
      %v1513 = vshll.u32 %v1447, 16
      %v1515 = vrot.slane %v1513, 4
      %v1516 = vor.u32 %v1512, %v1515
      %v1517 = vsel %vm1464, %v1507, %v1516
      %v1519 = vshrl.u32 %v1448, 16
      %v1521 = vrot.slane %v1519, 3
      %v1522 = vshll.u32 %v1448, 16
      %v1524 = vrot.slane %v1522, 4
      %v1525 = vor.u32 %v1521, %v1524
      %v1526 = vsel %vm1464, %v1516, %v1525
      %v1528 = vshrl.u32 %v1449, 16
      %v1530 = vrot.slane %v1528, 3
      %v1531 = vshll.u32 %v1449, 16
      %v1533 = vrot.slane %v1531, 4
      %v1534 = vor.u32 %v1530, %v1533
      %v1535 = vsel %vm1464, %v1525, %v1534
      %v1537 = vshrl.u32 %v1450, 16
      %v1539 = vrot.slane %v1537, 3
      %v1540 = vshll.u32 %v1450, 16
      %v1542 = vrot.slane %v1540, 4
      %v1543 = vor.u32 %v1539, %v1542
      %v1544 = vsel %vm1464, %v1534, %v1543
      %v1546 = vshrl.u32 %v1451, 16
      %v1548 = vrot.slane %v1546, 3
      %v1549 = vshll.u32 %v1451, 16
      %v1551 = vrot.slane %v1549, 4
      %v1552 = vor.u32 %v1548, %v1551
      %v1553 = vsel %vm1464, %v1543, %v1552
      %v1555 = vshrl.u32 %v1452, 16
      %v1557 = vrot.slane %v1555, 3
      %v1558 = vshll.u32 %v1452, 16
      %v1560 = vrot.slane %v1558, 4
      %v1561 = vor.u32 %v1557, %v1560
      %v1562 = vsel %vm1464, %v1552, %v1561
      %v1564 = vshrl.u32 %v1453, 16
      %v1566 = vrot.slane %v1564, 3
      %v1567 = vshll.u32 %v1453, 16
      %v1569 = vrot.slane %v1567, 4
      %v1570 = vor.u32 %v1566, %v1569
      %v1571 = vsel %vm1464, %v1561, %v1570
      %v1573 = vshrl.u32 %v1454, 16
      %v1575 = vrot.slane %v1573, 3
      %v1576 = vshll.u32 %v1454, 16
      %v1578 = vrot.slane %v1576, 4
      %v1579 = vor.u32 %v1575, %v1578
      %v1580 = vsel %vm1464, %v1570, %v1579
      %v1582 = vshrl.u32 %v1455, 16
      %v1584 = vrot.slane %v1582, 3
      %v1585 = vshll.u32 %v1455, 16
      %v1587 = vrot.slane %v1585, 4
      %v1588 = vor.u32 %v1584, %v1587
      %v1589 = vsel %vm1464, %v1579, %v1588
      %v1591 = vshrl.u32 %v1456, 16
      %v1593 = vrot.slane %v1591, 3
      %v1594 = vshll.u32 %v1456, 16
      %v1596 = vrot.slane %v1594, 4
      %v1597 = vor.u32 %v1593, %v1596
      %v1598 = vsel %vm1464, %v1588, %v1597
      %v1600 = vshrl.u32 %v1460, 16
      %v1602 = vrot.slane %v1600, 3
      %v1603 = vshll.u32 %v1460, 16
      %v1605 = vrot.slane %v1603, 4
      %v1606 = vor.u32 %v1602, %v1605
      %v1607 = vsel %vm1464, %v1597, %v1606
      %v1609 = vshrl.u32 %v1461, 16
      %v1611 = vrot.slane %v1609, 3
      %v1612 = vshll.u32 %v1461, 16
      %v1614 = vrot.slane %v1612, 4
      %v1615 = vor.u32 %v1611, %v1614
      %v1616 = vsel %vm1464, %v1606, %v1615
      %v1618 = vsel %vm680, %v1481, 0
      %v1621 = vsel %vm680, %v1490, 0
      %v1624 = vsel %vm680, %v1499, 0
      %v1627 = vsel %vm680, %v1508, 0
      %v1630 = vsel %vm680, %v1517, 0
      %v1633 = vsel %vm680, %v1526, 0
      %v1636 = vsel %vm680, %v1535, 0
      %v1639 = vsel %vm680, %v1544, 0
      %v1642 = vsel %vm680, %v1553, 0
      %v1645 = vsel %vm680, %v1562, 0
      %v1648 = vsel %vm680, %v1571, 0
      %v1651 = vsel %vm680, %v1580, 0
      %v1654 = vsel %vm680, %v1589, 0
      %v1657 = vsel %vm680, %v1598, 0
      %v1660 = vsel %vm680, %v1607, 0
      %v1663 = vsel %vm680, %v1616, 0
      %vm1665 = vcmask 1041408
      %v1667 = vsel %vm1665, %v1463, 0
      %1669 = vmatprep.subr.bf16.mxu0 0
      %1670 = vmatpush1.bf16.msra.mxu0 %v1667
      %1671 = vmatprep.subr.bf16.mxu0 0
      %1672 = vmatpush1.bf16.msra.mxu0 0
      %1673 = vmatprep.subr.bf16.mxu0 0
      %1674 = vmatpush1.bf16.msra.mxu0 0
      %1675 = vmatprep.subr.bf16.mxu0 0
      %1676 = vmatpush1.bf16.msra.mxu0 0
      %1677 = vmatprep.subr.bf16.mxu0 0
      %1678 = vmatpush1.bf16.msra.mxu0 0
      %1679 = vmatprep.subr.bf16.mxu0 0
      %1680 = vmatpush1.bf16.msra.mxu0 0
      %1681 = vmatprep.subr.bf16.mxu0 0
      %1682 = vmatpush1.bf16.msra.mxu0 0
      %1683 = vmatprep.subr.bf16.mxu0 0
      %1684 = vmatpush1.bf16.msra.mxu0 0
      %1685 = vmatprep.subr.bf16.mxu0 0
      %1686 = vmatpush1.bf16.msra.mxu0 0
      %1687 = vmatprep.subr.bf16.mxu0 0
      %1688 = vmatpush1.bf16.msra.mxu0 0
      %1689 = vmatprep.subr.bf16.mxu0 0
      %1690 = vmatpush1.bf16.msra.mxu0 0
      %1691 = vmatprep.subr.bf16.mxu0 0
      %1692 = vmatpush1.bf16.msra.mxu0 0
      %1693 = vmatprep.subr.bf16.mxu0 0
      %1694 = vmatpush1.bf16.msra.mxu0 0
      %1695 = vmatprep.subr.bf16.mxu0 0
      %1696 = vmatpush1.bf16.msra.mxu0 0
      %1697 = vmatprep.subr.bf16.mxu0 0
      %1698 = vmatpush1.bf16.msra.mxu0 0
      %1699 = vmatprep.subr.bf16.mxu0 0
      %1700 = vmatpush1.bf16.msra.mxu0 0
      %1701 = vmatprep.mubr.bf16.mxu0 0
      %1702 = vmatmul.mubr.bf16.gmra.mrb[0].mxu0 %v1618
      %v1703 = vpop.f32.mrb[0].mxu0
      %v1704 = vadd.f32 0.0, %v1703
      %v1705 = vpop.f32.mrb[0].mxu0
      %v1706 = vpop.f32.mrb[0].mxu0
      %v1707 = vadd.f32 0.0, %v1706
      %v1708 = vpop.f32.mrb[0].mxu0
      %1709 = vmatprep.mubr.bf16.mxu0 0
      %1710 = vmatmul.mubr.bf16.gmra.mrb[0].mxu0 %v1621
      %v1711 = vpop.f32.mrb[0].mxu0
      %v1712 = vadd.f32 0.0, %v1711
      %v1713 = vpop.f32.mrb[0].mxu0
      %v1714 = vpop.f32.mrb[0].mxu0
      %v1715 = vadd.f32 0.0, %v1714
      %v1716 = vpop.f32.mrb[0].mxu0
      %1717 = vmatprep.mubr.bf16.mxu0 0
      %1718 = vmatmul.mubr.bf16.gmra.mrb[0].mxu0 %v1624
      %v1719 = vpop.f32.mrb[0].mxu0
      %v1720 = vadd.f32 0.0, %v1719
      %v1721 = vpop.f32.mrb[0].mxu0
      %v1722 = vpop.f32.mrb[0].mxu0
      %v1723 = vadd.f32 0.0, %v1722
      %v1724 = vpop.f32.mrb[0].mxu0
      %1725 = vmatprep.mubr.bf16.mxu0 0
      %1726 = vmatmul.mubr.bf16.gmra.mrb[0].mxu0 %v1627
      %v1727 = vpop.f32.mrb[0].mxu0
      %v1728 = vadd.f32 0.0, %v1727
      %v1729 = vpop.f32.mrb[0].mxu0
      %v1730 = vpop.f32.mrb[0].mxu0
      %v1731 = vadd.f32 0.0, %v1730
      %v1732 = vpop.f32.mrb[0].mxu0
      %1733 = vmatprep.mubr.bf16.mxu0 0
      %1734 = vmatmul.mubr.bf16.gmra.mrb[0].mxu0 %v1630
      %v1735 = vpop.f32.mrb[0].mxu0
      %v1736 = vadd.f32 0.0, %v1735
      %v1737 = vpop.f32.mrb[0].mxu0
      %v1738 = vpop.f32.mrb[0].mxu0
      %v1739 = vadd.f32 0.0, %v1738
      %v1740 = vpop.f32.mrb[0].mxu0
      %1741 = vmatprep.mubr.bf16.mxu0 0
      %1742 = vmatmul.mubr.bf16.gmra.mrb[0].mxu0 %v1633
      %v1743 = vpop.f32.mrb[0].mxu0
      %v1744 = vadd.f32 0.0, %v1743
      %v1745 = vpop.f32.mrb[0].mxu0
      %v1746 = vpop.f32.mrb[0].mxu0
      %v1747 = vadd.f32 0.0, %v1746
      %v1748 = vpop.f32.mrb[0].mxu0
      %1749 = vmatprep.mubr.bf16.mxu0 0
      %1750 = vmatmul.mubr.bf16.gmra.mrb[0].mxu0 %v1636
      %v1751 = vpop.f32.mrb[0].mxu0
      %v1752 = vadd.f32 0.0, %v1751
      %v1753 = vpop.f32.mrb[0].mxu0
      %v1754 = vpop.f32.mrb[0].mxu0
      %v1755 = vadd.f32 0.0, %v1754
      %v1756 = vpop.f32.mrb[0].mxu0
      %1757 = vmatprep.mubr.bf16.mxu0 0
      %1758 = vmatmul.mubr.bf16.gmra.mrb[0].mxu0 %v1639
      %v1759 = vpop.f32.mrb[0].mxu0
      %v1760 = vadd.f32 0.0, %v1759
      %v1761 = vpop.f32.mrb[0].mxu0
      %v1762 = vpop.f32.mrb[0].mxu0
      %v1763 = vadd.f32 0.0, %v1762
      %v1764 = vpop.f32.mrb[0].mxu0
      %1765 = vmatprep.mubr.bf16.mxu0 0
      %1766 = vmatmul.mubr.bf16.gmra.mrb[0].mxu0 %v1642
      %v1767 = vpop.f32.mrb[0].mxu0
      %v1768 = vadd.f32 0.0, %v1767
      %v1769 = vpop.f32.mrb[0].mxu0
      %v1770 = vpop.f32.mrb[0].mxu0
      %v1771 = vadd.f32 0.0, %v1770
      %v1772 = vpop.f32.mrb[0].mxu0
      %1773 = vmatprep.mubr.bf16.mxu0 0
      %1774 = vmatmul.mubr.bf16.gmra.mrb[0].mxu0 %v1645
      %v1775 = vpop.f32.mrb[0].mxu0
      %v1776 = vadd.f32 0.0, %v1775
      %v1777 = vpop.f32.mrb[0].mxu0
      %v1778 = vpop.f32.mrb[0].mxu0
      %v1779 = vadd.f32 0.0, %v1778
      %v1780 = vpop.f32.mrb[0].mxu0
      %1781 = vmatprep.mubr.bf16.mxu0 0
      %1782 = vmatmul.mubr.bf16.gmra.mrb[0].mxu0 %v1648
      %v1783 = vpop.f32.mrb[0].mxu0
      %v1784 = vadd.f32 0.0, %v1783
      %v1785 = vpop.f32.mrb[0].mxu0
      %v1786 = vpop.f32.mrb[0].mxu0
      %v1787 = vadd.f32 0.0, %v1786
      %v1788 = vpop.f32.mrb[0].mxu0
      %1789 = vmatprep.mubr.bf16.mxu0 0
      %1790 = vmatmul.mubr.bf16.gmra.mrb[0].mxu0 %v1651
      %v1791 = vpop.f32.mrb[0].mxu0
      %v1792 = vadd.f32 0.0, %v1791
      %v1793 = vpop.f32.mrb[0].mxu0
      %v1794 = vpop.f32.mrb[0].mxu0
      %v1795 = vadd.f32 0.0, %v1794
      %v1796 = vpop.f32.mrb[0].mxu0
      %1797 = vmatprep.mubr.bf16.mxu0 0
      %1798 = vmatmul.mubr.bf16.gmra.mrb[0].mxu0 %v1654
      %v1799 = vpop.f32.mrb[0].mxu0
      %v1800 = vadd.f32 0.0, %v1799
      %v1801 = vpop.f32.mrb[0].mxu0
      %v1802 = vpop.f32.mrb[0].mxu0
      %v1803 = vadd.f32 0.0, %v1802
      %v1804 = vpop.f32.mrb[0].mxu0
      %1805 = vmatprep.mubr.bf16.mxu0 0
      %1806 = vmatmul.mubr.bf16.gmra.mrb[0].mxu0 %v1657
      %v1807 = vpop.f32.mrb[0].mxu0
      %v1808 = vadd.f32 0.0, %v1807
      %v1809 = vpop.f32.mrb[0].mxu0
      %v1810 = vpop.f32.mrb[0].mxu0
      %v1811 = vadd.f32 0.0, %v1810
      %v1812 = vpop.f32.mrb[0].mxu0
      %1813 = vmatprep.mubr.bf16.mxu0 0
      %1814 = vmatmul.mubr.bf16.gmra.mrb[0].mxu0 %v1660
      %v1815 = vpop.f32.mrb[0].mxu0
      %v1816 = vadd.f32 0.0, %v1815
      %v1817 = vpop.f32.mrb[0].mxu0
      %v1818 = vpop.f32.mrb[0].mxu0
      %v1819 = vadd.f32 0.0, %v1818
      %v1820 = vpop.f32.mrb[0].mxu0
      %1821 = vmatprep.mubr.bf16.mxu0 0
      %1822 = vmatmul.mubr.bf16.gmra.mrb[0].mxu0 %v1663
      %v1823 = vpop.f32.mrb[0].mxu0
      %v1824 = vadd.f32 0.0, %v1823
      %v1825 = vpop.f32.mrb[0].mxu0
      %v1826 = vpop.f32.mrb[0].mxu0
      %v1827 = vadd.f32 0.0, %v1826
      %v1828 = vpop.f32.mrb[0].mxu0
      %1829 = vdwg.mxu0
      %v1831 = vshrl.u32 %v1441, 16
      %v1833 = vrot.slane %v1831, 3
      %v1834 = vshll.u32 %v1441, 16
      %v1836 = vrot.slane %v1834, 4
      %v1837 = vor.u32 %v1833, %v1836
      %v1839 = vshrl.u32 %v1442, 16
      %v1841 = vrot.slane %v1839, 3
      %v1842 = vshll.u32 %v1442, 16
      %v1844 = vrot.slane %v1842, 4
      %v1845 = vor.u32 %v1841, %v1844
      %v1846 = vsel %vm1464, %v1837, %v1845
      %v1847 = vsel %vm1464, %v1845, %v1480
      %v1849 = vshrl.u32 %v1457, 16
      %v1851 = vrot.slane %v1849, 3
      %v1852 = vshll.u32 %v1457, 16
      %v1854 = vrot.slane %v1852, 4
      %v1855 = vor.u32 %v1851, %v1854
      %v1856 = vsel %vm1464, %v1597, %v1855
      %v1858 = vsel %vm680, %v1846, 0
      %v1861 = vsel %vm680, %v1847, 0
      %v1864 = vsel %vm680, %v1856, 0
      %v1867 = vsel %vm1665, %v1458, 0
      %1869 = vmatprep.subr.bf16.mxu0 0
      %1870 = vmatpush1.bf16.msra.mxu0 %v1867
      %1871 = vmatprep.subr.bf16.mxu0 0
      %1872 = vmatpush1.bf16.msra.mxu0 0
      %1873 = vmatprep.subr.bf16.mxu0 0
      %1874 = vmatpush1.bf16.msra.mxu0 0
      %1875 = vmatprep.subr.bf16.mxu0 0
      %1876 = vmatpush1.bf16.msra.mxu0 0
      %1877 = vmatprep.subr.bf16.mxu0 0
      %1878 = vmatpush1.bf16.msra.mxu0 0
      %1879 = vmatprep.subr.bf16.mxu0 0
      %1880 = vmatpush1.bf16.msra.mxu0 0
      %1881 = vmatprep.subr.bf16.mxu0 0
      %1882 = vmatpush1.bf16.msra.mxu0 0
      %1883 = vmatprep.subr.bf16.mxu0 0
      %1884 = vmatpush1.bf16.msra.mxu0 0
      %1885 = vmatprep.subr.bf16.mxu0 0
      %1886 = vmatpush1.bf16.msra.mxu0 0
      %1887 = vmatprep.subr.bf16.mxu0 0
      %1888 = vmatpush1.bf16.msra.mxu0 0
      %1889 = vmatprep.subr.bf16.mxu0 0
      %1890 = vmatpush1.bf16.msra.mxu0 0
      %1891 = vmatprep.subr.bf16.mxu0 0
      %1892 = vmatpush1.bf16.msra.mxu0 0
      %1893 = vmatprep.subr.bf16.mxu0 0
      %1894 = vmatpush1.bf16.msra.mxu0 0
      %1895 = vmatprep.subr.bf16.mxu0 0
      %1896 = vmatpush1.bf16.msra.mxu0 0
      %1897 = vmatprep.subr.bf16.mxu0 0
      %1898 = vmatpush1.bf16.msra.mxu0 0
      %1899 = vmatprep.subr.bf16.mxu0 0
      %1900 = vmatpush1.bf16.msra.mxu0 0
      %1901 = vmatprep.mubr.bf16.mxu0 0
      %1902 = vmatmul.mubr.bf16.gmra.mrb[0].mxu0 %v1858
      %v1903 = vpop.f32.mrb[0].mxu0
      %v1904 = vadd.f32 %v1704, %v1903
      %v1905 = vpop.f32.mrb[0].mxu0
      %v1906 = vpop.f32.mrb[0].mxu0
      %v1907 = vadd.f32 %v1707, %v1906
      %v1908 = vpop.f32.mrb[0].mxu0
      %1909 = vmatprep.mubr.bf16.mxu0 0
      %1910 = vmatmul.mubr.bf16.gmra.mrb[0].mxu0 %v1861
      %v1911 = vpop.f32.mrb[0].mxu0
      %v1912 = vadd.f32 %v1712, %v1911
      %v1913 = vpop.f32.mrb[0].mxu0
      %v1914 = vpop.f32.mrb[0].mxu0
      %v1915 = vadd.f32 %v1715, %v1914
      %v1916 = vpop.f32.mrb[0].mxu0
      %1917 = vmatprep.mubr.bf16.mxu0 0
      %1918 = vmatmul.mubr.bf16.gmra.mrb[0].mxu0 %v1621
      %v1919 = vpop.f32.mrb[0].mxu0
      %v1920 = vadd.f32 %v1720, %v1919
      %v1921 = vpop.f32.mrb[0].mxu0
      %v1922 = vpop.f32.mrb[0].mxu0
      %v1923 = vadd.f32 %v1723, %v1922
      %v1924 = vpop.f32.mrb[0].mxu0
      %1925 = vmatprep.mubr.bf16.mxu0 0
      %1926 = vmatmul.mubr.bf16.gmra.mrb[0].mxu0 %v1624
      %v1927 = vpop.f32.mrb[0].mxu0
      %v1928 = vadd.f32 %v1728, %v1927
      %v1929 = vpop.f32.mrb[0].mxu0
      %v1930 = vpop.f32.mrb[0].mxu0
      %v1931 = vadd.f32 %v1731, %v1930
      %v1932 = vpop.f32.mrb[0].mxu0
      %1933 = vmatprep.mubr.bf16.mxu0 0
      %1934 = vmatmul.mubr.bf16.gmra.mrb[0].mxu0 %v1627
      %v1935 = vpop.f32.mrb[0].mxu0
      %v1936 = vadd.f32 %v1736, %v1935
      %v1937 = vpop.f32.mrb[0].mxu0
      %v1938 = vpop.f32.mrb[0].mxu0
      %v1939 = vadd.f32 %v1739, %v1938
      %v1940 = vpop.f32.mrb[0].mxu0
      %1941 = vmatprep.mubr.bf16.mxu0 0
      %1942 = vmatmul.mubr.bf16.gmra.mrb[0].mxu0 %v1630
      %v1943 = vpop.f32.mrb[0].mxu0
      %v1944 = vadd.f32 %v1744, %v1943
      %v1945 = vpop.f32.mrb[0].mxu0
      %v1946 = vpop.f32.mrb[0].mxu0
      %v1947 = vadd.f32 %v1747, %v1946
      %v1948 = vpop.f32.mrb[0].mxu0
      %1949 = vmatprep.mubr.bf16.mxu0 0
      %1950 = vmatmul.mubr.bf16.gmra.mrb[0].mxu0 %v1633
      %v1951 = vpop.f32.mrb[0].mxu0
      %v1952 = vadd.f32 %v1752, %v1951
      %v1953 = vpop.f32.mrb[0].mxu0
      %v1954 = vpop.f32.mrb[0].mxu0
      %v1955 = vadd.f32 %v1755, %v1954
      %v1956 = vpop.f32.mrb[0].mxu0
      %1957 = vmatprep.mubr.bf16.mxu0 0
      %1958 = vmatmul.mubr.bf16.gmra.mrb[0].mxu0 %v1636
      %v1959 = vpop.f32.mrb[0].mxu0
      %v1960 = vadd.f32 %v1760, %v1959
      %v1961 = vpop.f32.mrb[0].mxu0
      %v1962 = vpop.f32.mrb[0].mxu0
      %v1963 = vadd.f32 %v1763, %v1962
      %v1964 = vpop.f32.mrb[0].mxu0
      %1965 = vmatprep.mubr.bf16.mxu0 0
      %1966 = vmatmul.mubr.bf16.gmra.mrb[0].mxu0 %v1639
      %v1967 = vpop.f32.mrb[0].mxu0
      %v1968 = vadd.f32 %v1768, %v1967
      %v1969 = vpop.f32.mrb[0].mxu0
      %v1970 = vpop.f32.mrb[0].mxu0
      %v1971 = vadd.f32 %v1771, %v1970
      %v1972 = vpop.f32.mrb[0].mxu0
      %1973 = vmatprep.mubr.bf16.mxu0 0
      %1974 = vmatmul.mubr.bf16.gmra.mrb[0].mxu0 %v1642
      %v1975 = vpop.f32.mrb[0].mxu0
      %v1976 = vadd.f32 %v1776, %v1975
      %v1977 = vpop.f32.mrb[0].mxu0
      %v1978 = vpop.f32.mrb[0].mxu0
      %v1979 = vadd.f32 %v1779, %v1978
      %v1980 = vpop.f32.mrb[0].mxu0
      %1981 = vmatprep.mubr.bf16.mxu0 0
      %1982 = vmatmul.mubr.bf16.gmra.mrb[0].mxu0 %v1645
      %v1983 = vpop.f32.mrb[0].mxu0
      %v1984 = vadd.f32 %v1784, %v1983
      %v1985 = vpop.f32.mrb[0].mxu0
      %v1986 = vpop.f32.mrb[0].mxu0
      %v1987 = vadd.f32 %v1787, %v1986
      %v1988 = vpop.f32.mrb[0].mxu0
      %1989 = vmatprep.mubr.bf16.mxu0 0
      %1990 = vmatmul.mubr.bf16.gmra.mrb[0].mxu0 %v1648
      %v1991 = vpop.f32.mrb[0].mxu0
      %v1992 = vadd.f32 %v1792, %v1991
      %v1993 = vpop.f32.mrb[0].mxu0
      %v1994 = vpop.f32.mrb[0].mxu0
      %v1995 = vadd.f32 %v1795, %v1994
      %v1996 = vpop.f32.mrb[0].mxu0
      %1997 = vmatprep.mubr.bf16.mxu0 0
      %1998 = vmatmul.mubr.bf16.gmra.mrb[0].mxu0 %v1651
      %v1999 = vpop.f32.mrb[0].mxu0
      %v2000 = vadd.f32 %v1800, %v1999
      %v2001 = vpop.f32.mrb[0].mxu0
      %v2002 = vpop.f32.mrb[0].mxu0
      %v2003 = vadd.f32 %v1803, %v2002
      %v2004 = vpop.f32.mrb[0].mxu0
      %2005 = vmatprep.mubr.bf16.mxu0 0
      %2006 = vmatmul.mubr.bf16.gmra.mrb[0].mxu0 %v1654
      %v2007 = vpop.f32.mrb[0].mxu0
      %v2008 = vadd.f32 %v1808, %v2007
      %v2009 = vpop.f32.mrb[0].mxu0
      %v2010 = vpop.f32.mrb[0].mxu0
      %v2011 = vadd.f32 %v1811, %v2010
      %v2012 = vpop.f32.mrb[0].mxu0
      %2013 = vmatprep.mubr.bf16.mxu0 0
      %2014 = vmatmul.mubr.bf16.gmra.mrb[0].mxu0 %v1657
      %v2015 = vpop.f32.mrb[0].mxu0
      %v2016 = vadd.f32 %v1816, %v2015
      %v2017 = vpop.f32.mrb[0].mxu0
      %v2018 = vpop.f32.mrb[0].mxu0
      %v2019 = vadd.f32 %v1819, %v2018
      %v2020 = vpop.f32.mrb[0].mxu0
      %2021 = vmatprep.mubr.bf16.mxu0 0
      %2022 = vmatmul.mubr.bf16.gmra.mrb[0].mxu0 %v1864
      %v2023 = vpop.f32.mrb[0].mxu0
      %v2024 = vadd.f32 %v1824, %v2023
      %v2025 = vpop.f32.mrb[0].mxu0
      %v2026 = vpop.f32.mrb[0].mxu0
      %v2027 = vadd.f32 %v1827, %v2026
      %v2028 = vpop.f32.mrb[0].mxu0
      %2029 = vdwg.mxu0
      %v2030 = vld [vmem:[#allocation2 + $0x10] sm:$0xf8]
      %v2031 = vld [vmem:[#allocation2 + $0x18] sm:$0xff]
      %v2032 = vld [vmem:[#allocation2 + $0x20] sm:$0xff]
      %v2033 = vld [vmem:[#allocation2 + $0x28] sm:$0xff]
      %v2034 = vld [vmem:[#allocation2 + $0x30] sm:$0xff]
      %v2035 = vld [vmem:[#allocation2 + $0x38] sm:$0xff]
      %v2036 = vld [vmem:[#allocation2 + $0x40] sm:$0xff]
      %v2037 = vld [vmem:[#allocation2 + $0x48] sm:$0xff]
      %v2038 = vld [vmem:[#allocation2 + $0x50] sm:$0xff]
      %v2039 = vld [vmem:[#allocation2 + $0x58] sm:$0xff]
      %v2040 = vld [vmem:[#allocation2 + $0x60] sm:$0xff]
      %v2041 = vld [vmem:[#allocation2 + $0x68] sm:$0xff]
      %v2042 = vld [vmem:[#allocation2 + $0x70] sm:$0xff]
      %v2043 = vld [vmem:[#allocation2 + $0x78] sm:$0xff]
      %v2044 = vld [vmem:[#allocation2 + $0x80] sm:$0xff]
      %v2045 = vld [vmem:[#allocation2 + $0x88] sm:$0xff]
      %v2046 = vld [vmem:[#allocation2 + $0x90] sm:$0xf]
      %s2047 = scalar_lea.vmem %s7, 12
      %v2048 = vld [vmem:[%s2047] sm:$0x3]
      %v2050 = vshrl.u32 %v2030, 16
      %v2052 = vrot.slane %v2050, 3
      %v2053 = vshll.u32 %v2030, 16
      %v2055 = vrot.slane %v2053, 4
      %v2056 = vor.u32 %v2052, %v2055
      %v2058 = vshrl.u32 %v2031, 16
      %v2060 = vrot.slane %v2058, 3
      %v2061 = vshll.u32 %v2031, 16
      %v2063 = vrot.slane %v2061, 4
      %v2064 = vor.u32 %v2060, %v2063
      %v2065 = vsel %vm1464, %v2056, %v2064
      %v2067 = vshrl.u32 %v2032, 16
      %v2069 = vrot.slane %v2067, 3
      %v2070 = vshll.u32 %v2032, 16
      %v2072 = vrot.slane %v2070, 4
      %v2073 = vor.u32 %v2069, %v2072
      %v2074 = vsel %vm1464, %v2064, %v2073
      %v2076 = vshrl.u32 %v2033, 16
      %v2078 = vrot.slane %v2076, 3
      %v2079 = vshll.u32 %v2033, 16
      %v2081 = vrot.slane %v2079, 4
      %v2082 = vor.u32 %v2078, %v2081
      %v2083 = vsel %vm1464, %v2073, %v2082
      %v2085 = vshrl.u32 %v2034, 16
      %v2087 = vrot.slane %v2085, 3
      %v2088 = vshll.u32 %v2034, 16
      %v2090 = vrot.slane %v2088, 4
      %v2091 = vor.u32 %v2087, %v2090
      %v2092 = vsel %vm1464, %v2082, %v2091
      %v2094 = vshrl.u32 %v2035, 16
      %v2096 = vrot.slane %v2094, 3
      %v2097 = vshll.u32 %v2035, 16
      %v2099 = vrot.slane %v2097, 4
      %v2100 = vor.u32 %v2096, %v2099
      %v2101 = vsel %vm1464, %v2091, %v2100
      %v2103 = vshrl.u32 %v2036, 16
      %v2105 = vrot.slane %v2103, 3
      %v2106 = vshll.u32 %v2036, 16
      %v2108 = vrot.slane %v2106, 4
      %v2109 = vor.u32 %v2105, %v2108
      %v2110 = vsel %vm1464, %v2100, %v2109
      %v2112 = vshrl.u32 %v2037, 16
      %v2114 = vrot.slane %v2112, 3
      %v2115 = vshll.u32 %v2037, 16
      %v2117 = vrot.slane %v2115, 4
      %v2118 = vor.u32 %v2114, %v2117
      %v2119 = vsel %vm1464, %v2109, %v2118
      %v2121 = vshrl.u32 %v2038, 16
      %v2123 = vrot.slane %v2121, 3
      %v2124 = vshll.u32 %v2038, 16
      %v2126 = vrot.slane %v2124, 4
      %v2127 = vor.u32 %v2123, %v2126
      %v2128 = vsel %vm1464, %v2118, %v2127
      %v2130 = vshrl.u32 %v2039, 16
      %v2132 = vrot.slane %v2130, 3
      %v2133 = vshll.u32 %v2039, 16
      %v2135 = vrot.slane %v2133, 4
      %v2136 = vor.u32 %v2132, %v2135
      %v2137 = vsel %vm1464, %v2127, %v2136
      %v2139 = vshrl.u32 %v2040, 16
      %v2141 = vrot.slane %v2139, 3
      %v2142 = vshll.u32 %v2040, 16
      %v2144 = vrot.slane %v2142, 4
      %v2145 = vor.u32 %v2141, %v2144
      %v2146 = vsel %vm1464, %v2136, %v2145
      %v2148 = vshrl.u32 %v2041, 16
      %v2150 = vrot.slane %v2148, 3
      %v2151 = vshll.u32 %v2041, 16
      %v2153 = vrot.slane %v2151, 4
      %v2154 = vor.u32 %v2150, %v2153
      %v2155 = vsel %vm1464, %v2145, %v2154
      %v2157 = vshrl.u32 %v2042, 16
      %v2159 = vrot.slane %v2157, 3
      %v2160 = vshll.u32 %v2042, 16
      %v2162 = vrot.slane %v2160, 4
      %v2163 = vor.u32 %v2159, %v2162
      %v2164 = vsel %vm1464, %v2154, %v2163
      %v2166 = vshrl.u32 %v2043, 16
      %v2168 = vrot.slane %v2166, 3
      %v2169 = vshll.u32 %v2043, 16
      %v2171 = vrot.slane %v2169, 4
      %v2172 = vor.u32 %v2168, %v2171
      %v2173 = vsel %vm1464, %v2163, %v2172
      %v2175 = vshrl.u32 %v2044, 16
      %v2177 = vrot.slane %v2175, 3
      %v2178 = vshll.u32 %v2044, 16
      %v2180 = vrot.slane %v2178, 4
      %v2181 = vor.u32 %v2177, %v2180
      %v2182 = vsel %vm1464, %v2172, %v2181
      %v2184 = vshrl.u32 %v2045, 16
      %v2186 = vrot.slane %v2184, 3
      %v2187 = vshll.u32 %v2045, 16
      %v2189 = vrot.slane %v2187, 4
      %v2190 = vor.u32 %v2186, %v2189
      %v2191 = vsel %vm1464, %v2181, %v2190
      %v2193 = vshrl.u32 %v2046, 16
      %v2195 = vrot.slane %v2193, 3
      %v2196 = vshll.u32 %v2046, 16
      %v2198 = vrot.slane %v2196, 4
      %v2199 = vor.u32 %v2195, %v2198
      %v2200 = vsel %vm1464, %v2190, %v2199
      %v2202 = vsel %vm680, %v2065, 0
      %v2205 = vsel %vm680, %v2074, 0
      %v2208 = vsel %vm680, %v2083, 0
      %v2211 = vsel %vm680, %v2092, 0
      %v2214 = vsel %vm680, %v2101, 0
      %v2217 = vsel %vm680, %v2110, 0
      %v2220 = vsel %vm680, %v2119, 0
      %v2223 = vsel %vm680, %v2128, 0
      %v2226 = vsel %vm680, %v2137, 0
      %v2229 = vsel %vm680, %v2146, 0
      %v2232 = vsel %vm680, %v2155, 0
      %v2235 = vsel %vm680, %v2164, 0
      %v2238 = vsel %vm680, %v2173, 0
      %v2241 = vsel %vm680, %v2182, 0
      %v2244 = vsel %vm680, %v2191, 0
      %v2247 = vsel %vm680, %v2200, 0
      %v2250 = vsel %vm1665, %v2048, 0
      %2252 = vmatprep.subr.bf16.mxu0 0
      %2253 = vmatpush1.bf16.msra.mxu0 %v2250
      %2254 = vmatprep.subr.bf16.mxu0 0
      %2255 = vmatpush1.bf16.msra.mxu0 0
      %2256 = vmatprep.subr.bf16.mxu0 0
      %2257 = vmatpush1.bf16.msra.mxu0 0
      %2258 = vmatprep.subr.bf16.mxu0 0
      %2259 = vmatpush1.bf16.msra.mxu0 0
      %2260 = vmatprep.subr.bf16.mxu0 0
      %2261 = vmatpush1.bf16.msra.mxu0 0
      %2262 = vmatprep.subr.bf16.mxu0 0
      %2263 = vmatpush1.bf16.msra.mxu0 0
      %2264 = vmatprep.subr.bf16.mxu0 0
      %2265 = vmatpush1.bf16.msra.mxu0 0
      %2266 = vmatprep.subr.bf16.mxu0 0
      %2267 = vmatpush1.bf16.msra.mxu0 0
      %2268 = vmatprep.subr.bf16.mxu0 0
      %2269 = vmatpush1.bf16.msra.mxu0 0
      %2270 = vmatprep.subr.bf16.mxu0 0
      %2271 = vmatpush1.bf16.msra.mxu0 0
      %2272 = vmatprep.subr.bf16.mxu0 0
      %2273 = vmatpush1.bf16.msra.mxu0 0
      %2274 = vmatprep.subr.bf16.mxu0 0
      %2275 = vmatpush1.bf16.msra.mxu0 0
      %2276 = vmatprep.subr.bf16.mxu0 0
      %2277 = vmatpush1.bf16.msra.mxu0 0
      %2278 = vmatprep.subr.bf16.mxu0 0
      %2279 = vmatpush1.bf16.msra.mxu0 0
      %2280 = vmatprep.subr.bf16.mxu0 0
      %2281 = vmatpush1.bf16.msra.mxu0 0
      %2282 = vmatprep.subr.bf16.mxu0 0
      %2283 = vmatpush1.bf16.msra.mxu0 0
      %2284 = vmatprep.mubr.bf16.mxu0 0
      %2285 = vmatmul.mubr.bf16.gmra.mrb[0].mxu0 %v2202
      %v2286 = vpop.f32.mrb[0].mxu0
      %v2287 = vadd.f32 0.0, %v2286
      %v2288 = vpop.f32.mrb[0].mxu0
      %v2289 = vpop.f32.mrb[0].mxu0
      %v2290 = vadd.f32 0.0, %v2289
      %v2291 = vpop.f32.mrb[0].mxu0
      %2292 = vmatprep.mubr.bf16.mxu0 0
      %2293 = vmatmul.mubr.bf16.gmra.mrb[0].mxu0 %v2205
      %v2294 = vpop.f32.mrb[0].mxu0
      %v2295 = vadd.f32 0.0, %v2294
      %v2296 = vpop.f32.mrb[0].mxu0
      %v2297 = vpop.f32.mrb[0].mxu0
      %v2298 = vadd.f32 0.0, %v2297
      %v2299 = vpop.f32.mrb[0].mxu0
      %2300 = vmatprep.mubr.bf16.mxu0 0
      %2301 = vmatmul.mubr.bf16.gmra.mrb[0].mxu0 %v2208
      %v2302 = vpop.f32.mrb[0].mxu0
      %v2303 = vadd.f32 0.0, %v2302
      %v2304 = vpop.f32.mrb[0].mxu0
      %v2305 = vpop.f32.mrb[0].mxu0
      %v2306 = vadd.f32 0.0, %v2305
      %v2307 = vpop.f32.mrb[0].mxu0
      %2308 = vmatprep.mubr.bf16.mxu0 0
      %2309 = vmatmul.mubr.bf16.gmra.mrb[0].mxu0 %v2211
      %v2310 = vpop.f32.mrb[0].mxu0
      %v2311 = vadd.f32 0.0, %v2310
      %v2312 = vpop.f32.mrb[0].mxu0
      %v2313 = vpop.f32.mrb[0].mxu0
      %v2314 = vadd.f32 0.0, %v2313
      %v2315 = vpop.f32.mrb[0].mxu0
      %2316 = vmatprep.mubr.bf16.mxu0 0
      %2317 = vmatmul.mubr.bf16.gmra.mrb[0].mxu0 %v2214
      %v2318 = vpop.f32.mrb[0].mxu0
      %v2319 = vadd.f32 0.0, %v2318
      %v2320 = vpop.f32.mrb[0].mxu0
      %v2321 = vpop.f32.mrb[0].mxu0
      %v2322 = vadd.f32 0.0, %v2321
      %v2323 = vpop.f32.mrb[0].mxu0
      %2324 = vmatprep.mubr.bf16.mxu0 0
      %2325 = vmatmul.mubr.bf16.gmra.mrb[0].mxu0 %v2217
      %v2326 = vpop.f32.mrb[0].mxu0
      %v2327 = vadd.f32 0.0, %v2326
      %v2328 = vpop.f32.mrb[0].mxu0
      %v2329 = vpop.f32.mrb[0].mxu0
      %v2330 = vadd.f32 0.0, %v2329
      %v2331 = vpop.f32.mrb[0].mxu0
      %2332 = vmatprep.mubr.bf16.mxu0 0
      %2333 = vmatmul.mubr.bf16.gmra.mrb[0].mxu0 %v2220
      %v2334 = vpop.f32.mrb[0].mxu0
      %v2335 = vadd.f32 0.0, %v2334
      %v2336 = vpop.f32.mrb[0].mxu0
      %v2337 = vpop.f32.mrb[0].mxu0
      %v2338 = vadd.f32 0.0, %v2337
      %v2339 = vpop.f32.mrb[0].mxu0
      %2340 = vmatprep.mubr.bf16.mxu0 0
      %2341 = vmatmul.mubr.bf16.gmra.mrb[0].mxu0 %v2223
      %v2342 = vpop.f32.mrb[0].mxu0
      %v2343 = vadd.f32 0.0, %v2342
      %v2344 = vpop.f32.mrb[0].mxu0
      %v2345 = vpop.f32.mrb[0].mxu0
      %v2346 = vadd.f32 0.0, %v2345
      %v2347 = vpop.f32.mrb[0].mxu0
      %2348 = vmatprep.mubr.bf16.mxu0 0
      %2349 = vmatmul.mubr.bf16.gmra.mrb[0].mxu0 %v2226
      %v2350 = vpop.f32.mrb[0].mxu0
      %v2351 = vadd.f32 0.0, %v2350
      %v2352 = vpop.f32.mrb[0].mxu0
      %v2353 = vpop.f32.mrb[0].mxu0
      %v2354 = vadd.f32 0.0, %v2353
      %v2355 = vpop.f32.mrb[0].mxu0
      %2356 = vmatprep.mubr.bf16.mxu0 0
      %2357 = vmatmul.mubr.bf16.gmra.mrb[0].mxu0 %v2229
      %v2358 = vpop.f32.mrb[0].mxu0
      %v2359 = vadd.f32 0.0, %v2358
      %v2360 = vpop.f32.mrb[0].mxu0
      %v2361 = vpop.f32.mrb[0].mxu0
      %v2362 = vadd.f32 0.0, %v2361
      %v2363 = vpop.f32.mrb[0].mxu0
      %2364 = vmatprep.mubr.bf16.mxu0 0
      %2365 = vmatmul.mubr.bf16.gmra.mrb[0].mxu0 %v2232
      %v2366 = vpop.f32.mrb[0].mxu0
      %v2367 = vadd.f32 0.0, %v2366
      %v2368 = vpop.f32.mrb[0].mxu0
      %v2369 = vpop.f32.mrb[0].mxu0
      %v2370 = vadd.f32 0.0, %v2369
      %v2371 = vpop.f32.mrb[0].mxu0
      %2372 = vmatprep.mubr.bf16.mxu0 0
      %2373 = vmatmul.mubr.bf16.gmra.mrb[0].mxu0 %v2235
      %v2374 = vpop.f32.mrb[0].mxu0
      %v2375 = vadd.f32 0.0, %v2374
      %v2376 = vpop.f32.mrb[0].mxu0
      %v2377 = vpop.f32.mrb[0].mxu0
      %v2378 = vadd.f32 0.0, %v2377
      %v2379 = vpop.f32.mrb[0].mxu0
      %2380 = vmatprep.mubr.bf16.mxu0 0
      %2381 = vmatmul.mubr.bf16.gmra.mrb[0].mxu0 %v2238
      %v2382 = vpop.f32.mrb[0].mxu0
      %v2383 = vadd.f32 0.0, %v2382
      %v2384 = vpop.f32.mrb[0].mxu0
      %v2385 = vpop.f32.mrb[0].mxu0
      %v2386 = vadd.f32 0.0, %v2385
      %v2387 = vpop.f32.mrb[0].mxu0
      %2388 = vmatprep.mubr.bf16.mxu0 0
      %2389 = vmatmul.mubr.bf16.gmra.mrb[0].mxu0 %v2241
      %v2390 = vpop.f32.mrb[0].mxu0
      %v2391 = vadd.f32 0.0, %v2390
      %v2392 = vpop.f32.mrb[0].mxu0
      %v2393 = vpop.f32.mrb[0].mxu0
      %v2394 = vadd.f32 0.0, %v2393
      %v2395 = vpop.f32.mrb[0].mxu0
      %2396 = vmatprep.mubr.bf16.mxu0 0
      %2397 = vmatmul.mubr.bf16.gmra.mrb[0].mxu0 %v2244
      %v2398 = vpop.f32.mrb[0].mxu0
      %v2399 = vadd.f32 0.0, %v2398
      %v2400 = vpop.f32.mrb[0].mxu0
      %v2401 = vpop.f32.mrb[0].mxu0
      %v2402 = vadd.f32 0.0, %v2401
      %v2403 = vpop.f32.mrb[0].mxu0
      %2404 = vmatprep.mubr.bf16.mxu0 0
      %2405 = vmatmul.mubr.bf16.gmra.mrb[0].mxu0 %v2247
      %v2406 = vpop.f32.mrb[0].mxu0
      %v2407 = vadd.f32 0.0, %v2406
      %v2408 = vpop.f32.mrb[0].mxu0
      %v2409 = vpop.f32.mrb[0].mxu0
      %v2410 = vadd.f32 0.0, %v2409
      %v2411 = vpop.f32.mrb[0].mxu0
      %2412 = vdwg.mxu0
      %v2413 = vadd.f32 %v1904, %v2287
      %v2414 = vadd.f32 %v1907, %v2290
      %v2415 = vadd.f32 %v1912, %v2295
      %v2416 = vadd.f32 %v1915, %v2298
      %v2417 = vadd.f32 %v1920, %v2303
      %v2418 = vadd.f32 %v1923, %v2306
      %v2419 = vadd.f32 %v1928, %v2311
      %v2420 = vadd.f32 %v1931, %v2314
      %v2421 = vadd.f32 %v1936, %v2319
      %v2422 = vadd.f32 %v1939, %v2322
      %v2423 = vadd.f32 %v1944, %v2327
      %v2424 = vadd.f32 %v1947, %v2330
      %v2425 = vadd.f32 %v1952, %v2335
      %v2426 = vadd.f32 %v1955, %v2338
      %v2427 = vadd.f32 %v1960, %v2343
      %v2428 = vadd.f32 %v1963, %v2346
      %v2429 = vadd.f32 %v1968, %v2351
      %v2430 = vadd.f32 %v1971, %v2354
      %v2431 = vadd.f32 %v1976, %v2359
      %v2432 = vadd.f32 %v1979, %v2362
      %v2433 = vadd.f32 %v1984, %v2367
      %v2434 = vadd.f32 %v1987, %v2370
      %v2435 = vadd.f32 %v1992, %v2375
      %v2436 = vadd.f32 %v1995, %v2378
      %v2437 = vadd.f32 %v2000, %v2383
      %v2438 = vadd.f32 %v2003, %v2386
      %v2439 = vadd.f32 %v2008, %v2391
      %v2440 = vadd.f32 %v2011, %v2394
      %v2441 = vadd.f32 %v2016, %v2399
      %v2442 = vadd.f32 %v2019, %v2402
      %v2443 = vadd.f32 %v2024, %v2407
      %v2444 = vadd.f32 %v2027, %v2410
      %2446 = vset.pattern.permute.xlu0 0
      %2447 = vperm.xlu0 %2446, %v616
      %v2448 = vpop.permute.xlu0 %2447
      %2451 = vset.pattern.permute.xlu0 0
      %2452 = vperm.xlu0 %2451, %v617
      %v2453 = vpop.permute.xlu0 %2452
      %2456 = vset.pattern.permute.xlu0 0
      %2457 = vperm.xlu0 %2456, %v618
      %v2458 = vpop.permute.xlu0 %2457
      %2461 = vset.pattern.permute.xlu0 0
      %2462 = vperm.xlu0 %2461, %v619
      %v2463 = vpop.permute.xlu0 %2462
      %2466 = vset.pattern.permute.xlu0 0
      %2467 = vperm.xlu0 %2466, %v620
      %v2468 = vpop.permute.xlu0 %2467
      %2471 = vset.pattern.permute.xlu0 0
      %2472 = vperm.xlu0 %2471, %v621
      %v2473 = vpop.permute.xlu0 %2472
      %2476 = vset.pattern.permute.xlu0 0
      %2477 = vperm.xlu0 %2476, %v622
      %v2478 = vpop.permute.xlu0 %2477
      %2481 = vset.pattern.permute.xlu0 0
      %2482 = vperm.xlu0 %2481, %v623
      %v2483 = vpop.permute.xlu0 %2482
      %2486 = vset.pattern.permute.xlu0 0
      %2487 = vperm.xlu0 %2486, %v624
      %v2488 = vpop.permute.xlu0 %2487
      %2491 = vset.pattern.permute.xlu0 0
      %2492 = vperm.xlu0 %2491, %v625
      %v2493 = vpop.permute.xlu0 %2492
      %2496 = vset.pattern.permute.xlu0 0
      %2497 = vperm.xlu0 %2496, %v626
      %v2498 = vpop.permute.xlu0 %2497
      %2501 = vset.pattern.permute.xlu0 0
      %2502 = vperm.xlu0 %2501, %v627
      %v2503 = vpop.permute.xlu0 %2502
      %2506 = vset.pattern.permute.xlu0 0
      %2507 = vperm.xlu0 %2506, %v628
      %v2508 = vpop.permute.xlu0 %2507
      %2511 = vset.pattern.permute.xlu0 0
      %2512 = vperm.xlu0 %2511, %v629
      %v2513 = vpop.permute.xlu0 %2512
      %2516 = vset.pattern.permute.xlu0 0
      %2517 = vperm.xlu0 %2516, %v630
      %v2518 = vpop.permute.xlu0 %2517
      %2521 = vset.pattern.permute.xlu0 0
      %2522 = vperm.xlu0 %2521, %v631
      %v2523 = vpop.permute.xlu0 %2522
      %2526 = vset.pattern.permute.xlu0 0
      %2527 = vperm.xlu0 %2526, %v632
      %v2528 = vpop.permute.xlu0 %2527
      %2531 = vset.pattern.permute.xlu0 0
      %2532 = vperm.xlu0 %2531, %v633
      %v2533 = vpop.permute.xlu0 %2532
      %2536 = vset.pattern.permute.xlu0 0
      %2537 = vperm.xlu0 %2536, %v634
      %v2538 = vpop.permute.xlu0 %2537
      %2541 = vset.pattern.permute.xlu0 0
      %2542 = vperm.xlu0 %2541, %v635
      %v2543 = vpop.permute.xlu0 %2542
      %2546 = vset.pattern.permute.xlu0 0
      %2547 = vperm.xlu0 %2546, %v636
      %v2548 = vpop.permute.xlu0 %2547
      %2551 = vset.pattern.permute.xlu0 0
      %2552 = vperm.xlu0 %2551, %v637
      %v2553 = vpop.permute.xlu0 %2552
      %2556 = vset.pattern.permute.xlu0 0
      %2557 = vperm.xlu0 %2556, %v638
      %v2558 = vpop.permute.xlu0 %2557
      %2561 = vset.pattern.permute.xlu0 0
      %2562 = vperm.xlu0 %2561, %v639
      %v2563 = vpop.permute.xlu0 %2562
      %2566 = vset.pattern.permute.xlu0 0
      %2567 = vperm.xlu0 %2566, %v640
      %v2568 = vpop.permute.xlu0 %2567
      %2571 = vset.pattern.permute.xlu0 0
      %2572 = vperm.xlu0 %2571, %v641
      %v2573 = vpop.permute.xlu0 %2572
      %2576 = vset.pattern.permute.xlu0 0
      %2577 = vperm.xlu0 %2576, %v642
      %v2578 = vpop.permute.xlu0 %2577
      %2581 = vset.pattern.permute.xlu0 0
      %2582 = vperm.xlu0 %2581, %v643
      %v2583 = vpop.permute.xlu0 %2582
      %2586 = vset.pattern.permute.xlu0 0
      %2587 = vperm.xlu0 %2586, %v644
      %v2588 = vpop.permute.xlu0 %2587
      %2591 = vset.pattern.permute.xlu0 0
      %2592 = vperm.xlu0 %2591, %v645
      %v2593 = vpop.permute.xlu0 %2592
      %2596 = vset.pattern.permute.xlu0 0
      %2597 = vperm.xlu0 %2596, %v646
      %v2598 = vpop.permute.xlu0 %2597
      %2601 = vset.pattern.permute.xlu0 0
      %2602 = vperm.xlu0 %2601, %v647
      %v2603 = vpop.permute.xlu0 %2602
      %v2605 = vmul.f32 %v2413, %v2448
      %v2606 = vmul.f32 %v2414, %v2453
      %v2607 = vmul.f32 %v2415, %v2458
      %v2608 = vmul.f32 %v2416, %v2463
      %v2609 = vmul.f32 %v2417, %v2468
      %v2610 = vmul.f32 %v2418, %v2473
      %v2611 = vmul.f32 %v2419, %v2478
      %v2612 = vmul.f32 %v2420, %v2483
      %v2613 = vmul.f32 %v2421, %v2488
      %v2614 = vmul.f32 %v2422, %v2493
      %v2615 = vmul.f32 %v2423, %v2498
      %v2616 = vmul.f32 %v2424, %v2503
      %v2617 = vmul.f32 %v2425, %v2508
      %v2618 = vmul.f32 %v2426, %v2513
      %v2619 = vmul.f32 %v2427, %v2518
      %v2620 = vmul.f32 %v2428, %v2523
      %v2621 = vmul.f32 %v2429, %v2528
      %v2622 = vmul.f32 %v2430, %v2533
      %v2623 = vmul.f32 %v2431, %v2538
      %v2624 = vmul.f32 %v2432, %v2543
      %v2625 = vmul.f32 %v2433, %v2548
      %v2626 = vmul.f32 %v2434, %v2553
      %v2627 = vmul.f32 %v2435, %v2558
      %v2628 = vmul.f32 %v2436, %v2563
      %v2629 = vmul.f32 %v2437, %v2568
      %v2630 = vmul.f32 %v2438, %v2573
      %v2631 = vmul.f32 %v2439, %v2578
      %v2632 = vmul.f32 %v2440, %v2583
      %v2633 = vmul.f32 %v2441, %v2588
      %v2634 = vmul.f32 %v2442, %v2593
      %v2635 = vmul.f32 %v2443, %v2598
      %v2636 = vmul.f32 %v2444, %v2603
      %v2637 = vld [vmem:[#allocation2] sm:$0xf0]
      %s2638 = scalar_lea.vmem %s7, 2
      %v2639 = vld [vmem:[%s2638] sm:$0x3]
      %v2640 = vld [vmem:[#allocation2 + $0x8] sm:$0xf0]
      %s2641 = scalar_lea.vmem %s7, 8
      %v2642 = vld [vmem:[%s2641] sm:$0x3]
      %v2660 = vrot.slane %v2640, 4
      %v2661 = vrot.slane %v1443, 4
      %v2662 = vsel %vm1375, %v2660, %v2661
      %v2663 = vrot.slane %v1444, 4
      %v2664 = vsel %vm1375, %v2661, %v2663
      %v2665 = vrot.slane %v1445, 4
      %v2666 = vsel %vm1375, %v2663, %v2665
      %v2667 = vrot.slane %v1446, 4
      %v2668 = vsel %vm1375, %v2665, %v2667
      %v2669 = vrot.slane %v1447, 4
      %v2670 = vsel %vm1375, %v2667, %v2669
      %v2671 = vrot.slane %v1448, 4
      %v2672 = vsel %vm1375, %v2669, %v2671
      %v2673 = vrot.slane %v1449, 4
      %v2674 = vsel %vm1375, %v2671, %v2673
      %v2675 = vrot.slane %v1450, 4
      %v2676 = vsel %vm1375, %v2673, %v2675
      %v2677 = vrot.slane %v1451, 4
      %v2678 = vsel %vm1375, %v2675, %v2677
      %v2679 = vrot.slane %v1452, 4
      %v2680 = vsel %vm1375, %v2677, %v2679
      %v2681 = vrot.slane %v1453, 4
      %v2682 = vsel %vm1375, %v2679, %v2681
      %v2683 = vrot.slane %v1454, 4
      %v2684 = vsel %vm1375, %v2681, %v2683
      %v2685 = vrot.slane %v1455, 4
      %v2686 = vsel %vm1375, %v2683, %v2685
      %v2687 = vrot.slane %v1456, 4
      %v2688 = vsel %vm1375, %v2685, %v2687
      %v2689 = vrot.slane %v1460, 4
      %v2690 = vsel %vm1375, %v2687, %v2689
      %v2691 = vrot.slane %v1461, 4
      %v2692 = vsel %vm1375, %v2689, %v2691
      %v2694 = vsel %vm680, %v2662, 0
      %v2697 = vsel %vm680, %v2664, 0
      %v2700 = vsel %vm680, %v2666, 0
      %v2703 = vsel %vm680, %v2668, 0
      %v2706 = vsel %vm680, %v2670, 0
      %v2709 = vsel %vm680, %v2672, 0
      %v2712 = vsel %vm680, %v2674, 0
      %v2715 = vsel %vm680, %v2676, 0
      %v2718 = vsel %vm680, %v2678, 0
      %v2721 = vsel %vm680, %v2680, 0
      %v2724 = vsel %vm680, %v2682, 0
      %v2727 = vsel %vm680, %v2684, 0
      %v2730 = vsel %vm680, %v2686, 0
      %v2733 = vsel %vm680, %v2688, 0
      %v2736 = vsel %vm680, %v2690, 0
      %v2739 = vsel %vm680, %v2692, 0
      %v2742 = vsel %vm1665, %v2642, 0
      %2744 = vmatprep.subr.bf16.mxu0 0
      %2745 = vmatpush1.bf16.msra.mxu0 %v2742
      %2746 = vmatprep.subr.bf16.mxu0 0
      %2747 = vmatpush1.bf16.msra.mxu0 0
      %2748 = vmatprep.subr.bf16.mxu0 0
      %2749 = vmatpush1.bf16.msra.mxu0 0
      %2750 = vmatprep.subr.bf16.mxu0 0
      %2751 = vmatpush1.bf16.msra.mxu0 0
      %2752 = vmatprep.subr.bf16.mxu0 0
      %2753 = vmatpush1.bf16.msra.mxu0 0
      %2754 = vmatprep.subr.bf16.mxu0 0
      %2755 = vmatpush1.bf16.msra.mxu0 0
      %2756 = vmatprep.subr.bf16.mxu0 0
      %2757 = vmatpush1.bf16.msra.mxu0 0
      %2758 = vmatprep.subr.bf16.mxu0 0
      %2759 = vmatpush1.bf16.msra.mxu0 0
      %2760 = vmatprep.subr.bf16.mxu0 0
      %2761 = vmatpush1.bf16.msra.mxu0 0
      %2762 = vmatprep.subr.bf16.mxu0 0
      %2763 = vmatpush1.bf16.msra.mxu0 0
      %2764 = vmatprep.subr.bf16.mxu0 0
      %2765 = vmatpush1.bf16.msra.mxu0 0
      %2766 = vmatprep.subr.bf16.mxu0 0
      %2767 = vmatpush1.bf16.msra.mxu0 0
      %2768 = vmatprep.subr.bf16.mxu0 0
      %2769 = vmatpush1.bf16.msra.mxu0 0
      %2770 = vmatprep.subr.bf16.mxu0 0
      %2771 = vmatpush1.bf16.msra.mxu0 0
      %2772 = vmatprep.subr.bf16.mxu0 0
      %2773 = vmatpush1.bf16.msra.mxu0 0
      %2774 = vmatprep.subr.bf16.mxu0 0
      %2775 = vmatpush1.bf16.msra.mxu0 0
      %2776 = vmatprep.mubr.bf16.mxu0 0
      %2777 = vmatmul.mubr.bf16.gmra.mrb[0].mxu0 %v2694
      %v2778 = vpop.f32.mrb[0].mxu0
      %v2779 = vadd.f32 0.0, %v2778
      %v2780 = vpop.f32.mrb[0].mxu0
      %v2781 = vpop.f32.mrb[0].mxu0
      %v2782 = vadd.f32 0.0, %v2781
      %v2783 = vpop.f32.mrb[0].mxu0
      %2784 = vmatprep.mubr.bf16.mxu0 0
      %2785 = vmatmul.mubr.bf16.gmra.mrb[0].mxu0 %v2697
      %v2786 = vpop.f32.mrb[0].mxu0
      %v2787 = vadd.f32 0.0, %v2786
      %v2788 = vpop.f32.mrb[0].mxu0
      %v2789 = vpop.f32.mrb[0].mxu0
      %v2790 = vadd.f32 0.0, %v2789
      %v2791 = vpop.f32.mrb[0].mxu0
      %2792 = vmatprep.mubr.bf16.mxu0 0
      %2793 = vmatmul.mubr.bf16.gmra.mrb[0].mxu0 %v2700
      %v2794 = vpop.f32.mrb[0].mxu0
      %v2795 = vadd.f32 0.0, %v2794
      %v2796 = vpop.f32.mrb[0].mxu0
      %v2797 = vpop.f32.mrb[0].mxu0
      %v2798 = vadd.f32 0.0, %v2797
      %v2799 = vpop.f32.mrb[0].mxu0
      %2800 = vmatprep.mubr.bf16.mxu0 0
      %2801 = vmatmul.mubr.bf16.gmra.mrb[0].mxu0 %v2703
      %v2802 = vpop.f32.mrb[0].mxu0
      %v2803 = vadd.f32 0.0, %v2802
      %v2804 = vpop.f32.mrb[0].mxu0
      %v2805 = vpop.f32.mrb[0].mxu0
      %v2806 = vadd.f32 0.0, %v2805
      %v2807 = vpop.f32.mrb[0].mxu0
      %2808 = vmatprep.mubr.bf16.mxu0 0
      %2809 = vmatmul.mubr.bf16.gmra.mrb[0].mxu0 %v2706
      %v2810 = vpop.f32.mrb[0].mxu0
      %v2811 = vadd.f32 0.0, %v2810
      %v2812 = vpop.f32.mrb[0].mxu0
      %v2813 = vpop.f32.mrb[0].mxu0
      %v2814 = vadd.f32 0.0, %v2813
      %v2815 = vpop.f32.mrb[0].mxu0
      %2816 = vmatprep.mubr.bf16.mxu0 0
      %2817 = vmatmul.mubr.bf16.gmra.mrb[0].mxu0 %v2709
      %v2818 = vpop.f32.mrb[0].mxu0
      %v2819 = vadd.f32 0.0, %v2818
      %v2820 = vpop.f32.mrb[0].mxu0
      %v2821 = vpop.f32.mrb[0].mxu0
      %v2822 = vadd.f32 0.0, %v2821
      %v2823 = vpop.f32.mrb[0].mxu0
      %2824 = vmatprep.mubr.bf16.mxu0 0
      %2825 = vmatmul.mubr.bf16.gmra.mrb[0].mxu0 %v2712
      %v2826 = vpop.f32.mrb[0].mxu0
      %v2827 = vadd.f32 0.0, %v2826
      %v2828 = vpop.f32.mrb[0].mxu0
      %v2829 = vpop.f32.mrb[0].mxu0
      %v2830 = vadd.f32 0.0, %v2829
      %v2831 = vpop.f32.mrb[0].mxu0
      %2832 = vmatprep.mubr.bf16.mxu0 0
      %2833 = vmatmul.mubr.bf16.gmra.mrb[0].mxu0 %v2715
      %v2834 = vpop.f32.mrb[0].mxu0
      %v2835 = vadd.f32 0.0, %v2834
      %v2836 = vpop.f32.mrb[0].mxu0
      %v2837 = vpop.f32.mrb[0].mxu0
      %v2838 = vadd.f32 0.0, %v2837
      %v2839 = vpop.f32.mrb[0].mxu0
      %2840 = vmatprep.mubr.bf16.mxu0 0
      %2841 = vmatmul.mubr.bf16.gmra.mrb[0].mxu0 %v2718
      %v2842 = vpop.f32.mrb[0].mxu0
      %v2843 = vadd.f32 0.0, %v2842
      %v2844 = vpop.f32.mrb[0].mxu0
      %v2845 = vpop.f32.mrb[0].mxu0
      %v2846 = vadd.f32 0.0, %v2845
      %v2847 = vpop.f32.mrb[0].mxu0
      %2848 = vmatprep.mubr.bf16.mxu0 0
      %2849 = vmatmul.mubr.bf16.gmra.mrb[0].mxu0 %v2721
      %v2850 = vpop.f32.mrb[0].mxu0
      %v2851 = vadd.f32 0.0, %v2850
      %v2852 = vpop.f32.mrb[0].mxu0
      %v2853 = vpop.f32.mrb[0].mxu0
      %v2854 = vadd.f32 0.0, %v2853
      %v2855 = vpop.f32.mrb[0].mxu0
      %2856 = vmatprep.mubr.bf16.mxu0 0
      %2857 = vmatmul.mubr.bf16.gmra.mrb[0].mxu0 %v2724
      %v2858 = vpop.f32.mrb[0].mxu0
      %v2859 = vadd.f32 0.0, %v2858
      %v2860 = vpop.f32.mrb[0].mxu0
      %v2861 = vpop.f32.mrb[0].mxu0
      %v2862 = vadd.f32 0.0, %v2861
      %v2863 = vpop.f32.mrb[0].mxu0
      %2864 = vmatprep.mubr.bf16.mxu0 0
      %2865 = vmatmul.mubr.bf16.gmra.mrb[0].mxu0 %v2727
      %v2866 = vpop.f32.mrb[0].mxu0
      %v2867 = vadd.f32 0.0, %v2866
      %v2868 = vpop.f32.mrb[0].mxu0
      %v2869 = vpop.f32.mrb[0].mxu0
      %v2870 = vadd.f32 0.0, %v2869
      %v2871 = vpop.f32.mrb[0].mxu0
      %2872 = vmatprep.mubr.bf16.mxu0 0
      %2873 = vmatmul.mubr.bf16.gmra.mrb[0].mxu0 %v2730
      %v2874 = vpop.f32.mrb[0].mxu0
      %v2875 = vadd.f32 0.0, %v2874
      %v2876 = vpop.f32.mrb[0].mxu0
      %v2877 = vpop.f32.mrb[0].mxu0
      %v2878 = vadd.f32 0.0, %v2877
      %v2879 = vpop.f32.mrb[0].mxu0
      %2880 = vmatprep.mubr.bf16.mxu0 0
      %2881 = vmatmul.mubr.bf16.gmra.mrb[0].mxu0 %v2733
      %v2882 = vpop.f32.mrb[0].mxu0
      %v2883 = vadd.f32 0.0, %v2882
      %v2884 = vpop.f32.mrb[0].mxu0
      %v2885 = vpop.f32.mrb[0].mxu0
      %v2886 = vadd.f32 0.0, %v2885
      %v2887 = vpop.f32.mrb[0].mxu0
      %2888 = vmatprep.mubr.bf16.mxu0 0
      %2889 = vmatmul.mubr.bf16.gmra.mrb[0].mxu0 %v2736
      %v2890 = vpop.f32.mrb[0].mxu0
      %v2891 = vadd.f32 0.0, %v2890
      %v2892 = vpop.f32.mrb[0].mxu0
      %v2893 = vpop.f32.mrb[0].mxu0
      %v2894 = vadd.f32 0.0, %v2893
      %v2895 = vpop.f32.mrb[0].mxu0
      %2896 = vmatprep.mubr.bf16.mxu0 0
      %2897 = vmatmul.mubr.bf16.gmra.mrb[0].mxu0 %v2739
      %v2898 = vpop.f32.mrb[0].mxu0
      %v2899 = vadd.f32 0.0, %v2898
      %v2900 = vpop.f32.mrb[0].mxu0
      %v2901 = vpop.f32.mrb[0].mxu0
      %v2902 = vadd.f32 0.0, %v2901
      %v2903 = vpop.f32.mrb[0].mxu0
      %2904 = vdwg.mxu0
      %v2908 = vrot.slane %v2637, 4
      %v2909 = vrot.slane %v1442, 4
      %v2910 = vsel %vm1375, %v2908, %v2909
      %v2911 = vsel %vm1375, %v2909, %v2661
      %v2912 = vrot.slane %v1457, 4
      %v2913 = vsel %vm1375, %v2687, %v2912
      %v2915 = vsel %vm680, %v2910, 0
      %v2918 = vsel %vm680, %v2911, 0
      %v2921 = vsel %vm680, %v2913, 0
      %v2924 = vsel %vm1665, %v2639, 0
      %2926 = vmatprep.subr.bf16.mxu0 0
      %2927 = vmatpush1.bf16.msra.mxu0 %v2924
      %2928 = vmatprep.subr.bf16.mxu0 0
      %2929 = vmatpush1.bf16.msra.mxu0 0
      %2930 = vmatprep.subr.bf16.mxu0 0
      %2931 = vmatpush1.bf16.msra.mxu0 0
      %2932 = vmatprep.subr.bf16.mxu0 0
      %2933 = vmatpush1.bf16.msra.mxu0 0
      %2934 = vmatprep.subr.bf16.mxu0 0
      %2935 = vmatpush1.bf16.msra.mxu0 0
      %2936 = vmatprep.subr.bf16.mxu0 0
      %2937 = vmatpush1.bf16.msra.mxu0 0
      %2938 = vmatprep.subr.bf16.mxu0 0
      %2939 = vmatpush1.bf16.msra.mxu0 0
      %2940 = vmatprep.subr.bf16.mxu0 0
      %2941 = vmatpush1.bf16.msra.mxu0 0
      %2942 = vmatprep.subr.bf16.mxu0 0
      %2943 = vmatpush1.bf16.msra.mxu0 0
      %2944 = vmatprep.subr.bf16.mxu0 0
      %2945 = vmatpush1.bf16.msra.mxu0 0
      %2946 = vmatprep.subr.bf16.mxu0 0
      %2947 = vmatpush1.bf16.msra.mxu0 0
      %2948 = vmatprep.subr.bf16.mxu0 0
      %2949 = vmatpush1.bf16.msra.mxu0 0
      %2950 = vmatprep.subr.bf16.mxu0 0
      %2951 = vmatpush1.bf16.msra.mxu0 0
      %2952 = vmatprep.subr.bf16.mxu0 0
      %2953 = vmatpush1.bf16.msra.mxu0 0
      %2954 = vmatprep.subr.bf16.mxu0 0
      %2955 = vmatpush1.bf16.msra.mxu0 0
      %2956 = vmatprep.subr.bf16.mxu0 0
      %2957 = vmatpush1.bf16.msra.mxu0 0
      %2958 = vmatprep.mubr.bf16.mxu0 0
      %2959 = vmatmul.mubr.bf16.gmra.mrb[0].mxu0 %v2915
      %v2960 = vpop.f32.mrb[0].mxu0
      %v2961 = vadd.f32 %v2779, %v2960
      %v2962 = vpop.f32.mrb[0].mxu0
      %v2963 = vpop.f32.mrb[0].mxu0
      %v2964 = vadd.f32 %v2782, %v2963
      %v2965 = vpop.f32.mrb[0].mxu0
      %2966 = vmatprep.mubr.bf16.mxu0 0
      %2967 = vmatmul.mubr.bf16.gmra.mrb[0].mxu0 %v2918
      %v2968 = vpop.f32.mrb[0].mxu0
      %v2969 = vadd.f32 %v2787, %v2968
      %v2970 = vpop.f32.mrb[0].mxu0
      %v2971 = vpop.f32.mrb[0].mxu0
      %v2972 = vadd.f32 %v2790, %v2971
      %v2973 = vpop.f32.mrb[0].mxu0
      %2974 = vmatprep.mubr.bf16.mxu0 0
      %2975 = vmatmul.mubr.bf16.gmra.mrb[0].mxu0 %v2697
      %v2976 = vpop.f32.mrb[0].mxu0
      %v2977 = vadd.f32 %v2795, %v2976
      %v2978 = vpop.f32.mrb[0].mxu0
      %v2979 = vpop.f32.mrb[0].mxu0
      %v2980 = vadd.f32 %v2798, %v2979
      %v2981 = vpop.f32.mrb[0].mxu0
      %2982 = vmatprep.mubr.bf16.mxu0 0
      %2983 = vmatmul.mubr.bf16.gmra.mrb[0].mxu0 %v2700
      %v2984 = vpop.f32.mrb[0].mxu0
      %v2985 = vadd.f32 %v2803, %v2984
      %v2986 = vpop.f32.mrb[0].mxu0
      %v2987 = vpop.f32.mrb[0].mxu0
      %v2988 = vadd.f32 %v2806, %v2987
      %v2989 = vpop.f32.mrb[0].mxu0
      %2990 = vmatprep.mubr.bf16.mxu0 0
      %2991 = vmatmul.mubr.bf16.gmra.mrb[0].mxu0 %v2703
      %v2992 = vpop.f32.mrb[0].mxu0
      %v2993 = vadd.f32 %v2811, %v2992
      %v2994 = vpop.f32.mrb[0].mxu0
      %v2995 = vpop.f32.mrb[0].mxu0
      %v2996 = vadd.f32 %v2814, %v2995
      %v2997 = vpop.f32.mrb[0].mxu0
      %2998 = vmatprep.mubr.bf16.mxu0 0
      %2999 = vmatmul.mubr.bf16.gmra.mrb[0].mxu0 %v2706
      %v3000 = vpop.f32.mrb[0].mxu0
      %v3001 = vadd.f32 %v2819, %v3000
      %v3002 = vpop.f32.mrb[0].mxu0
      %v3003 = vpop.f32.mrb[0].mxu0
      %v3004 = vadd.f32 %v2822, %v3003
      %v3005 = vpop.f32.mrb[0].mxu0
      %3006 = vmatprep.mubr.bf16.mxu0 0
      %3007 = vmatmul.mubr.bf16.gmra.mrb[0].mxu0 %v2709
      %v3008 = vpop.f32.mrb[0].mxu0
      %v3009 = vadd.f32 %v2827, %v3008
      %v3010 = vpop.f32.mrb[0].mxu0
      %v3011 = vpop.f32.mrb[0].mxu0
      %v3012 = vadd.f32 %v2830, %v3011
      %v3013 = vpop.f32.mrb[0].mxu0
      %3014 = vmatprep.mubr.bf16.mxu0 0
      %3015 = vmatmul.mubr.bf16.gmra.mrb[0].mxu0 %v2712
      %v3016 = vpop.f32.mrb[0].mxu0
      %v3017 = vadd.f32 %v2835, %v3016
      %v3018 = vpop.f32.mrb[0].mxu0
      %v3019 = vpop.f32.mrb[0].mxu0
      %v3020 = vadd.f32 %v2838, %v3019
      %v3021 = vpop.f32.mrb[0].mxu0
      %3022 = vmatprep.mubr.bf16.mxu0 0
      %3023 = vmatmul.mubr.bf16.gmra.mrb[0].mxu0 %v2715
      %v3024 = vpop.f32.mrb[0].mxu0
      %v3025 = vadd.f32 %v2843, %v3024
      %v3026 = vpop.f32.mrb[0].mxu0
      %v3027 = vpop.f32.mrb[0].mxu0
      %v3028 = vadd.f32 %v2846, %v3027
      %v3029 = vpop.f32.mrb[0].mxu0
      %3030 = vmatprep.mubr.bf16.mxu0 0
      %3031 = vmatmul.mubr.bf16.gmra.mrb[0].mxu0 %v2718
      %v3032 = vpop.f32.mrb[0].mxu0
      %v3033 = vadd.f32 %v2851, %v3032
      %v3034 = vpop.f32.mrb[0].mxu0
      %v3035 = vpop.f32.mrb[0].mxu0
      %v3036 = vadd.f32 %v2854, %v3035
      %v3037 = vpop.f32.mrb[0].mxu0
      %3038 = vmatprep.mubr.bf16.mxu0 0
      %3039 = vmatmul.mubr.bf16.gmra.mrb[0].mxu0 %v2721
      %v3040 = vpop.f32.mrb[0].mxu0
      %v3041 = vadd.f32 %v2859, %v3040
      %v3042 = vpop.f32.mrb[0].mxu0
      %v3043 = vpop.f32.mrb[0].mxu0
      %v3044 = vadd.f32 %v2862, %v3043
      %v3045 = vpop.f32.mrb[0].mxu0
      %3046 = vmatprep.mubr.bf16.mxu0 0
      %3047 = vmatmul.mubr.bf16.gmra.mrb[0].mxu0 %v2724
      %v3048 = vpop.f32.mrb[0].mxu0
      %v3049 = vadd.f32 %v2867, %v3048
      %v3050 = vpop.f32.mrb[0].mxu0
      %v3051 = vpop.f32.mrb[0].mxu0
      %v3052 = vadd.f32 %v2870, %v3051
      %v3053 = vpop.f32.mrb[0].mxu0
      %3054 = vmatprep.mubr.bf16.mxu0 0
      %3055 = vmatmul.mubr.bf16.gmra.mrb[0].mxu0 %v2727
      %v3056 = vpop.f32.mrb[0].mxu0
      %v3057 = vadd.f32 %v2875, %v3056
      %v3058 = vpop.f32.mrb[0].mxu0
      %v3059 = vpop.f32.mrb[0].mxu0
      %v3060 = vadd.f32 %v2878, %v3059
      %v3061 = vpop.f32.mrb[0].mxu0
      %3062 = vmatprep.mubr.bf16.mxu0 0
      %3063 = vmatmul.mubr.bf16.gmra.mrb[0].mxu0 %v2730
      %v3064 = vpop.f32.mrb[0].mxu0
      %v3065 = vadd.f32 %v2883, %v3064
      %v3066 = vpop.f32.mrb[0].mxu0
      %v3067 = vpop.f32.mrb[0].mxu0
      %v3068 = vadd.f32 %v2886, %v3067
      %v3069 = vpop.f32.mrb[0].mxu0
      %3070 = vmatprep.mubr.bf16.mxu0 0
      %3071 = vmatmul.mubr.bf16.gmra.mrb[0].mxu0 %v2733
      %v3072 = vpop.f32.mrb[0].mxu0
      %v3073 = vadd.f32 %v2891, %v3072
      %v3074 = vpop.f32.mrb[0].mxu0
      %v3075 = vpop.f32.mrb[0].mxu0
      %v3076 = vadd.f32 %v2894, %v3075
      %v3077 = vpop.f32.mrb[0].mxu0
      %3078 = vmatprep.mubr.bf16.mxu0 0
      %3079 = vmatmul.mubr.bf16.gmra.mrb[0].mxu0 %v2921
      %v3080 = vpop.f32.mrb[0].mxu0
      %v3081 = vadd.f32 %v2899, %v3080
      %v3082 = vpop.f32.mrb[0].mxu0
      %v3083 = vpop.f32.mrb[0].mxu0
      %v3084 = vadd.f32 %v2902, %v3083
      %v3085 = vpop.f32.mrb[0].mxu0
      %3086 = vdwg.mxu0
      %v3087 = vld [vmem:[#allocation2 + $0x10] sm:$0xf0]
      %s3088 = scalar_lea.vmem %s7, 14
      %v3089 = vld [vmem:[%s3088] sm:$0x3]
      %v3107 = vrot.slane %v3087, 4
      %v3108 = vrot.slane %v2031, 4
      %v3109 = vsel %vm1375, %v3107, %v3108
      %v3110 = vrot.slane %v2032, 4
      %v3111 = vsel %vm1375, %v3108, %v3110
      %v3112 = vrot.slane %v2033, 4
      %v3113 = vsel %vm1375, %v3110, %v3112
      %v3114 = vrot.slane %v2034, 4
      %v3115 = vsel %vm1375, %v3112, %v3114
      %v3116 = vrot.slane %v2035, 4
      %v3117 = vsel %vm1375, %v3114, %v3116
      %v3118 = vrot.slane %v2036, 4
      %v3119 = vsel %vm1375, %v3116, %v3118
      %v3120 = vrot.slane %v2037, 4
      %v3121 = vsel %vm1375, %v3118, %v3120
      %v3122 = vrot.slane %v2038, 4
      %v3123 = vsel %vm1375, %v3120, %v3122
      %v3124 = vrot.slane %v2039, 4
      %v3125 = vsel %vm1375, %v3122, %v3124
      %v3126 = vrot.slane %v2040, 4
      %v3127 = vsel %vm1375, %v3124, %v3126
      %v3128 = vrot.slane %v2041, 4
      %v3129 = vsel %vm1375, %v3126, %v3128
      %v3130 = vrot.slane %v2042, 4
      %v3131 = vsel %vm1375, %v3128, %v3130
      %v3132 = vrot.slane %v2043, 4
      %v3133 = vsel %vm1375, %v3130, %v3132
      %v3134 = vrot.slane %v2044, 4
      %v3135 = vsel %vm1375, %v3132, %v3134
      %v3136 = vrot.slane %v2045, 4
      %v3137 = vsel %vm1375, %v3134, %v3136
      %v3138 = vrot.slane %v2046, 4
      %v3139 = vsel %vm1375, %v3136, %v3138
      %v3141 = vsel %vm680, %v3109, 0
      %v3144 = vsel %vm680, %v3111, 0
      %v3147 = vsel %vm680, %v3113, 0
      %v3150 = vsel %vm680, %v3115, 0
      %v3153 = vsel %vm680, %v3117, 0
      %v3156 = vsel %vm680, %v3119, 0
      %v3159 = vsel %vm680, %v3121, 0
      %v3162 = vsel %vm680, %v3123, 0
      %v3165 = vsel %vm680, %v3125, 0
      %v3168 = vsel %vm680, %v3127, 0
      %v3171 = vsel %vm680, %v3129, 0
      %v3174 = vsel %vm680, %v3131, 0
      %v3177 = vsel %vm680, %v3133, 0
      %v3180 = vsel %vm680, %v3135, 0
      %v3183 = vsel %vm680, %v3137, 0
      %v3186 = vsel %vm680, %v3139, 0
      %v3189 = vsel %vm1665, %v3089, 0
      %3191 = vmatprep.subr.bf16.mxu0 0
      %3192 = vmatpush1.bf16.msra.mxu0 %v3189
      %3193 = vmatprep.subr.bf16.mxu0 0
      %3194 = vmatpush1.bf16.msra.mxu0 0
      %3195 = vmatprep.subr.bf16.mxu0 0
      %3196 = vmatpush1.bf16.msra.mxu0 0
      %3197 = vmatprep.subr.bf16.mxu0 0
      %3198 = vmatpush1.bf16.msra.mxu0 0
      %3199 = vmatprep.subr.bf16.mxu0 0
      %3200 = vmatpush1.bf16.msra.mxu0 0
      %3201 = vmatprep.subr.bf16.mxu0 0
      %3202 = vmatpush1.bf16.msra.mxu0 0
      %3203 = vmatprep.subr.bf16.mxu0 0
      %3204 = vmatpush1.bf16.msra.mxu0 0
      %3205 = vmatprep.subr.bf16.mxu0 0
      %3206 = vmatpush1.bf16.msra.mxu0 0
      %3207 = vmatprep.subr.bf16.mxu0 0
      %3208 = vmatpush1.bf16.msra.mxu0 0
      %3209 = vmatprep.subr.bf16.mxu0 0
      %3210 = vmatpush1.bf16.msra.mxu0 0
      %3211 = vmatprep.subr.bf16.mxu0 0
      %3212 = vmatpush1.bf16.msra.mxu0 0
      %3213 = vmatprep.subr.bf16.mxu0 0
      %3214 = vmatpush1.bf16.msra.mxu0 0
      %3215 = vmatprep.subr.bf16.mxu0 0
      %3216 = vmatpush1.bf16.msra.mxu0 0
      %3217 = vmatprep.subr.bf16.mxu0 0
      %3218 = vmatpush1.bf16.msra.mxu0 0
      %3219 = vmatprep.subr.bf16.mxu0 0
      %3220 = vmatpush1.bf16.msra.mxu0 0
      %3221 = vmatprep.subr.bf16.mxu0 0
      %3222 = vmatpush1.bf16.msra.mxu0 0
      %3223 = vmatprep.mubr.bf16.mxu0 0
      %3224 = vmatmul.mubr.bf16.gmra.mrb[0].mxu0 %v3141
      %v3225 = vpop.f32.mrb[0].mxu0
      %v3226 = vadd.f32 0.0, %v3225
      %v3227 = vpop.f32.mrb[0].mxu0
      %v3228 = vpop.f32.mrb[0].mxu0
      %v3229 = vadd.f32 0.0, %v3228
      %v3230 = vpop.f32.mrb[0].mxu0
      %3231 = vmatprep.mubr.bf16.mxu0 0
      %3232 = vmatmul.mubr.bf16.gmra.mrb[0].mxu0 %v3144
      %v3233 = vpop.f32.mrb[0].mxu0
      %v3234 = vadd.f32 0.0, %v3233
      %v3235 = vpop.f32.mrb[0].mxu0
      %v3236 = vpop.f32.mrb[0].mxu0
      %v3237 = vadd.f32 0.0, %v3236
      %v3238 = vpop.f32.mrb[0].mxu0
      %3239 = vmatprep.mubr.bf16.mxu0 0
      %3240 = vmatmul.mubr.bf16.gmra.mrb[0].mxu0 %v3147
      %v3241 = vpop.f32.mrb[0].mxu0
      %v3242 = vadd.f32 0.0, %v3241
      %v3243 = vpop.f32.mrb[0].mxu0
      %v3244 = vpop.f32.mrb[0].mxu0
      %v3245 = vadd.f32 0.0, %v3244
      %v3246 = vpop.f32.mrb[0].mxu0
      %3247 = vmatprep.mubr.bf16.mxu0 0
      %3248 = vmatmul.mubr.bf16.gmra.mrb[0].mxu0 %v3150
      %v3249 = vpop.f32.mrb[0].mxu0
      %v3250 = vadd.f32 0.0, %v3249
      %v3251 = vpop.f32.mrb[0].mxu0
      %v3252 = vpop.f32.mrb[0].mxu0
      %v3253 = vadd.f32 0.0, %v3252
      %v3254 = vpop.f32.mrb[0].mxu0
      %3255 = vmatprep.mubr.bf16.mxu0 0
      %3256 = vmatmul.mubr.bf16.gmra.mrb[0].mxu0 %v3153
      %v3257 = vpop.f32.mrb[0].mxu0
      %v3258 = vadd.f32 0.0, %v3257
      %v3259 = vpop.f32.mrb[0].mxu0
      %v3260 = vpop.f32.mrb[0].mxu0
      %v3261 = vadd.f32 0.0, %v3260
      %v3262 = vpop.f32.mrb[0].mxu0
      %3263 = vmatprep.mubr.bf16.mxu0 0
      %3264 = vmatmul.mubr.bf16.gmra.mrb[0].mxu0 %v3156
      %v3265 = vpop.f32.mrb[0].mxu0
      %v3266 = vadd.f32 0.0, %v3265
      %v3267 = vpop.f32.mrb[0].mxu0
      %v3268 = vpop.f32.mrb[0].mxu0
      %v3269 = vadd.f32 0.0, %v3268
      %v3270 = vpop.f32.mrb[0].mxu0
      %3271 = vmatprep.mubr.bf16.mxu0 0
      %3272 = vmatmul.mubr.bf16.gmra.mrb[0].mxu0 %v3159
      %v3273 = vpop.f32.mrb[0].mxu0
      %v3274 = vadd.f32 0.0, %v3273
      %v3275 = vpop.f32.mrb[0].mxu0
      %v3276 = vpop.f32.mrb[0].mxu0
      %v3277 = vadd.f32 0.0, %v3276
      %v3278 = vpop.f32.mrb[0].mxu0
      %3279 = vmatprep.mubr.bf16.mxu0 0
      %3280 = vmatmul.mubr.bf16.gmra.mrb[0].mxu0 %v3162
      %v3281 = vpop.f32.mrb[0].mxu0
      %v3282 = vadd.f32 0.0, %v3281
      %v3283 = vpop.f32.mrb[0].mxu0
      %v3284 = vpop.f32.mrb[0].mxu0
      %v3285 = vadd.f32 0.0, %v3284
      %v3286 = vpop.f32.mrb[0].mxu0
      %3287 = vmatprep.mubr.bf16.mxu0 0
      %3288 = vmatmul.mubr.bf16.gmra.mrb[0].mxu0 %v3165
      %v3289 = vpop.f32.mrb[0].mxu0
      %v3290 = vadd.f32 0.0, %v3289
      %v3291 = vpop.f32.mrb[0].mxu0
      %v3292 = vpop.f32.mrb[0].mxu0
      %v3293 = vadd.f32 0.0, %v3292
      %v3294 = vpop.f32.mrb[0].mxu0
      %3295 = vmatprep.mubr.bf16.mxu0 0
      %3296 = vmatmul.mubr.bf16.gmra.mrb[0].mxu0 %v3168
      %v3297 = vpop.f32.mrb[0].mxu0
      %v3298 = vadd.f32 0.0, %v3297
      %v3299 = vpop.f32.mrb[0].mxu0
      %v3300 = vpop.f32.mrb[0].mxu0
      %v3301 = vadd.f32 0.0, %v3300
      %v3302 = vpop.f32.mrb[0].mxu0
      %3303 = vmatprep.mubr.bf16.mxu0 0
      %3304 = vmatmul.mubr.bf16.gmra.mrb[0].mxu0 %v3171
      %v3305 = vpop.f32.mrb[0].mxu0
      %v3306 = vadd.f32 0.0, %v3305
      %v3307 = vpop.f32.mrb[0].mxu0
      %v3308 = vpop.f32.mrb[0].mxu0
      %v3309 = vadd.f32 0.0, %v3308
      %v3310 = vpop.f32.mrb[0].mxu0
      %3311 = vmatprep.mubr.bf16.mxu0 0
      %3312 = vmatmul.mubr.bf16.gmra.mrb[0].mxu0 %v3174
      %v3313 = vpop.f32.mrb[0].mxu0
      %v3314 = vadd.f32 0.0, %v3313
      %v3315 = vpop.f32.mrb[0].mxu0
      %v3316 = vpop.f32.mrb[0].mxu0
      %v3317 = vadd.f32 0.0, %v3316
      %v3318 = vpop.f32.mrb[0].mxu0
      %3319 = vmatprep.mubr.bf16.mxu0 0
      %3320 = vmatmul.mubr.bf16.gmra.mrb[0].mxu0 %v3177
      %v3321 = vpop.f32.mrb[0].mxu0
      %v3322 = vadd.f32 0.0, %v3321
      %v3323 = vpop.f32.mrb[0].mxu0
      %v3324 = vpop.f32.mrb[0].mxu0
      %v3325 = vadd.f32 0.0, %v3324
      %v3326 = vpop.f32.mrb[0].mxu0
      %3327 = vmatprep.mubr.bf16.mxu0 0
      %3328 = vmatmul.mubr.bf16.gmra.mrb[0].mxu0 %v3180
      %v3329 = vpop.f32.mrb[0].mxu0
      %v3330 = vadd.f32 0.0, %v3329
      %v3331 = vpop.f32.mrb[0].mxu0
      %v3332 = vpop.f32.mrb[0].mxu0
      %v3333 = vadd.f32 0.0, %v3332
      %v3334 = vpop.f32.mrb[0].mxu0
      %3335 = vmatprep.mubr.bf16.mxu0 0
      %3336 = vmatmul.mubr.bf16.gmra.mrb[0].mxu0 %v3183
      %v3337 = vpop.f32.mrb[0].mxu0
      %v3338 = vadd.f32 0.0, %v3337
      %v3339 = vpop.f32.mrb[0].mxu0
      %v3340 = vpop.f32.mrb[0].mxu0
      %v3341 = vadd.f32 0.0, %v3340
      %v3342 = vpop.f32.mrb[0].mxu0
      %3343 = vmatprep.mubr.bf16.mxu0 0
      %3344 = vmatmul.mubr.bf16.gmra.mrb[0].mxu0 %v3186
      %v3345 = vpop.f32.mrb[0].mxu0
      %v3346 = vadd.f32 0.0, %v3345
      %v3347 = vpop.f32.mrb[0].mxu0
      %v3348 = vpop.f32.mrb[0].mxu0
      %v3349 = vadd.f32 0.0, %v3348
      %v3350 = vpop.f32.mrb[0].mxu0
      %3351 = vdwg.mxu0
      %v3352 = vadd.f32 %v2961, %v3226
      %v3353 = vadd.f32 %v2964, %v3229
      %v3354 = vadd.f32 %v2969, %v3234
      %v3355 = vadd.f32 %v2972, %v3237
      %v3356 = vadd.f32 %v2977, %v3242
      %v3357 = vadd.f32 %v2980, %v3245
      %v3358 = vadd.f32 %v2985, %v3250
      %v3359 = vadd.f32 %v2988, %v3253
      %v3360 = vadd.f32 %v2993, %v3258
      %v3361 = vadd.f32 %v2996, %v3261
      %v3362 = vadd.f32 %v3001, %v3266
      %v3363 = vadd.f32 %v3004, %v3269
      %v3364 = vadd.f32 %v3009, %v3274
      %v3365 = vadd.f32 %v3012, %v3277
      %v3366 = vadd.f32 %v3017, %v3282
      %v3367 = vadd.f32 %v3020, %v3285
      %v3368 = vadd.f32 %v3025, %v3290
      %v3369 = vadd.f32 %v3028, %v3293
      %v3370 = vadd.f32 %v3033, %v3298
      %v3371 = vadd.f32 %v3036, %v3301
      %v3372 = vadd.f32 %v3041, %v3306
      %v3373 = vadd.f32 %v3044, %v3309
      %v3374 = vadd.f32 %v3049, %v3314
      %v3375 = vadd.f32 %v3052, %v3317
      %v3376 = vadd.f32 %v3057, %v3322
      %v3377 = vadd.f32 %v3060, %v3325
      %v3378 = vadd.f32 %v3065, %v3330
      %v3379 = vadd.f32 %v3068, %v3333
      %v3380 = vadd.f32 %v3073, %v3338
      %v3381 = vadd.f32 %v3076, %v3341
      %v3382 = vadd.f32 %v3081, %v3346
      %v3383 = vadd.f32 %v3084, %v3349
      %v3384 = vadd.f32 %v2605, %v3352
      %v3385 = vadd.f32 %v2606, %v3353
      %v3386 = vadd.f32 %v2607, %v3354
      %v3387 = vadd.f32 %v2608, %v3355
      %v3388 = vadd.f32 %v2609, %v3356
      %v3389 = vadd.f32 %v2610, %v3357
      %v3390 = vadd.f32 %v2611, %v3358
      %v3391 = vadd.f32 %v2612, %v3359
      %v3392 = vadd.f32 %v2613, %v3360
      %v3393 = vadd.f32 %v2614, %v3361
      %v3394 = vadd.f32 %v2615, %v3362
      %v3395 = vadd.f32 %v2616, %v3363
      %v3396 = vadd.f32 %v2617, %v3364
      %v3397 = vadd.f32 %v2618, %v3365
      %v3398 = vadd.f32 %v2619, %v3366
      %v3399 = vadd.f32 %v2620, %v3367
      %v3400 = vadd.f32 %v2621, %v3368
      %v3401 = vadd.f32 %v2622, %v3369
      %v3402 = vadd.f32 %v2623, %v3370
      %v3403 = vadd.f32 %v2624, %v3371
      %v3404 = vadd.f32 %v2625, %v3372
      %v3405 = vadd.f32 %v2626, %v3373
      %v3406 = vadd.f32 %v2627, %v3374
      %v3407 = vadd.f32 %v2628, %v3375
      %v3408 = vadd.f32 %v2629, %v3376
      %v3409 = vadd.f32 %v2630, %v3377
      %v3410 = vadd.f32 %v2631, %v3378
      %v3411 = vadd.f32 %v2632, %v3379
      %v3412 = vadd.f32 %v2633, %v3380
      %v3413 = vadd.f32 %v2634, %v3381
      %v3414 = vadd.f32 %v2635, %v3382
      %v3415 = vadd.f32 %v2636, %v3383
      %v3416 = vld [vmem:[#allocation2 + $0x80] sm:$0x1f]
      %s3417 = scalar_lea.vmem %s7, 4
      %v3418 = vld [vmem:[%s3417] sm:$0x3]
      %v3419 = vld [vmem:[#allocation2 + $0x88] sm:$0x1f]
      %s3420 = scalar_lea.vmem %s7, 10
      %v3421 = vld [vmem:[%s3420] sm:$0x3]
      %vm3422 = vsmask.f32 3328
      %v3424 = vshrl.u32 %v2640, 16
      %v3426 = vrot.slane %v3424, 4
      %v3427 = vshll.u32 %v2640, 16
      %v3429 = vrot.slane %v3427, 5
      %v3430 = vor.u32 %v3426, %v3429
      %v3431 = vrot.slane %v1474, 4
      %v3432 = vrot.slane %v1477, 5
      %v3433 = vor.u32 %v3431, %v3432
      %v3434 = vsel %vm3422, %v3430, %v3433
      %v3435 = vrot.slane %v1483, 4
      %v3436 = vrot.slane %v1486, 5
      %v3437 = vor.u32 %v3435, %v3436
      %v3438 = vsel %vm3422, %v3433, %v3437
      %v3439 = vrot.slane %v1492, 4
      %v3440 = vrot.slane %v1495, 5
      %v3441 = vor.u32 %v3439, %v3440
      %v3442 = vsel %vm3422, %v3437, %v3441
      %v3443 = vrot.slane %v1501, 4
      %v3444 = vrot.slane %v1504, 5
      %v3445 = vor.u32 %v3443, %v3444
      %v3446 = vsel %vm3422, %v3441, %v3445
      %v3447 = vrot.slane %v1510, 4
      %v3448 = vrot.slane %v1513, 5
      %v3449 = vor.u32 %v3447, %v3448
      %v3450 = vsel %vm3422, %v3445, %v3449
      %v3451 = vrot.slane %v1519, 4
      %v3452 = vrot.slane %v1522, 5
      %v3453 = vor.u32 %v3451, %v3452
      %v3454 = vsel %vm3422, %v3449, %v3453
      %v3455 = vrot.slane %v1528, 4
      %v3456 = vrot.slane %v1531, 5
      %v3457 = vor.u32 %v3455, %v3456
      %v3458 = vsel %vm3422, %v3453, %v3457
      %v3459 = vrot.slane %v1537, 4
      %v3460 = vrot.slane %v1540, 5
      %v3461 = vor.u32 %v3459, %v3460
      %v3462 = vsel %vm3422, %v3457, %v3461
      %v3463 = vrot.slane %v1546, 4
      %v3464 = vrot.slane %v1549, 5
      %v3465 = vor.u32 %v3463, %v3464
      %v3466 = vsel %vm3422, %v3461, %v3465
      %v3467 = vrot.slane %v1555, 4
      %v3468 = vrot.slane %v1558, 5
      %v3469 = vor.u32 %v3467, %v3468
      %v3470 = vsel %vm3422, %v3465, %v3469
      %v3471 = vrot.slane %v1564, 4
      %v3472 = vrot.slane %v1567, 5
      %v3473 = vor.u32 %v3471, %v3472
      %v3474 = vsel %vm3422, %v3469, %v3473
      %v3475 = vrot.slane %v1573, 4
      %v3476 = vrot.slane %v1576, 5
      %v3477 = vor.u32 %v3475, %v3476
      %v3478 = vsel %vm3422, %v3473, %v3477
      %v3479 = vrot.slane %v1582, 4
      %v3480 = vrot.slane %v1585, 5
      %v3481 = vor.u32 %v3479, %v3480
      %v3482 = vsel %vm3422, %v3477, %v3481
      %v3483 = vrot.slane %v1591, 4
      %v3484 = vrot.slane %v1594, 5
      %v3485 = vor.u32 %v3483, %v3484
      %v3486 = vsel %vm3422, %v3481, %v3485
      %v3487 = vrot.slane %v1600, 4
      %v3488 = vrot.slane %v1603, 5
      %v3489 = vor.u32 %v3487, %v3488
      %v3490 = vsel %vm3422, %v3485, %v3489
      %v3492 = vshrl.u32 %v3419, 16
      %v3494 = vrot.slane %v3492, 4
      %v3495 = vshll.u32 %v3419, 16
      %v3497 = vrot.slane %v3495, 5
      %v3498 = vor.u32 %v3494, %v3497
      %v3499 = vsel %vm3422, %v3489, %v3498
      %v3501 = vsel %vm680, %v3434, 0
      %v3504 = vsel %vm680, %v3438, 0
      %v3507 = vsel %vm680, %v3442, 0
      %v3510 = vsel %vm680, %v3446, 0
      %v3513 = vsel %vm680, %v3450, 0
      %v3516 = vsel %vm680, %v3454, 0
      %v3519 = vsel %vm680, %v3458, 0
      %v3522 = vsel %vm680, %v3462, 0
      %v3525 = vsel %vm680, %v3466, 0
      %v3528 = vsel %vm680, %v3470, 0
      %v3531 = vsel %vm680, %v3474, 0
      %v3534 = vsel %vm680, %v3478, 0
      %v3537 = vsel %vm680, %v3482, 0
      %v3540 = vsel %vm680, %v3486, 0
      %v3543 = vsel %vm680, %v3490, 0
      %v3546 = vsel %vm680, %v3499, 0
      %v3549 = vsel %vm1665, %v3421, 0
      %3551 = vmatprep.subr.bf16.mxu0 0
      %3552 = vmatpush1.bf16.msra.mxu0 %v3549
      %3553 = vmatprep.subr.bf16.mxu0 0
      %3554 = vmatpush1.bf16.msra.mxu0 0
      %3555 = vmatprep.subr.bf16.mxu0 0
      %3556 = vmatpush1.bf16.msra.mxu0 0
      %3557 = vmatprep.subr.bf16.mxu0 0
      %3558 = vmatpush1.bf16.msra.mxu0 0
      %3559 = vmatprep.subr.bf16.mxu0 0
      %3560 = vmatpush1.bf16.msra.mxu0 0
      %3561 = vmatprep.subr.bf16.mxu0 0
      %3562 = vmatpush1.bf16.msra.mxu0 0
      %3563 = vmatprep.subr.bf16.mxu0 0
      %3564 = vmatpush1.bf16.msra.mxu0 0
      %3565 = vmatprep.subr.bf16.mxu0 0
      %3566 = vmatpush1.bf16.msra.mxu0 0
      %3567 = vmatprep.subr.bf16.mxu0 0
      %3568 = vmatpush1.bf16.msra.mxu0 0
      %3569 = vmatprep.subr.bf16.mxu0 0
      %3570 = vmatpush1.bf16.msra.mxu0 0
      %3571 = vmatprep.subr.bf16.mxu0 0
      %3572 = vmatpush1.bf16.msra.mxu0 0
      %3573 = vmatprep.subr.bf16.mxu0 0
      %3574 = vmatpush1.bf16.msra.mxu0 0
      %3575 = vmatprep.subr.bf16.mxu0 0
      %3576 = vmatpush1.bf16.msra.mxu0 0
      %3577 = vmatprep.subr.bf16.mxu0 0
      %3578 = vmatpush1.bf16.msra.mxu0 0
      %3579 = vmatprep.subr.bf16.mxu0 0
      %3580 = vmatpush1.bf16.msra.mxu0 0
      %3581 = vmatprep.subr.bf16.mxu0 0
      %3582 = vmatpush1.bf16.msra.mxu0 0
      %3583 = vmatprep.mubr.bf16.mxu0 0
      %3584 = vmatmul.mubr.bf16.gmra.mrb[0].mxu0 %v3501
      %v3585 = vpop.f32.mrb[0].mxu0
      %v3586 = vadd.f32 0.0, %v3585
      %v3587 = vpop.f32.mrb[0].mxu0
      %v3588 = vpop.f32.mrb[0].mxu0
      %v3589 = vadd.f32 0.0, %v3588
      %v3590 = vpop.f32.mrb[0].mxu0
      %3591 = vmatprep.mubr.bf16.mxu0 0
      %3592 = vmatmul.mubr.bf16.gmra.mrb[0].mxu0 %v3504
      %v3593 = vpop.f32.mrb[0].mxu0
      %v3594 = vadd.f32 0.0, %v3593
      %v3595 = vpop.f32.mrb[0].mxu0
      %v3596 = vpop.f32.mrb[0].mxu0
      %v3597 = vadd.f32 0.0, %v3596
      %v3598 = vpop.f32.mrb[0].mxu0
      %3599 = vmatprep.mubr.bf16.mxu0 0
      %3600 = vmatmul.mubr.bf16.gmra.mrb[0].mxu0 %v3507
      %v3601 = vpop.f32.mrb[0].mxu0
      %v3602 = vadd.f32 0.0, %v3601
      %v3603 = vpop.f32.mrb[0].mxu0
      %v3604 = vpop.f32.mrb[0].mxu0
      %v3605 = vadd.f32 0.0, %v3604
      %v3606 = vpop.f32.mrb[0].mxu0
      %3607 = vmatprep.mubr.bf16.mxu0 0
      %3608 = vmatmul.mubr.bf16.gmra.mrb[0].mxu0 %v3510
      %v3609 = vpop.f32.mrb[0].mxu0
      %v3610 = vadd.f32 0.0, %v3609
      %v3611 = vpop.f32.mrb[0].mxu0
      %v3612 = vpop.f32.mrb[0].mxu0
      %v3613 = vadd.f32 0.0, %v3612
      %v3614 = vpop.f32.mrb[0].mxu0
      %3615 = vmatprep.mubr.bf16.mxu0 0
      %3616 = vmatmul.mubr.bf16.gmra.mrb[0].mxu0 %v3513
      %v3617 = vpop.f32.mrb[0].mxu0
      %v3618 = vadd.f32 0.0, %v3617
      %v3619 = vpop.f32.mrb[0].mxu0
      %v3620 = vpop.f32.mrb[0].mxu0
      %v3621 = vadd.f32 0.0, %v3620
      %v3622 = vpop.f32.mrb[0].mxu0
      %3623 = vmatprep.mubr.bf16.mxu0 0
      %3624 = vmatmul.mubr.bf16.gmra.mrb[0].mxu0 %v3516
      %v3625 = vpop.f32.mrb[0].mxu0
      %v3626 = vadd.f32 0.0, %v3625
      %v3627 = vpop.f32.mrb[0].mxu0
      %v3628 = vpop.f32.mrb[0].mxu0
      %v3629 = vadd.f32 0.0, %v3628
      %v3630 = vpop.f32.mrb[0].mxu0
      %3631 = vmatprep.mubr.bf16.mxu0 0
      %3632 = vmatmul.mubr.bf16.gmra.mrb[0].mxu0 %v3519
      %v3633 = vpop.f32.mrb[0].mxu0
      %v3634 = vadd.f32 0.0, %v3633
      %v3635 = vpop.f32.mrb[0].mxu0
      %v3636 = vpop.f32.mrb[0].mxu0
      %v3637 = vadd.f32 0.0, %v3636
      %v3638 = vpop.f32.mrb[0].mxu0
      %3639 = vmatprep.mubr.bf16.mxu0 0
      %3640 = vmatmul.mubr.bf16.gmra.mrb[0].mxu0 %v3522
      %v3641 = vpop.f32.mrb[0].mxu0
      %v3642 = vadd.f32 0.0, %v3641
      %v3643 = vpop.f32.mrb[0].mxu0
      %v3644 = vpop.f32.mrb[0].mxu0
      %v3645 = vadd.f32 0.0, %v3644
      %v3646 = vpop.f32.mrb[0].mxu0
      %3647 = vmatprep.mubr.bf16.mxu0 0
      %3648 = vmatmul.mubr.bf16.gmra.mrb[0].mxu0 %v3525
      %v3649 = vpop.f32.mrb[0].mxu0
      %v3650 = vadd.f32 0.0, %v3649
      %v3651 = vpop.f32.mrb[0].mxu0
      %v3652 = vpop.f32.mrb[0].mxu0
      %v3653 = vadd.f32 0.0, %v3652
      %v3654 = vpop.f32.mrb[0].mxu0
      %3655 = vmatprep.mubr.bf16.mxu0 0
      %3656 = vmatmul.mubr.bf16.gmra.mrb[0].mxu0 %v3528
      %v3657 = vpop.f32.mrb[0].mxu0
      %v3658 = vadd.f32 0.0, %v3657
      %v3659 = vpop.f32.mrb[0].mxu0
      %v3660 = vpop.f32.mrb[0].mxu0
      %v3661 = vadd.f32 0.0, %v3660
      %v3662 = vpop.f32.mrb[0].mxu0
      %3663 = vmatprep.mubr.bf16.mxu0 0
      %3664 = vmatmul.mubr.bf16.gmra.mrb[0].mxu0 %v3531
      %v3665 = vpop.f32.mrb[0].mxu0
      %v3666 = vadd.f32 0.0, %v3665
      %v3667 = vpop.f32.mrb[0].mxu0
      %v3668 = vpop.f32.mrb[0].mxu0
      %v3669 = vadd.f32 0.0, %v3668
      %v3670 = vpop.f32.mrb[0].mxu0
      %3671 = vmatprep.mubr.bf16.mxu0 0
      %3672 = vmatmul.mubr.bf16.gmra.mrb[0].mxu0 %v3534
      %v3673 = vpop.f32.mrb[0].mxu0
      %v3674 = vadd.f32 0.0, %v3673
      %v3675 = vpop.f32.mrb[0].mxu0
      %v3676 = vpop.f32.mrb[0].mxu0
      %v3677 = vadd.f32 0.0, %v3676
      %v3678 = vpop.f32.mrb[0].mxu0
      %3679 = vmatprep.mubr.bf16.mxu0 0
      %3680 = vmatmul.mubr.bf16.gmra.mrb[0].mxu0 %v3537
      %v3681 = vpop.f32.mrb[0].mxu0
      %v3682 = vadd.f32 0.0, %v3681
      %v3683 = vpop.f32.mrb[0].mxu0
      %v3684 = vpop.f32.mrb[0].mxu0
      %v3685 = vadd.f32 0.0, %v3684
      %v3686 = vpop.f32.mrb[0].mxu0
      %3687 = vmatprep.mubr.bf16.mxu0 0
      %3688 = vmatmul.mubr.bf16.gmra.mrb[0].mxu0 %v3540
      %v3689 = vpop.f32.mrb[0].mxu0
      %v3690 = vadd.f32 0.0, %v3689
      %v3691 = vpop.f32.mrb[0].mxu0
      %v3692 = vpop.f32.mrb[0].mxu0
      %v3693 = vadd.f32 0.0, %v3692
      %v3694 = vpop.f32.mrb[0].mxu0
      %3695 = vmatprep.mubr.bf16.mxu0 0
      %3696 = vmatmul.mubr.bf16.gmra.mrb[0].mxu0 %v3543
      %v3697 = vpop.f32.mrb[0].mxu0
      %v3698 = vadd.f32 0.0, %v3697
      %v3699 = vpop.f32.mrb[0].mxu0
      %v3700 = vpop.f32.mrb[0].mxu0
      %v3701 = vadd.f32 0.0, %v3700
      %v3702 = vpop.f32.mrb[0].mxu0
      %3703 = vmatprep.mubr.bf16.mxu0 0
      %3704 = vmatmul.mubr.bf16.gmra.mrb[0].mxu0 %v3546
      %v3705 = vpop.f32.mrb[0].mxu0
      %v3706 = vadd.f32 0.0, %v3705
      %v3707 = vpop.f32.mrb[0].mxu0
      %v3708 = vpop.f32.mrb[0].mxu0
      %v3709 = vadd.f32 0.0, %v3708
      %v3710 = vpop.f32.mrb[0].mxu0
      %3711 = vdwg.mxu0
      %v3713 = vshrl.u32 %v2637, 16
      %v3715 = vrot.slane %v3713, 4
      %v3716 = vshll.u32 %v2637, 16
      %v3718 = vrot.slane %v3716, 5
      %v3719 = vor.u32 %v3715, %v3718
      %v3720 = vrot.slane %v1839, 4
      %v3721 = vrot.slane %v1842, 5
      %v3722 = vor.u32 %v3720, %v3721
      %v3723 = vsel %vm3422, %v3719, %v3722
      %v3724 = vsel %vm3422, %v3722, %v3433
      %v3726 = vshrl.u32 %v3416, 16
      %v3728 = vrot.slane %v3726, 4
      %v3729 = vshll.u32 %v3416, 16
      %v3731 = vrot.slane %v3729, 5
      %v3732 = vor.u32 %v3728, %v3731
      %v3733 = vsel %vm3422, %v3485, %v3732
      %v3735 = vsel %vm680, %v3723, 0
      %v3738 = vsel %vm680, %v3724, 0
      %v3741 = vsel %vm680, %v3733, 0
      %v3744 = vsel %vm1665, %v3418, 0
      %3746 = vmatprep.subr.bf16.mxu0 0
      %3747 = vmatpush1.bf16.msra.mxu0 %v3744
      %3748 = vmatprep.subr.bf16.mxu0 0
      %3749 = vmatpush1.bf16.msra.mxu0 0
      %3750 = vmatprep.subr.bf16.mxu0 0
      %3751 = vmatpush1.bf16.msra.mxu0 0
      %3752 = vmatprep.subr.bf16.mxu0 0
      %3753 = vmatpush1.bf16.msra.mxu0 0
      %3754 = vmatprep.subr.bf16.mxu0 0
      %3755 = vmatpush1.bf16.msra.mxu0 0
      %3756 = vmatprep.subr.bf16.mxu0 0
      %3757 = vmatpush1.bf16.msra.mxu0 0
      %3758 = vmatprep.subr.bf16.mxu0 0
      %3759 = vmatpush1.bf16.msra.mxu0 0
      %3760 = vmatprep.subr.bf16.mxu0 0
      %3761 = vmatpush1.bf16.msra.mxu0 0
      %3762 = vmatprep.subr.bf16.mxu0 0
      %3763 = vmatpush1.bf16.msra.mxu0 0
      %3764 = vmatprep.subr.bf16.mxu0 0
      %3765 = vmatpush1.bf16.msra.mxu0 0
      %3766 = vmatprep.subr.bf16.mxu0 0
      %3767 = vmatpush1.bf16.msra.mxu0 0
      %3768 = vmatprep.subr.bf16.mxu0 0
      %3769 = vmatpush1.bf16.msra.mxu0 0
      %3770 = vmatprep.subr.bf16.mxu0 0
      %3771 = vmatpush1.bf16.msra.mxu0 0
      %3772 = vmatprep.subr.bf16.mxu0 0
      %3773 = vmatpush1.bf16.msra.mxu0 0
      %3774 = vmatprep.subr.bf16.mxu0 0
      %3775 = vmatpush1.bf16.msra.mxu0 0
      %3776 = vmatprep.subr.bf16.mxu0 0
      %3777 = vmatpush1.bf16.msra.mxu0 0
      %3778 = vmatprep.mubr.bf16.mxu0 0
      %3779 = vmatmul.mubr.bf16.gmra.mrb[0].mxu0 %v3735
      %v3780 = vpop.f32.mrb[0].mxu0
      %v3781 = vadd.f32 %v3586, %v3780
      %v3782 = vpop.f32.mrb[0].mxu0
      %v3783 = vpop.f32.mrb[0].mxu0
      %v3784 = vadd.f32 %v3589, %v3783
      %v3785 = vpop.f32.mrb[0].mxu0
      %3786 = vmatprep.mubr.bf16.mxu0 0
      %3787 = vmatmul.mubr.bf16.gmra.mrb[0].mxu0 %v3738
      %v3788 = vpop.f32.mrb[0].mxu0
      %v3789 = vadd.f32 %v3594, %v3788
      %v3790 = vpop.f32.mrb[0].mxu0
      %v3791 = vpop.f32.mrb[0].mxu0
      %v3792 = vadd.f32 %v3597, %v3791
      %v3793 = vpop.f32.mrb[0].mxu0
      %3794 = vmatprep.mubr.bf16.mxu0 0
      %3795 = vmatmul.mubr.bf16.gmra.mrb[0].mxu0 %v3504
      %v3796 = vpop.f32.mrb[0].mxu0
      %v3797 = vadd.f32 %v3602, %v3796
      %v3798 = vpop.f32.mrb[0].mxu0
      %v3799 = vpop.f32.mrb[0].mxu0
      %v3800 = vadd.f32 %v3605, %v3799
      %v3801 = vpop.f32.mrb[0].mxu0
      %3802 = vmatprep.mubr.bf16.mxu0 0
      %3803 = vmatmul.mubr.bf16.gmra.mrb[0].mxu0 %v3507
      %v3804 = vpop.f32.mrb[0].mxu0
      %v3805 = vadd.f32 %v3610, %v3804
      %v3806 = vpop.f32.mrb[0].mxu0
      %v3807 = vpop.f32.mrb[0].mxu0
      %v3808 = vadd.f32 %v3613, %v3807
      %v3809 = vpop.f32.mrb[0].mxu0
      %3810 = vmatprep.mubr.bf16.mxu0 0
      %3811 = vmatmul.mubr.bf16.gmra.mrb[0].mxu0 %v3510
      %v3812 = vpop.f32.mrb[0].mxu0
      %v3813 = vadd.f32 %v3618, %v3812
      %v3814 = vpop.f32.mrb[0].mxu0
      %v3815 = vpop.f32.mrb[0].mxu0
      %v3816 = vadd.f32 %v3621, %v3815
      %v3817 = vpop.f32.mrb[0].mxu0
      %3818 = vmatprep.mubr.bf16.mxu0 0
      %3819 = vmatmul.mubr.bf16.gmra.mrb[0].mxu0 %v3513
      %v3820 = vpop.f32.mrb[0].mxu0
      %v3821 = vadd.f32 %v3626, %v3820
      %v3822 = vpop.f32.mrb[0].mxu0
      %v3823 = vpop.f32.mrb[0].mxu0
      %v3824 = vadd.f32 %v3629, %v3823
      %v3825 = vpop.f32.mrb[0].mxu0
      %3826 = vmatprep.mubr.bf16.mxu0 0
      %3827 = vmatmul.mubr.bf16.gmra.mrb[0].mxu0 %v3516
      %v3828 = vpop.f32.mrb[0].mxu0
      %v3829 = vadd.f32 %v3634, %v3828
      %v3830 = vpop.f32.mrb[0].mxu0
      %v3831 = vpop.f32.mrb[0].mxu0
      %v3832 = vadd.f32 %v3637, %v3831
      %v3833 = vpop.f32.mrb[0].mxu0
      %3834 = vmatprep.mubr.bf16.mxu0 0
      %3835 = vmatmul.mubr.bf16.gmra.mrb[0].mxu0 %v3519
      %v3836 = vpop.f32.mrb[0].mxu0
      %v3837 = vadd.f32 %v3642, %v3836
      %v3838 = vpop.f32.mrb[0].mxu0
      %v3839 = vpop.f32.mrb[0].mxu0
      %v3840 = vadd.f32 %v3645, %v3839
      %v3841 = vpop.f32.mrb[0].mxu0
      %3842 = vmatprep.mubr.bf16.mxu0 0
      %3843 = vmatmul.mubr.bf16.gmra.mrb[0].mxu0 %v3522
      %v3844 = vpop.f32.mrb[0].mxu0
      %v3845 = vadd.f32 %v3650, %v3844
      %v3846 = vpop.f32.mrb[0].mxu0
      %v3847 = vpop.f32.mrb[0].mxu0
      %v3848 = vadd.f32 %v3653, %v3847
      %v3849 = vpop.f32.mrb[0].mxu0
      %3850 = vmatprep.mubr.bf16.mxu0 0
      %3851 = vmatmul.mubr.bf16.gmra.mrb[0].mxu0 %v3525
      %v3852 = vpop.f32.mrb[0].mxu0
      %v3853 = vadd.f32 %v3658, %v3852
      %v3854 = vpop.f32.mrb[0].mxu0
      %v3855 = vpop.f32.mrb[0].mxu0
      %v3856 = vadd.f32 %v3661, %v3855
      %v3857 = vpop.f32.mrb[0].mxu0
      %3858 = vmatprep.mubr.bf16.mxu0 0
      %3859 = vmatmul.mubr.bf16.gmra.mrb[0].mxu0 %v3528
      %v3860 = vpop.f32.mrb[0].mxu0
      %v3861 = vadd.f32 %v3666, %v3860
      %v3862 = vpop.f32.mrb[0].mxu0
      %v3863 = vpop.f32.mrb[0].mxu0
      %v3864 = vadd.f32 %v3669, %v3863
      %v3865 = vpop.f32.mrb[0].mxu0
      %3866 = vmatprep.mubr.bf16.mxu0 0
      %3867 = vmatmul.mubr.bf16.gmra.mrb[0].mxu0 %v3531
      %v3868 = vpop.f32.mrb[0].mxu0
      %v3869 = vadd.f32 %v3674, %v3868
      %v3870 = vpop.f32.mrb[0].mxu0
      %v3871 = vpop.f32.mrb[0].mxu0
      %v3872 = vadd.f32 %v3677, %v3871
      %v3873 = vpop.f32.mrb[0].mxu0
      %3874 = vmatprep.mubr.bf16.mxu0 0
      %3875 = vmatmul.mubr.bf16.gmra.mrb[0].mxu0 %v3534
      %v3876 = vpop.f32.mrb[0].mxu0
      %v3877 = vadd.f32 %v3682, %v3876
      %v3878 = vpop.f32.mrb[0].mxu0
      %v3879 = vpop.f32.mrb[0].mxu0
      %v3880 = vadd.f32 %v3685, %v3879
      %v3881 = vpop.f32.mrb[0].mxu0
      %3882 = vmatprep.mubr.bf16.mxu0 0
      %3883 = vmatmul.mubr.bf16.gmra.mrb[0].mxu0 %v3537
      %v3884 = vpop.f32.mrb[0].mxu0
      %v3885 = vadd.f32 %v3690, %v3884
      %v3886 = vpop.f32.mrb[0].mxu0
      %v3887 = vpop.f32.mrb[0].mxu0
      %v3888 = vadd.f32 %v3693, %v3887
      %v3889 = vpop.f32.mrb[0].mxu0
      %3890 = vmatprep.mubr.bf16.mxu0 0
      %3891 = vmatmul.mubr.bf16.gmra.mrb[0].mxu0 %v3540
      %v3892 = vpop.f32.mrb[0].mxu0
      %v3893 = vadd.f32 %v3698, %v3892
      %v3894 = vpop.f32.mrb[0].mxu0
      %v3895 = vpop.f32.mrb[0].mxu0
      %v3896 = vadd.f32 %v3701, %v3895
      %v3897 = vpop.f32.mrb[0].mxu0
      %3898 = vmatprep.mubr.bf16.mxu0 0
      %3899 = vmatmul.mubr.bf16.gmra.mrb[0].mxu0 %v3741
      %v3900 = vpop.f32.mrb[0].mxu0
      %v3901 = vadd.f32 %v3706, %v3900
      %v3902 = vpop.f32.mrb[0].mxu0
      %v3903 = vpop.f32.mrb[0].mxu0
      %v3904 = vadd.f32 %v3709, %v3903
      %v3905 = vpop.f32.mrb[0].mxu0
      %3906 = vdwg.mxu0
      %v3907 = vld [vmem:[#allocation2 + $0x90] sm:$0x1f]
      %s3908 = scalar_lea.vmem %s7, 16
      %v3909 = vld [vmem:[%s3908] sm:$0x3]
      %v3911 = vshrl.u32 %v3087, 16
      %v3913 = vrot.slane %v3911, 4
      %v3914 = vshll.u32 %v3087, 16
      %v3916 = vrot.slane %v3914, 5
      %v3917 = vor.u32 %v3913, %v3916
      %v3918 = vrot.slane %v2058, 4
      %v3919 = vrot.slane %v2061, 5
      %v3920 = vor.u32 %v3918, %v3919
      %v3921 = vsel %vm3422, %v3917, %v3920
      %v3922 = vrot.slane %v2067, 4
      %v3923 = vrot.slane %v2070, 5
      %v3924 = vor.u32 %v3922, %v3923
      %v3925 = vsel %vm3422, %v3920, %v3924
      %v3926 = vrot.slane %v2076, 4
      %v3927 = vrot.slane %v2079, 5
      %v3928 = vor.u32 %v3926, %v3927
      %v3929 = vsel %vm3422, %v3924, %v3928
      %v3930 = vrot.slane %v2085, 4
      %v3931 = vrot.slane %v2088, 5
      %v3932 = vor.u32 %v3930, %v3931
      %v3933 = vsel %vm3422, %v3928, %v3932
      %v3934 = vrot.slane %v2094, 4
      %v3935 = vrot.slane %v2097, 5
      %v3936 = vor.u32 %v3934, %v3935
      %v3937 = vsel %vm3422, %v3932, %v3936
      %v3938 = vrot.slane %v2103, 4
      %v3939 = vrot.slane %v2106, 5
      %v3940 = vor.u32 %v3938, %v3939
      %v3941 = vsel %vm3422, %v3936, %v3940
      %v3942 = vrot.slane %v2112, 4
      %v3943 = vrot.slane %v2115, 5
      %v3944 = vor.u32 %v3942, %v3943
      %v3945 = vsel %vm3422, %v3940, %v3944
      %v3946 = vrot.slane %v2121, 4
      %v3947 = vrot.slane %v2124, 5
      %v3948 = vor.u32 %v3946, %v3947
      %v3949 = vsel %vm3422, %v3944, %v3948
      %v3950 = vrot.slane %v2130, 4
      %v3951 = vrot.slane %v2133, 5
      %v3952 = vor.u32 %v3950, %v3951
      %v3953 = vsel %vm3422, %v3948, %v3952
      %v3954 = vrot.slane %v2139, 4
      %v3955 = vrot.slane %v2142, 5
      %v3956 = vor.u32 %v3954, %v3955
      %v3957 = vsel %vm3422, %v3952, %v3956
      %v3958 = vrot.slane %v2148, 4
      %v3959 = vrot.slane %v2151, 5
      %v3960 = vor.u32 %v3958, %v3959
      %v3961 = vsel %vm3422, %v3956, %v3960
      %v3962 = vrot.slane %v2157, 4
      %v3963 = vrot.slane %v2160, 5
      %v3964 = vor.u32 %v3962, %v3963
      %v3965 = vsel %vm3422, %v3960, %v3964
      %v3966 = vrot.slane %v2166, 4
      %v3967 = vrot.slane %v2169, 5
      %v3968 = vor.u32 %v3966, %v3967
      %v3969 = vsel %vm3422, %v3964, %v3968
      %v3970 = vrot.slane %v2175, 4
      %v3971 = vrot.slane %v2178, 5
      %v3972 = vor.u32 %v3970, %v3971
      %v3973 = vsel %vm3422, %v3968, %v3972
      %v3974 = vrot.slane %v2184, 4
      %v3975 = vrot.slane %v2187, 5
      %v3976 = vor.u32 %v3974, %v3975
      %v3977 = vsel %vm3422, %v3972, %v3976
      %v3979 = vshrl.u32 %v3907, 16
      %v3981 = vrot.slane %v3979, 4
      %v3982 = vshll.u32 %v3907, 16
      %v3984 = vrot.slane %v3982, 5
      %v3985 = vor.u32 %v3981, %v3984
      %v3986 = vsel %vm3422, %v3976, %v3985
      %v3988 = vsel %vm680, %v3921, 0
      %v3991 = vsel %vm680, %v3925, 0
      %v3994 = vsel %vm680, %v3929, 0
      %v3997 = vsel %vm680, %v3933, 0
      %v4000 = vsel %vm680, %v3937, 0
      %v4003 = vsel %vm680, %v3941, 0
      %v4006 = vsel %vm680, %v3945, 0
      %v4009 = vsel %vm680, %v3949, 0
      %v4012 = vsel %vm680, %v3953, 0
      %v4015 = vsel %vm680, %v3957, 0
      %v4018 = vsel %vm680, %v3961, 0
      %v4021 = vsel %vm680, %v3965, 0
      %v4024 = vsel %vm680, %v3969, 0
      %v4027 = vsel %vm680, %v3973, 0
      %v4030 = vsel %vm680, %v3977, 0
      %v4033 = vsel %vm680, %v3986, 0
      %v4036 = vsel %vm1665, %v3909, 0
      %4038 = vmatprep.subr.bf16.mxu0 0
      %4039 = vmatpush1.bf16.msra.mxu0 %v4036
      %4040 = vmatprep.subr.bf16.mxu0 0
      %4041 = vmatpush1.bf16.msra.mxu0 0
      %4042 = vmatprep.subr.bf16.mxu0 0
      %4043 = vmatpush1.bf16.msra.mxu0 0
      %4044 = vmatprep.subr.bf16.mxu0 0
      %4045 = vmatpush1.bf16.msra.mxu0 0
      %4046 = vmatprep.subr.bf16.mxu0 0
      %4047 = vmatpush1.bf16.msra.mxu0 0
      %4048 = vmatprep.subr.bf16.mxu0 0
      %4049 = vmatpush1.bf16.msra.mxu0 0
      %4050 = vmatprep.subr.bf16.mxu0 0
      %4051 = vmatpush1.bf16.msra.mxu0 0
      %4052 = vmatprep.subr.bf16.mxu0 0
      %4053 = vmatpush1.bf16.msra.mxu0 0
      %4054 = vmatprep.subr.bf16.mxu0 0
      %4055 = vmatpush1.bf16.msra.mxu0 0
      %4056 = vmatprep.subr.bf16.mxu0 0
      %4057 = vmatpush1.bf16.msra.mxu0 0
      %4058 = vmatprep.subr.bf16.mxu0 0
      %4059 = vmatpush1.bf16.msra.mxu0 0
      %4060 = vmatprep.subr.bf16.mxu0 0
      %4061 = vmatpush1.bf16.msra.mxu0 0
      %4062 = vmatprep.subr.bf16.mxu0 0
      %4063 = vmatpush1.bf16.msra.mxu0 0
      %4064 = vmatprep.subr.bf16.mxu0 0
      %4065 = vmatpush1.bf16.msra.mxu0 0
      %4066 = vmatprep.subr.bf16.mxu0 0
      %4067 = vmatpush1.bf16.msra.mxu0 0
      %4068 = vmatprep.subr.bf16.mxu0 0
      %4069 = vmatpush1.bf16.msra.mxu0 0
      %4070 = vmatprep.mubr.bf16.mxu0 0
      %4071 = vmatmul.mubr.bf16.gmra.mrb[0].mxu0 %v3988
      %v4072 = vpop.f32.mrb[0].mxu0
      %v4073 = vadd.f32 0.0, %v4072
      %v4074 = vpop.f32.mrb[0].mxu0
      %v4075 = vpop.f32.mrb[0].mxu0
      %v4076 = vadd.f32 0.0, %v4075
      %v4077 = vpop.f32.mrb[0].mxu0
      %4078 = vmatprep.mubr.bf16.mxu0 0
      %4079 = vmatmul.mubr.bf16.gmra.mrb[0].mxu0 %v3991
      %v4080 = vpop.f32.mrb[0].mxu0
      %v4081 = vadd.f32 0.0, %v4080
      %v4082 = vpop.f32.mrb[0].mxu0
      %v4083 = vpop.f32.mrb[0].mxu0
      %v4084 = vadd.f32 0.0, %v4083
      %v4085 = vpop.f32.mrb[0].mxu0
      %4086 = vmatprep.mubr.bf16.mxu0 0
      %4087 = vmatmul.mubr.bf16.gmra.mrb[0].mxu0 %v3994
      %v4088 = vpop.f32.mrb[0].mxu0
      %v4089 = vadd.f32 0.0, %v4088
      %v4090 = vpop.f32.mrb[0].mxu0
      %v4091 = vpop.f32.mrb[0].mxu0
      %v4092 = vadd.f32 0.0, %v4091
      %v4093 = vpop.f32.mrb[0].mxu0
      %4094 = vmatprep.mubr.bf16.mxu0 0
      %4095 = vmatmul.mubr.bf16.gmra.mrb[0].mxu0 %v3997
      %v4096 = vpop.f32.mrb[0].mxu0
      %v4097 = vadd.f32 0.0, %v4096
      %v4098 = vpop.f32.mrb[0].mxu0
      %v4099 = vpop.f32.mrb[0].mxu0
      %v4100 = vadd.f32 0.0, %v4099
      %v4101 = vpop.f32.mrb[0].mxu0
      %4102 = vmatprep.mubr.bf16.mxu0 0
      %4103 = vmatmul.mubr.bf16.gmra.mrb[0].mxu0 %v4000
      %v4104 = vpop.f32.mrb[0].mxu0
      %v4105 = vadd.f32 0.0, %v4104
      %v4106 = vpop.f32.mrb[0].mxu0
      %v4107 = vpop.f32.mrb[0].mxu0
      %v4108 = vadd.f32 0.0, %v4107
      %v4109 = vpop.f32.mrb[0].mxu0
      %4110 = vmatprep.mubr.bf16.mxu0 0
      %4111 = vmatmul.mubr.bf16.gmra.mrb[0].mxu0 %v4003
      %v4112 = vpop.f32.mrb[0].mxu0
      %v4113 = vadd.f32 0.0, %v4112
      %v4114 = vpop.f32.mrb[0].mxu0
      %v4115 = vpop.f32.mrb[0].mxu0
      %v4116 = vadd.f32 0.0, %v4115
      %v4117 = vpop.f32.mrb[0].mxu0
      %4118 = vmatprep.mubr.bf16.mxu0 0
      %4119 = vmatmul.mubr.bf16.gmra.mrb[0].mxu0 %v4006
      %v4120 = vpop.f32.mrb[0].mxu0
      %v4121 = vadd.f32 0.0, %v4120
      %v4122 = vpop.f32.mrb[0].mxu0
      %v4123 = vpop.f32.mrb[0].mxu0
      %v4124 = vadd.f32 0.0, %v4123
      %v4125 = vpop.f32.mrb[0].mxu0
      %4126 = vmatprep.mubr.bf16.mxu0 0
      %4127 = vmatmul.mubr.bf16.gmra.mrb[0].mxu0 %v4009
      %v4128 = vpop.f32.mrb[0].mxu0
      %v4129 = vadd.f32 0.0, %v4128
      %v4130 = vpop.f32.mrb[0].mxu0
      %v4131 = vpop.f32.mrb[0].mxu0
      %v4132 = vadd.f32 0.0, %v4131
      %v4133 = vpop.f32.mrb[0].mxu0
      %4134 = vmatprep.mubr.bf16.mxu0 0
      %4135 = vmatmul.mubr.bf16.gmra.mrb[0].mxu0 %v4012
      %v4136 = vpop.f32.mrb[0].mxu0
      %v4137 = vadd.f32 0.0, %v4136
      %v4138 = vpop.f32.mrb[0].mxu0
      %v4139 = vpop.f32.mrb[0].mxu0
      %v4140 = vadd.f32 0.0, %v4139
      %v4141 = vpop.f32.mrb[0].mxu0
      %4142 = vmatprep.mubr.bf16.mxu0 0
      %4143 = vmatmul.mubr.bf16.gmra.mrb[0].mxu0 %v4015
      %v4144 = vpop.f32.mrb[0].mxu0
      %v4145 = vadd.f32 0.0, %v4144
      %v4146 = vpop.f32.mrb[0].mxu0
      %v4147 = vpop.f32.mrb[0].mxu0
      %v4148 = vadd.f32 0.0, %v4147
      %v4149 = vpop.f32.mrb[0].mxu0
      %4150 = vmatprep.mubr.bf16.mxu0 0
      %4151 = vmatmul.mubr.bf16.gmra.mrb[0].mxu0 %v4018
      %v4152 = vpop.f32.mrb[0].mxu0
      %v4153 = vadd.f32 0.0, %v4152
      %v4154 = vpop.f32.mrb[0].mxu0
      %v4155 = vpop.f32.mrb[0].mxu0
      %v4156 = vadd.f32 0.0, %v4155
      %v4157 = vpop.f32.mrb[0].mxu0
      %4158 = vmatprep.mubr.bf16.mxu0 0
      %4159 = vmatmul.mubr.bf16.gmra.mrb[0].mxu0 %v4021
      %v4160 = vpop.f32.mrb[0].mxu0
      %v4161 = vadd.f32 0.0, %v4160
      %v4162 = vpop.f32.mrb[0].mxu0
      %v4163 = vpop.f32.mrb[0].mxu0
      %v4164 = vadd.f32 0.0, %v4163
      %v4165 = vpop.f32.mrb[0].mxu0
      %4166 = vmatprep.mubr.bf16.mxu0 0
      %4167 = vmatmul.mubr.bf16.gmra.mrb[0].mxu0 %v4024
      %v4168 = vpop.f32.mrb[0].mxu0
      %v4169 = vadd.f32 0.0, %v4168
      %v4170 = vpop.f32.mrb[0].mxu0
      %v4171 = vpop.f32.mrb[0].mxu0
      %v4172 = vadd.f32 0.0, %v4171
      %v4173 = vpop.f32.mrb[0].mxu0
      %4174 = vmatprep.mubr.bf16.mxu0 0
      %4175 = vmatmul.mubr.bf16.gmra.mrb[0].mxu0 %v4027
      %v4176 = vpop.f32.mrb[0].mxu0
      %v4177 = vadd.f32 0.0, %v4176
      %v4178 = vpop.f32.mrb[0].mxu0
      %v4179 = vpop.f32.mrb[0].mxu0
      %v4180 = vadd.f32 0.0, %v4179
      %v4181 = vpop.f32.mrb[0].mxu0
      %4182 = vmatprep.mubr.bf16.mxu0 0
      %4183 = vmatmul.mubr.bf16.gmra.mrb[0].mxu0 %v4030
      %v4184 = vpop.f32.mrb[0].mxu0
      %v4185 = vadd.f32 0.0, %v4184
      %v4186 = vpop.f32.mrb[0].mxu0
      %v4187 = vpop.f32.mrb[0].mxu0
      %v4188 = vadd.f32 0.0, %v4187
      %v4189 = vpop.f32.mrb[0].mxu0
      %4190 = vmatprep.mubr.bf16.mxu0 0
      %4191 = vmatmul.mubr.bf16.gmra.mrb[0].mxu0 %v4033
      %v4192 = vpop.f32.mrb[0].mxu0
      %v4193 = vadd.f32 0.0, %v4192
      %v4194 = vpop.f32.mrb[0].mxu0
      %v4195 = vpop.f32.mrb[0].mxu0
      %v4196 = vadd.f32 0.0, %v4195
      %v4197 = vpop.f32.mrb[0].mxu0
      %4198 = vdwg.mxu0
      %v4199 = vadd.f32 %v3781, %v4073
      %v4200 = vadd.f32 %v3784, %v4076
      %v4201 = vadd.f32 %v3789, %v4081
      %v4202 = vadd.f32 %v3792, %v4084
      %v4203 = vadd.f32 %v3797, %v4089
      %v4204 = vadd.f32 %v3800, %v4092
      %v4205 = vadd.f32 %v3805, %v4097
      %v4206 = vadd.f32 %v3808, %v4100
      %v4207 = vadd.f32 %v3813, %v4105
      %v4208 = vadd.f32 %v3816, %v4108
      %v4209 = vadd.f32 %v3821, %v4113
      %v4210 = vadd.f32 %v3824, %v4116
      %v4211 = vadd.f32 %v3829, %v4121
      %v4212 = vadd.f32 %v3832, %v4124
      %v4213 = vadd.f32 %v3837, %v4129
      %v4214 = vadd.f32 %v3840, %v4132
      %v4215 = vadd.f32 %v3845, %v4137
      %v4216 = vadd.f32 %v3848, %v4140
      %v4217 = vadd.f32 %v3853, %v4145
      %v4218 = vadd.f32 %v3856, %v4148
      %v4219 = vadd.f32 %v3861, %v4153
      %v4220 = vadd.f32 %v3864, %v4156
      %v4221 = vadd.f32 %v3869, %v4161
      %v4222 = vadd.f32 %v3872, %v4164
      %v4223 = vadd.f32 %v3877, %v4169
      %v4224 = vadd.f32 %v3880, %v4172
      %v4225 = vadd.f32 %v3885, %v4177
      %v4226 = vadd.f32 %v3888, %v4180
      %v4227 = vadd.f32 %v3893, %v4185
      %v4228 = vadd.f32 %v3896, %v4188
      %v4229 = vadd.f32 %v3901, %v4193
      %v4230 = vadd.f32 %v3904, %v4196
      %4232 = vset.pattern.permute.xlu0 0
      %4233 = vperm.xlu0 %4232, %v648
      %v4234 = vpop.permute.xlu0 %4233
      %4237 = vset.pattern.permute.xlu0 0
      %4238 = vperm.xlu0 %4237, %v649
      %v4239 = vpop.permute.xlu0 %4238
      %4242 = vset.pattern.permute.xlu0 0
      %4243 = vperm.xlu0 %4242, %v650
      %v4244 = vpop.permute.xlu0 %4243
      %4247 = vset.pattern.permute.xlu0 0
      %4248 = vperm.xlu0 %4247, %v651
      %v4249 = vpop.permute.xlu0 %4248
      %4252 = vset.pattern.permute.xlu0 0
      %4253 = vperm.xlu0 %4252, %v652
      %v4254 = vpop.permute.xlu0 %4253
      %4257 = vset.pattern.permute.xlu0 0
      %4258 = vperm.xlu0 %4257, %v653
      %v4259 = vpop.permute.xlu0 %4258
      %4262 = vset.pattern.permute.xlu0 0
      %4263 = vperm.xlu0 %4262, %v654
      %v4264 = vpop.permute.xlu0 %4263
      %4267 = vset.pattern.permute.xlu0 0
      %4268 = vperm.xlu0 %4267, %v655
      %v4269 = vpop.permute.xlu0 %4268
      %4272 = vset.pattern.permute.xlu0 0
      %4273 = vperm.xlu0 %4272, %v656
      %v4274 = vpop.permute.xlu0 %4273
      %4277 = vset.pattern.permute.xlu0 0
      %4278 = vperm.xlu0 %4277, %v657
      %v4279 = vpop.permute.xlu0 %4278
      %4282 = vset.pattern.permute.xlu0 0
      %4283 = vperm.xlu0 %4282, %v658
      %v4284 = vpop.permute.xlu0 %4283
      %4287 = vset.pattern.permute.xlu0 0
      %4288 = vperm.xlu0 %4287, %v659
      %v4289 = vpop.permute.xlu0 %4288
      %4292 = vset.pattern.permute.xlu0 0
      %4293 = vperm.xlu0 %4292, %v660
      %v4294 = vpop.permute.xlu0 %4293
      %4297 = vset.pattern.permute.xlu0 0
      %4298 = vperm.xlu0 %4297, %v661
      %v4299 = vpop.permute.xlu0 %4298
      %4302 = vset.pattern.permute.xlu0 0
      %4303 = vperm.xlu0 %4302, %v662
      %v4304 = vpop.permute.xlu0 %4303
      %4307 = vset.pattern.permute.xlu0 0
      %4308 = vperm.xlu0 %4307, %v663
      %v4309 = vpop.permute.xlu0 %4308
      %4312 = vset.pattern.permute.xlu0 0
      %4313 = vperm.xlu0 %4312, %v664
      %v4314 = vpop.permute.xlu0 %4313
      %4317 = vset.pattern.permute.xlu0 0
      %4318 = vperm.xlu0 %4317, %v665
      %v4319 = vpop.permute.xlu0 %4318
      %4322 = vset.pattern.permute.xlu0 0
      %4323 = vperm.xlu0 %4322, %v666
      %v4324 = vpop.permute.xlu0 %4323
      %4327 = vset.pattern.permute.xlu0 0
      %4328 = vperm.xlu0 %4327, %v667
      %v4329 = vpop.permute.xlu0 %4328
      %4332 = vset.pattern.permute.xlu0 0
      %4333 = vperm.xlu0 %4332, %v668
      %v4334 = vpop.permute.xlu0 %4333
      %4337 = vset.pattern.permute.xlu0 0
      %4338 = vperm.xlu0 %4337, %v669
      %v4339 = vpop.permute.xlu0 %4338
      %4342 = vset.pattern.permute.xlu0 0
      %4343 = vperm.xlu0 %4342, %v670
      %v4344 = vpop.permute.xlu0 %4343
      %4347 = vset.pattern.permute.xlu0 0
      %4348 = vperm.xlu0 %4347, %v671
      %v4349 = vpop.permute.xlu0 %4348
      %4352 = vset.pattern.permute.xlu0 0
      %4353 = vperm.xlu0 %4352, %v672
      %v4354 = vpop.permute.xlu0 %4353
      %4357 = vset.pattern.permute.xlu0 0
      %4358 = vperm.xlu0 %4357, %v673
      %v4359 = vpop.permute.xlu0 %4358
      %4362 = vset.pattern.permute.xlu0 0
      %4363 = vperm.xlu0 %4362, %v674
      %v4364 = vpop.permute.xlu0 %4363
      %4367 = vset.pattern.permute.xlu0 0
      %4368 = vperm.xlu0 %4367, %v675
      %v4369 = vpop.permute.xlu0 %4368
      %4372 = vset.pattern.permute.xlu0 0
      %4373 = vperm.xlu0 %4372, %v676
      %v4374 = vpop.permute.xlu0 %4373
      %4377 = vset.pattern.permute.xlu0 0
      %4378 = vperm.xlu0 %4377, %v677
      %v4379 = vpop.permute.xlu0 %4378
      %4382 = vset.pattern.permute.xlu0 0
      %4383 = vperm.xlu0 %4382, %v678
      %v4384 = vpop.permute.xlu0 %4383
      %4387 = vset.pattern.permute.xlu0 0
      %4388 = vperm.xlu0 %4387, %v679
      %v4389 = vpop.permute.xlu0 %4388
      %v4391 = vmul.f32 %v4199, %v4234
      %v4392 = vmul.f32 %v4200, %v4239
      %v4393 = vmul.f32 %v4201, %v4244
      %v4394 = vmul.f32 %v4202, %v4249
      %v4395 = vmul.f32 %v4203, %v4254
      %v4396 = vmul.f32 %v4204, %v4259
      %v4397 = vmul.f32 %v4205, %v4264
      %v4398 = vmul.f32 %v4206, %v4269
      %v4399 = vmul.f32 %v4207, %v4274
      %v4400 = vmul.f32 %v4208, %v4279
      %v4401 = vmul.f32 %v4209, %v4284
      %v4402 = vmul.f32 %v4210, %v4289
      %v4403 = vmul.f32 %v4211, %v4294
      %v4404 = vmul.f32 %v4212, %v4299
      %v4405 = vmul.f32 %v4213, %v4304
      %v4406 = vmul.f32 %v4214, %v4309
      %v4407 = vmul.f32 %v4215, %v4314
      %v4408 = vmul.f32 %v4216, %v4319
      %v4409 = vmul.f32 %v4217, %v4324
      %v4410 = vmul.f32 %v4218, %v4329
      %v4411 = vmul.f32 %v4219, %v4334
      %v4412 = vmul.f32 %v4220, %v4339
      %v4413 = vmul.f32 %v4221, %v4344
      %v4414 = vmul.f32 %v4222, %v4349
      %v4415 = vmul.f32 %v4223, %v4354
      %v4416 = vmul.f32 %v4224, %v4359
      %v4417 = vmul.f32 %v4225, %v4364
      %v4418 = vmul.f32 %v4226, %v4369
      %v4419 = vmul.f32 %v4227, %v4374
      %v4420 = vmul.f32 %v4228, %v4379
      %v4421 = vmul.f32 %v4229, %v4384
      %v4422 = vmul.f32 %v4230, %v4389
      %v4423 = vadd.f32 %v3384, %v4391
      %v4424 = vadd.f32 %v3385, %v4392
      %v4425 = vadd.f32 %v3386, %v4393
      %v4426 = vadd.f32 %v3387, %v4394
      %v4427 = vadd.f32 %v3388, %v4395
      %v4428 = vadd.f32 %v3389, %v4396
      %v4429 = vadd.f32 %v3390, %v4397
      %v4430 = vadd.f32 %v3391, %v4398
      %v4431 = vadd.f32 %v3392, %v4399
      %v4432 = vadd.f32 %v3393, %v4400
      %v4433 = vadd.f32 %v3394, %v4401
      %v4434 = vadd.f32 %v3395, %v4402
      %v4435 = vadd.f32 %v3396, %v4403
      %v4436 = vadd.f32 %v3397, %v4404
      %v4437 = vadd.f32 %v3398, %v4405
      %v4438 = vadd.f32 %v3399, %v4406
      %v4439 = vadd.f32 %v3400, %v4407
      %v4440 = vadd.f32 %v3401, %v4408
      %v4441 = vadd.f32 %v3402, %v4409
      %v4442 = vadd.f32 %v3403, %v4410
      %v4443 = vadd.f32 %v3404, %v4411
      %v4444 = vadd.f32 %v3405, %v4412
      %v4445 = vadd.f32 %v3406, %v4413
      %v4446 = vadd.f32 %v3407, %v4414
      %v4447 = vadd.f32 %v3408, %v4415
      %v4448 = vadd.f32 %v3409, %v4416
      %v4449 = vadd.f32 %v3410, %v4417
      %v4450 = vadd.f32 %v3411, %v4418
      %v4451 = vadd.f32 %v3412, %v4419
      %v4452 = vadd.f32 %v3413, %v4420
      %v4453 = vadd.f32 %v3414, %v4421
      %v4454 = vadd.f32 %v3415, %v4422
      %v4455 = vld [vmem:[%s577] sm:$0x1]
      %v4457 = vlaneseq
      %v4458 = vshrl.u32 %v4457, 7
      %v4459 = vsub.s32 0, %v4458
      %v4460 = vrot.slane %v4455, %v4459
      %v4462 = vadd.f32 %v4423, %v4460
      %v4463 = vadd.f32 %v4424, %v4460
      %v4464 = vadd.f32 %v4425, %v4460
      %v4465 = vadd.f32 %v4426, %v4460
      %v4466 = vadd.f32 %v4427, %v4460
      %v4467 = vadd.f32 %v4428, %v4460
      %v4468 = vadd.f32 %v4429, %v4460
      %v4469 = vadd.f32 %v4430, %v4460
      %v4470 = vadd.f32 %v4431, %v4460
      %v4471 = vadd.f32 %v4432, %v4460
      %v4472 = vadd.f32 %v4433, %v4460
      %v4473 = vadd.f32 %v4434, %v4460
      %v4474 = vadd.f32 %v4435, %v4460
      %v4475 = vadd.f32 %v4436, %v4460
      %v4476 = vadd.f32 %v4437, %v4460
      %v4477 = vadd.f32 %v4438, %v4460
      %v4478 = vadd.f32 %v4439, %v4460
      %v4479 = vadd.f32 %v4440, %v4460
      %v4480 = vadd.f32 %v4441, %v4460
      %v4481 = vadd.f32 %v4442, %v4460
      %v4482 = vadd.f32 %v4443, %v4460
      %v4483 = vadd.f32 %v4444, %v4460
      %v4484 = vadd.f32 %v4445, %v4460
      %v4485 = vadd.f32 %v4446, %v4460
      %v4486 = vadd.f32 %v4447, %v4460
      %v4487 = vadd.f32 %v4448, %v4460
      %v4488 = vadd.f32 %v4449, %v4460
      %v4489 = vadd.f32 %v4450, %v4460
      %v4490 = vadd.f32 %v4451, %v4460
      %v4491 = vadd.f32 %v4452, %v4460
      %v4492 = vadd.f32 %v4453, %v4460
      %v4493 = vadd.f32 %v4454, %v4460
      %v4494 = vld [vmem:[%s574] sm:$0xf]
      %v4495 = vld [vmem:[%s574 + $0x4] sm:$0xf]
      %v4496 = vld [vmem:[%s574 + $0x8] sm:$0xf]
      %v4497 = vld [vmem:[%s574 + $0xc] sm:$0xf]
      %v4498 = vld [vmem:[%s574 + $0x10] sm:$0xf]
      %v4499 = vld [vmem:[%s574 + $0x14] sm:$0xf]
      %v4500 = vld [vmem:[%s574 + $0x18] sm:$0xf]
      %v4501 = vld [vmem:[%s574 + $0x1c] sm:$0xf]
      %v4502 = vld [vmem:[%s574 + $0x20] sm:$0xf]
      %v4503 = vld [vmem:[%s574 + $0x24] sm:$0xf]
      %v4504 = vld [vmem:[%s574 + $0x28] sm:$0xf]
      %v4505 = vld [vmem:[%s574 + $0x2c] sm:$0xf]
      %v4506 = vld [vmem:[%s574 + $0x30] sm:$0xf]
      %v4507 = vld [vmem:[%s574 + $0x34] sm:$0xf]
      %v4508 = vld [vmem:[%s574 + $0x38] sm:$0xf]
      %v4509 = vld [vmem:[%s574 + $0x3c] sm:$0xf]
      %v4510 = vld [vmem:[%s574 + $0x40] sm:$0xf]
      %v4511 = vld [vmem:[%s574 + $0x44] sm:$0xf]
      %v4512 = vld [vmem:[%s574 + $0x48] sm:$0xf]
      %v4513 = vld [vmem:[%s574 + $0x4c] sm:$0xf]
      %v4514 = vld [vmem:[%s574 + $0x50] sm:$0xf]
      %v4515 = vld [vmem:[%s574 + $0x54] sm:$0xf]
      %v4516 = vld [vmem:[%s574 + $0x58] sm:$0xf]
      %v4517 = vld [vmem:[%s574 + $0x5c] sm:$0xf]
      %v4518 = vld [vmem:[%s574 + $0x60] sm:$0xf]
      %v4519 = vld [vmem:[%s574 + $0x64] sm:$0xf]
      %v4520 = vld [vmem:[%s574 + $0x68] sm:$0xf]
      %v4521 = vld [vmem:[%s574 + $0x6c] sm:$0xf]
      %v4522 = vld [vmem:[%s574 + $0x70] sm:$0xf]
      %v4523 = vld [vmem:[%s574 + $0x74] sm:$0xf]
      %v4524 = vld [vmem:[%s574 + $0x78] sm:$0xf]
      %v4525 = vld [vmem:[%s574 + $0x7c] sm:$0xf]
      %v4526 = vld [vmem:[%s13] sm:$0x3]
      %v4559 = vunpack.c.l.b16 %v4494
      %v4560 = vunpack.c.l.b16 %v4495
      %v4561 = vunpack.c.l.b16 %v4496
      %v4562 = vunpack.c.l.b16 %v4497
      %v4563 = vunpack.c.l.b16 %v4498
      %v4564 = vunpack.c.l.b16 %v4499
      %v4565 = vunpack.c.l.b16 %v4500
      %v4566 = vunpack.c.l.b16 %v4501
      %v4567 = vunpack.c.l.b16 %v4502
      %v4568 = vunpack.c.l.b16 %v4503
      %v4569 = vunpack.c.l.b16 %v4504
      %v4570 = vunpack.c.l.b16 %v4505
      %v4571 = vunpack.c.l.b16 %v4506
      %v4572 = vunpack.c.l.b16 %v4507
      %v4573 = vunpack.c.l.b16 %v4508
      %v4574 = vunpack.c.l.b16 %v4509
      %v4575 = vunpack.c.l.b16 %v4510
      %v4576 = vunpack.c.l.b16 %v4511
      %v4577 = vunpack.c.l.b16 %v4512
      %v4578 = vunpack.c.l.b16 %v4513
      %v4579 = vunpack.c.l.b16 %v4514
      %v4580 = vunpack.c.l.b16 %v4515
      %v4581 = vunpack.c.l.b16 %v4516
      %v4582 = vunpack.c.l.b16 %v4517
      %v4583 = vunpack.c.l.b16 %v4518
      %v4584 = vunpack.c.l.b16 %v4519
      %v4585 = vunpack.c.l.b16 %v4520
      %v4586 = vunpack.c.l.b16 %v4521
      %v4587 = vunpack.c.l.b16 %v4522
      %v4588 = vunpack.c.l.b16 %v4523
      %v4589 = vunpack.c.l.b16 %v4524
      %v4590 = vunpack.c.l.b16 %v4525
      %v4591 = vpack.c.b16 %v4560, %v4559
      %v4592 = vpack.c.b16 %v4562, %v4561
      %v4593 = vpack.c.b16 %v4564, %v4563
      %v4594 = vpack.c.b16 %v4566, %v4565
      %v4595 = vpack.c.b16 %v4568, %v4567
      %v4596 = vpack.c.b16 %v4570, %v4569
      %v4597 = vpack.c.b16 %v4572, %v4571
      %v4598 = vpack.c.b16 %v4574, %v4573
      %v4599 = vpack.c.b16 %v4576, %v4575
      %v4600 = vpack.c.b16 %v4578, %v4577
      %v4601 = vpack.c.b16 %v4580, %v4579
      %v4602 = vpack.c.b16 %v4582, %v4581
      %v4603 = vpack.c.b16 %v4584, %v4583
      %v4604 = vpack.c.b16 %v4586, %v4585
      %v4605 = vpack.c.b16 %v4588, %v4587
      %v4606 = vpack.c.b16 %v4590, %v4589
      %v4608 = vsel %vm680, %v4591, 0
      %v4611 = vsel %vm680, %v4592, 0
      %v4614 = vsel %vm680, %v4593, 0
      %v4617 = vsel %vm680, %v4594, 0
      %v4620 = vsel %vm680, %v4595, 0
      %v4623 = vsel %vm680, %v4596, 0
      %v4626 = vsel %vm680, %v4597, 0
      %v4629 = vsel %vm680, %v4598, 0
      %v4632 = vsel %vm680, %v4599, 0
      %v4635 = vsel %vm680, %v4600, 0
      %v4638 = vsel %vm680, %v4601, 0
      %v4641 = vsel %vm680, %v4602, 0
      %v4644 = vsel %vm680, %v4603, 0
      %v4647 = vsel %vm680, %v4604, 0
      %v4650 = vsel %vm680, %v4605, 0
      %v4653 = vsel %vm680, %v4606, 0
      %v4656 = vsel %vm1665, %v4526, 0
      %4658 = vmatprep.subr.bf16.mxu0 0
      %4659 = vmatpush1.bf16.msra.mxu0 %v4656
      %4660 = vmatprep.subr.bf16.mxu0 0
      %4661 = vmatpush1.bf16.msra.mxu0 0
      %4662 = vmatprep.subr.bf16.mxu0 0
      %4663 = vmatpush1.bf16.msra.mxu0 0
      %4664 = vmatprep.subr.bf16.mxu0 0
      %4665 = vmatpush1.bf16.msra.mxu0 0
      %4666 = vmatprep.subr.bf16.mxu0 0
      %4667 = vmatpush1.bf16.msra.mxu0 0
      %4668 = vmatprep.subr.bf16.mxu0 0
      %4669 = vmatpush1.bf16.msra.mxu0 0
      %4670 = vmatprep.subr.bf16.mxu0 0
      %4671 = vmatpush1.bf16.msra.mxu0 0
      %4672 = vmatprep.subr.bf16.mxu0 0
      %4673 = vmatpush1.bf16.msra.mxu0 0
      %4674 = vmatprep.subr.bf16.mxu0 0
      %4675 = vmatpush1.bf16.msra.mxu0 0
      %4676 = vmatprep.subr.bf16.mxu0 0
      %4677 = vmatpush1.bf16.msra.mxu0 0
      %4678 = vmatprep.subr.bf16.mxu0 0
      %4679 = vmatpush1.bf16.msra.mxu0 0
      %4680 = vmatprep.subr.bf16.mxu0 0
      %4681 = vmatpush1.bf16.msra.mxu0 0
      %4682 = vmatprep.subr.bf16.mxu0 0
      %4683 = vmatpush1.bf16.msra.mxu0 0
      %4684 = vmatprep.subr.bf16.mxu0 0
      %4685 = vmatpush1.bf16.msra.mxu0 0
      %4686 = vmatprep.subr.bf16.mxu0 0
      %4687 = vmatpush1.bf16.msra.mxu0 0
      %4688 = vmatprep.subr.bf16.mxu0 0
      %4689 = vmatpush1.bf16.msra.mxu0 0
      %4690 = vmatprep.mubr.bf16.mxu0 0
      %4691 = vmatmul.mubr.bf16.gmra.mrb[0].mxu0 %v4608
      %v4692 = vpop.f32.mrb[0].mxu0
      %v4693 = vadd.f32 0.0, %v4692
      %v4694 = vpop.f32.mrb[0].mxu0
      %v4695 = vpop.f32.mrb[0].mxu0
      %v4696 = vadd.f32 0.0, %v4695
      %v4697 = vpop.f32.mrb[0].mxu0
      %4698 = vmatprep.mubr.bf16.mxu0 0
      %4699 = vmatmul.mubr.bf16.gmra.mrb[0].mxu0 %v4611
      %v4700 = vpop.f32.mrb[0].mxu0
      %v4701 = vadd.f32 0.0, %v4700
      %v4702 = vpop.f32.mrb[0].mxu0
      %v4703 = vpop.f32.mrb[0].mxu0
      %v4704 = vadd.f32 0.0, %v4703
      %v4705 = vpop.f32.mrb[0].mxu0
      %4706 = vmatprep.mubr.bf16.mxu0 0
      %4707 = vmatmul.mubr.bf16.gmra.mrb[0].mxu0 %v4614
      %v4708 = vpop.f32.mrb[0].mxu0
      %v4709 = vadd.f32 0.0, %v4708
      %v4710 = vpop.f32.mrb[0].mxu0
      %v4711 = vpop.f32.mrb[0].mxu0
      %v4712 = vadd.f32 0.0, %v4711
      %v4713 = vpop.f32.mrb[0].mxu0
      %4714 = vmatprep.mubr.bf16.mxu0 0
      %4715 = vmatmul.mubr.bf16.gmra.mrb[0].mxu0 %v4617
      %v4716 = vpop.f32.mrb[0].mxu0
      %v4717 = vadd.f32 0.0, %v4716
      %v4718 = vpop.f32.mrb[0].mxu0
      %v4719 = vpop.f32.mrb[0].mxu0
      %v4720 = vadd.f32 0.0, %v4719
      %v4721 = vpop.f32.mrb[0].mxu0
      %4722 = vmatprep.mubr.bf16.mxu0 0
      %4723 = vmatmul.mubr.bf16.gmra.mrb[0].mxu0 %v4620
      %v4724 = vpop.f32.mrb[0].mxu0
      %v4725 = vadd.f32 0.0, %v4724
      %v4726 = vpop.f32.mrb[0].mxu0
      %v4727 = vpop.f32.mrb[0].mxu0
      %v4728 = vadd.f32 0.0, %v4727
      %v4729 = vpop.f32.mrb[0].mxu0
      %4730 = vmatprep.mubr.bf16.mxu0 0
      %4731 = vmatmul.mubr.bf16.gmra.mrb[0].mxu0 %v4623
      %v4732 = vpop.f32.mrb[0].mxu0
      %v4733 = vadd.f32 0.0, %v4732
      %v4734 = vpop.f32.mrb[0].mxu0
      %v4735 = vpop.f32.mrb[0].mxu0
      %v4736 = vadd.f32 0.0, %v4735
      %v4737 = vpop.f32.mrb[0].mxu0
      %4738 = vmatprep.mubr.bf16.mxu0 0
      %4739 = vmatmul.mubr.bf16.gmra.mrb[0].mxu0 %v4626
      %v4740 = vpop.f32.mrb[0].mxu0
      %v4741 = vadd.f32 0.0, %v4740
      %v4742 = vpop.f32.mrb[0].mxu0
      %v4743 = vpop.f32.mrb[0].mxu0
      %v4744 = vadd.f32 0.0, %v4743
      %v4745 = vpop.f32.mrb[0].mxu0
      %4746 = vmatprep.mubr.bf16.mxu0 0
      %4747 = vmatmul.mubr.bf16.gmra.mrb[0].mxu0 %v4629
      %v4748 = vpop.f32.mrb[0].mxu0
      %v4749 = vadd.f32 0.0, %v4748
      %v4750 = vpop.f32.mrb[0].mxu0
      %v4751 = vpop.f32.mrb[0].mxu0
      %v4752 = vadd.f32 0.0, %v4751
      %v4753 = vpop.f32.mrb[0].mxu0
      %4754 = vmatprep.mubr.bf16.mxu0 0
      %4755 = vmatmul.mubr.bf16.gmra.mrb[0].mxu0 %v4632
      %v4756 = vpop.f32.mrb[0].mxu0
      %v4757 = vadd.f32 0.0, %v4756
      %v4758 = vpop.f32.mrb[0].mxu0
      %v4759 = vpop.f32.mrb[0].mxu0
      %v4760 = vadd.f32 0.0, %v4759
      %v4761 = vpop.f32.mrb[0].mxu0
      %4762 = vmatprep.mubr.bf16.mxu0 0
      %4763 = vmatmul.mubr.bf16.gmra.mrb[0].mxu0 %v4635
      %v4764 = vpop.f32.mrb[0].mxu0
      %v4765 = vadd.f32 0.0, %v4764
      %v4766 = vpop.f32.mrb[0].mxu0
      %v4767 = vpop.f32.mrb[0].mxu0
      %v4768 = vadd.f32 0.0, %v4767
      %v4769 = vpop.f32.mrb[0].mxu0
      %4770 = vmatprep.mubr.bf16.mxu0 0
      %4771 = vmatmul.mubr.bf16.gmra.mrb[0].mxu0 %v4638
      %v4772 = vpop.f32.mrb[0].mxu0
      %v4773 = vadd.f32 0.0, %v4772
      %v4774 = vpop.f32.mrb[0].mxu0
      %v4775 = vpop.f32.mrb[0].mxu0
      %v4776 = vadd.f32 0.0, %v4775
      %v4777 = vpop.f32.mrb[0].mxu0
      %4778 = vmatprep.mubr.bf16.mxu0 0
      %4779 = vmatmul.mubr.bf16.gmra.mrb[0].mxu0 %v4641
      %v4780 = vpop.f32.mrb[0].mxu0
      %v4781 = vadd.f32 0.0, %v4780
      %v4782 = vpop.f32.mrb[0].mxu0
      %v4783 = vpop.f32.mrb[0].mxu0
      %v4784 = vadd.f32 0.0, %v4783
      %v4785 = vpop.f32.mrb[0].mxu0
      %4786 = vmatprep.mubr.bf16.mxu0 0
      %4787 = vmatmul.mubr.bf16.gmra.mrb[0].mxu0 %v4644
      %v4788 = vpop.f32.mrb[0].mxu0
      %v4789 = vadd.f32 0.0, %v4788
      %v4790 = vpop.f32.mrb[0].mxu0
      %v4791 = vpop.f32.mrb[0].mxu0
      %v4792 = vadd.f32 0.0, %v4791
      %v4793 = vpop.f32.mrb[0].mxu0
      %4794 = vmatprep.mubr.bf16.mxu0 0
      %4795 = vmatmul.mubr.bf16.gmra.mrb[0].mxu0 %v4647
      %v4796 = vpop.f32.mrb[0].mxu0
      %v4797 = vadd.f32 0.0, %v4796
      %v4798 = vpop.f32.mrb[0].mxu0
      %v4799 = vpop.f32.mrb[0].mxu0
      %v4800 = vadd.f32 0.0, %v4799
      %v4801 = vpop.f32.mrb[0].mxu0
      %4802 = vmatprep.mubr.bf16.mxu0 0
      %4803 = vmatmul.mubr.bf16.gmra.mrb[0].mxu0 %v4650
      %v4804 = vpop.f32.mrb[0].mxu0
      %v4805 = vadd.f32 0.0, %v4804
      %v4806 = vpop.f32.mrb[0].mxu0
      %v4807 = vpop.f32.mrb[0].mxu0
      %v4808 = vadd.f32 0.0, %v4807
      %v4809 = vpop.f32.mrb[0].mxu0
      %4810 = vmatprep.mubr.bf16.mxu0 0
      %4811 = vmatmul.mubr.bf16.gmra.mrb[0].mxu0 %v4653
      %v4812 = vpop.f32.mrb[0].mxu0
      %v4813 = vadd.f32 0.0, %v4812
      %v4814 = vpop.f32.mrb[0].mxu0
      %v4815 = vpop.f32.mrb[0].mxu0
      %v4816 = vadd.f32 0.0, %v4815
      %v4817 = vpop.f32.mrb[0].mxu0
      %4818 = vdwg.mxu0
      %v4819 = vadd.f32 %v4462, %v4693
      %v4820 = vadd.f32 %v4463, %v4696
      %v4821 = vadd.f32 %v4464, %v4701
      %v4822 = vadd.f32 %v4465, %v4704
      %v4823 = vadd.f32 %v4466, %v4709
      %v4824 = vadd.f32 %v4467, %v4712
      %v4825 = vadd.f32 %v4468, %v4717
      %v4826 = vadd.f32 %v4469, %v4720
      %v4827 = vadd.f32 %v4470, %v4725
      %v4828 = vadd.f32 %v4471, %v4728
      %v4829 = vadd.f32 %v4472, %v4733
      %v4830 = vadd.f32 %v4473, %v4736
      %v4831 = vadd.f32 %v4474, %v4741
      %v4832 = vadd.f32 %v4475, %v4744
      %v4833 = vadd.f32 %v4476, %v4749
      %v4834 = vadd.f32 %v4477, %v4752
      %v4835 = vadd.f32 %v4478, %v4757
      %v4836 = vadd.f32 %v4479, %v4760
      %v4837 = vadd.f32 %v4480, %v4765
      %v4838 = vadd.f32 %v4481, %v4768
      %v4839 = vadd.f32 %v4482, %v4773
      %v4840 = vadd.f32 %v4483, %v4776
      %v4841 = vadd.f32 %v4484, %v4781
      %v4842 = vadd.f32 %v4485, %v4784
      %v4843 = vadd.f32 %v4486, %v4789
      %v4844 = vadd.f32 %v4487, %v4792
      %v4845 = vadd.f32 %v4488, %v4797
      %v4846 = vadd.f32 %v4489, %v4800
      %v4847 = vadd.f32 %v4490, %v4805
      %v4848 = vadd.f32 %v4491, %v4808
      %v4849 = vadd.f32 %v4492, %v4813
      %v4850 = vadd.f32 %v4493, %v4816
      %v4851 = vsel %vm687, %v4819, 0.0
      %v4852 = vsel %vm687, %v4820, 0.0
      %v4853 = vadd.f32 %v4851, %v4852
      %v4854 = vsel %vm687, %v4821, 0.0
      %v4855 = vadd.f32 %v4853, %v4854
      %v4856 = vsel %vm687, %v4822, 0.0
      %v4857 = vadd.f32 %v4855, %v4856
      %v4858 = vsel %vm687, %v4823, 0.0
      %v4859 = vadd.f32 %v4857, %v4858
      %v4860 = vsel %vm687, %v4824, 0.0
      %v4861 = vadd.f32 %v4859, %v4860
      %v4862 = vsel %vm687, %v4825, 0.0
      %v4863 = vadd.f32 %v4861, %v4862
      %v4864 = vsel %vm687, %v4826, 0.0
      %v4865 = vadd.f32 %v4863, %v4864
      %v4866 = vsel %vm687, %v4827, 0.0
      %v4867 = vadd.f32 %v4865, %v4866
      %v4868 = vsel %vm687, %v4828, 0.0
      %v4869 = vadd.f32 %v4867, %v4868
      %v4870 = vsel %vm687, %v4829, 0.0
      %v4871 = vadd.f32 %v4869, %v4870
      %v4872 = vsel %vm687, %v4830, 0.0
      %v4873 = vadd.f32 %v4871, %v4872
      %v4874 = vsel %vm687, %v4831, 0.0
      %v4875 = vadd.f32 %v4873, %v4874
      %v4876 = vsel %vm687, %v4832, 0.0
      %v4877 = vadd.f32 %v4875, %v4876
      %v4878 = vsel %vm687, %v4833, 0.0
      %v4879 = vadd.f32 %v4877, %v4878
      %v4880 = vsel %vm687, %v4834, 0.0
      %v4881 = vadd.f32 %v4879, %v4880
      %v4882 = vsel %vm687, %v4835, 0.0
      %v4883 = vadd.f32 %v4881, %v4882
      %v4884 = vsel %vm687, %v4836, 0.0
      %v4885 = vadd.f32 %v4883, %v4884
      %v4886 = vsel %vm687, %v4837, 0.0
      %v4887 = vadd.f32 %v4885, %v4886
      %v4888 = vsel %vm687, %v4838, 0.0
      %v4889 = vadd.f32 %v4887, %v4888
      %v4890 = vsel %vm687, %v4839, 0.0
      %v4891 = vadd.f32 %v4889, %v4890
      %v4892 = vsel %vm687, %v4840, 0.0
      %v4893 = vadd.f32 %v4891, %v4892
      %v4894 = vsel %vm687, %v4841, 0.0
      %v4895 = vadd.f32 %v4893, %v4894
      %v4896 = vsel %vm687, %v4842, 0.0
      %v4897 = vadd.f32 %v4895, %v4896
      %v4898 = vsel %vm687, %v4843, 0.0
      %v4899 = vadd.f32 %v4897, %v4898
      %v4900 = vsel %vm687, %v4844, 0.0
      %v4901 = vadd.f32 %v4899, %v4900
      %v4902 = vsel %vm687, %v4845, 0.0
      %v4903 = vadd.f32 %v4901, %v4902
      %v4904 = vsel %vm687, %v4846, 0.0
      %v4905 = vadd.f32 %v4903, %v4904
      %v4906 = vsel %vm687, %v4847, 0.0
      %v4907 = vadd.f32 %v4905, %v4906
      %v4908 = vsel %vm687, %v4848, 0.0
      %v4909 = vadd.f32 %v4907, %v4908
      %v4910 = vsel %vm687, %v4849, 0.0
      %v4911 = vadd.f32 %v4909, %v4910
      %v4912 = vsel %vm687, %v4850, 0.0
      %v4913 = vadd.f32 %v4911, %v4912
      %v4914 = vrot.slane %v4913, 4
      %v4915 = vadd.f32 %v4913, %v4914
      %v4916 = vrot.slane %v4915, 2
      %v4917 = vadd.f32 %v4915, %v4916
      %v4918 = vrot.slane %v4917, 1
      %v4919 = vadd.f32 %v4917, %v4918
      %v4920 = vmul.f32 %v4819, %v4819
      %v4921 = vmul.f32 %v4820, %v4820
      %v4922 = vmul.f32 %v4821, %v4821
      %v4923 = vmul.f32 %v4822, %v4822
      %v4924 = vmul.f32 %v4823, %v4823
      %v4925 = vmul.f32 %v4824, %v4824
      %v4926 = vmul.f32 %v4825, %v4825
      %v4927 = vmul.f32 %v4826, %v4826
      %v4928 = vmul.f32 %v4827, %v4827
      %v4929 = vmul.f32 %v4828, %v4828
      %v4930 = vmul.f32 %v4829, %v4829
      %v4931 = vmul.f32 %v4830, %v4830
      %v4932 = vmul.f32 %v4831, %v4831
      %v4933 = vmul.f32 %v4832, %v4832
      %v4934 = vmul.f32 %v4833, %v4833
      %v4935 = vmul.f32 %v4834, %v4834
      %v4936 = vmul.f32 %v4835, %v4835
      %v4937 = vmul.f32 %v4836, %v4836
      %v4938 = vmul.f32 %v4837, %v4837
      %v4939 = vmul.f32 %v4838, %v4838
      %v4940 = vmul.f32 %v4839, %v4839
      %v4941 = vmul.f32 %v4840, %v4840
      %v4942 = vmul.f32 %v4841, %v4841
      %v4943 = vmul.f32 %v4842, %v4842
      %v4944 = vmul.f32 %v4843, %v4843
      %v4945 = vmul.f32 %v4844, %v4844
      %v4946 = vmul.f32 %v4845, %v4845
      %v4947 = vmul.f32 %v4846, %v4846
      %v4948 = vmul.f32 %v4847, %v4847
      %v4949 = vmul.f32 %v4848, %v4848
      %v4950 = vmul.f32 %v4849, %v4849
      %v4951 = vmul.f32 %v4850, %v4850
      %v4952 = vsel %vm687, %v4920, 0.0
      %v4953 = vsel %vm687, %v4921, 0.0
      %v4954 = vadd.f32 %v4952, %v4953
      %v4955 = vsel %vm687, %v4922, 0.0
      %v4956 = vadd.f32 %v4954, %v4955
      %v4957 = vsel %vm687, %v4923, 0.0
      %v4958 = vadd.f32 %v4956, %v4957
      %v4959 = vsel %vm687, %v4924, 0.0
      %v4960 = vadd.f32 %v4958, %v4959
      %v4961 = vsel %vm687, %v4925, 0.0
      %v4962 = vadd.f32 %v4960, %v4961
      %v4963 = vsel %vm687, %v4926, 0.0
      %v4964 = vadd.f32 %v4962, %v4963
      %v4965 = vsel %vm687, %v4927, 0.0
      %v4966 = vadd.f32 %v4964, %v4965
      %v4967 = vsel %vm687, %v4928, 0.0
      %v4968 = vadd.f32 %v4966, %v4967
      %v4969 = vsel %vm687, %v4929, 0.0
      %v4970 = vadd.f32 %v4968, %v4969
      %v4971 = vsel %vm687, %v4930, 0.0
      %v4972 = vadd.f32 %v4970, %v4971
      %v4973 = vsel %vm687, %v4931, 0.0
      %v4974 = vadd.f32 %v4972, %v4973
      %v4975 = vsel %vm687, %v4932, 0.0
      %v4976 = vadd.f32 %v4974, %v4975
      %v4977 = vsel %vm687, %v4933, 0.0
      %v4978 = vadd.f32 %v4976, %v4977
      %v4979 = vsel %vm687, %v4934, 0.0
      %v4980 = vadd.f32 %v4978, %v4979
      %v4981 = vsel %vm687, %v4935, 0.0
      %v4982 = vadd.f32 %v4980, %v4981
      %v4983 = vsel %vm687, %v4936, 0.0
      %v4984 = vadd.f32 %v4982, %v4983
      %v4985 = vsel %vm687, %v4937, 0.0
      %v4986 = vadd.f32 %v4984, %v4985
      %v4987 = vsel %vm687, %v4938, 0.0
      %v4988 = vadd.f32 %v4986, %v4987
      %v4989 = vsel %vm687, %v4939, 0.0
      %v4990 = vadd.f32 %v4988, %v4989
      %v4991 = vsel %vm687, %v4940, 0.0
      %v4992 = vadd.f32 %v4990, %v4991
      %v4993 = vsel %vm687, %v4941, 0.0
      %v4994 = vadd.f32 %v4992, %v4993
      %v4995 = vsel %vm687, %v4942, 0.0
      %v4996 = vadd.f32 %v4994, %v4995
      %v4997 = vsel %vm687, %v4943, 0.0
      %v4998 = vadd.f32 %v4996, %v4997
      %v4999 = vsel %vm687, %v4944, 0.0
      %v5000 = vadd.f32 %v4998, %v4999
      %v5001 = vsel %vm687, %v4945, 0.0
      %v5002 = vadd.f32 %v5000, %v5001
      %v5003 = vsel %vm687, %v4946, 0.0
      %v5004 = vadd.f32 %v5002, %v5003
      %v5005 = vsel %vm687, %v4947, 0.0
      %v5006 = vadd.f32 %v5004, %v5005
      %v5007 = vsel %vm687, %v4948, 0.0
      %v5008 = vadd.f32 %v5006, %v5007
      %v5009 = vsel %vm687, %v4949, 0.0
      %v5010 = vadd.f32 %v5008, %v5009
      %v5011 = vsel %vm687, %v4950, 0.0
      %v5012 = vadd.f32 %v5010, %v5011
      %v5013 = vsel %vm687, %v4951, 0.0
      %v5014 = vadd.f32 %v5012, %v5013
      %v5015 = vrot.slane %v5014, 4
      %v5016 = vadd.f32 %v5014, %v5015
      %v5017 = vrot.slane %v5016, 2
      %v5018 = vadd.f32 %v5016, %v5017
      %v5019 = vrot.slane %v5018, 1
      %v5020 = vadd.f32 %v5018, %v5019
      %v5021 = vsel %vm864, %v4919, %v5020
      %v5022 = vld [vmem:[%s8] sm:$0xff]
      %v5024 = vsel %vm687, %v5021, 0
      %5026 = vmatprep.subr.mxu0 0.0
      %5027 = vmatpush1.msra.mxu0 %v5022
      %5028 = vmatprep.subr.mxu0 0.0
      %5029 = vmatpush1.msra.mxu0 0.0
      %5030 = vmatprep.subr.mxu0 0.0
      %5031 = vmatpush1.msra.mxu0 0.0
      %5032 = vmatprep.subr.mxu0 0.0
      %5033 = vmatpush1.msra.mxu0 0.0
      %5034 = vmatprep.subr.mxu0 0.0
      %5035 = vmatpush1.msra.mxu0 0.0
      %5036 = vmatprep.subr.mxu0 0.0
      %5037 = vmatpush1.msra.mxu0 0.0
      %5038 = vmatprep.subr.mxu0 0.0
      %5039 = vmatpush1.msra.mxu0 0.0
      %5040 = vmatprep.subr.mxu0 0.0
      %5041 = vmatpush1.msra.mxu0 0.0
      %5042 = vmatprep.subr.mxu0 0.0
      %5043 = vmatpush1.msra.mxu0 0.0
      %5044 = vmatprep.subr.mxu0 0.0
      %5045 = vmatpush1.msra.mxu0 0.0
      %5046 = vmatprep.subr.mxu0 0.0
      %5047 = vmatpush1.msra.mxu0 0.0
      %5048 = vmatprep.subr.mxu0 0.0
      %5049 = vmatpush1.msra.mxu0 0.0
      %5050 = vmatprep.subr.mxu0 0.0
      %5051 = vmatpush1.msra.mxu0 0.0
      %5052 = vmatprep.subr.mxu0 0.0
      %5053 = vmatpush1.msra.mxu0 0.0
      %5054 = vmatprep.subr.mxu0 0.0
      %5055 = vmatpush1.msra.mxu0 0.0
      %5056 = vmatprep.subr.mxu0 0.0
      %5057 = vmatpush1.msra.mxu0 0.0
      %5058 = vmatprep.subr.mxu0 0.0
      %5059 = vmatpush1.msra.mxu0 0.0
      %5060 = vmatprep.subr.mxu0 0.0
      %5061 = vmatpush1.msra.mxu0 0.0
      %5062 = vmatprep.subr.mxu0 0.0
      %5063 = vmatpush1.msra.mxu0 0.0
      %5064 = vmatprep.subr.mxu0 0.0
      %5065 = vmatpush1.msra.mxu0 0.0
      %5066 = vmatprep.subr.mxu0 0.0
      %5067 = vmatpush1.msra.mxu0 0.0
      %5068 = vmatprep.subr.mxu0 0.0
      %5069 = vmatpush1.msra.mxu0 0.0
      %5070 = vmatprep.subr.mxu0 0.0
      %5071 = vmatpush1.msra.mxu0 0.0
      %5072 = vmatprep.subr.mxu0 0.0
      %5073 = vmatpush1.msra.mxu0 0.0
      %5074 = vmatprep.subr.mxu0 0.0
      %5075 = vmatpush1.msra.mxu0 0.0
      %5076 = vmatprep.subr.mxu0 0.0
      %5077 = vmatpush1.msra.mxu0 0.0
      %5078 = vmatprep.subr.mxu0 0.0
      %5079 = vmatpush1.msra.mxu0 0.0
      %5080 = vmatprep.subr.mxu0 0.0
      %5081 = vmatpush1.msra.mxu0 0.0
      %5082 = vmatprep.subr.mxu0 0.0
      %5083 = vmatpush1.msra.mxu0 0.0
      %5084 = vmatprep.subr.mxu0 0.0
      %5085 = vmatpush1.msra.mxu0 0.0
      %5086 = vmatprep.subr.mxu0 0.0
      %5087 = vmatpush1.msra.mxu0 0.0
      %5088 = vmatprep.subr.mxu0 0.0
      %5089 = vmatpush1.msra.mxu0 0.0
      %5090 = vmatprep.mubr.f32.mxu0 0.0
      %5091 = vmatmul.mubr.f32.gmra.mrb[0].mxu0 %v5024
      %v5092 = vpop.f32.mrb[0].mxu0
      %v5093 = vadd.f32 0.0, %v5092
      %v5094 = vpop.f32.mrb[0].mxu0
      %5095 = vdwg.mxu0
      %v5096 = vmul.f32 %v5093, %v5093
      %v5098 = vrot.slane %v5096, 7
      %v5100 = vsub.f32 %v5093, %v5098
      %v5101 = vmax.f32 %v5100, 0.0
      %v5102 = vsel %vm864, %v5093, %v5101
      %v5103 = vld [vmem:[%s9] sm:$0x3]
      %vm5104 = vcmask 15360
      %v5106 = vsel %vm5104, %v5102, 0
      %v5109 = vsel %vm1665, %v5103, 0
      %5111 = vmatprep.subr.mxu0 0.0
      %5112 = vmatpush1.msra.mxu0 %v5109
      %5113 = vmatprep.subr.mxu0 0.0
      %5114 = vmatpush1.msra.mxu0 0.0
      %5115 = vmatprep.subr.mxu0 0.0
      %5116 = vmatpush1.msra.mxu0 0.0
      %5117 = vmatprep.subr.mxu0 0.0
      %5118 = vmatpush1.msra.mxu0 0.0
      %5119 = vmatprep.subr.mxu0 0.0
      %5120 = vmatpush1.msra.mxu0 0.0
      %5121 = vmatprep.subr.mxu0 0.0
      %5122 = vmatpush1.msra.mxu0 0.0
      %5123 = vmatprep.subr.mxu0 0.0
      %5124 = vmatpush1.msra.mxu0 0.0
      %5125 = vmatprep.subr.mxu0 0.0
      %5126 = vmatpush1.msra.mxu0 0.0
      %5127 = vmatprep.subr.mxu0 0.0
      %5128 = vmatpush1.msra.mxu0 0.0
      %5129 = vmatprep.subr.mxu0 0.0
      %5130 = vmatpush1.msra.mxu0 0.0
      %5131 = vmatprep.subr.mxu0 0.0
      %5132 = vmatpush1.msra.mxu0 0.0
      %5133 = vmatprep.subr.mxu0 0.0
      %5134 = vmatpush1.msra.mxu0 0.0
      %5135 = vmatprep.subr.mxu0 0.0
      %5136 = vmatpush1.msra.mxu0 0.0
      %5137 = vmatprep.subr.mxu0 0.0
      %5138 = vmatpush1.msra.mxu0 0.0
      %5139 = vmatprep.subr.mxu0 0.0
      %5140 = vmatpush1.msra.mxu0 0.0
      %5141 = vmatprep.subr.mxu0 0.0
      %5142 = vmatpush1.msra.mxu0 0.0
      %5143 = vmatprep.subr.mxu0 0.0
      %5144 = vmatpush1.msra.mxu0 0.0
      %5145 = vmatprep.subr.mxu0 0.0
      %5146 = vmatpush1.msra.mxu0 0.0
      %5147 = vmatprep.subr.mxu0 0.0
      %5148 = vmatpush1.msra.mxu0 0.0
      %5149 = vmatprep.subr.mxu0 0.0
      %5150 = vmatpush1.msra.mxu0 0.0
      %5151 = vmatprep.subr.mxu0 0.0
      %5152 = vmatpush1.msra.mxu0 0.0
      %5153 = vmatprep.subr.mxu0 0.0
      %5154 = vmatpush1.msra.mxu0 0.0
      %5155 = vmatprep.subr.mxu0 0.0
      %5156 = vmatpush1.msra.mxu0 0.0
      %5157 = vmatprep.subr.mxu0 0.0
      %5158 = vmatpush1.msra.mxu0 0.0
      %5159 = vmatprep.subr.mxu0 0.0
      %5160 = vmatpush1.msra.mxu0 0.0
      %5161 = vmatprep.subr.mxu0 0.0
      %5162 = vmatpush1.msra.mxu0 0.0
      %5163 = vmatprep.subr.mxu0 0.0
      %5164 = vmatpush1.msra.mxu0 0.0
      %5165 = vmatprep.subr.mxu0 0.0
      %5166 = vmatpush1.msra.mxu0 0.0
      %5167 = vmatprep.subr.mxu0 0.0
      %5168 = vmatpush1.msra.mxu0 0.0
      %5169 = vmatprep.subr.mxu0 0.0
      %5170 = vmatpush1.msra.mxu0 0.0
      %5171 = vmatprep.subr.mxu0 0.0
      %5172 = vmatpush1.msra.mxu0 0.0
      %5173 = vmatprep.subr.mxu0 0.0
      %5174 = vmatpush1.msra.mxu0 0.0
      %5175 = vmatprep.mubr.f32.mxu0 0.0
      %5176 = vmatmul.mubr.f32.gmra.mrb[0].mxu0 %v5106
      %v5177 = vpop.f32.mrb[0].mxu0
      %v5178 = vadd.f32 0.0, %v5177
      %v5179 = vpop.f32.mrb[0].mxu0
      %5180 = vdwg.mxu0
      %v5181 = vadd.f32 %v5178, 1e-05
      %v5182 = vrsqrt.pop %v5181
      %v5183 = vld [vmem:[%s10] sm:$0x1]
      %v5185 = vlaneseq
      %v5186 = vshrl.u32 %v5185, 7
      %v5187 = vsub.s32 0, %v5186
      %v5188 = vrot.slane %v5183, %v5187
      %v5190 = vmul.f32 %v5182, %v5188
      %v5191 = vld [vmem:[%s11] sm:$0x1]
      %v5193 = vrot.slane %v5190, 1
      %v5195 = vmul.f32 %v5178, %v5193
      %v5196 = vsub.f32 %v5191, %v5195
      %v5197 = vlaneseq
      %v5198 = vshrl.u32 %v5197, 7
      %v5199 = vsub.s32 1, %v5198
      %v5200 = vrot.slane %v5190, %v5199
      %v5201 = vmul.f32 %v4819, %v5200
      %v5202 = vmul.f32 %v4820, %v5200
      %v5203 = vmul.f32 %v4821, %v5200
      %v5204 = vmul.f32 %v4822, %v5200
      %v5205 = vmul.f32 %v4823, %v5200
      %v5206 = vmul.f32 %v4824, %v5200
      %v5207 = vmul.f32 %v4825, %v5200
      %v5208 = vmul.f32 %v4826, %v5200
      %v5209 = vmul.f32 %v4827, %v5200
      %v5210 = vmul.f32 %v4828, %v5200
      %v5211 = vmul.f32 %v4829, %v5200
      %v5212 = vmul.f32 %v4830, %v5200
      %v5213 = vmul.f32 %v4831, %v5200
      %v5214 = vmul.f32 %v4832, %v5200
      %v5215 = vmul.f32 %v4833, %v5200
      %v5216 = vmul.f32 %v4834, %v5200
      %v5217 = vmul.f32 %v4835, %v5200
      %v5218 = vmul.f32 %v4836, %v5200
      %v5219 = vmul.f32 %v4837, %v5200
      %v5220 = vmul.f32 %v4838, %v5200
      %v5221 = vmul.f32 %v4839, %v5200
      %v5222 = vmul.f32 %v4840, %v5200
      %v5223 = vmul.f32 %v4841, %v5200
      %v5224 = vmul.f32 %v4842, %v5200
      %v5225 = vmul.f32 %v4843, %v5200
      %v5226 = vmul.f32 %v4844, %v5200
      %v5227 = vmul.f32 %v4845, %v5200
      %v5228 = vmul.f32 %v4846, %v5200
      %v5229 = vmul.f32 %v4847, %v5200
      %v5230 = vmul.f32 %v4848, %v5200
      %v5231 = vmul.f32 %v4849, %v5200
      %v5232 = vmul.f32 %v4850, %v5200
      %v5234 = vlaneseq
      %v5235 = vshrl.u32 %v5234, 7
      %v5236 = vsub.s32 0, %v5235
      %v5237 = vrot.slane %v5196, %v5236
      %v5239 = vadd.f32 %v5201, %v5237
      %v5240 = vadd.f32 %v5202, %v5237
      %v5241 = vadd.f32 %v5203, %v5237
      %v5242 = vadd.f32 %v5204, %v5237
      %v5243 = vadd.f32 %v5205, %v5237
      %v5244 = vadd.f32 %v5206, %v5237
      %v5245 = vadd.f32 %v5207, %v5237
      %v5246 = vadd.f32 %v5208, %v5237
      %v5247 = vadd.f32 %v5209, %v5237
      %v5248 = vadd.f32 %v5210, %v5237
      %v5249 = vadd.f32 %v5211, %v5237
      %v5250 = vadd.f32 %v5212, %v5237
      %v5251 = vadd.f32 %v5213, %v5237
      %v5252 = vadd.f32 %v5214, %v5237
      %v5253 = vadd.f32 %v5215, %v5237
      %v5254 = vadd.f32 %v5216, %v5237
      %v5255 = vadd.f32 %v5217, %v5237
      %v5256 = vadd.f32 %v5218, %v5237
      %v5257 = vadd.f32 %v5219, %v5237
      %v5258 = vadd.f32 %v5220, %v5237
      %v5259 = vadd.f32 %v5221, %v5237
      %v5260 = vadd.f32 %v5222, %v5237
      %v5261 = vadd.f32 %v5223, %v5237
      %v5262 = vadd.f32 %v5224, %v5237
      %v5263 = vadd.f32 %v5225, %v5237
      %v5264 = vadd.f32 %v5226, %v5237
      %v5265 = vadd.f32 %v5227, %v5237
      %v5266 = vadd.f32 %v5228, %v5237
      %v5267 = vadd.f32 %v5229, %v5237
      %v5268 = vadd.f32 %v5230, %v5237
      %v5269 = vadd.f32 %v5231, %v5237
      %v5270 = vadd.f32 %v5232, %v5237
      %v5271 = vxor.u32 %v5239, 2147483648
      %v5272 = vxor.u32 %v5240, 2147483648
      %v5273 = vxor.u32 %v5241, 2147483648
      %v5274 = vxor.u32 %v5242, 2147483648
      %v5275 = vxor.u32 %v5243, 2147483648
      %v5276 = vxor.u32 %v5244, 2147483648
      %v5277 = vxor.u32 %v5245, 2147483648
      %v5278 = vxor.u32 %v5246, 2147483648
      %v5279 = vxor.u32 %v5247, 2147483648
      %v5280 = vxor.u32 %v5248, 2147483648
      %v5281 = vxor.u32 %v5249, 2147483648
      %v5282 = vxor.u32 %v5250, 2147483648
      %v5283 = vxor.u32 %v5251, 2147483648
      %v5284 = vxor.u32 %v5252, 2147483648
      %v5285 = vxor.u32 %v5253, 2147483648
      %v5286 = vxor.u32 %v5254, 2147483648
      %v5287 = vxor.u32 %v5255, 2147483648
      %v5288 = vxor.u32 %v5256, 2147483648
      %v5289 = vxor.u32 %v5257, 2147483648
      %v5290 = vxor.u32 %v5258, 2147483648
      %v5291 = vxor.u32 %v5259, 2147483648
      %v5292 = vxor.u32 %v5260, 2147483648
      %v5293 = vxor.u32 %v5261, 2147483648
      %v5294 = vxor.u32 %v5262, 2147483648
      %v5295 = vxor.u32 %v5263, 2147483648
      %v5296 = vxor.u32 %v5264, 2147483648
      %v5297 = vxor.u32 %v5265, 2147483648
      %v5298 = vxor.u32 %v5266, 2147483648
      %v5299 = vxor.u32 %v5267, 2147483648
      %v5300 = vxor.u32 %v5268, 2147483648
      %v5301 = vxor.u32 %v5269, 2147483648
      %v5302 = vxor.u32 %v5270, 2147483648
      %v5303 = vmul.f32 %v5271, 1.442695
      %v5304 = vpow.pop %v5303
      %v5305 = vmul.f32 %v5272, 1.442695
      %v5306 = vpow.pop %v5305
      %v5307 = vmul.f32 %v5273, 1.442695
      %v5308 = vpow.pop %v5307
      %v5309 = vmul.f32 %v5274, 1.442695
      %v5310 = vpow.pop %v5309
      %v5311 = vmul.f32 %v5275, 1.442695
      %v5312 = vpow.pop %v5311
      %v5313 = vmul.f32 %v5276, 1.442695
      %v5314 = vpow.pop %v5313
      %v5315 = vmul.f32 %v5277, 1.442695
      %v5316 = vpow.pop %v5315
      %v5317 = vmul.f32 %v5278, 1.442695
      %v5318 = vpow.pop %v5317
      %v5319 = vmul.f32 %v5279, 1.442695
      %v5320 = vpow.pop %v5319
      %v5321 = vmul.f32 %v5280, 1.442695
      %v5322 = vpow.pop %v5321
      %v5323 = vmul.f32 %v5281, 1.442695
      %v5324 = vpow.pop %v5323
      %v5325 = vmul.f32 %v5282, 1.442695
      %v5326 = vpow.pop %v5325
      %v5327 = vmul.f32 %v5283, 1.442695
      %v5328 = vpow.pop %v5327
      %v5329 = vmul.f32 %v5284, 1.442695
      %v5330 = vpow.pop %v5329
      %v5331 = vmul.f32 %v5285, 1.442695
      %v5332 = vpow.pop %v5331
      %v5333 = vmul.f32 %v5286, 1.442695
      %v5334 = vpow.pop %v5333
      %v5335 = vmul.f32 %v5287, 1.442695
      %v5336 = vpow.pop %v5335
      %v5337 = vmul.f32 %v5288, 1.442695
      %v5338 = vpow.pop %v5337
      %v5339 = vmul.f32 %v5289, 1.442695
      %v5340 = vpow.pop %v5339
      %v5341 = vmul.f32 %v5290, 1.442695
      %v5342 = vpow.pop %v5341
      %v5343 = vmul.f32 %v5291, 1.442695
      %v5344 = vpow.pop %v5343
      %v5345 = vmul.f32 %v5292, 1.442695
      %v5346 = vpow.pop %v5345
      %v5347 = vmul.f32 %v5293, 1.442695
      %v5348 = vpow.pop %v5347
      %v5349 = vmul.f32 %v5294, 1.442695
      %v5350 = vpow.pop %v5349
      %v5351 = vmul.f32 %v5295, 1.442695
      %v5352 = vpow.pop %v5351
      %v5353 = vmul.f32 %v5296, 1.442695
      %v5354 = vpow.pop %v5353
      %v5355 = vmul.f32 %v5297, 1.442695
      %v5356 = vpow.pop %v5355
      %v5357 = vmul.f32 %v5298, 1.442695
      %v5358 = vpow.pop %v5357
      %v5359 = vmul.f32 %v5299, 1.442695
      %v5360 = vpow.pop %v5359
      %v5361 = vmul.f32 %v5300, 1.442695
      %v5362 = vpow.pop %v5361
      %v5363 = vmul.f32 %v5301, 1.442695
      %v5364 = vpow.pop %v5363
      %v5365 = vmul.f32 %v5302, 1.442695
      %v5366 = vpow.pop %v5365
      %v5367 = vadd.f32 %v5304, 1.0
      %v5368 = vadd.f32 %v5306, 1.0
      %v5369 = vadd.f32 %v5308, 1.0
      %v5370 = vadd.f32 %v5310, 1.0
      %v5371 = vadd.f32 %v5312, 1.0
      %v5372 = vadd.f32 %v5314, 1.0
      %v5373 = vadd.f32 %v5316, 1.0
      %v5374 = vadd.f32 %v5318, 1.0
      %v5375 = vadd.f32 %v5320, 1.0
      %v5376 = vadd.f32 %v5322, 1.0
      %v5377 = vadd.f32 %v5324, 1.0
      %v5378 = vadd.f32 %v5326, 1.0
      %v5379 = vadd.f32 %v5328, 1.0
      %v5380 = vadd.f32 %v5330, 1.0
      %v5381 = vadd.f32 %v5332, 1.0
      %v5382 = vadd.f32 %v5334, 1.0
      %v5383 = vadd.f32 %v5336, 1.0
      %v5384 = vadd.f32 %v5338, 1.0
      %v5385 = vadd.f32 %v5340, 1.0
      %v5386 = vadd.f32 %v5342, 1.0
      %v5387 = vadd.f32 %v5344, 1.0
      %v5388 = vadd.f32 %v5346, 1.0
      %v5389 = vadd.f32 %v5348, 1.0
      %v5390 = vadd.f32 %v5350, 1.0
      %v5391 = vadd.f32 %v5352, 1.0
      %v5392 = vadd.f32 %v5354, 1.0
      %v5393 = vadd.f32 %v5356, 1.0
      %v5394 = vadd.f32 %v5358, 1.0
      %v5395 = vadd.f32 %v5360, 1.0
      %v5396 = vadd.f32 %v5362, 1.0
      %v5397 = vadd.f32 %v5364, 1.0
      %v5398 = vadd.f32 %v5366, 1.0
      %v5399 = vrcp.pop %v5367
      %v5400 = vmul.f32 1.0, %v5399
      %v5401 = vrcp.pop %v5368
      %v5402 = vmul.f32 1.0, %v5401
      %v5403 = vrcp.pop %v5369
      %v5404 = vmul.f32 1.0, %v5403
      %v5405 = vrcp.pop %v5370
      %v5406 = vmul.f32 1.0, %v5405
      %v5407 = vrcp.pop %v5371
      %v5408 = vmul.f32 1.0, %v5407
      %v5409 = vrcp.pop %v5372
      %v5410 = vmul.f32 1.0, %v5409
      %v5411 = vrcp.pop %v5373
      %v5412 = vmul.f32 1.0, %v5411
      %v5413 = vrcp.pop %v5374
      %v5414 = vmul.f32 1.0, %v5413
      %v5415 = vrcp.pop %v5375
      %v5416 = vmul.f32 1.0, %v5415
      %v5417 = vrcp.pop %v5376
      %v5418 = vmul.f32 1.0, %v5417
      %v5419 = vrcp.pop %v5377
      %v5420 = vmul.f32 1.0, %v5419
      %v5421 = vrcp.pop %v5378
      %v5422 = vmul.f32 1.0, %v5421
      %v5423 = vrcp.pop %v5379
      %v5424 = vmul.f32 1.0, %v5423
      %v5425 = vrcp.pop %v5380
      %v5426 = vmul.f32 1.0, %v5425
      %v5427 = vrcp.pop %v5381
      %v5428 = vmul.f32 1.0, %v5427
      %v5429 = vrcp.pop %v5382
      %v5430 = vmul.f32 1.0, %v5429
      %v5431 = vrcp.pop %v5383
      %v5432 = vmul.f32 1.0, %v5431
      %v5433 = vrcp.pop %v5384
      %v5434 = vmul.f32 1.0, %v5433
      %v5435 = vrcp.pop %v5385
      %v5436 = vmul.f32 1.0, %v5435
      %v5437 = vrcp.pop %v5386
      %v5438 = vmul.f32 1.0, %v5437
      %v5439 = vrcp.pop %v5387
      %v5440 = vmul.f32 1.0, %v5439
      %v5441 = vrcp.pop %v5388
      %v5442 = vmul.f32 1.0, %v5441
      %v5443 = vrcp.pop %v5389
      %v5444 = vmul.f32 1.0, %v5443
      %v5445 = vrcp.pop %v5390
      %v5446 = vmul.f32 1.0, %v5445
      %v5447 = vrcp.pop %v5391
      %v5448 = vmul.f32 1.0, %v5447
      %v5449 = vrcp.pop %v5392
      %v5450 = vmul.f32 1.0, %v5449
      %v5451 = vrcp.pop %v5393
      %v5452 = vmul.f32 1.0, %v5451
      %v5453 = vrcp.pop %v5394
      %v5454 = vmul.f32 1.0, %v5453
      %v5455 = vrcp.pop %v5395
      %v5456 = vmul.f32 1.0, %v5455
      %v5457 = vrcp.pop %v5396
      %v5458 = vmul.f32 1.0, %v5457
      %v5459 = vrcp.pop %v5397
      %v5460 = vmul.f32 1.0, %v5459
      %v5461 = vrcp.pop %v5398
      %v5462 = vmul.f32 1.0, %v5461
      %v5463 = vmul.f32 %v5239, %v5400
      %v5464 = vmul.f32 %v5240, %v5402
      %v5465 = vmul.f32 %v5241, %v5404
      %v5466 = vmul.f32 %v5242, %v5406
      %v5467 = vmul.f32 %v5243, %v5408
      %v5468 = vmul.f32 %v5244, %v5410
      %v5469 = vmul.f32 %v5245, %v5412
      %v5470 = vmul.f32 %v5246, %v5414
      %v5471 = vmul.f32 %v5247, %v5416
      %v5472 = vmul.f32 %v5248, %v5418
      %v5473 = vmul.f32 %v5249, %v5420
      %v5474 = vmul.f32 %v5250, %v5422
      %v5475 = vmul.f32 %v5251, %v5424
      %v5476 = vmul.f32 %v5252, %v5426
      %v5477 = vmul.f32 %v5253, %v5428
      %v5478 = vmul.f32 %v5254, %v5430
      %v5479 = vmul.f32 %v5255, %v5432
      %v5480 = vmul.f32 %v5256, %v5434
      %v5481 = vmul.f32 %v5257, %v5436
      %v5482 = vmul.f32 %v5258, %v5438
      %v5483 = vmul.f32 %v5259, %v5440
      %v5484 = vmul.f32 %v5260, %v5442
      %v5485 = vmul.f32 %v5261, %v5444
      %v5486 = vmul.f32 %v5262, %v5446
      %v5487 = vmul.f32 %v5263, %v5448
      %v5488 = vmul.f32 %v5264, %v5450
      %v5489 = vmul.f32 %v5265, %v5452
      %v5490 = vmul.f32 %v5266, %v5454
      %v5491 = vmul.f32 %v5267, %v5456
      %v5492 = vmul.f32 %v5268, %v5458
      %v5493 = vmul.f32 %v5269, %v5460
      %v5494 = vmul.f32 %v5270, %v5462
      %v5495 = vpack.c.bf16 %v5464, %v5463
      %v5496 = vpack.c.bf16 %v5466, %v5465
      %v5497 = vpack.c.bf16 %v5468, %v5467
      %v5498 = vpack.c.bf16 %v5470, %v5469
      %v5499 = vpack.c.bf16 %v5472, %v5471
      %v5500 = vpack.c.bf16 %v5474, %v5473
      %v5501 = vpack.c.bf16 %v5476, %v5475
      %v5502 = vpack.c.bf16 %v5478, %v5477
      %v5503 = vpack.c.bf16 %v5480, %v5479
      %v5504 = vpack.c.bf16 %v5482, %v5481
      %v5505 = vpack.c.bf16 %v5484, %v5483
      %v5506 = vpack.c.bf16 %v5486, %v5485
      %v5507 = vpack.c.bf16 %v5488, %v5487
      %v5508 = vpack.c.bf16 %v5490, %v5489
      %v5509 = vpack.c.bf16 %v5492, %v5491
      %v5510 = vpack.c.bf16 %v5494, %v5493
      %v5527 = vrot.slane %v5495, 4
      %v5528 = vrot.slane %v5496, 4
      %v5529 = vsel %vm1375, %v5527, %v5528
      %v5530 = vrot.slane %v5497, 4
      %v5531 = vsel %vm1375, %v5528, %v5530
      %v5532 = vrot.slane %v5498, 4
      %v5533 = vsel %vm1375, %v5530, %v5532
      %v5534 = vrot.slane %v5499, 4
      %v5535 = vsel %vm1375, %v5532, %v5534
      %v5536 = vrot.slane %v5500, 4
      %v5537 = vsel %vm1375, %v5534, %v5536
      %v5538 = vrot.slane %v5501, 4
      %v5539 = vsel %vm1375, %v5536, %v5538
      %v5540 = vrot.slane %v5502, 4
      %v5541 = vsel %vm1375, %v5538, %v5540
      %v5542 = vrot.slane %v5503, 4
      %v5543 = vsel %vm1375, %v5540, %v5542
      %v5544 = vrot.slane %v5504, 4
      %v5545 = vsel %vm1375, %v5542, %v5544
      %v5546 = vrot.slane %v5505, 4
      %v5547 = vsel %vm1375, %v5544, %v5546
      %v5548 = vrot.slane %v5506, 4
      %v5549 = vsel %vm1375, %v5546, %v5548
      %v5550 = vrot.slane %v5507, 4
      %v5551 = vsel %vm1375, %v5548, %v5550
      %v5552 = vrot.slane %v5508, 4
      %v5553 = vsel %vm1375, %v5550, %v5552
      %v5554 = vrot.slane %v5509, 4
      %v5555 = vsel %vm1375, %v5552, %v5554
      %v5556 = vrot.slane %v5510, 4
      %v5557 = vsel %vm1375, %v5554, %v5556
      %5575 = vst.msk [vmem:[#allocation3 + $0x8] sm:$0xf0] %vm691, %v5527
      %5576 = vst.msk [vmem:[#allocation3 + $0x10] sm:$0xff] %vm687, %v5529
      %5577 = vst.msk [vmem:[#allocation3 + $0x18] sm:$0xff] %vm687, %v5531
      %5578 = vst.msk [vmem:[#allocation3 + $0x20] sm:$0xff] %vm687, %v5533
      %5579 = vst.msk [vmem:[#allocation3 + $0x28] sm:$0xff] %vm687, %v5535
      %5580 = vst.msk [vmem:[#allocation3 + $0x30] sm:$0xff] %vm687, %v5537
      %5581 = vst.msk [vmem:[#allocation3 + $0x38] sm:$0xff] %vm687, %v5539
      %5582 = vst.msk [vmem:[#allocation3 + $0x40] sm:$0xff] %vm687, %v5541
      %5583 = vst.msk [vmem:[#allocation3 + $0x48] sm:$0xff] %vm687, %v5543
      %5584 = vst.msk [vmem:[#allocation3 + $0x50] sm:$0xff] %vm687, %v5545
      %5585 = vst.msk [vmem:[#allocation3 + $0x58] sm:$0xff] %vm687, %v5547
      %5586 = vst.msk [vmem:[#allocation3 + $0x60] sm:$0xff] %vm687, %v5549
      %5587 = vst.msk [vmem:[#allocation3 + $0x68] sm:$0xff] %vm687, %v5551
      %5588 = vst.msk [vmem:[#allocation3 + $0x70] sm:$0xff] %vm687, %v5553
      %5589 = vst.msk [vmem:[#allocation3 + $0x78] sm:$0xff] %vm687, %v5555
      %5590 = vst.msk [vmem:[#allocation3 + $0x80] sm:$0xff] %vm687, %v5557
      %5591 = vst.msk [vmem:[#allocation3 + $0x88] sm:$0xf] %vm689, %v5556
      %v5592 = vld [vmem:[#allocation3] sm:$0xf8]
      %v5593 = vld [vmem:[#allocation3 + $0x8] sm:$0xff]
      %v5594 = vld [vmem:[#allocation3 + $0x10] sm:$0xff]
      %v5595 = vld [vmem:[#allocation3 + $0x18] sm:$0xff]
      %v5596 = vld [vmem:[#allocation3 + $0x20] sm:$0xff]
      %v5597 = vld [vmem:[#allocation3 + $0x28] sm:$0xff]
      %v5598 = vld [vmem:[#allocation3 + $0x30] sm:$0xff]
      %v5599 = vld [vmem:[#allocation3 + $0x38] sm:$0xff]
      %v5600 = vld [vmem:[#allocation3 + $0x40] sm:$0xff]
      %v5601 = vld [vmem:[#allocation3 + $0x48] sm:$0xff]
      %v5602 = vld [vmem:[#allocation3 + $0x50] sm:$0xff]
      %v5603 = vld [vmem:[#allocation3 + $0x58] sm:$0xff]
      %v5604 = vld [vmem:[#allocation3 + $0x60] sm:$0xff]
      %v5605 = vld [vmem:[#allocation3 + $0x68] sm:$0xff]
      %v5606 = vld [vmem:[#allocation3 + $0x70] sm:$0xff]
      %v5607 = vld [vmem:[#allocation3 + $0x78] sm:$0xff]
      %v5608 = vld [vmem:[#allocation3 + $0x80] sm:$0xf]
      %v5609 = vld [vmem:[%s12] sm:$0xf]
      %v5610 = vld [vmem:[#allocation3 + $0x8] sm:$0xf8]
      %v5611 = vld [vmem:[#allocation3 + $0x80] sm:$0xff]
      %v5612 = vld [vmem:[#allocation3 + $0x88] sm:$0xf]
      %s5613 = scalar_lea.vmem %s12, 12
      %v5614 = vld [vmem:[%s5613] sm:$0xf]
      %v5616 = vshrl.u32 %v5610, 16
      %v5618 = vrot.slane %v5616, 3
      %v5619 = vshll.u32 %v5610, 16
      %v5621 = vrot.slane %v5619, 4
      %v5622 = vor.u32 %v5618, %v5621
      %v5624 = vshrl.u32 %v5594, 16
      %v5626 = vrot.slane %v5624, 3
      %v5627 = vshll.u32 %v5594, 16
      %v5629 = vrot.slane %v5627, 4
      %v5630 = vor.u32 %v5626, %v5629
      %v5631 = vsel %vm1464, %v5622, %v5630
      %v5633 = vshrl.u32 %v5595, 16
      %v5635 = vrot.slane %v5633, 3
      %v5636 = vshll.u32 %v5595, 16
      %v5638 = vrot.slane %v5636, 4
      %v5639 = vor.u32 %v5635, %v5638
      %v5640 = vsel %vm1464, %v5630, %v5639
      %v5642 = vshrl.u32 %v5596, 16
      %v5644 = vrot.slane %v5642, 3
      %v5645 = vshll.u32 %v5596, 16
      %v5647 = vrot.slane %v5645, 4
      %v5648 = vor.u32 %v5644, %v5647
      %v5649 = vsel %vm1464, %v5639, %v5648
      %v5651 = vshrl.u32 %v5597, 16
      %v5653 = vrot.slane %v5651, 3
      %v5654 = vshll.u32 %v5597, 16
      %v5656 = vrot.slane %v5654, 4
      %v5657 = vor.u32 %v5653, %v5656
      %v5658 = vsel %vm1464, %v5648, %v5657
      %v5660 = vshrl.u32 %v5598, 16
      %v5662 = vrot.slane %v5660, 3
      %v5663 = vshll.u32 %v5598, 16
      %v5665 = vrot.slane %v5663, 4
      %v5666 = vor.u32 %v5662, %v5665
      %v5667 = vsel %vm1464, %v5657, %v5666
      %v5669 = vshrl.u32 %v5599, 16
      %v5671 = vrot.slane %v5669, 3
      %v5672 = vshll.u32 %v5599, 16
      %v5674 = vrot.slane %v5672, 4
      %v5675 = vor.u32 %v5671, %v5674
      %v5676 = vsel %vm1464, %v5666, %v5675
      %v5678 = vshrl.u32 %v5600, 16
      %v5680 = vrot.slane %v5678, 3
      %v5681 = vshll.u32 %v5600, 16
      %v5683 = vrot.slane %v5681, 4
      %v5684 = vor.u32 %v5680, %v5683
      %v5685 = vsel %vm1464, %v5675, %v5684
      %v5687 = vshrl.u32 %v5601, 16
      %v5689 = vrot.slane %v5687, 3
      %v5690 = vshll.u32 %v5601, 16
      %v5692 = vrot.slane %v5690, 4
      %v5693 = vor.u32 %v5689, %v5692
      %v5694 = vsel %vm1464, %v5684, %v5693
      %v5696 = vshrl.u32 %v5602, 16
      %v5698 = vrot.slane %v5696, 3
      %v5699 = vshll.u32 %v5602, 16
      %v5701 = vrot.slane %v5699, 4
      %v5702 = vor.u32 %v5698, %v5701
      %v5703 = vsel %vm1464, %v5693, %v5702
      %v5705 = vshrl.u32 %v5603, 16
      %v5707 = vrot.slane %v5705, 3
      %v5708 = vshll.u32 %v5603, 16
      %v5710 = vrot.slane %v5708, 4
      %v5711 = vor.u32 %v5707, %v5710
      %v5712 = vsel %vm1464, %v5702, %v5711
      %v5714 = vshrl.u32 %v5604, 16
      %v5716 = vrot.slane %v5714, 3
      %v5717 = vshll.u32 %v5604, 16
      %v5719 = vrot.slane %v5717, 4
      %v5720 = vor.u32 %v5716, %v5719
      %v5721 = vsel %vm1464, %v5711, %v5720
      %v5723 = vshrl.u32 %v5605, 16
      %v5725 = vrot.slane %v5723, 3
      %v5726 = vshll.u32 %v5605, 16
      %v5728 = vrot.slane %v5726, 4
      %v5729 = vor.u32 %v5725, %v5728
      %v5730 = vsel %vm1464, %v5720, %v5729
      %v5732 = vshrl.u32 %v5606, 16
      %v5734 = vrot.slane %v5732, 3
      %v5735 = vshll.u32 %v5606, 16
      %v5737 = vrot.slane %v5735, 4
      %v5738 = vor.u32 %v5734, %v5737
      %v5739 = vsel %vm1464, %v5729, %v5738
      %v5741 = vshrl.u32 %v5607, 16
      %v5743 = vrot.slane %v5741, 3
      %v5744 = vshll.u32 %v5607, 16
      %v5746 = vrot.slane %v5744, 4
      %v5747 = vor.u32 %v5743, %v5746
      %v5748 = vsel %vm1464, %v5738, %v5747
      %v5750 = vshrl.u32 %v5611, 16
      %v5752 = vrot.slane %v5750, 3
      %v5753 = vshll.u32 %v5611, 16
      %v5755 = vrot.slane %v5753, 4
      %v5756 = vor.u32 %v5752, %v5755
      %v5757 = vsel %vm1464, %v5747, %v5756
      %v5759 = vshrl.u32 %v5612, 16
      %v5761 = vrot.slane %v5759, 3
      %v5762 = vshll.u32 %v5612, 16
      %v5764 = vrot.slane %v5762, 4
      %v5765 = vor.u32 %v5761, %v5764
      %v5766 = vsel %vm1464, %v5756, %v5765
      %v5768 = vsel %vm687, %v5631, 0
      %v5771 = vsel %vm687, %v5640, 0
      %v5774 = vsel %vm687, %v5649, 0
      %v5777 = vsel %vm687, %v5658, 0
      %v5780 = vsel %vm687, %v5667, 0
      %v5783 = vsel %vm687, %v5676, 0
      %v5786 = vsel %vm687, %v5685, 0
      %v5789 = vsel %vm687, %v5694, 0
      %v5792 = vsel %vm687, %v5703, 0
      %v5795 = vsel %vm687, %v5712, 0
      %v5798 = vsel %vm687, %v5721, 0
      %v5801 = vsel %vm687, %v5730, 0
      %v5804 = vsel %vm687, %v5739, 0
      %v5807 = vsel %vm687, %v5748, 0
      %v5810 = vsel %vm687, %v5757, 0
      %v5813 = vsel %vm687, %v5766, 0
      %v5816 = vsel %vm870, %v5614, 0
      %5818 = vmatprep.subr.bf16.mxu0 0
      %5819 = vmatpush1.bf16.msra.mxu0 %v5816
      %5820 = vmatprep.subr.bf16.mxu0 0
      %5821 = vmatpush1.bf16.msra.mxu0 0
      %5822 = vmatprep.subr.bf16.mxu0 0
      %5823 = vmatpush1.bf16.msra.mxu0 0
      %5824 = vmatprep.subr.bf16.mxu0 0
      %5825 = vmatpush1.bf16.msra.mxu0 0
      %5826 = vmatprep.subr.bf16.mxu0 0
      %5827 = vmatpush1.bf16.msra.mxu0 0
      %5828 = vmatprep.subr.bf16.mxu0 0
      %5829 = vmatpush1.bf16.msra.mxu0 0
      %5830 = vmatprep.subr.bf16.mxu0 0
      %5831 = vmatpush1.bf16.msra.mxu0 0
      %5832 = vmatprep.subr.bf16.mxu0 0
      %5833 = vmatpush1.bf16.msra.mxu0 0
      %5834 = vmatprep.subr.bf16.mxu0 0
      %5835 = vmatpush1.bf16.msra.mxu0 0
      %5836 = vmatprep.subr.bf16.mxu0 0
      %5837 = vmatpush1.bf16.msra.mxu0 0
      %5838 = vmatprep.subr.bf16.mxu0 0
      %5839 = vmatpush1.bf16.msra.mxu0 0
      %5840 = vmatprep.subr.bf16.mxu0 0
      %5841 = vmatpush1.bf16.msra.mxu0 0
      %5842 = vmatprep.subr.bf16.mxu0 0
      %5843 = vmatpush1.bf16.msra.mxu0 0
      %5844 = vmatprep.subr.bf16.mxu0 0
      %5845 = vmatpush1.bf16.msra.mxu0 0
      %5846 = vmatprep.subr.bf16.mxu0 0
      %5847 = vmatpush1.bf16.msra.mxu0 0
      %5848 = vmatprep.subr.bf16.mxu0 0
      %5849 = vmatpush1.bf16.msra.mxu0 0
      %5850 = vmatprep.mubr.bf16.mxu0 0
      %5851 = vmatmul.mubr.bf16.gmra.mrb[0].mxu0 %v5768
      %v5852 = vpop.f32.mrb[0].mxu0
      %v5853 = vadd.f32 0.0, %v5852
      %v5854 = vpop.f32.mrb[0].mxu0
      %v5855 = vpop.f32.mrb[0].mxu0
      %v5856 = vadd.f32 0.0, %v5855
      %v5857 = vpop.f32.mrb[0].mxu0
      %5858 = vmatprep.mubr.bf16.mxu0 0
      %5859 = vmatmul.mubr.bf16.gmra.mrb[0].mxu0 %v5771
      %v5860 = vpop.f32.mrb[0].mxu0
      %v5861 = vadd.f32 0.0, %v5860
      %v5862 = vpop.f32.mrb[0].mxu0
      %v5863 = vpop.f32.mrb[0].mxu0
      %v5864 = vadd.f32 0.0, %v5863
      %v5865 = vpop.f32.mrb[0].mxu0
      %5866 = vmatprep.mubr.bf16.mxu0 0
      %5867 = vmatmul.mubr.bf16.gmra.mrb[0].mxu0 %v5774
      %v5868 = vpop.f32.mrb[0].mxu0
      %v5869 = vadd.f32 0.0, %v5868
      %v5870 = vpop.f32.mrb[0].mxu0
      %v5871 = vpop.f32.mrb[0].mxu0
      %v5872 = vadd.f32 0.0, %v5871
      %v5873 = vpop.f32.mrb[0].mxu0
      %5874 = vmatprep.mubr.bf16.mxu0 0
      %5875 = vmatmul.mubr.bf16.gmra.mrb[0].mxu0 %v5777
      %v5876 = vpop.f32.mrb[0].mxu0
      %v5877 = vadd.f32 0.0, %v5876
      %v5878 = vpop.f32.mrb[0].mxu0
      %v5879 = vpop.f32.mrb[0].mxu0
      %v5880 = vadd.f32 0.0, %v5879
      %v5881 = vpop.f32.mrb[0].mxu0
      %5882 = vmatprep.mubr.bf16.mxu0 0
      %5883 = vmatmul.mubr.bf16.gmra.mrb[0].mxu0 %v5780
      %v5884 = vpop.f32.mrb[0].mxu0
      %v5885 = vadd.f32 0.0, %v5884
      %v5886 = vpop.f32.mrb[0].mxu0
      %v5887 = vpop.f32.mrb[0].mxu0
      %v5888 = vadd.f32 0.0, %v5887
      %v5889 = vpop.f32.mrb[0].mxu0
      %5890 = vmatprep.mubr.bf16.mxu0 0
      %5891 = vmatmul.mubr.bf16.gmra.mrb[0].mxu0 %v5783
      %v5892 = vpop.f32.mrb[0].mxu0
      %v5893 = vadd.f32 0.0, %v5892
      %v5894 = vpop.f32.mrb[0].mxu0
      %v5895 = vpop.f32.mrb[0].mxu0
      %v5896 = vadd.f32 0.0, %v5895
      %v5897 = vpop.f32.mrb[0].mxu0
      %5898 = vmatprep.mubr.bf16.mxu0 0
      %5899 = vmatmul.mubr.bf16.gmra.mrb[0].mxu0 %v5786
      %v5900 = vpop.f32.mrb[0].mxu0
      %v5901 = vadd.f32 0.0, %v5900
      %v5902 = vpop.f32.mrb[0].mxu0
      %v5903 = vpop.f32.mrb[0].mxu0
      %v5904 = vadd.f32 0.0, %v5903
      %v5905 = vpop.f32.mrb[0].mxu0
      %5906 = vmatprep.mubr.bf16.mxu0 0
      %5907 = vmatmul.mubr.bf16.gmra.mrb[0].mxu0 %v5789
      %v5908 = vpop.f32.mrb[0].mxu0
      %v5909 = vadd.f32 0.0, %v5908
      %v5910 = vpop.f32.mrb[0].mxu0
      %v5911 = vpop.f32.mrb[0].mxu0
      %v5912 = vadd.f32 0.0, %v5911
      %v5913 = vpop.f32.mrb[0].mxu0
      %5914 = vmatprep.mubr.bf16.mxu0 0
      %5915 = vmatmul.mubr.bf16.gmra.mrb[0].mxu0 %v5792
      %v5916 = vpop.f32.mrb[0].mxu0
      %v5917 = vadd.f32 0.0, %v5916
      %v5918 = vpop.f32.mrb[0].mxu0
      %v5919 = vpop.f32.mrb[0].mxu0
      %v5920 = vadd.f32 0.0, %v5919
      %v5921 = vpop.f32.mrb[0].mxu0
      %5922 = vmatprep.mubr.bf16.mxu0 0
      %5923 = vmatmul.mubr.bf16.gmra.mrb[0].mxu0 %v5795
      %v5924 = vpop.f32.mrb[0].mxu0
      %v5925 = vadd.f32 0.0, %v5924
      %v5926 = vpop.f32.mrb[0].mxu0
      %v5927 = vpop.f32.mrb[0].mxu0
      %v5928 = vadd.f32 0.0, %v5927
      %v5929 = vpop.f32.mrb[0].mxu0
      %5930 = vmatprep.mubr.bf16.mxu0 0
      %5931 = vmatmul.mubr.bf16.gmra.mrb[0].mxu0 %v5798
      %v5932 = vpop.f32.mrb[0].mxu0
      %v5933 = vadd.f32 0.0, %v5932
      %v5934 = vpop.f32.mrb[0].mxu0
      %v5935 = vpop.f32.mrb[0].mxu0
      %v5936 = vadd.f32 0.0, %v5935
      %v5937 = vpop.f32.mrb[0].mxu0
      %5938 = vmatprep.mubr.bf16.mxu0 0
      %5939 = vmatmul.mubr.bf16.gmra.mrb[0].mxu0 %v5801
      %v5940 = vpop.f32.mrb[0].mxu0
      %v5941 = vadd.f32 0.0, %v5940
      %v5942 = vpop.f32.mrb[0].mxu0
      %v5943 = vpop.f32.mrb[0].mxu0
      %v5944 = vadd.f32 0.0, %v5943
      %v5945 = vpop.f32.mrb[0].mxu0
      %5946 = vmatprep.mubr.bf16.mxu0 0
      %5947 = vmatmul.mubr.bf16.gmra.mrb[0].mxu0 %v5804
      %v5948 = vpop.f32.mrb[0].mxu0
      %v5949 = vadd.f32 0.0, %v5948
      %v5950 = vpop.f32.mrb[0].mxu0
      %v5951 = vpop.f32.mrb[0].mxu0
      %v5952 = vadd.f32 0.0, %v5951
      %v5953 = vpop.f32.mrb[0].mxu0
      %5954 = vmatprep.mubr.bf16.mxu0 0
      %5955 = vmatmul.mubr.bf16.gmra.mrb[0].mxu0 %v5807
      %v5956 = vpop.f32.mrb[0].mxu0
      %v5957 = vadd.f32 0.0, %v5956
      %v5958 = vpop.f32.mrb[0].mxu0
      %v5959 = vpop.f32.mrb[0].mxu0
      %v5960 = vadd.f32 0.0, %v5959
      %v5961 = vpop.f32.mrb[0].mxu0
      %5962 = vmatprep.mubr.bf16.mxu0 0
      %5963 = vmatmul.mubr.bf16.gmra.mrb[0].mxu0 %v5810
      %v5964 = vpop.f32.mrb[0].mxu0
      %v5965 = vadd.f32 0.0, %v5964
      %v5966 = vpop.f32.mrb[0].mxu0
      %v5967 = vpop.f32.mrb[0].mxu0
      %v5968 = vadd.f32 0.0, %v5967
      %v5969 = vpop.f32.mrb[0].mxu0
      %5970 = vmatprep.mubr.bf16.mxu0 0
      %5971 = vmatmul.mubr.bf16.gmra.mrb[0].mxu0 %v5813
      %v5972 = vpop.f32.mrb[0].mxu0
      %v5973 = vadd.f32 0.0, %v5972
      %v5974 = vpop.f32.mrb[0].mxu0
      %v5975 = vpop.f32.mrb[0].mxu0
      %v5976 = vadd.f32 0.0, %v5975
      %v5977 = vpop.f32.mrb[0].mxu0
      %5978 = vdwg.mxu0
      %v5980 = vshrl.u32 %v5592, 16
      %v5982 = vrot.slane %v5980, 3
      %v5983 = vshll.u32 %v5592, 16
      %v5985 = vrot.slane %v5983, 4
      %v5986 = vor.u32 %v5982, %v5985
      %v5988 = vshrl.u32 %v5593, 16
      %v5990 = vrot.slane %v5988, 3
      %v5991 = vshll.u32 %v5593, 16
      %v5993 = vrot.slane %v5991, 4
      %v5994 = vor.u32 %v5990, %v5993
      %v5995 = vsel %vm1464, %v5986, %v5994
      %v5996 = vsel %vm1464, %v5994, %v5630
      %v5998 = vshrl.u32 %v5608, 16
      %v6000 = vrot.slane %v5998, 3
      %v6001 = vshll.u32 %v5608, 16
      %v6003 = vrot.slane %v6001, 4
      %v6004 = vor.u32 %v6000, %v6003
      %v6005 = vsel %vm1464, %v5747, %v6004
      %v6007 = vsel %vm687, %v5995, 0
      %v6010 = vsel %vm687, %v5996, 0
      %v6013 = vsel %vm687, %v6005, 0
      %v6016 = vsel %vm870, %v5609, 0
      %6018 = vmatprep.subr.bf16.mxu0 0
      %6019 = vmatpush1.bf16.msra.mxu0 %v6016
      %6020 = vmatprep.subr.bf16.mxu0 0
      %6021 = vmatpush1.bf16.msra.mxu0 0
      %6022 = vmatprep.subr.bf16.mxu0 0
      %6023 = vmatpush1.bf16.msra.mxu0 0
      %6024 = vmatprep.subr.bf16.mxu0 0
      %6025 = vmatpush1.bf16.msra.mxu0 0
      %6026 = vmatprep.subr.bf16.mxu0 0
      %6027 = vmatpush1.bf16.msra.mxu0 0
      %6028 = vmatprep.subr.bf16.mxu0 0
      %6029 = vmatpush1.bf16.msra.mxu0 0
      %6030 = vmatprep.subr.bf16.mxu0 0
      %6031 = vmatpush1.bf16.msra.mxu0 0
      %6032 = vmatprep.subr.bf16.mxu0 0
      %6033 = vmatpush1.bf16.msra.mxu0 0
      %6034 = vmatprep.subr.bf16.mxu0 0
      %6035 = vmatpush1.bf16.msra.mxu0 0
      %6036 = vmatprep.subr.bf16.mxu0 0
      %6037 = vmatpush1.bf16.msra.mxu0 0
      %6038 = vmatprep.subr.bf16.mxu0 0
      %6039 = vmatpush1.bf16.msra.mxu0 0
      %6040 = vmatprep.subr.bf16.mxu0 0
      %6041 = vmatpush1.bf16.msra.mxu0 0
      %6042 = vmatprep.subr.bf16.mxu0 0
      %6043 = vmatpush1.bf16.msra.mxu0 0
      %6044 = vmatprep.subr.bf16.mxu0 0
      %6045 = vmatpush1.bf16.msra.mxu0 0
      %6046 = vmatprep.subr.bf16.mxu0 0
      %6047 = vmatpush1.bf16.msra.mxu0 0
      %6048 = vmatprep.subr.bf16.mxu0 0
      %6049 = vmatpush1.bf16.msra.mxu0 0
      %6050 = vmatprep.mubr.bf16.mxu0 0
      %6051 = vmatmul.mubr.bf16.gmra.mrb[0].mxu0 %v6007
      %v6052 = vpop.f32.mrb[0].mxu0
      %v6053 = vadd.f32 %v5853, %v6052
      %v6054 = vpop.f32.mrb[0].mxu0
      %v6055 = vpop.f32.mrb[0].mxu0
      %v6056 = vadd.f32 %v5856, %v6055
      %v6057 = vpop.f32.mrb[0].mxu0
      %6058 = vmatprep.mubr.bf16.mxu0 0
      %6059 = vmatmul.mubr.bf16.gmra.mrb[0].mxu0 %v6010
      %v6060 = vpop.f32.mrb[0].mxu0
      %v6061 = vadd.f32 %v5861, %v6060
      %v6062 = vpop.f32.mrb[0].mxu0
      %v6063 = vpop.f32.mrb[0].mxu0
      %v6064 = vadd.f32 %v5864, %v6063
      %v6065 = vpop.f32.mrb[0].mxu0
      %6066 = vmatprep.mubr.bf16.mxu0 0
      %6067 = vmatmul.mubr.bf16.gmra.mrb[0].mxu0 %v5771
      %v6068 = vpop.f32.mrb[0].mxu0
      %v6069 = vadd.f32 %v5869, %v6068
      %v6070 = vpop.f32.mrb[0].mxu0
      %v6071 = vpop.f32.mrb[0].mxu0
      %v6072 = vadd.f32 %v5872, %v6071
      %v6073 = vpop.f32.mrb[0].mxu0
      %6074 = vmatprep.mubr.bf16.mxu0 0
      %6075 = vmatmul.mubr.bf16.gmra.mrb[0].mxu0 %v5774
      %v6076 = vpop.f32.mrb[0].mxu0
      %v6077 = vadd.f32 %v5877, %v6076
      %v6078 = vpop.f32.mrb[0].mxu0
      %v6079 = vpop.f32.mrb[0].mxu0
      %v6080 = vadd.f32 %v5880, %v6079
      %v6081 = vpop.f32.mrb[0].mxu0
      %6082 = vmatprep.mubr.bf16.mxu0 0
      %6083 = vmatmul.mubr.bf16.gmra.mrb[0].mxu0 %v5777
      %v6084 = vpop.f32.mrb[0].mxu0
      %v6085 = vadd.f32 %v5885, %v6084
      %v6086 = vpop.f32.mrb[0].mxu0
      %v6087 = vpop.f32.mrb[0].mxu0
      %v6088 = vadd.f32 %v5888, %v6087
      %v6089 = vpop.f32.mrb[0].mxu0
      %6090 = vmatprep.mubr.bf16.mxu0 0
      %6091 = vmatmul.mubr.bf16.gmra.mrb[0].mxu0 %v5780
      %v6092 = vpop.f32.mrb[0].mxu0
      %v6093 = vadd.f32 %v5893, %v6092
      %v6094 = vpop.f32.mrb[0].mxu0
      %v6095 = vpop.f32.mrb[0].mxu0
      %v6096 = vadd.f32 %v5896, %v6095
      %v6097 = vpop.f32.mrb[0].mxu0
      %6098 = vmatprep.mubr.bf16.mxu0 0
      %6099 = vmatmul.mubr.bf16.gmra.mrb[0].mxu0 %v5783
      %v6100 = vpop.f32.mrb[0].mxu0
      %v6101 = vadd.f32 %v5901, %v6100
      %v6102 = vpop.f32.mrb[0].mxu0
      %v6103 = vpop.f32.mrb[0].mxu0
      %v6104 = vadd.f32 %v5904, %v6103
      %v6105 = vpop.f32.mrb[0].mxu0
      %6106 = vmatprep.mubr.bf16.mxu0 0
      %6107 = vmatmul.mubr.bf16.gmra.mrb[0].mxu0 %v5786
      %v6108 = vpop.f32.mrb[0].mxu0
      %v6109 = vadd.f32 %v5909, %v6108
      %v6110 = vpop.f32.mrb[0].mxu0
      %v6111 = vpop.f32.mrb[0].mxu0
      %v6112 = vadd.f32 %v5912, %v6111
      %v6113 = vpop.f32.mrb[0].mxu0
      %6114 = vmatprep.mubr.bf16.mxu0 0
      %6115 = vmatmul.mubr.bf16.gmra.mrb[0].mxu0 %v5789
      %v6116 = vpop.f32.mrb[0].mxu0
      %v6117 = vadd.f32 %v5917, %v6116
      %v6118 = vpop.f32.mrb[0].mxu0
      %v6119 = vpop.f32.mrb[0].mxu0
      %v6120 = vadd.f32 %v5920, %v6119
      %v6121 = vpop.f32.mrb[0].mxu0
      %6122 = vmatprep.mubr.bf16.mxu0 0
      %6123 = vmatmul.mubr.bf16.gmra.mrb[0].mxu0 %v5792
      %v6124 = vpop.f32.mrb[0].mxu0
      %v6125 = vadd.f32 %v5925, %v6124
      %v6126 = vpop.f32.mrb[0].mxu0
      %v6127 = vpop.f32.mrb[0].mxu0
      %v6128 = vadd.f32 %v5928, %v6127
      %v6129 = vpop.f32.mrb[0].mxu0
      %6130 = vmatprep.mubr.bf16.mxu0 0
      %6131 = vmatmul.mubr.bf16.gmra.mrb[0].mxu0 %v5795
      %v6132 = vpop.f32.mrb[0].mxu0
      %v6133 = vadd.f32 %v5933, %v6132
      %v6134 = vpop.f32.mrb[0].mxu0
      %v6135 = vpop.f32.mrb[0].mxu0
      %v6136 = vadd.f32 %v5936, %v6135
      %v6137 = vpop.f32.mrb[0].mxu0
      %6138 = vmatprep.mubr.bf16.mxu0 0
      %6139 = vmatmul.mubr.bf16.gmra.mrb[0].mxu0 %v5798
      %v6140 = vpop.f32.mrb[0].mxu0
      %v6141 = vadd.f32 %v5941, %v6140
      %v6142 = vpop.f32.mrb[0].mxu0
      %v6143 = vpop.f32.mrb[0].mxu0
      %v6144 = vadd.f32 %v5944, %v6143
      %v6145 = vpop.f32.mrb[0].mxu0
      %6146 = vmatprep.mubr.bf16.mxu0 0
      %6147 = vmatmul.mubr.bf16.gmra.mrb[0].mxu0 %v5801
      %v6148 = vpop.f32.mrb[0].mxu0
      %v6149 = vadd.f32 %v5949, %v6148
      %v6150 = vpop.f32.mrb[0].mxu0
      %v6151 = vpop.f32.mrb[0].mxu0
      %v6152 = vadd.f32 %v5952, %v6151
      %v6153 = vpop.f32.mrb[0].mxu0
      %6154 = vmatprep.mubr.bf16.mxu0 0
      %6155 = vmatmul.mubr.bf16.gmra.mrb[0].mxu0 %v5804
      %v6156 = vpop.f32.mrb[0].mxu0
      %v6157 = vadd.f32 %v5957, %v6156
      %v6158 = vpop.f32.mrb[0].mxu0
      %v6159 = vpop.f32.mrb[0].mxu0
      %v6160 = vadd.f32 %v5960, %v6159
      %v6161 = vpop.f32.mrb[0].mxu0
      %6162 = vmatprep.mubr.bf16.mxu0 0
      %6163 = vmatmul.mubr.bf16.gmra.mrb[0].mxu0 %v5807
      %v6164 = vpop.f32.mrb[0].mxu0
      %v6165 = vadd.f32 %v5965, %v6164
      %v6166 = vpop.f32.mrb[0].mxu0
      %v6167 = vpop.f32.mrb[0].mxu0
      %v6168 = vadd.f32 %v5968, %v6167
      %v6169 = vpop.f32.mrb[0].mxu0
      %6170 = vmatprep.mubr.bf16.mxu0 0
      %6171 = vmatmul.mubr.bf16.gmra.mrb[0].mxu0 %v6013
      %v6172 = vpop.f32.mrb[0].mxu0
      %v6173 = vadd.f32 %v5973, %v6172
      %v6174 = vpop.f32.mrb[0].mxu0
      %v6175 = vpop.f32.mrb[0].mxu0
      %v6176 = vadd.f32 %v5976, %v6175
      %v6177 = vpop.f32.mrb[0].mxu0
      %6178 = vdwg.mxu0
      %v6179 = vld [vmem:[#allocation3 + $0x10] sm:$0xf8]
      %v6180 = vld [vmem:[#allocation3 + $0x18] sm:$0xff]
      %v6181 = vld [vmem:[#allocation3 + $0x20] sm:$0xff]
      %v6182 = vld [vmem:[#allocation3 + $0x28] sm:$0xff]
      %v6183 = vld [vmem:[#allocation3 + $0x30] sm:$0xff]
      %v6184 = vld [vmem:[#allocation3 + $0x38] sm:$0xff]
      %v6185 = vld [vmem:[#allocation3 + $0x40] sm:$0xff]
      %v6186 = vld [vmem:[#allocation3 + $0x48] sm:$0xff]
      %v6187 = vld [vmem:[#allocation3 + $0x50] sm:$0xff]
      %v6188 = vld [vmem:[#allocation3 + $0x58] sm:$0xff]
      %v6189 = vld [vmem:[#allocation3 + $0x60] sm:$0xff]
      %v6190 = vld [vmem:[#allocation3 + $0x68] sm:$0xff]
      %v6191 = vld [vmem:[#allocation3 + $0x70] sm:$0xff]
      %v6192 = vld [vmem:[#allocation3 + $0x78] sm:$0xff]
      %v6193 = vld [vmem:[#allocation3 + $0x80] sm:$0xff]
      %v6194 = vld [vmem:[#allocation3 + $0x88] sm:$0xff]
      %v6195 = vld [vmem:[#allocation3 + $0x90] sm:$0xf]
      %s6196 = scalar_lea.vmem %s12, 24
      %v6197 = vld [vmem:[%s6196] sm:$0xf]
      %v6199 = vshrl.u32 %v6179, 16
      %v6201 = vrot.slane %v6199, 3
      %v6202 = vshll.u32 %v6179, 16
      %v6204 = vrot.slane %v6202, 4
      %v6205 = vor.u32 %v6201, %v6204
      %v6207 = vshrl.u32 %v6180, 16
      %v6209 = vrot.slane %v6207, 3
      %v6210 = vshll.u32 %v6180, 16
      %v6212 = vrot.slane %v6210, 4
      %v6213 = vor.u32 %v6209, %v6212
      %v6214 = vsel %vm1464, %v6205, %v6213
      %v6216 = vshrl.u32 %v6181, 16
      %v6218 = vrot.slane %v6216, 3
      %v6219 = vshll.u32 %v6181, 16
      %v6221 = vrot.slane %v6219, 4
      %v6222 = vor.u32 %v6218, %v6221
      %v6223 = vsel %vm1464, %v6213, %v6222
      %v6225 = vshrl.u32 %v6182, 16
      %v6227 = vrot.slane %v6225, 3
      %v6228 = vshll.u32 %v6182, 16
      %v6230 = vrot.slane %v6228, 4
      %v6231 = vor.u32 %v6227, %v6230
      %v6232 = vsel %vm1464, %v6222, %v6231
      %v6234 = vshrl.u32 %v6183, 16
      %v6236 = vrot.slane %v6234, 3
      %v6237 = vshll.u32 %v6183, 16
      %v6239 = vrot.slane %v6237, 4
      %v6240 = vor.u32 %v6236, %v6239
      %v6241 = vsel %vm1464, %v6231, %v6240
      %v6243 = vshrl.u32 %v6184, 16
      %v6245 = vrot.slane %v6243, 3
      %v6246 = vshll.u32 %v6184, 16
      %v6248 = vrot.slane %v6246, 4
      %v6249 = vor.u32 %v6245, %v6248
      %v6250 = vsel %vm1464, %v6240, %v6249
      %v6252 = vshrl.u32 %v6185, 16
      %v6254 = vrot.slane %v6252, 3
      %v6255 = vshll.u32 %v6185, 16
      %v6257 = vrot.slane %v6255, 4
      %v6258 = vor.u32 %v6254, %v6257
      %v6259 = vsel %vm1464, %v6249, %v6258
      %v6261 = vshrl.u32 %v6186, 16
      %v6263 = vrot.slane %v6261, 3
      %v6264 = vshll.u32 %v6186, 16
      %v6266 = vrot.slane %v6264, 4
      %v6267 = vor.u32 %v6263, %v6266
      %v6268 = vsel %vm1464, %v6258, %v6267
      %v6270 = vshrl.u32 %v6187, 16
      %v6272 = vrot.slane %v6270, 3
      %v6273 = vshll.u32 %v6187, 16
      %v6275 = vrot.slane %v6273, 4
      %v6276 = vor.u32 %v6272, %v6275
      %v6277 = vsel %vm1464, %v6267, %v6276
      %v6279 = vshrl.u32 %v6188, 16
      %v6281 = vrot.slane %v6279, 3
      %v6282 = vshll.u32 %v6188, 16
      %v6284 = vrot.slane %v6282, 4
      %v6285 = vor.u32 %v6281, %v6284
      %v6286 = vsel %vm1464, %v6276, %v6285
      %v6288 = vshrl.u32 %v6189, 16
      %v6290 = vrot.slane %v6288, 3
      %v6291 = vshll.u32 %v6189, 16
      %v6293 = vrot.slane %v6291, 4
      %v6294 = vor.u32 %v6290, %v6293
      %v6295 = vsel %vm1464, %v6285, %v6294
      %v6297 = vshrl.u32 %v6190, 16
      %v6299 = vrot.slane %v6297, 3
      %v6300 = vshll.u32 %v6190, 16
      %v6302 = vrot.slane %v6300, 4
      %v6303 = vor.u32 %v6299, %v6302
      %v6304 = vsel %vm1464, %v6294, %v6303
      %v6306 = vshrl.u32 %v6191, 16
      %v6308 = vrot.slane %v6306, 3
      %v6309 = vshll.u32 %v6191, 16
      %v6311 = vrot.slane %v6309, 4
      %v6312 = vor.u32 %v6308, %v6311
      %v6313 = vsel %vm1464, %v6303, %v6312
      %v6315 = vshrl.u32 %v6192, 16
      %v6317 = vrot.slane %v6315, 3
      %v6318 = vshll.u32 %v6192, 16
      %v6320 = vrot.slane %v6318, 4
      %v6321 = vor.u32 %v6317, %v6320
      %v6322 = vsel %vm1464, %v6312, %v6321
      %v6324 = vshrl.u32 %v6193, 16
      %v6326 = vrot.slane %v6324, 3
      %v6327 = vshll.u32 %v6193, 16
      %v6329 = vrot.slane %v6327, 4
      %v6330 = vor.u32 %v6326, %v6329
      %v6331 = vsel %vm1464, %v6321, %v6330
      %v6333 = vshrl.u32 %v6194, 16
      %v6335 = vrot.slane %v6333, 3
      %v6336 = vshll.u32 %v6194, 16
      %v6338 = vrot.slane %v6336, 4
      %v6339 = vor.u32 %v6335, %v6338
      %v6340 = vsel %vm1464, %v6330, %v6339
      %v6342 = vshrl.u32 %v6195, 16
      %v6344 = vrot.slane %v6342, 3
      %v6345 = vshll.u32 %v6195, 16
      %v6347 = vrot.slane %v6345, 4
      %v6348 = vor.u32 %v6344, %v6347
      %v6349 = vsel %vm1464, %v6339, %v6348
      %v6351 = vsel %vm687, %v6214, 0
      %v6354 = vsel %vm687, %v6223, 0
      %v6357 = vsel %vm687, %v6232, 0
      %v6360 = vsel %vm687, %v6241, 0
      %v6363 = vsel %vm687, %v6250, 0
      %v6366 = vsel %vm687, %v6259, 0
      %v6369 = vsel %vm687, %v6268, 0
      %v6372 = vsel %vm687, %v6277, 0
      %v6375 = vsel %vm687, %v6286, 0
      %v6378 = vsel %vm687, %v6295, 0
      %v6381 = vsel %vm687, %v6304, 0
      %v6384 = vsel %vm687, %v6313, 0
      %v6387 = vsel %vm687, %v6322, 0
      %v6390 = vsel %vm687, %v6331, 0
      %v6393 = vsel %vm687, %v6340, 0
      %v6396 = vsel %vm687, %v6349, 0
      %v6399 = vsel %vm870, %v6197, 0
      %6401 = vmatprep.subr.bf16.mxu0 0
      %6402 = vmatpush1.bf16.msra.mxu0 %v6399
      %6403 = vmatprep.subr.bf16.mxu0 0
      %6404 = vmatpush1.bf16.msra.mxu0 0
      %6405 = vmatprep.subr.bf16.mxu0 0
      %6406 = vmatpush1.bf16.msra.mxu0 0
      %6407 = vmatprep.subr.bf16.mxu0 0
      %6408 = vmatpush1.bf16.msra.mxu0 0
      %6409 = vmatprep.subr.bf16.mxu0 0
      %6410 = vmatpush1.bf16.msra.mxu0 0
      %6411 = vmatprep.subr.bf16.mxu0 0
      %6412 = vmatpush1.bf16.msra.mxu0 0
      %6413 = vmatprep.subr.bf16.mxu0 0
      %6414 = vmatpush1.bf16.msra.mxu0 0
      %6415 = vmatprep.subr.bf16.mxu0 0
      %6416 = vmatpush1.bf16.msra.mxu0 0
      %6417 = vmatprep.subr.bf16.mxu0 0
      %6418 = vmatpush1.bf16.msra.mxu0 0
      %6419 = vmatprep.subr.bf16.mxu0 0
      %6420 = vmatpush1.bf16.msra.mxu0 0
      %6421 = vmatprep.subr.bf16.mxu0 0
      %6422 = vmatpush1.bf16.msra.mxu0 0
      %6423 = vmatprep.subr.bf16.mxu0 0
      %6424 = vmatpush1.bf16.msra.mxu0 0
      %6425 = vmatprep.subr.bf16.mxu0 0
      %6426 = vmatpush1.bf16.msra.mxu0 0
      %6427 = vmatprep.subr.bf16.mxu0 0
      %6428 = vmatpush1.bf16.msra.mxu0 0
      %6429 = vmatprep.subr.bf16.mxu0 0
      %6430 = vmatpush1.bf16.msra.mxu0 0
      %6431 = vmatprep.subr.bf16.mxu0 0
      %6432 = vmatpush1.bf16.msra.mxu0 0
      %6433 = vmatprep.mubr.bf16.mxu0 0
      %6434 = vmatmul.mubr.bf16.gmra.mrb[0].mxu0 %v6351
      %v6435 = vpop.f32.mrb[0].mxu0
      %v6436 = vadd.f32 0.0, %v6435
      %v6437 = vpop.f32.mrb[0].mxu0
      %v6438 = vpop.f32.mrb[0].mxu0
      %v6439 = vadd.f32 0.0, %v6438
      %v6440 = vpop.f32.mrb[0].mxu0
      %6441 = vmatprep.mubr.bf16.mxu0 0
      %6442 = vmatmul.mubr.bf16.gmra.mrb[0].mxu0 %v6354
      %v6443 = vpop.f32.mrb[0].mxu0
      %v6444 = vadd.f32 0.0, %v6443
      %v6445 = vpop.f32.mrb[0].mxu0
      %v6446 = vpop.f32.mrb[0].mxu0
      %v6447 = vadd.f32 0.0, %v6446
      %v6448 = vpop.f32.mrb[0].mxu0
      %6449 = vmatprep.mubr.bf16.mxu0 0
      %6450 = vmatmul.mubr.bf16.gmra.mrb[0].mxu0 %v6357
      %v6451 = vpop.f32.mrb[0].mxu0
      %v6452 = vadd.f32 0.0, %v6451
      %v6453 = vpop.f32.mrb[0].mxu0
      %v6454 = vpop.f32.mrb[0].mxu0
      %v6455 = vadd.f32 0.0, %v6454
      %v6456 = vpop.f32.mrb[0].mxu0
      %6457 = vmatprep.mubr.bf16.mxu0 0
      %6458 = vmatmul.mubr.bf16.gmra.mrb[0].mxu0 %v6360
      %v6459 = vpop.f32.mrb[0].mxu0
      %v6460 = vadd.f32 0.0, %v6459
      %v6461 = vpop.f32.mrb[0].mxu0
      %v6462 = vpop.f32.mrb[0].mxu0
      %v6463 = vadd.f32 0.0, %v6462
      %v6464 = vpop.f32.mrb[0].mxu0
      %6465 = vmatprep.mubr.bf16.mxu0 0
      %6466 = vmatmul.mubr.bf16.gmra.mrb[0].mxu0 %v6363
      %v6467 = vpop.f32.mrb[0].mxu0
      %v6468 = vadd.f32 0.0, %v6467
      %v6469 = vpop.f32.mrb[0].mxu0
      %v6470 = vpop.f32.mrb[0].mxu0
      %v6471 = vadd.f32 0.0, %v6470
      %v6472 = vpop.f32.mrb[0].mxu0
      %6473 = vmatprep.mubr.bf16.mxu0 0
      %6474 = vmatmul.mubr.bf16.gmra.mrb[0].mxu0 %v6366
      %v6475 = vpop.f32.mrb[0].mxu0
      %v6476 = vadd.f32 0.0, %v6475
      %v6477 = vpop.f32.mrb[0].mxu0
      %v6478 = vpop.f32.mrb[0].mxu0
      %v6479 = vadd.f32 0.0, %v6478
      %v6480 = vpop.f32.mrb[0].mxu0
      %6481 = vmatprep.mubr.bf16.mxu0 0
      %6482 = vmatmul.mubr.bf16.gmra.mrb[0].mxu0 %v6369
      %v6483 = vpop.f32.mrb[0].mxu0
      %v6484 = vadd.f32 0.0, %v6483
      %v6485 = vpop.f32.mrb[0].mxu0
      %v6486 = vpop.f32.mrb[0].mxu0
      %v6487 = vadd.f32 0.0, %v6486
      %v6488 = vpop.f32.mrb[0].mxu0
      %6489 = vmatprep.mubr.bf16.mxu0 0
      %6490 = vmatmul.mubr.bf16.gmra.mrb[0].mxu0 %v6372
      %v6491 = vpop.f32.mrb[0].mxu0
      %v6492 = vadd.f32 0.0, %v6491
      %v6493 = vpop.f32.mrb[0].mxu0
      %v6494 = vpop.f32.mrb[0].mxu0
      %v6495 = vadd.f32 0.0, %v6494
      %v6496 = vpop.f32.mrb[0].mxu0
      %6497 = vmatprep.mubr.bf16.mxu0 0
      %6498 = vmatmul.mubr.bf16.gmra.mrb[0].mxu0 %v6375
      %v6499 = vpop.f32.mrb[0].mxu0
      %v6500 = vadd.f32 0.0, %v6499
      %v6501 = vpop.f32.mrb[0].mxu0
      %v6502 = vpop.f32.mrb[0].mxu0
      %v6503 = vadd.f32 0.0, %v6502
      %v6504 = vpop.f32.mrb[0].mxu0
      %6505 = vmatprep.mubr.bf16.mxu0 0
      %6506 = vmatmul.mubr.bf16.gmra.mrb[0].mxu0 %v6378
      %v6507 = vpop.f32.mrb[0].mxu0
      %v6508 = vadd.f32 0.0, %v6507
      %v6509 = vpop.f32.mrb[0].mxu0
      %v6510 = vpop.f32.mrb[0].mxu0
      %v6511 = vadd.f32 0.0, %v6510
      %v6512 = vpop.f32.mrb[0].mxu0
      %6513 = vmatprep.mubr.bf16.mxu0 0
      %6514 = vmatmul.mubr.bf16.gmra.mrb[0].mxu0 %v6381
      %v6515 = vpop.f32.mrb[0].mxu0
      %v6516 = vadd.f32 0.0, %v6515
      %v6517 = vpop.f32.mrb[0].mxu0
      %v6518 = vpop.f32.mrb[0].mxu0
      %v6519 = vadd.f32 0.0, %v6518
      %v6520 = vpop.f32.mrb[0].mxu0
      %6521 = vmatprep.mubr.bf16.mxu0 0
      %6522 = vmatmul.mubr.bf16.gmra.mrb[0].mxu0 %v6384
      %v6523 = vpop.f32.mrb[0].mxu0
      %v6524 = vadd.f32 0.0, %v6523
      %v6525 = vpop.f32.mrb[0].mxu0
      %v6526 = vpop.f32.mrb[0].mxu0
      %v6527 = vadd.f32 0.0, %v6526
      %v6528 = vpop.f32.mrb[0].mxu0
      %6529 = vmatprep.mubr.bf16.mxu0 0
      %6530 = vmatmul.mubr.bf16.gmra.mrb[0].mxu0 %v6387
      %v6531 = vpop.f32.mrb[0].mxu0
      %v6532 = vadd.f32 0.0, %v6531
      %v6533 = vpop.f32.mrb[0].mxu0
      %v6534 = vpop.f32.mrb[0].mxu0
      %v6535 = vadd.f32 0.0, %v6534
      %v6536 = vpop.f32.mrb[0].mxu0
      %6537 = vmatprep.mubr.bf16.mxu0 0
      %6538 = vmatmul.mubr.bf16.gmra.mrb[0].mxu0 %v6390
      %v6539 = vpop.f32.mrb[0].mxu0
      %v6540 = vadd.f32 0.0, %v6539
      %v6541 = vpop.f32.mrb[0].mxu0
      %v6542 = vpop.f32.mrb[0].mxu0
      %v6543 = vadd.f32 0.0, %v6542
      %v6544 = vpop.f32.mrb[0].mxu0
      %6545 = vmatprep.mubr.bf16.mxu0 0
      %6546 = vmatmul.mubr.bf16.gmra.mrb[0].mxu0 %v6393
      %v6547 = vpop.f32.mrb[0].mxu0
      %v6548 = vadd.f32 0.0, %v6547
      %v6549 = vpop.f32.mrb[0].mxu0
      %v6550 = vpop.f32.mrb[0].mxu0
      %v6551 = vadd.f32 0.0, %v6550
      %v6552 = vpop.f32.mrb[0].mxu0
      %6553 = vmatprep.mubr.bf16.mxu0 0
      %6554 = vmatmul.mubr.bf16.gmra.mrb[0].mxu0 %v6396
      %v6555 = vpop.f32.mrb[0].mxu0
      %v6556 = vadd.f32 0.0, %v6555
      %v6557 = vpop.f32.mrb[0].mxu0
      %v6558 = vpop.f32.mrb[0].mxu0
      %v6559 = vadd.f32 0.0, %v6558
      %v6560 = vpop.f32.mrb[0].mxu0
      %6561 = vdwg.mxu0
      %v6562 = vadd.f32 %v6053, %v6436
      %v6563 = vadd.f32 %v6056, %v6439
      %v6564 = vadd.f32 %v6061, %v6444
      %v6565 = vadd.f32 %v6064, %v6447
      %v6566 = vadd.f32 %v6069, %v6452
      %v6567 = vadd.f32 %v6072, %v6455
      %v6568 = vadd.f32 %v6077, %v6460
      %v6569 = vadd.f32 %v6080, %v6463
      %v6570 = vadd.f32 %v6085, %v6468
      %v6571 = vadd.f32 %v6088, %v6471
      %v6572 = vadd.f32 %v6093, %v6476
      %v6573 = vadd.f32 %v6096, %v6479
      %v6574 = vadd.f32 %v6101, %v6484
      %v6575 = vadd.f32 %v6104, %v6487
      %v6576 = vadd.f32 %v6109, %v6492
      %v6577 = vadd.f32 %v6112, %v6495
      %v6578 = vadd.f32 %v6117, %v6500
      %v6579 = vadd.f32 %v6120, %v6503
      %v6580 = vadd.f32 %v6125, %v6508
      %v6581 = vadd.f32 %v6128, %v6511
      %v6582 = vadd.f32 %v6133, %v6516
      %v6583 = vadd.f32 %v6136, %v6519
      %v6584 = vadd.f32 %v6141, %v6524
      %v6585 = vadd.f32 %v6144, %v6527
      %v6586 = vadd.f32 %v6149, %v6532
      %v6587 = vadd.f32 %v6152, %v6535
      %v6588 = vadd.f32 %v6157, %v6540
      %v6589 = vadd.f32 %v6160, %v6543
      %v6590 = vadd.f32 %v6165, %v6548
      %v6591 = vadd.f32 %v6168, %v6551
      %v6592 = vadd.f32 %v6173, %v6556
      %v6593 = vadd.f32 %v6176, %v6559
      %v6594 = vmul.f32 %v6562, %v2448
      %v6595 = vmul.f32 %v6563, %v2453
      %v6596 = vmul.f32 %v6564, %v2458
      %v6597 = vmul.f32 %v6565, %v2463
      %v6598 = vmul.f32 %v6566, %v2468
      %v6599 = vmul.f32 %v6567, %v2473
      %v6600 = vmul.f32 %v6568, %v2478
      %v6601 = vmul.f32 %v6569, %v2483
      %v6602 = vmul.f32 %v6570, %v2488
      %v6603 = vmul.f32 %v6571, %v2493
      %v6604 = vmul.f32 %v6572, %v2498
      %v6605 = vmul.f32 %v6573, %v2503
      %v6606 = vmul.f32 %v6574, %v2508
      %v6607 = vmul.f32 %v6575, %v2513
      %v6608 = vmul.f32 %v6576, %v2518
      %v6609 = vmul.f32 %v6577, %v2523
      %v6610 = vmul.f32 %v6578, %v2528
      %v6611 = vmul.f32 %v6579, %v2533
      %v6612 = vmul.f32 %v6580, %v2538
      %v6613 = vmul.f32 %v6581, %v2543
      %v6614 = vmul.f32 %v6582, %v2548
      %v6615 = vmul.f32 %v6583, %v2553
      %v6616 = vmul.f32 %v6584, %v2558
      %v6617 = vmul.f32 %v6585, %v2563
      %v6618 = vmul.f32 %v6586, %v2568
      %v6619 = vmul.f32 %v6587, %v2573
      %v6620 = vmul.f32 %v6588, %v2578
      %v6621 = vmul.f32 %v6589, %v2583
      %v6622 = vmul.f32 %v6590, %v2588
      %v6623 = vmul.f32 %v6591, %v2593
      %v6624 = vmul.f32 %v6592, %v2598
      %v6625 = vmul.f32 %v6593, %v2603
      %v6626 = vld [vmem:[#allocation3] sm:$0xf0]
      %s6627 = scalar_lea.vmem %s12, 4
      %v6628 = vld [vmem:[%s6627] sm:$0xf]
      %v6629 = vld [vmem:[#allocation3 + $0x8] sm:$0xf0]
      %s6630 = scalar_lea.vmem %s12, 16
      %v6631 = vld [vmem:[%s6630] sm:$0xf]
      %v6649 = vrot.slane %v6629, 4
      %v6650 = vrot.slane %v5594, 4
      %v6651 = vsel %vm1375, %v6649, %v6650
      %v6652 = vrot.slane %v5595, 4
      %v6653 = vsel %vm1375, %v6650, %v6652
      %v6654 = vrot.slane %v5596, 4
      %v6655 = vsel %vm1375, %v6652, %v6654
      %v6656 = vrot.slane %v5597, 4
      %v6657 = vsel %vm1375, %v6654, %v6656
      %v6658 = vrot.slane %v5598, 4
      %v6659 = vsel %vm1375, %v6656, %v6658
      %v6660 = vrot.slane %v5599, 4
      %v6661 = vsel %vm1375, %v6658, %v6660
      %v6662 = vrot.slane %v5600, 4
      %v6663 = vsel %vm1375, %v6660, %v6662
      %v6664 = vrot.slane %v5601, 4
      %v6665 = vsel %vm1375, %v6662, %v6664
      %v6666 = vrot.slane %v5602, 4
      %v6667 = vsel %vm1375, %v6664, %v6666
      %v6668 = vrot.slane %v5603, 4
      %v6669 = vsel %vm1375, %v6666, %v6668
      %v6670 = vrot.slane %v5604, 4
      %v6671 = vsel %vm1375, %v6668, %v6670
      %v6672 = vrot.slane %v5605, 4
      %v6673 = vsel %vm1375, %v6670, %v6672
      %v6674 = vrot.slane %v5606, 4
      %v6675 = vsel %vm1375, %v6672, %v6674
      %v6676 = vrot.slane %v5607, 4
      %v6677 = vsel %vm1375, %v6674, %v6676
      %v6678 = vrot.slane %v5611, 4
      %v6679 = vsel %vm1375, %v6676, %v6678
      %v6680 = vrot.slane %v5612, 4
      %v6681 = vsel %vm1375, %v6678, %v6680
      %v6683 = vsel %vm687, %v6651, 0
      %v6686 = vsel %vm687, %v6653, 0
      %v6689 = vsel %vm687, %v6655, 0
      %v6692 = vsel %vm687, %v6657, 0
      %v6695 = vsel %vm687, %v6659, 0
      %v6698 = vsel %vm687, %v6661, 0
      %v6701 = vsel %vm687, %v6663, 0
      %v6704 = vsel %vm687, %v6665, 0
      %v6707 = vsel %vm687, %v6667, 0
      %v6710 = vsel %vm687, %v6669, 0
      %v6713 = vsel %vm687, %v6671, 0
      %v6716 = vsel %vm687, %v6673, 0
      %v6719 = vsel %vm687, %v6675, 0
      %v6722 = vsel %vm687, %v6677, 0
      %v6725 = vsel %vm687, %v6679, 0
      %v6728 = vsel %vm687, %v6681, 0
      %v6731 = vsel %vm870, %v6631, 0
      %6733 = vmatprep.subr.bf16.mxu0 0
      %6734 = vmatpush1.bf16.msra.mxu0 %v6731
      %6735 = vmatprep.subr.bf16.mxu0 0
      %6736 = vmatpush1.bf16.msra.mxu0 0
      %6737 = vmatprep.subr.bf16.mxu0 0
      %6738 = vmatpush1.bf16.msra.mxu0 0
      %6739 = vmatprep.subr.bf16.mxu0 0
      %6740 = vmatpush1.bf16.msra.mxu0 0
      %6741 = vmatprep.subr.bf16.mxu0 0
      %6742 = vmatpush1.bf16.msra.mxu0 0
      %6743 = vmatprep.subr.bf16.mxu0 0
      %6744 = vmatpush1.bf16.msra.mxu0 0
      %6745 = vmatprep.subr.bf16.mxu0 0
      %6746 = vmatpush1.bf16.msra.mxu0 0
      %6747 = vmatprep.subr.bf16.mxu0 0
      %6748 = vmatpush1.bf16.msra.mxu0 0
      %6749 = vmatprep.subr.bf16.mxu0 0
      %6750 = vmatpush1.bf16.msra.mxu0 0
      %6751 = vmatprep.subr.bf16.mxu0 0
      %6752 = vmatpush1.bf16.msra.mxu0 0
      %6753 = vmatprep.subr.bf16.mxu0 0
      %6754 = vmatpush1.bf16.msra.mxu0 0
      %6755 = vmatprep.subr.bf16.mxu0 0
      %6756 = vmatpush1.bf16.msra.mxu0 0
      %6757 = vmatprep.subr.bf16.mxu0 0
      %6758 = vmatpush1.bf16.msra.mxu0 0
      %6759 = vmatprep.subr.bf16.mxu0 0
      %6760 = vmatpush1.bf16.msra.mxu0 0
      %6761 = vmatprep.subr.bf16.mxu0 0
      %6762 = vmatpush1.bf16.msra.mxu0 0
      %6763 = vmatprep.subr.bf16.mxu0 0
      %6764 = vmatpush1.bf16.msra.mxu0 0
      %6765 = vmatprep.mubr.bf16.mxu0 0
      %6766 = vmatmul.mubr.bf16.gmra.mrb[0].mxu0 %v6683
      %v6767 = vpop.f32.mrb[0].mxu0
      %v6768 = vadd.f32 0.0, %v6767
      %v6769 = vpop.f32.mrb[0].mxu0
      %v6770 = vpop.f32.mrb[0].mxu0
      %v6771 = vadd.f32 0.0, %v6770
      %v6772 = vpop.f32.mrb[0].mxu0
      %6773 = vmatprep.mubr.bf16.mxu0 0
      %6774 = vmatmul.mubr.bf16.gmra.mrb[0].mxu0 %v6686
      %v6775 = vpop.f32.mrb[0].mxu0
      %v6776 = vadd.f32 0.0, %v6775
      %v6777 = vpop.f32.mrb[0].mxu0
      %v6778 = vpop.f32.mrb[0].mxu0
      %v6779 = vadd.f32 0.0, %v6778
      %v6780 = vpop.f32.mrb[0].mxu0
      %6781 = vmatprep.mubr.bf16.mxu0 0
      %6782 = vmatmul.mubr.bf16.gmra.mrb[0].mxu0 %v6689
      %v6783 = vpop.f32.mrb[0].mxu0
      %v6784 = vadd.f32 0.0, %v6783
      %v6785 = vpop.f32.mrb[0].mxu0
      %v6786 = vpop.f32.mrb[0].mxu0
      %v6787 = vadd.f32 0.0, %v6786
      %v6788 = vpop.f32.mrb[0].mxu0
      %6789 = vmatprep.mubr.bf16.mxu0 0
      %6790 = vmatmul.mubr.bf16.gmra.mrb[0].mxu0 %v6692
      %v6791 = vpop.f32.mrb[0].mxu0
      %v6792 = vadd.f32 0.0, %v6791
      %v6793 = vpop.f32.mrb[0].mxu0
      %v6794 = vpop.f32.mrb[0].mxu0
      %v6795 = vadd.f32 0.0, %v6794
      %v6796 = vpop.f32.mrb[0].mxu0
      %6797 = vmatprep.mubr.bf16.mxu0 0
      %6798 = vmatmul.mubr.bf16.gmra.mrb[0].mxu0 %v6695
      %v6799 = vpop.f32.mrb[0].mxu0
      %v6800 = vadd.f32 0.0, %v6799
      %v6801 = vpop.f32.mrb[0].mxu0
      %v6802 = vpop.f32.mrb[0].mxu0
      %v6803 = vadd.f32 0.0, %v6802
      %v6804 = vpop.f32.mrb[0].mxu0
      %6805 = vmatprep.mubr.bf16.mxu0 0
      %6806 = vmatmul.mubr.bf16.gmra.mrb[0].mxu0 %v6698
      %v6807 = vpop.f32.mrb[0].mxu0
      %v6808 = vadd.f32 0.0, %v6807
      %v6809 = vpop.f32.mrb[0].mxu0
      %v6810 = vpop.f32.mrb[0].mxu0
      %v6811 = vadd.f32 0.0, %v6810
      %v6812 = vpop.f32.mrb[0].mxu0
      %6813 = vmatprep.mubr.bf16.mxu0 0
      %6814 = vmatmul.mubr.bf16.gmra.mrb[0].mxu0 %v6701
      %v6815 = vpop.f32.mrb[0].mxu0
      %v6816 = vadd.f32 0.0, %v6815
      %v6817 = vpop.f32.mrb[0].mxu0
      %v6818 = vpop.f32.mrb[0].mxu0
      %v6819 = vadd.f32 0.0, %v6818
      %v6820 = vpop.f32.mrb[0].mxu0
      %6821 = vmatprep.mubr.bf16.mxu0 0
      %6822 = vmatmul.mubr.bf16.gmra.mrb[0].mxu0 %v6704
      %v6823 = vpop.f32.mrb[0].mxu0
      %v6824 = vadd.f32 0.0, %v6823
      %v6825 = vpop.f32.mrb[0].mxu0
      %v6826 = vpop.f32.mrb[0].mxu0
      %v6827 = vadd.f32 0.0, %v6826
      %v6828 = vpop.f32.mrb[0].mxu0
      %6829 = vmatprep.mubr.bf16.mxu0 0
      %6830 = vmatmul.mubr.bf16.gmra.mrb[0].mxu0 %v6707
      %v6831 = vpop.f32.mrb[0].mxu0
      %v6832 = vadd.f32 0.0, %v6831
      %v6833 = vpop.f32.mrb[0].mxu0
      %v6834 = vpop.f32.mrb[0].mxu0
      %v6835 = vadd.f32 0.0, %v6834
      %v6836 = vpop.f32.mrb[0].mxu0
      %6837 = vmatprep.mubr.bf16.mxu0 0
      %6838 = vmatmul.mubr.bf16.gmra.mrb[0].mxu0 %v6710
      %v6839 = vpop.f32.mrb[0].mxu0
      %v6840 = vadd.f32 0.0, %v6839
      %v6841 = vpop.f32.mrb[0].mxu0
      %v6842 = vpop.f32.mrb[0].mxu0
      %v6843 = vadd.f32 0.0, %v6842
      %v6844 = vpop.f32.mrb[0].mxu0
      %6845 = vmatprep.mubr.bf16.mxu0 0
      %6846 = vmatmul.mubr.bf16.gmra.mrb[0].mxu0 %v6713
      %v6847 = vpop.f32.mrb[0].mxu0
      %v6848 = vadd.f32 0.0, %v6847
      %v6849 = vpop.f32.mrb[0].mxu0
      %v6850 = vpop.f32.mrb[0].mxu0
      %v6851 = vadd.f32 0.0, %v6850
      %v6852 = vpop.f32.mrb[0].mxu0
      %6853 = vmatprep.mubr.bf16.mxu0 0
      %6854 = vmatmul.mubr.bf16.gmra.mrb[0].mxu0 %v6716
      %v6855 = vpop.f32.mrb[0].mxu0
      %v6856 = vadd.f32 0.0, %v6855
      %v6857 = vpop.f32.mrb[0].mxu0
      %v6858 = vpop.f32.mrb[0].mxu0
      %v6859 = vadd.f32 0.0, %v6858
      %v6860 = vpop.f32.mrb[0].mxu0
      %6861 = vmatprep.mubr.bf16.mxu0 0
      %6862 = vmatmul.mubr.bf16.gmra.mrb[0].mxu0 %v6719
      %v6863 = vpop.f32.mrb[0].mxu0
      %v6864 = vadd.f32 0.0, %v6863
      %v6865 = vpop.f32.mrb[0].mxu0
      %v6866 = vpop.f32.mrb[0].mxu0
      %v6867 = vadd.f32 0.0, %v6866
      %v6868 = vpop.f32.mrb[0].mxu0
      %6869 = vmatprep.mubr.bf16.mxu0 0
      %6870 = vmatmul.mubr.bf16.gmra.mrb[0].mxu0 %v6722
      %v6871 = vpop.f32.mrb[0].mxu0
      %v6872 = vadd.f32 0.0, %v6871
      %v6873 = vpop.f32.mrb[0].mxu0
      %v6874 = vpop.f32.mrb[0].mxu0
      %v6875 = vadd.f32 0.0, %v6874
      %v6876 = vpop.f32.mrb[0].mxu0
      %6877 = vmatprep.mubr.bf16.mxu0 0
      %6878 = vmatmul.mubr.bf16.gmra.mrb[0].mxu0 %v6725
      %v6879 = vpop.f32.mrb[0].mxu0
      %v6880 = vadd.f32 0.0, %v6879
      %v6881 = vpop.f32.mrb[0].mxu0
      %v6882 = vpop.f32.mrb[0].mxu0
      %v6883 = vadd.f32 0.0, %v6882
      %v6884 = vpop.f32.mrb[0].mxu0
      %6885 = vmatprep.mubr.bf16.mxu0 0
      %6886 = vmatmul.mubr.bf16.gmra.mrb[0].mxu0 %v6728
      %v6887 = vpop.f32.mrb[0].mxu0
      %v6888 = vadd.f32 0.0, %v6887
      %v6889 = vpop.f32.mrb[0].mxu0
      %v6890 = vpop.f32.mrb[0].mxu0
      %v6891 = vadd.f32 0.0, %v6890
      %v6892 = vpop.f32.mrb[0].mxu0
      %6893 = vdwg.mxu0
      %v6897 = vrot.slane %v6626, 4
      %v6898 = vrot.slane %v5593, 4
      %v6899 = vsel %vm1375, %v6897, %v6898
      %v6900 = vsel %vm1375, %v6898, %v6650
      %v6901 = vrot.slane %v5608, 4
      %v6902 = vsel %vm1375, %v6676, %v6901
      %v6904 = vsel %vm687, %v6899, 0
      %v6907 = vsel %vm687, %v6900, 0
      %v6910 = vsel %vm687, %v6902, 0
      %v6913 = vsel %vm870, %v6628, 0
      %6915 = vmatprep.subr.bf16.mxu0 0
      %6916 = vmatpush1.bf16.msra.mxu0 %v6913
      %6917 = vmatprep.subr.bf16.mxu0 0
      %6918 = vmatpush1.bf16.msra.mxu0 0
      %6919 = vmatprep.subr.bf16.mxu0 0
      %6920 = vmatpush1.bf16.msra.mxu0 0
      %6921 = vmatprep.subr.bf16.mxu0 0
      %6922 = vmatpush1.bf16.msra.mxu0 0
      %6923 = vmatprep.subr.bf16.mxu0 0
      %6924 = vmatpush1.bf16.msra.mxu0 0
      %6925 = vmatprep.subr.bf16.mxu0 0
      %6926 = vmatpush1.bf16.msra.mxu0 0
      %6927 = vmatprep.subr.bf16.mxu0 0
      %6928 = vmatpush1.bf16.msra.mxu0 0
      %6929 = vmatprep.subr.bf16.mxu0 0
      %6930 = vmatpush1.bf16.msra.mxu0 0
      %6931 = vmatprep.subr.bf16.mxu0 0
      %6932 = vmatpush1.bf16.msra.mxu0 0
      %6933 = vmatprep.subr.bf16.mxu0 0
      %6934 = vmatpush1.bf16.msra.mxu0 0
      %6935 = vmatprep.subr.bf16.mxu0 0
      %6936 = vmatpush1.bf16.msra.mxu0 0
      %6937 = vmatprep.subr.bf16.mxu0 0
      %6938 = vmatpush1.bf16.msra.mxu0 0
      %6939 = vmatprep.subr.bf16.mxu0 0
      %6940 = vmatpush1.bf16.msra.mxu0 0
      %6941 = vmatprep.subr.bf16.mxu0 0
      %6942 = vmatpush1.bf16.msra.mxu0 0
      %6943 = vmatprep.subr.bf16.mxu0 0
      %6944 = vmatpush1.bf16.msra.mxu0 0
      %6945 = vmatprep.subr.bf16.mxu0 0
      %6946 = vmatpush1.bf16.msra.mxu0 0
      %6947 = vmatprep.mubr.bf16.mxu0 0
      %6948 = vmatmul.mubr.bf16.gmra.mrb[0].mxu0 %v6904
      %v6949 = vpop.f32.mrb[0].mxu0
      %v6950 = vadd.f32 %v6768, %v6949
      %v6951 = vpop.f32.mrb[0].mxu0
      %v6952 = vpop.f32.mrb[0].mxu0
      %v6953 = vadd.f32 %v6771, %v6952
      %v6954 = vpop.f32.mrb[0].mxu0
      %6955 = vmatprep.mubr.bf16.mxu0 0
      %6956 = vmatmul.mubr.bf16.gmra.mrb[0].mxu0 %v6907
      %v6957 = vpop.f32.mrb[0].mxu0
      %v6958 = vadd.f32 %v6776, %v6957
      %v6959 = vpop.f32.mrb[0].mxu0
      %v6960 = vpop.f32.mrb[0].mxu0
      %v6961 = vadd.f32 %v6779, %v6960
      %v6962 = vpop.f32.mrb[0].mxu0
      %6963 = vmatprep.mubr.bf16.mxu0 0
      %6964 = vmatmul.mubr.bf16.gmra.mrb[0].mxu0 %v6686
      %v6965 = vpop.f32.mrb[0].mxu0
      %v6966 = vadd.f32 %v6784, %v6965
      %v6967 = vpop.f32.mrb[0].mxu0
      %v6968 = vpop.f32.mrb[0].mxu0
      %v6969 = vadd.f32 %v6787, %v6968
      %v6970 = vpop.f32.mrb[0].mxu0
      %6971 = vmatprep.mubr.bf16.mxu0 0
      %6972 = vmatmul.mubr.bf16.gmra.mrb[0].mxu0 %v6689
      %v6973 = vpop.f32.mrb[0].mxu0
      %v6974 = vadd.f32 %v6792, %v6973
      %v6975 = vpop.f32.mrb[0].mxu0
      %v6976 = vpop.f32.mrb[0].mxu0
      %v6977 = vadd.f32 %v6795, %v6976
      %v6978 = vpop.f32.mrb[0].mxu0
      %6979 = vmatprep.mubr.bf16.mxu0 0
      %6980 = vmatmul.mubr.bf16.gmra.mrb[0].mxu0 %v6692
      %v6981 = vpop.f32.mrb[0].mxu0
      %v6982 = vadd.f32 %v6800, %v6981
      %v6983 = vpop.f32.mrb[0].mxu0
      %v6984 = vpop.f32.mrb[0].mxu0
      %v6985 = vadd.f32 %v6803, %v6984
      %v6986 = vpop.f32.mrb[0].mxu0
      %6987 = vmatprep.mubr.bf16.mxu0 0
      %6988 = vmatmul.mubr.bf16.gmra.mrb[0].mxu0 %v6695
      %v6989 = vpop.f32.mrb[0].mxu0
      %v6990 = vadd.f32 %v6808, %v6989
      %v6991 = vpop.f32.mrb[0].mxu0
      %v6992 = vpop.f32.mrb[0].mxu0
      %v6993 = vadd.f32 %v6811, %v6992
      %v6994 = vpop.f32.mrb[0].mxu0
      %6995 = vmatprep.mubr.bf16.mxu0 0
      %6996 = vmatmul.mubr.bf16.gmra.mrb[0].mxu0 %v6698
      %v6997 = vpop.f32.mrb[0].mxu0
      %v6998 = vadd.f32 %v6816, %v6997
      %v6999 = vpop.f32.mrb[0].mxu0
      %v7000 = vpop.f32.mrb[0].mxu0
      %v7001 = vadd.f32 %v6819, %v7000
      %v7002 = vpop.f32.mrb[0].mxu0
      %7003 = vmatprep.mubr.bf16.mxu0 0
      %7004 = vmatmul.mubr.bf16.gmra.mrb[0].mxu0 %v6701
      %v7005 = vpop.f32.mrb[0].mxu0
      %v7006 = vadd.f32 %v6824, %v7005
      %v7007 = vpop.f32.mrb[0].mxu0
      %v7008 = vpop.f32.mrb[0].mxu0
      %v7009 = vadd.f32 %v6827, %v7008
      %v7010 = vpop.f32.mrb[0].mxu0
      %7011 = vmatprep.mubr.bf16.mxu0 0
      %7012 = vmatmul.mubr.bf16.gmra.mrb[0].mxu0 %v6704
      %v7013 = vpop.f32.mrb[0].mxu0
      %v7014 = vadd.f32 %v6832, %v7013
      %v7015 = vpop.f32.mrb[0].mxu0
      %v7016 = vpop.f32.mrb[0].mxu0
      %v7017 = vadd.f32 %v6835, %v7016
      %v7018 = vpop.f32.mrb[0].mxu0
      %7019 = vmatprep.mubr.bf16.mxu0 0
      %7020 = vmatmul.mubr.bf16.gmra.mrb[0].mxu0 %v6707
      %v7021 = vpop.f32.mrb[0].mxu0
      %v7022 = vadd.f32 %v6840, %v7021
      %v7023 = vpop.f32.mrb[0].mxu0
      %v7024 = vpop.f32.mrb[0].mxu0
      %v7025 = vadd.f32 %v6843, %v7024
      %v7026 = vpop.f32.mrb[0].mxu0
      %7027 = vmatprep.mubr.bf16.mxu0 0
      %7028 = vmatmul.mubr.bf16.gmra.mrb[0].mxu0 %v6710
      %v7029 = vpop.f32.mrb[0].mxu0
      %v7030 = vadd.f32 %v6848, %v7029
      %v7031 = vpop.f32.mrb[0].mxu0
      %v7032 = vpop.f32.mrb[0].mxu0
      %v7033 = vadd.f32 %v6851, %v7032
      %v7034 = vpop.f32.mrb[0].mxu0
      %7035 = vmatprep.mubr.bf16.mxu0 0
      %7036 = vmatmul.mubr.bf16.gmra.mrb[0].mxu0 %v6713
      %v7037 = vpop.f32.mrb[0].mxu0
      %v7038 = vadd.f32 %v6856, %v7037
      %v7039 = vpop.f32.mrb[0].mxu0
      %v7040 = vpop.f32.mrb[0].mxu0
      %v7041 = vadd.f32 %v6859, %v7040
      %v7042 = vpop.f32.mrb[0].mxu0
      %7043 = vmatprep.mubr.bf16.mxu0 0
      %7044 = vmatmul.mubr.bf16.gmra.mrb[0].mxu0 %v6716
      %v7045 = vpop.f32.mrb[0].mxu0
      %v7046 = vadd.f32 %v6864, %v7045
      %v7047 = vpop.f32.mrb[0].mxu0
      %v7048 = vpop.f32.mrb[0].mxu0
      %v7049 = vadd.f32 %v6867, %v7048
      %v7050 = vpop.f32.mrb[0].mxu0
      %7051 = vmatprep.mubr.bf16.mxu0 0
      %7052 = vmatmul.mubr.bf16.gmra.mrb[0].mxu0 %v6719
      %v7053 = vpop.f32.mrb[0].mxu0
      %v7054 = vadd.f32 %v6872, %v7053
      %v7055 = vpop.f32.mrb[0].mxu0
      %v7056 = vpop.f32.mrb[0].mxu0
      %v7057 = vadd.f32 %v6875, %v7056
      %v7058 = vpop.f32.mrb[0].mxu0
      %7059 = vmatprep.mubr.bf16.mxu0 0
      %7060 = vmatmul.mubr.bf16.gmra.mrb[0].mxu0 %v6722
      %v7061 = vpop.f32.mrb[0].mxu0
      %v7062 = vadd.f32 %v6880, %v7061
      %v7063 = vpop.f32.mrb[0].mxu0
      %v7064 = vpop.f32.mrb[0].mxu0
      %v7065 = vadd.f32 %v6883, %v7064
      %v7066 = vpop.f32.mrb[0].mxu0
      %7067 = vmatprep.mubr.bf16.mxu0 0
      %7068 = vmatmul.mubr.bf16.gmra.mrb[0].mxu0 %v6910
      %v7069 = vpop.f32.mrb[0].mxu0
      %v7070 = vadd.f32 %v6888, %v7069
      %v7071 = vpop.f32.mrb[0].mxu0
      %v7072 = vpop.f32.mrb[0].mxu0
      %v7073 = vadd.f32 %v6891, %v7072
      %v7074 = vpop.f32.mrb[0].mxu0
      %7075 = vdwg.mxu0
      %v7076 = vld [vmem:[#allocation3 + $0x10] sm:$0xf0]
      %s7077 = scalar_lea.vmem %s12, 28
      %v7078 = vld [vmem:[%s7077] sm:$0xf]
      %v7096 = vrot.slane %v7076, 4
      %v7097 = vrot.slane %v6180, 4
      %v7098 = vsel %vm1375, %v7096, %v7097
      %v7099 = vrot.slane %v6181, 4
      %v7100 = vsel %vm1375, %v7097, %v7099
      %v7101 = vrot.slane %v6182, 4
      %v7102 = vsel %vm1375, %v7099, %v7101
      %v7103 = vrot.slane %v6183, 4
      %v7104 = vsel %vm1375, %v7101, %v7103
      %v7105 = vrot.slane %v6184, 4
      %v7106 = vsel %vm1375, %v7103, %v7105
      %v7107 = vrot.slane %v6185, 4
      %v7108 = vsel %vm1375, %v7105, %v7107
      %v7109 = vrot.slane %v6186, 4
      %v7110 = vsel %vm1375, %v7107, %v7109
      %v7111 = vrot.slane %v6187, 4
      %v7112 = vsel %vm1375, %v7109, %v7111
      %v7113 = vrot.slane %v6188, 4
      %v7114 = vsel %vm1375, %v7111, %v7113
      %v7115 = vrot.slane %v6189, 4
      %v7116 = vsel %vm1375, %v7113, %v7115
      %v7117 = vrot.slane %v6190, 4
      %v7118 = vsel %vm1375, %v7115, %v7117
      %v7119 = vrot.slane %v6191, 4
      %v7120 = vsel %vm1375, %v7117, %v7119
      %v7121 = vrot.slane %v6192, 4
      %v7122 = vsel %vm1375, %v7119, %v7121
      %v7123 = vrot.slane %v6193, 4
      %v7124 = vsel %vm1375, %v7121, %v7123
      %v7125 = vrot.slane %v6194, 4
      %v7126 = vsel %vm1375, %v7123, %v7125
      %v7127 = vrot.slane %v6195, 4
      %v7128 = vsel %vm1375, %v7125, %v7127
      %v7130 = vsel %vm687, %v7098, 0
      %v7133 = vsel %vm687, %v7100, 0
      %v7136 = vsel %vm687, %v7102, 0
      %v7139 = vsel %vm687, %v7104, 0
      %v7142 = vsel %vm687, %v7106, 0
      %v7145 = vsel %vm687, %v7108, 0
      %v7148 = vsel %vm687, %v7110, 0
      %v7151 = vsel %vm687, %v7112, 0
      %v7154 = vsel %vm687, %v7114, 0
      %v7157 = vsel %vm687, %v7116, 0
      %v7160 = vsel %vm687, %v7118, 0
      %v7163 = vsel %vm687, %v7120, 0
      %v7166 = vsel %vm687, %v7122, 0
      %v7169 = vsel %vm687, %v7124, 0
      %v7172 = vsel %vm687, %v7126, 0
      %v7175 = vsel %vm687, %v7128, 0
      %v7178 = vsel %vm870, %v7078, 0
      %7180 = vmatprep.subr.bf16.mxu0 0
      %7181 = vmatpush1.bf16.msra.mxu0 %v7178
      %7182 = vmatprep.subr.bf16.mxu0 0
      %7183 = vmatpush1.bf16.msra.mxu0 0
      %7184 = vmatprep.subr.bf16.mxu0 0
      %7185 = vmatpush1.bf16.msra.mxu0 0
      %7186 = vmatprep.subr.bf16.mxu0 0
      %7187 = vmatpush1.bf16.msra.mxu0 0
      %7188 = vmatprep.subr.bf16.mxu0 0
      %7189 = vmatpush1.bf16.msra.mxu0 0
      %7190 = vmatprep.subr.bf16.mxu0 0
      %7191 = vmatpush1.bf16.msra.mxu0 0
      %7192 = vmatprep.subr.bf16.mxu0 0
      %7193 = vmatpush1.bf16.msra.mxu0 0
      %7194 = vmatprep.subr.bf16.mxu0 0
      %7195 = vmatpush1.bf16.msra.mxu0 0
      %7196 = vmatprep.subr.bf16.mxu0 0
      %7197 = vmatpush1.bf16.msra.mxu0 0
      %7198 = vmatprep.subr.bf16.mxu0 0
      %7199 = vmatpush1.bf16.msra.mxu0 0
      %7200 = vmatprep.subr.bf16.mxu0 0
      %7201 = vmatpush1.bf16.msra.mxu0 0
      %7202 = vmatprep.subr.bf16.mxu0 0
      %7203 = vmatpush1.bf16.msra.mxu0 0
      %7204 = vmatprep.subr.bf16.mxu0 0
      %7205 = vmatpush1.bf16.msra.mxu0 0
      %7206 = vmatprep.subr.bf16.mxu0 0
      %7207 = vmatpush1.bf16.msra.mxu0 0
      %7208 = vmatprep.subr.bf16.mxu0 0
      %7209 = vmatpush1.bf16.msra.mxu0 0
      %7210 = vmatprep.subr.bf16.mxu0 0
      %7211 = vmatpush1.bf16.msra.mxu0 0
      %7212 = vmatprep.mubr.bf16.mxu0 0
      %7213 = vmatmul.mubr.bf16.gmra.mrb[0].mxu0 %v7130
      %v7214 = vpop.f32.mrb[0].mxu0
      %v7215 = vadd.f32 0.0, %v7214
      %v7216 = vpop.f32.mrb[0].mxu0
      %v7217 = vpop.f32.mrb[0].mxu0
      %v7218 = vadd.f32 0.0, %v7217
      %v7219 = vpop.f32.mrb[0].mxu0
      %7220 = vmatprep.mubr.bf16.mxu0 0
      %7221 = vmatmul.mubr.bf16.gmra.mrb[0].mxu0 %v7133
      %v7222 = vpop.f32.mrb[0].mxu0
      %v7223 = vadd.f32 0.0, %v7222
      %v7224 = vpop.f32.mrb[0].mxu0
      %v7225 = vpop.f32.mrb[0].mxu0
      %v7226 = vadd.f32 0.0, %v7225
      %v7227 = vpop.f32.mrb[0].mxu0
      %7228 = vmatprep.mubr.bf16.mxu0 0
      %7229 = vmatmul.mubr.bf16.gmra.mrb[0].mxu0 %v7136
      %v7230 = vpop.f32.mrb[0].mxu0
      %v7231 = vadd.f32 0.0, %v7230
      %v7232 = vpop.f32.mrb[0].mxu0
      %v7233 = vpop.f32.mrb[0].mxu0
      %v7234 = vadd.f32 0.0, %v7233
      %v7235 = vpop.f32.mrb[0].mxu0
      %7236 = vmatprep.mubr.bf16.mxu0 0
      %7237 = vmatmul.mubr.bf16.gmra.mrb[0].mxu0 %v7139
      %v7238 = vpop.f32.mrb[0].mxu0
      %v7239 = vadd.f32 0.0, %v7238
      %v7240 = vpop.f32.mrb[0].mxu0
      %v7241 = vpop.f32.mrb[0].mxu0
      %v7242 = vadd.f32 0.0, %v7241
      %v7243 = vpop.f32.mrb[0].mxu0
      %7244 = vmatprep.mubr.bf16.mxu0 0
      %7245 = vmatmul.mubr.bf16.gmra.mrb[0].mxu0 %v7142
      %v7246 = vpop.f32.mrb[0].mxu0
      %v7247 = vadd.f32 0.0, %v7246
      %v7248 = vpop.f32.mrb[0].mxu0
      %v7249 = vpop.f32.mrb[0].mxu0
      %v7250 = vadd.f32 0.0, %v7249
      %v7251 = vpop.f32.mrb[0].mxu0
      %7252 = vmatprep.mubr.bf16.mxu0 0
      %7253 = vmatmul.mubr.bf16.gmra.mrb[0].mxu0 %v7145
      %v7254 = vpop.f32.mrb[0].mxu0
      %v7255 = vadd.f32 0.0, %v7254
      %v7256 = vpop.f32.mrb[0].mxu0
      %v7257 = vpop.f32.mrb[0].mxu0
      %v7258 = vadd.f32 0.0, %v7257
      %v7259 = vpop.f32.mrb[0].mxu0
      %7260 = vmatprep.mubr.bf16.mxu0 0
      %7261 = vmatmul.mubr.bf16.gmra.mrb[0].mxu0 %v7148
      %v7262 = vpop.f32.mrb[0].mxu0
      %v7263 = vadd.f32 0.0, %v7262
      %v7264 = vpop.f32.mrb[0].mxu0
      %v7265 = vpop.f32.mrb[0].mxu0
      %v7266 = vadd.f32 0.0, %v7265
      %v7267 = vpop.f32.mrb[0].mxu0
      %7268 = vmatprep.mubr.bf16.mxu0 0
      %7269 = vmatmul.mubr.bf16.gmra.mrb[0].mxu0 %v7151
      %v7270 = vpop.f32.mrb[0].mxu0
      %v7271 = vadd.f32 0.0, %v7270
      %v7272 = vpop.f32.mrb[0].mxu0
      %v7273 = vpop.f32.mrb[0].mxu0
      %v7274 = vadd.f32 0.0, %v7273
      %v7275 = vpop.f32.mrb[0].mxu0
      %7276 = vmatprep.mubr.bf16.mxu0 0
      %7277 = vmatmul.mubr.bf16.gmra.mrb[0].mxu0 %v7154
      %v7278 = vpop.f32.mrb[0].mxu0
      %v7279 = vadd.f32 0.0, %v7278
      %v7280 = vpop.f32.mrb[0].mxu0
      %v7281 = vpop.f32.mrb[0].mxu0
      %v7282 = vadd.f32 0.0, %v7281
      %v7283 = vpop.f32.mrb[0].mxu0
      %7284 = vmatprep.mubr.bf16.mxu0 0
      %7285 = vmatmul.mubr.bf16.gmra.mrb[0].mxu0 %v7157
      %v7286 = vpop.f32.mrb[0].mxu0
      %v7287 = vadd.f32 0.0, %v7286
      %v7288 = vpop.f32.mrb[0].mxu0
      %v7289 = vpop.f32.mrb[0].mxu0
      %v7290 = vadd.f32 0.0, %v7289
      %v7291 = vpop.f32.mrb[0].mxu0
      %7292 = vmatprep.mubr.bf16.mxu0 0
      %7293 = vmatmul.mubr.bf16.gmra.mrb[0].mxu0 %v7160
      %v7294 = vpop.f32.mrb[0].mxu0
      %v7295 = vadd.f32 0.0, %v7294
      %v7296 = vpop.f32.mrb[0].mxu0
      %v7297 = vpop.f32.mrb[0].mxu0
      %v7298 = vadd.f32 0.0, %v7297
      %v7299 = vpop.f32.mrb[0].mxu0
      %7300 = vmatprep.mubr.bf16.mxu0 0
      %7301 = vmatmul.mubr.bf16.gmra.mrb[0].mxu0 %v7163
      %v7302 = vpop.f32.mrb[0].mxu0
      %v7303 = vadd.f32 0.0, %v7302
      %v7304 = vpop.f32.mrb[0].mxu0
      %v7305 = vpop.f32.mrb[0].mxu0
      %v7306 = vadd.f32 0.0, %v7305
      %v7307 = vpop.f32.mrb[0].mxu0
      %7308 = vmatprep.mubr.bf16.mxu0 0
      %7309 = vmatmul.mubr.bf16.gmra.mrb[0].mxu0 %v7166
      %v7310 = vpop.f32.mrb[0].mxu0
      %v7311 = vadd.f32 0.0, %v7310
      %v7312 = vpop.f32.mrb[0].mxu0
      %v7313 = vpop.f32.mrb[0].mxu0
      %v7314 = vadd.f32 0.0, %v7313
      %v7315 = vpop.f32.mrb[0].mxu0
      %7316 = vmatprep.mubr.bf16.mxu0 0
      %7317 = vmatmul.mubr.bf16.gmra.mrb[0].mxu0 %v7169
      %v7318 = vpop.f32.mrb[0].mxu0
      %v7319 = vadd.f32 0.0, %v7318
      %v7320 = vpop.f32.mrb[0].mxu0
      %v7321 = vpop.f32.mrb[0].mxu0
      %v7322 = vadd.f32 0.0, %v7321
      %v7323 = vpop.f32.mrb[0].mxu0
      %7324 = vmatprep.mubr.bf16.mxu0 0
      %7325 = vmatmul.mubr.bf16.gmra.mrb[0].mxu0 %v7172
      %v7326 = vpop.f32.mrb[0].mxu0
      %v7327 = vadd.f32 0.0, %v7326
      %v7328 = vpop.f32.mrb[0].mxu0
      %v7329 = vpop.f32.mrb[0].mxu0
      %v7330 = vadd.f32 0.0, %v7329
      %v7331 = vpop.f32.mrb[0].mxu0
      %7332 = vmatprep.mubr.bf16.mxu0 0
      %7333 = vmatmul.mubr.bf16.gmra.mrb[0].mxu0 %v7175
      %v7334 = vpop.f32.mrb[0].mxu0
      %v7335 = vadd.f32 0.0, %v7334
      %v7336 = vpop.f32.mrb[0].mxu0
      %v7337 = vpop.f32.mrb[0].mxu0
      %v7338 = vadd.f32 0.0, %v7337
      %v7339 = vpop.f32.mrb[0].mxu0
      %7340 = vdwg.mxu0
      %v7341 = vadd.f32 %v6950, %v7215
      %v7342 = vadd.f32 %v6953, %v7218
      %v7343 = vadd.f32 %v6958, %v7223
      %v7344 = vadd.f32 %v6961, %v7226
      %v7345 = vadd.f32 %v6966, %v7231
      %v7346 = vadd.f32 %v6969, %v7234
      %v7347 = vadd.f32 %v6974, %v7239
      %v7348 = vadd.f32 %v6977, %v7242
      %v7349 = vadd.f32 %v6982, %v7247
      %v7350 = vadd.f32 %v6985, %v7250
      %v7351 = vadd.f32 %v6990, %v7255
      %v7352 = vadd.f32 %v6993, %v7258
      %v7353 = vadd.f32 %v6998, %v7263
      %v7354 = vadd.f32 %v7001, %v7266
      %v7355 = vadd.f32 %v7006, %v7271
      %v7356 = vadd.f32 %v7009, %v7274
      %v7357 = vadd.f32 %v7014, %v7279
      %v7358 = vadd.f32 %v7017, %v7282
      %v7359 = vadd.f32 %v7022, %v7287
      %v7360 = vadd.f32 %v7025, %v7290
      %v7361 = vadd.f32 %v7030, %v7295
      %v7362 = vadd.f32 %v7033, %v7298
      %v7363 = vadd.f32 %v7038, %v7303
      %v7364 = vadd.f32 %v7041, %v7306
      %v7365 = vadd.f32 %v7046, %v7311
      %v7366 = vadd.f32 %v7049, %v7314
      %v7367 = vadd.f32 %v7054, %v7319
      %v7368 = vadd.f32 %v7057, %v7322
      %v7369 = vadd.f32 %v7062, %v7327
      %v7370 = vadd.f32 %v7065, %v7330
      %v7371 = vadd.f32 %v7070, %v7335
      %v7372 = vadd.f32 %v7073, %v7338
      %v7373 = vadd.f32 %v6594, %v7341
      %v7374 = vadd.f32 %v6595, %v7342
      %v7375 = vadd.f32 %v6596, %v7343
      %v7376 = vadd.f32 %v6597, %v7344
      %v7377 = vadd.f32 %v6598, %v7345
      %v7378 = vadd.f32 %v6599, %v7346
      %v7379 = vadd.f32 %v6600, %v7347
      %v7380 = vadd.f32 %v6601, %v7348
      %v7381 = vadd.f32 %v6602, %v7349
      %v7382 = vadd.f32 %v6603, %v7350
      %v7383 = vadd.f32 %v6604, %v7351
      %v7384 = vadd.f32 %v6605, %v7352
      %v7385 = vadd.f32 %v6606, %v7353
      %v7386 = vadd.f32 %v6607, %v7354
      %v7387 = vadd.f32 %v6608, %v7355
      %v7388 = vadd.f32 %v6609, %v7356
      %v7389 = vadd.f32 %v6610, %v7357
      %v7390 = vadd.f32 %v6611, %v7358
      %v7391 = vadd.f32 %v6612, %v7359
      %v7392 = vadd.f32 %v6613, %v7360
      %v7393 = vadd.f32 %v6614, %v7361
      %v7394 = vadd.f32 %v6615, %v7362
      %v7395 = vadd.f32 %v6616, %v7363
      %v7396 = vadd.f32 %v6617, %v7364
      %v7397 = vadd.f32 %v6618, %v7365
      %v7398 = vadd.f32 %v6619, %v7366
      %v7399 = vadd.f32 %v6620, %v7367
      %v7400 = vadd.f32 %v6621, %v7368
      %v7401 = vadd.f32 %v6622, %v7369
      %v7402 = vadd.f32 %v6623, %v7370
      %v7403 = vadd.f32 %v6624, %v7371
      %v7404 = vadd.f32 %v6625, %v7372
      %v7405 = vld [vmem:[#allocation3 + $0x80] sm:$0x1f]
      %s7406 = scalar_lea.vmem %s12, 8
      %v7407 = vld [vmem:[%s7406] sm:$0xf]
      %v7408 = vld [vmem:[#allocation3 + $0x88] sm:$0x1f]
      %s7409 = scalar_lea.vmem %s12, 20
      %v7410 = vld [vmem:[%s7409] sm:$0xf]
      %v7412 = vshrl.u32 %v6629, 16
      %v7414 = vrot.slane %v7412, 4
      %v7415 = vshll.u32 %v6629, 16
      %v7417 = vrot.slane %v7415, 5
      %v7418 = vor.u32 %v7414, %v7417
      %v7419 = vrot.slane %v5624, 4
      %v7420 = vrot.slane %v5627, 5
      %v7421 = vor.u32 %v7419, %v7420
      %v7422 = vsel %vm3422, %v7418, %v7421
      %v7423 = vrot.slane %v5633, 4
      %v7424 = vrot.slane %v5636, 5
      %v7425 = vor.u32 %v7423, %v7424
      %v7426 = vsel %vm3422, %v7421, %v7425
      %v7427 = vrot.slane %v5642, 4
      %v7428 = vrot.slane %v5645, 5
      %v7429 = vor.u32 %v7427, %v7428
      %v7430 = vsel %vm3422, %v7425, %v7429
      %v7431 = vrot.slane %v5651, 4
      %v7432 = vrot.slane %v5654, 5
      %v7433 = vor.u32 %v7431, %v7432
      %v7434 = vsel %vm3422, %v7429, %v7433
      %v7435 = vrot.slane %v5660, 4
      %v7436 = vrot.slane %v5663, 5
      %v7437 = vor.u32 %v7435, %v7436
      %v7438 = vsel %vm3422, %v7433, %v7437
      %v7439 = vrot.slane %v5669, 4
      %v7440 = vrot.slane %v5672, 5
      %v7441 = vor.u32 %v7439, %v7440
      %v7442 = vsel %vm3422, %v7437, %v7441
      %v7443 = vrot.slane %v5678, 4
      %v7444 = vrot.slane %v5681, 5
      %v7445 = vor.u32 %v7443, %v7444
      %v7446 = vsel %vm3422, %v7441, %v7445
      %v7447 = vrot.slane %v5687, 4
      %v7448 = vrot.slane %v5690, 5
      %v7449 = vor.u32 %v7447, %v7448
      %v7450 = vsel %vm3422, %v7445, %v7449
      %v7451 = vrot.slane %v5696, 4
      %v7452 = vrot.slane %v5699, 5
      %v7453 = vor.u32 %v7451, %v7452
      %v7454 = vsel %vm3422, %v7449, %v7453
      %v7455 = vrot.slane %v5705, 4
      %v7456 = vrot.slane %v5708, 5
      %v7457 = vor.u32 %v7455, %v7456
      %v7458 = vsel %vm3422, %v7453, %v7457
      %v7459 = vrot.slane %v5714, 4
      %v7460 = vrot.slane %v5717, 5
      %v7461 = vor.u32 %v7459, %v7460
      %v7462 = vsel %vm3422, %v7457, %v7461
      %v7463 = vrot.slane %v5723, 4
      %v7464 = vrot.slane %v5726, 5
      %v7465 = vor.u32 %v7463, %v7464
      %v7466 = vsel %vm3422, %v7461, %v7465
      %v7467 = vrot.slane %v5732, 4
      %v7468 = vrot.slane %v5735, 5
      %v7469 = vor.u32 %v7467, %v7468
      %v7470 = vsel %vm3422, %v7465, %v7469
      %v7471 = vrot.slane %v5741, 4
      %v7472 = vrot.slane %v5744, 5
      %v7473 = vor.u32 %v7471, %v7472
      %v7474 = vsel %vm3422, %v7469, %v7473
      %v7475 = vrot.slane %v5750, 4
      %v7476 = vrot.slane %v5753, 5
      %v7477 = vor.u32 %v7475, %v7476
      %v7478 = vsel %vm3422, %v7473, %v7477
      %v7480 = vshrl.u32 %v7408, 16
      %v7482 = vrot.slane %v7480, 4
      %v7483 = vshll.u32 %v7408, 16
      %v7485 = vrot.slane %v7483, 5
      %v7486 = vor.u32 %v7482, %v7485
      %v7487 = vsel %vm3422, %v7477, %v7486
      %v7489 = vsel %vm687, %v7422, 0
      %v7492 = vsel %vm687, %v7426, 0
      %v7495 = vsel %vm687, %v7430, 0
      %v7498 = vsel %vm687, %v7434, 0
      %v7501 = vsel %vm687, %v7438, 0
      %v7504 = vsel %vm687, %v7442, 0
      %v7507 = vsel %vm687, %v7446, 0
      %v7510 = vsel %vm687, %v7450, 0
      %v7513 = vsel %vm687, %v7454, 0
      %v7516 = vsel %vm687, %v7458, 0
      %v7519 = vsel %vm687, %v7462, 0
      %v7522 = vsel %vm687, %v7466, 0
      %v7525 = vsel %vm687, %v7470, 0
      %v7528 = vsel %vm687, %v7474, 0
      %v7531 = vsel %vm687, %v7478, 0
      %v7534 = vsel %vm687, %v7487, 0
      %v7537 = vsel %vm870, %v7410, 0
      %7539 = vmatprep.subr.bf16.mxu0 0
      %7540 = vmatpush1.bf16.msra.mxu0 %v7537
      %7541 = vmatprep.subr.bf16.mxu0 0
      %7542 = vmatpush1.bf16.msra.mxu0 0
      %7543 = vmatprep.subr.bf16.mxu0 0
      %7544 = vmatpush1.bf16.msra.mxu0 0
      %7545 = vmatprep.subr.bf16.mxu0 0
      %7546 = vmatpush1.bf16.msra.mxu0 0
      %7547 = vmatprep.subr.bf16.mxu0 0
      %7548 = vmatpush1.bf16.msra.mxu0 0
      %7549 = vmatprep.subr.bf16.mxu0 0
      %7550 = vmatpush1.bf16.msra.mxu0 0
      %7551 = vmatprep.subr.bf16.mxu0 0
      %7552 = vmatpush1.bf16.msra.mxu0 0
      %7553 = vmatprep.subr.bf16.mxu0 0
      %7554 = vmatpush1.bf16.msra.mxu0 0
      %7555 = vmatprep.subr.bf16.mxu0 0
      %7556 = vmatpush1.bf16.msra.mxu0 0
      %7557 = vmatprep.subr.bf16.mxu0 0
      %7558 = vmatpush1.bf16.msra.mxu0 0
      %7559 = vmatprep.subr.bf16.mxu0 0
      %7560 = vmatpush1.bf16.msra.mxu0 0
      %7561 = vmatprep.subr.bf16.mxu0 0
      %7562 = vmatpush1.bf16.msra.mxu0 0
      %7563 = vmatprep.subr.bf16.mxu0 0
      %7564 = vmatpush1.bf16.msra.mxu0 0
      %7565 = vmatprep.subr.bf16.mxu0 0
      %7566 = vmatpush1.bf16.msra.mxu0 0
      %7567 = vmatprep.subr.bf16.mxu0 0
      %7568 = vmatpush1.bf16.msra.mxu0 0
      %7569 = vmatprep.subr.bf16.mxu0 0
      %7570 = vmatpush1.bf16.msra.mxu0 0
      %7571 = vmatprep.mubr.bf16.mxu0 0
      %7572 = vmatmul.mubr.bf16.gmra.mrb[0].mxu0 %v7489
      %v7573 = vpop.f32.mrb[0].mxu0
      %v7574 = vadd.f32 0.0, %v7573
      %v7575 = vpop.f32.mrb[0].mxu0
      %v7576 = vpop.f32.mrb[0].mxu0
      %v7577 = vadd.f32 0.0, %v7576
      %v7578 = vpop.f32.mrb[0].mxu0
      %7579 = vmatprep.mubr.bf16.mxu0 0
      %7580 = vmatmul.mubr.bf16.gmra.mrb[0].mxu0 %v7492
      %v7581 = vpop.f32.mrb[0].mxu0
      %v7582 = vadd.f32 0.0, %v7581
      %v7583 = vpop.f32.mrb[0].mxu0
      %v7584 = vpop.f32.mrb[0].mxu0
      %v7585 = vadd.f32 0.0, %v7584
      %v7586 = vpop.f32.mrb[0].mxu0
      %7587 = vmatprep.mubr.bf16.mxu0 0
      %7588 = vmatmul.mubr.bf16.gmra.mrb[0].mxu0 %v7495
      %v7589 = vpop.f32.mrb[0].mxu0
      %v7590 = vadd.f32 0.0, %v7589
      %v7591 = vpop.f32.mrb[0].mxu0
      %v7592 = vpop.f32.mrb[0].mxu0
      %v7593 = vadd.f32 0.0, %v7592
      %v7594 = vpop.f32.mrb[0].mxu0
      %7595 = vmatprep.mubr.bf16.mxu0 0
      %7596 = vmatmul.mubr.bf16.gmra.mrb[0].mxu0 %v7498
      %v7597 = vpop.f32.mrb[0].mxu0
      %v7598 = vadd.f32 0.0, %v7597
      %v7599 = vpop.f32.mrb[0].mxu0
      %v7600 = vpop.f32.mrb[0].mxu0
      %v7601 = vadd.f32 0.0, %v7600
      %v7602 = vpop.f32.mrb[0].mxu0
      %7603 = vmatprep.mubr.bf16.mxu0 0
      %7604 = vmatmul.mubr.bf16.gmra.mrb[0].mxu0 %v7501
      %v7605 = vpop.f32.mrb[0].mxu0
      %v7606 = vadd.f32 0.0, %v7605
      %v7607 = vpop.f32.mrb[0].mxu0
      %v7608 = vpop.f32.mrb[0].mxu0
      %v7609 = vadd.f32 0.0, %v7608
      %v7610 = vpop.f32.mrb[0].mxu0
      %7611 = vmatprep.mubr.bf16.mxu0 0
      %7612 = vmatmul.mubr.bf16.gmra.mrb[0].mxu0 %v7504
      %v7613 = vpop.f32.mrb[0].mxu0
      %v7614 = vadd.f32 0.0, %v7613
      %v7615 = vpop.f32.mrb[0].mxu0
      %v7616 = vpop.f32.mrb[0].mxu0
      %v7617 = vadd.f32 0.0, %v7616
      %v7618 = vpop.f32.mrb[0].mxu0
      %7619 = vmatprep.mubr.bf16.mxu0 0
      %7620 = vmatmul.mubr.bf16.gmra.mrb[0].mxu0 %v7507
      %v7621 = vpop.f32.mrb[0].mxu0
      %v7622 = vadd.f32 0.0, %v7621
      %v7623 = vpop.f32.mrb[0].mxu0
      %v7624 = vpop.f32.mrb[0].mxu0
      %v7625 = vadd.f32 0.0, %v7624
      %v7626 = vpop.f32.mrb[0].mxu0
      %7627 = vmatprep.mubr.bf16.mxu0 0
      %7628 = vmatmul.mubr.bf16.gmra.mrb[0].mxu0 %v7510
      %v7629 = vpop.f32.mrb[0].mxu0
      %v7630 = vadd.f32 0.0, %v7629
      %v7631 = vpop.f32.mrb[0].mxu0
      %v7632 = vpop.f32.mrb[0].mxu0
      %v7633 = vadd.f32 0.0, %v7632
      %v7634 = vpop.f32.mrb[0].mxu0
      %7635 = vmatprep.mubr.bf16.mxu0 0
      %7636 = vmatmul.mubr.bf16.gmra.mrb[0].mxu0 %v7513
      %v7637 = vpop.f32.mrb[0].mxu0
      %v7638 = vadd.f32 0.0, %v7637
      %v7639 = vpop.f32.mrb[0].mxu0
      %v7640 = vpop.f32.mrb[0].mxu0
      %v7641 = vadd.f32 0.0, %v7640
      %v7642 = vpop.f32.mrb[0].mxu0
      %7643 = vmatprep.mubr.bf16.mxu0 0
      %7644 = vmatmul.mubr.bf16.gmra.mrb[0].mxu0 %v7516
      %v7645 = vpop.f32.mrb[0].mxu0
      %v7646 = vadd.f32 0.0, %v7645
      %v7647 = vpop.f32.mrb[0].mxu0
      %v7648 = vpop.f32.mrb[0].mxu0
      %v7649 = vadd.f32 0.0, %v7648
      %v7650 = vpop.f32.mrb[0].mxu0
      %7651 = vmatprep.mubr.bf16.mxu0 0
      %7652 = vmatmul.mubr.bf16.gmra.mrb[0].mxu0 %v7519
      %v7653 = vpop.f32.mrb[0].mxu0
      %v7654 = vadd.f32 0.0, %v7653
      %v7655 = vpop.f32.mrb[0].mxu0
      %v7656 = vpop.f32.mrb[0].mxu0
      %v7657 = vadd.f32 0.0, %v7656
      %v7658 = vpop.f32.mrb[0].mxu0
      %7659 = vmatprep.mubr.bf16.mxu0 0
      %7660 = vmatmul.mubr.bf16.gmra.mrb[0].mxu0 %v7522
      %v7661 = vpop.f32.mrb[0].mxu0
      %v7662 = vadd.f32 0.0, %v7661
      %v7663 = vpop.f32.mrb[0].mxu0
      %v7664 = vpop.f32.mrb[0].mxu0
      %v7665 = vadd.f32 0.0, %v7664
      %v7666 = vpop.f32.mrb[0].mxu0
      %7667 = vmatprep.mubr.bf16.mxu0 0
      %7668 = vmatmul.mubr.bf16.gmra.mrb[0].mxu0 %v7525
      %v7669 = vpop.f32.mrb[0].mxu0
      %v7670 = vadd.f32 0.0, %v7669
      %v7671 = vpop.f32.mrb[0].mxu0
      %v7672 = vpop.f32.mrb[0].mxu0
      %v7673 = vadd.f32 0.0, %v7672
      %v7674 = vpop.f32.mrb[0].mxu0
      %7675 = vmatprep.mubr.bf16.mxu0 0
      %7676 = vmatmul.mubr.bf16.gmra.mrb[0].mxu0 %v7528
      %v7677 = vpop.f32.mrb[0].mxu0
      %v7678 = vadd.f32 0.0, %v7677
      %v7679 = vpop.f32.mrb[0].mxu0
      %v7680 = vpop.f32.mrb[0].mxu0
      %v7681 = vadd.f32 0.0, %v7680
      %v7682 = vpop.f32.mrb[0].mxu0
      %7683 = vmatprep.mubr.bf16.mxu0 0
      %7684 = vmatmul.mubr.bf16.gmra.mrb[0].mxu0 %v7531
      %v7685 = vpop.f32.mrb[0].mxu0
      %v7686 = vadd.f32 0.0, %v7685
      %v7687 = vpop.f32.mrb[0].mxu0
      %v7688 = vpop.f32.mrb[0].mxu0
      %v7689 = vadd.f32 0.0, %v7688
      %v7690 = vpop.f32.mrb[0].mxu0
      %7691 = vmatprep.mubr.bf16.mxu0 0
      %7692 = vmatmul.mubr.bf16.gmra.mrb[0].mxu0 %v7534
      %v7693 = vpop.f32.mrb[0].mxu0
      %v7694 = vadd.f32 0.0, %v7693
      %v7695 = vpop.f32.mrb[0].mxu0
      %v7696 = vpop.f32.mrb[0].mxu0
      %v7697 = vadd.f32 0.0, %v7696
      %v7698 = vpop.f32.mrb[0].mxu0
      %7699 = vdwg.mxu0
      %v7701 = vshrl.u32 %v6626, 16
      %v7703 = vrot.slane %v7701, 4
      %v7704 = vshll.u32 %v6626, 16
      %v7706 = vrot.slane %v7704, 5
      %v7707 = vor.u32 %v7703, %v7706
      %v7708 = vrot.slane %v5988, 4
      %v7709 = vrot.slane %v5991, 5
      %v7710 = vor.u32 %v7708, %v7709
      %v7711 = vsel %vm3422, %v7707, %v7710
      %v7712 = vsel %vm3422, %v7710, %v7421
      %v7714 = vshrl.u32 %v7405, 16
      %v7716 = vrot.slane %v7714, 4
      %v7717 = vshll.u32 %v7405, 16
      %v7719 = vrot.slane %v7717, 5
      %v7720 = vor.u32 %v7716, %v7719
      %v7721 = vsel %vm3422, %v7473, %v7720
      %v7723 = vsel %vm687, %v7711, 0
      %v7726 = vsel %vm687, %v7712, 0
      %v7729 = vsel %vm687, %v7721, 0
      %v7732 = vsel %vm870, %v7407, 0
      %7734 = vmatprep.subr.bf16.mxu0 0
      %7735 = vmatpush1.bf16.msra.mxu0 %v7732
      %7736 = vmatprep.subr.bf16.mxu0 0
      %7737 = vmatpush1.bf16.msra.mxu0 0
      %7738 = vmatprep.subr.bf16.mxu0 0
      %7739 = vmatpush1.bf16.msra.mxu0 0
      %7740 = vmatprep.subr.bf16.mxu0 0
      %7741 = vmatpush1.bf16.msra.mxu0 0
      %7742 = vmatprep.subr.bf16.mxu0 0
      %7743 = vmatpush1.bf16.msra.mxu0 0
      %7744 = vmatprep.subr.bf16.mxu0 0
      %7745 = vmatpush1.bf16.msra.mxu0 0
      %7746 = vmatprep.subr.bf16.mxu0 0
      %7747 = vmatpush1.bf16.msra.mxu0 0
      %7748 = vmatprep.subr.bf16.mxu0 0
      %7749 = vmatpush1.bf16.msra.mxu0 0
      %7750 = vmatprep.subr.bf16.mxu0 0
      %7751 = vmatpush1.bf16.msra.mxu0 0
      %7752 = vmatprep.subr.bf16.mxu0 0
      %7753 = vmatpush1.bf16.msra.mxu0 0
      %7754 = vmatprep.subr.bf16.mxu0 0
      %7755 = vmatpush1.bf16.msra.mxu0 0
      %7756 = vmatprep.subr.bf16.mxu0 0
      %7757 = vmatpush1.bf16.msra.mxu0 0
      %7758 = vmatprep.subr.bf16.mxu0 0
      %7759 = vmatpush1.bf16.msra.mxu0 0
      %7760 = vmatprep.subr.bf16.mxu0 0
      %7761 = vmatpush1.bf16.msra.mxu0 0
      %7762 = vmatprep.subr.bf16.mxu0 0
      %7763 = vmatpush1.bf16.msra.mxu0 0
      %7764 = vmatprep.subr.bf16.mxu0 0
      %7765 = vmatpush1.bf16.msra.mxu0 0
      %7766 = vmatprep.mubr.bf16.mxu0 0
      %7767 = vmatmul.mubr.bf16.gmra.mrb[0].mxu0 %v7723
      %v7768 = vpop.f32.mrb[0].mxu0
      %v7769 = vadd.f32 %v7574, %v7768
      %v7770 = vpop.f32.mrb[0].mxu0
      %v7771 = vpop.f32.mrb[0].mxu0
      %v7772 = vadd.f32 %v7577, %v7771
      %v7773 = vpop.f32.mrb[0].mxu0
      %7774 = vmatprep.mubr.bf16.mxu0 0
      %7775 = vmatmul.mubr.bf16.gmra.mrb[0].mxu0 %v7726
      %v7776 = vpop.f32.mrb[0].mxu0
      %v7777 = vadd.f32 %v7582, %v7776
      %v7778 = vpop.f32.mrb[0].mxu0
      %v7779 = vpop.f32.mrb[0].mxu0
      %v7780 = vadd.f32 %v7585, %v7779
      %v7781 = vpop.f32.mrb[0].mxu0
      %7782 = vmatprep.mubr.bf16.mxu0 0
      %7783 = vmatmul.mubr.bf16.gmra.mrb[0].mxu0 %v7492
      %v7784 = vpop.f32.mrb[0].mxu0
      %v7785 = vadd.f32 %v7590, %v7784
      %v7786 = vpop.f32.mrb[0].mxu0
      %v7787 = vpop.f32.mrb[0].mxu0
      %v7788 = vadd.f32 %v7593, %v7787
      %v7789 = vpop.f32.mrb[0].mxu0
      %7790 = vmatprep.mubr.bf16.mxu0 0
      %7791 = vmatmul.mubr.bf16.gmra.mrb[0].mxu0 %v7495
      %v7792 = vpop.f32.mrb[0].mxu0
      %v7793 = vadd.f32 %v7598, %v7792
      %v7794 = vpop.f32.mrb[0].mxu0
      %v7795 = vpop.f32.mrb[0].mxu0
      %v7796 = vadd.f32 %v7601, %v7795
      %v7797 = vpop.f32.mrb[0].mxu0
      %7798 = vmatprep.mubr.bf16.mxu0 0
      %7799 = vmatmul.mubr.bf16.gmra.mrb[0].mxu0 %v7498
      %v7800 = vpop.f32.mrb[0].mxu0
      %v7801 = vadd.f32 %v7606, %v7800
      %v7802 = vpop.f32.mrb[0].mxu0
      %v7803 = vpop.f32.mrb[0].mxu0
      %v7804 = vadd.f32 %v7609, %v7803
      %v7805 = vpop.f32.mrb[0].mxu0
      %7806 = vmatprep.mubr.bf16.mxu0 0
      %7807 = vmatmul.mubr.bf16.gmra.mrb[0].mxu0 %v7501
      %v7808 = vpop.f32.mrb[0].mxu0
      %v7809 = vadd.f32 %v7614, %v7808
      %v7810 = vpop.f32.mrb[0].mxu0
      %v7811 = vpop.f32.mrb[0].mxu0
      %v7812 = vadd.f32 %v7617, %v7811
      %v7813 = vpop.f32.mrb[0].mxu0
      %7814 = vmatprep.mubr.bf16.mxu0 0
      %7815 = vmatmul.mubr.bf16.gmra.mrb[0].mxu0 %v7504
      %v7816 = vpop.f32.mrb[0].mxu0
      %v7817 = vadd.f32 %v7622, %v7816
      %v7818 = vpop.f32.mrb[0].mxu0
      %v7819 = vpop.f32.mrb[0].mxu0
      %v7820 = vadd.f32 %v7625, %v7819
      %v7821 = vpop.f32.mrb[0].mxu0
      %7822 = vmatprep.mubr.bf16.mxu0 0
      %7823 = vmatmul.mubr.bf16.gmra.mrb[0].mxu0 %v7507
      %v7824 = vpop.f32.mrb[0].mxu0
      %v7825 = vadd.f32 %v7630, %v7824
      %v7826 = vpop.f32.mrb[0].mxu0
      %v7827 = vpop.f32.mrb[0].mxu0
      %v7828 = vadd.f32 %v7633, %v7827
      %v7829 = vpop.f32.mrb[0].mxu0
      %7830 = vmatprep.mubr.bf16.mxu0 0
      %7831 = vmatmul.mubr.bf16.gmra.mrb[0].mxu0 %v7510
      %v7832 = vpop.f32.mrb[0].mxu0
      %v7833 = vadd.f32 %v7638, %v7832
      %v7834 = vpop.f32.mrb[0].mxu0
      %v7835 = vpop.f32.mrb[0].mxu0
      %v7836 = vadd.f32 %v7641, %v7835
      %v7837 = vpop.f32.mrb[0].mxu0
      %7838 = vmatprep.mubr.bf16.mxu0 0
      %7839 = vmatmul.mubr.bf16.gmra.mrb[0].mxu0 %v7513
      %v7840 = vpop.f32.mrb[0].mxu0
      %v7841 = vadd.f32 %v7646, %v7840
      %v7842 = vpop.f32.mrb[0].mxu0
      %v7843 = vpop.f32.mrb[0].mxu0
      %v7844 = vadd.f32 %v7649, %v7843
      %v7845 = vpop.f32.mrb[0].mxu0
      %7846 = vmatprep.mubr.bf16.mxu0 0
      %7847 = vmatmul.mubr.bf16.gmra.mrb[0].mxu0 %v7516
      %v7848 = vpop.f32.mrb[0].mxu0
      %v7849 = vadd.f32 %v7654, %v7848
      %v7850 = vpop.f32.mrb[0].mxu0
      %v7851 = vpop.f32.mrb[0].mxu0
      %v7852 = vadd.f32 %v7657, %v7851
      %v7853 = vpop.f32.mrb[0].mxu0
      %7854 = vmatprep.mubr.bf16.mxu0 0
      %7855 = vmatmul.mubr.bf16.gmra.mrb[0].mxu0 %v7519
      %v7856 = vpop.f32.mrb[0].mxu0
      %v7857 = vadd.f32 %v7662, %v7856
      %v7858 = vpop.f32.mrb[0].mxu0
      %v7859 = vpop.f32.mrb[0].mxu0
      %v7860 = vadd.f32 %v7665, %v7859
      %v7861 = vpop.f32.mrb[0].mxu0
      %7862 = vmatprep.mubr.bf16.mxu0 0
      %7863 = vmatmul.mubr.bf16.gmra.mrb[0].mxu0 %v7522
      %v7864 = vpop.f32.mrb[0].mxu0
      %v7865 = vadd.f32 %v7670, %v7864
      %v7866 = vpop.f32.mrb[0].mxu0
      %v7867 = vpop.f32.mrb[0].mxu0
      %v7868 = vadd.f32 %v7673, %v7867
      %v7869 = vpop.f32.mrb[0].mxu0
      %7870 = vmatprep.mubr.bf16.mxu0 0
      %7871 = vmatmul.mubr.bf16.gmra.mrb[0].mxu0 %v7525
      %v7872 = vpop.f32.mrb[0].mxu0
      %v7873 = vadd.f32 %v7678, %v7872
      %v7874 = vpop.f32.mrb[0].mxu0
      %v7875 = vpop.f32.mrb[0].mxu0
      %v7876 = vadd.f32 %v7681, %v7875
      %v7877 = vpop.f32.mrb[0].mxu0
      %7878 = vmatprep.mubr.bf16.mxu0 0
      %7879 = vmatmul.mubr.bf16.gmra.mrb[0].mxu0 %v7528
      %v7880 = vpop.f32.mrb[0].mxu0
      %v7881 = vadd.f32 %v7686, %v7880
      %v7882 = vpop.f32.mrb[0].mxu0
      %v7883 = vpop.f32.mrb[0].mxu0
      %v7884 = vadd.f32 %v7689, %v7883
      %v7885 = vpop.f32.mrb[0].mxu0
      %7886 = vmatprep.mubr.bf16.mxu0 0
      %7887 = vmatmul.mubr.bf16.gmra.mrb[0].mxu0 %v7729
      %v7888 = vpop.f32.mrb[0].mxu0
      %v7889 = vadd.f32 %v7694, %v7888
      %v7890 = vpop.f32.mrb[0].mxu0
      %v7891 = vpop.f32.mrb[0].mxu0
      %v7892 = vadd.f32 %v7697, %v7891
      %v7893 = vpop.f32.mrb[0].mxu0
      %7894 = vdwg.mxu0
      %v7895 = vld [vmem:[#allocation3 + $0x90] sm:$0x1f]
      %s7896 = scalar_lea.vmem %s12, 32
      %v7897 = vld [vmem:[%s7896] sm:$0xf]
      %v7899 = vshrl.u32 %v7076, 16
      %v7901 = vrot.slane %v7899, 4
      %v7902 = vshll.u32 %v7076, 16
      %v7904 = vrot.slane %v7902, 5
      %v7905 = vor.u32 %v7901, %v7904
      %v7906 = vrot.slane %v6207, 4
      %v7907 = vrot.slane %v6210, 5
      %v7908 = vor.u32 %v7906, %v7907
      %v7909 = vsel %vm3422, %v7905, %v7908
      %v7910 = vrot.slane %v6216, 4
      %v7911 = vrot.slane %v6219, 5
      %v7912 = vor.u32 %v7910, %v7911
      %v7913 = vsel %vm3422, %v7908, %v7912
      %v7914 = vrot.slane %v6225, 4
      %v7915 = vrot.slane %v6228, 5
      %v7916 = vor.u32 %v7914, %v7915
      %v7917 = vsel %vm3422, %v7912, %v7916
      %v7918 = vrot.slane %v6234, 4
      %v7919 = vrot.slane %v6237, 5
      %v7920 = vor.u32 %v7918, %v7919
      %v7921 = vsel %vm3422, %v7916, %v7920
      %v7922 = vrot.slane %v6243, 4
      %v7923 = vrot.slane %v6246, 5
      %v7924 = vor.u32 %v7922, %v7923
      %v7925 = vsel %vm3422, %v7920, %v7924
      %v7926 = vrot.slane %v6252, 4
      %v7927 = vrot.slane %v6255, 5
      %v7928 = vor.u32 %v7926, %v7927
      %v7929 = vsel %vm3422, %v7924, %v7928
      %v7930 = vrot.slane %v6261, 4
      %v7931 = vrot.slane %v6264, 5
      %v7932 = vor.u32 %v7930, %v7931
      %v7933 = vsel %vm3422, %v7928, %v7932
      %v7934 = vrot.slane %v6270, 4
      %v7935 = vrot.slane %v6273, 5
      %v7936 = vor.u32 %v7934, %v7935
      %v7937 = vsel %vm3422, %v7932, %v7936
      %v7938 = vrot.slane %v6279, 4
      %v7939 = vrot.slane %v6282, 5
      %v7940 = vor.u32 %v7938, %v7939
      %v7941 = vsel %vm3422, %v7936, %v7940
      %v7942 = vrot.slane %v6288, 4
      %v7943 = vrot.slane %v6291, 5
      %v7944 = vor.u32 %v7942, %v7943
      %v7945 = vsel %vm3422, %v7940, %v7944
      %v7946 = vrot.slane %v6297, 4
      %v7947 = vrot.slane %v6300, 5
      %v7948 = vor.u32 %v7946, %v7947
      %v7949 = vsel %vm3422, %v7944, %v7948
      %v7950 = vrot.slane %v6306, 4
      %v7951 = vrot.slane %v6309, 5
      %v7952 = vor.u32 %v7950, %v7951
      %v7953 = vsel %vm3422, %v7948, %v7952
      %v7954 = vrot.slane %v6315, 4
      %v7955 = vrot.slane %v6318, 5
      %v7956 = vor.u32 %v7954, %v7955
      %v7957 = vsel %vm3422, %v7952, %v7956
      %v7958 = vrot.slane %v6324, 4
      %v7959 = vrot.slane %v6327, 5
      %v7960 = vor.u32 %v7958, %v7959
      %v7961 = vsel %vm3422, %v7956, %v7960
      %v7962 = vrot.slane %v6333, 4
      %v7963 = vrot.slane %v6336, 5
      %v7964 = vor.u32 %v7962, %v7963
      %v7965 = vsel %vm3422, %v7960, %v7964
      %v7967 = vshrl.u32 %v7895, 16
      %v7969 = vrot.slane %v7967, 4
      %v7970 = vshll.u32 %v7895, 16
      %v7972 = vrot.slane %v7970, 5
      %v7973 = vor.u32 %v7969, %v7972
      %v7974 = vsel %vm3422, %v7964, %v7973
      %v7976 = vsel %vm687, %v7909, 0
      %v7979 = vsel %vm687, %v7913, 0
      %v7982 = vsel %vm687, %v7917, 0
      %v7985 = vsel %vm687, %v7921, 0
      %v7988 = vsel %vm687, %v7925, 0
      %v7991 = vsel %vm687, %v7929, 0
      %v7994 = vsel %vm687, %v7933, 0
      %v7997 = vsel %vm687, %v7937, 0
      %v8000 = vsel %vm687, %v7941, 0
      %v8003 = vsel %vm687, %v7945, 0
      %v8006 = vsel %vm687, %v7949, 0
      %v8009 = vsel %vm687, %v7953, 0
      %v8012 = vsel %vm687, %v7957, 0
      %v8015 = vsel %vm687, %v7961, 0
      %v8018 = vsel %vm687, %v7965, 0
      %v8021 = vsel %vm687, %v7974, 0
      %v8024 = vsel %vm870, %v7897, 0
      %8026 = vmatprep.subr.bf16.mxu0 0
      %8027 = vmatpush1.bf16.msra.mxu0 %v8024
      %8028 = vmatprep.subr.bf16.mxu0 0
      %8029 = vmatpush1.bf16.msra.mxu0 0
      %8030 = vmatprep.subr.bf16.mxu0 0
      %8031 = vmatpush1.bf16.msra.mxu0 0
      %8032 = vmatprep.subr.bf16.mxu0 0
      %8033 = vmatpush1.bf16.msra.mxu0 0
      %8034 = vmatprep.subr.bf16.mxu0 0
      %8035 = vmatpush1.bf16.msra.mxu0 0
      %8036 = vmatprep.subr.bf16.mxu0 0
      %8037 = vmatpush1.bf16.msra.mxu0 0
      %8038 = vmatprep.subr.bf16.mxu0 0
      %8039 = vmatpush1.bf16.msra.mxu0 0
      %8040 = vmatprep.subr.bf16.mxu0 0
      %8041 = vmatpush1.bf16.msra.mxu0 0
      %8042 = vmatprep.subr.bf16.mxu0 0
      %8043 = vmatpush1.bf16.msra.mxu0 0
      %8044 = vmatprep.subr.bf16.mxu0 0
      %8045 = vmatpush1.bf16.msra.mxu0 0
      %8046 = vmatprep.subr.bf16.mxu0 0
      %8047 = vmatpush1.bf16.msra.mxu0 0
      %8048 = vmatprep.subr.bf16.mxu0 0
      %8049 = vmatpush1.bf16.msra.mxu0 0
      %8050 = vmatprep.subr.bf16.mxu0 0
      %8051 = vmatpush1.bf16.msra.mxu0 0
      %8052 = vmatprep.subr.bf16.mxu0 0
      %8053 = vmatpush1.bf16.msra.mxu0 0
      %8054 = vmatprep.subr.bf16.mxu0 0
      %8055 = vmatpush1.bf16.msra.mxu0 0
      %8056 = vmatprep.subr.bf16.mxu0 0
      %8057 = vmatpush1.bf16.msra.mxu0 0
      %8058 = vmatprep.mubr.bf16.mxu0 0
      %8059 = vmatmul.mubr.bf16.gmra.mrb[0].mxu0 %v7976
      %v8060 = vpop.f32.mrb[0].mxu0
      %v8061 = vadd.f32 0.0, %v8060
      %v8062 = vpop.f32.mrb[0].mxu0
      %v8063 = vpop.f32.mrb[0].mxu0
      %v8064 = vadd.f32 0.0, %v8063
      %v8065 = vpop.f32.mrb[0].mxu0
      %8066 = vmatprep.mubr.bf16.mxu0 0
      %8067 = vmatmul.mubr.bf16.gmra.mrb[0].mxu0 %v7979
      %v8068 = vpop.f32.mrb[0].mxu0
      %v8069 = vadd.f32 0.0, %v8068
      %v8070 = vpop.f32.mrb[0].mxu0
      %v8071 = vpop.f32.mrb[0].mxu0
      %v8072 = vadd.f32 0.0, %v8071
      %v8073 = vpop.f32.mrb[0].mxu0
      %8074 = vmatprep.mubr.bf16.mxu0 0
      %8075 = vmatmul.mubr.bf16.gmra.mrb[0].mxu0 %v7982
      %v8076 = vpop.f32.mrb[0].mxu0
      %v8077 = vadd.f32 0.0, %v8076
      %v8078 = vpop.f32.mrb[0].mxu0
      %v8079 = vpop.f32.mrb[0].mxu0
      %v8080 = vadd.f32 0.0, %v8079
      %v8081 = vpop.f32.mrb[0].mxu0
      %8082 = vmatprep.mubr.bf16.mxu0 0
      %8083 = vmatmul.mubr.bf16.gmra.mrb[0].mxu0 %v7985
      %v8084 = vpop.f32.mrb[0].mxu0
      %v8085 = vadd.f32 0.0, %v8084
      %v8086 = vpop.f32.mrb[0].mxu0
      %v8087 = vpop.f32.mrb[0].mxu0
      %v8088 = vadd.f32 0.0, %v8087
      %v8089 = vpop.f32.mrb[0].mxu0
      %8090 = vmatprep.mubr.bf16.mxu0 0
      %8091 = vmatmul.mubr.bf16.gmra.mrb[0].mxu0 %v7988
      %v8092 = vpop.f32.mrb[0].mxu0
      %v8093 = vadd.f32 0.0, %v8092
      %v8094 = vpop.f32.mrb[0].mxu0
      %v8095 = vpop.f32.mrb[0].mxu0
      %v8096 = vadd.f32 0.0, %v8095
      %v8097 = vpop.f32.mrb[0].mxu0
      %8098 = vmatprep.mubr.bf16.mxu0 0
      %8099 = vmatmul.mubr.bf16.gmra.mrb[0].mxu0 %v7991
      %v8100 = vpop.f32.mrb[0].mxu0
      %v8101 = vadd.f32 0.0, %v8100
      %v8102 = vpop.f32.mrb[0].mxu0
      %v8103 = vpop.f32.mrb[0].mxu0
      %v8104 = vadd.f32 0.0, %v8103
      %v8105 = vpop.f32.mrb[0].mxu0
      %8106 = vmatprep.mubr.bf16.mxu0 0
      %8107 = vmatmul.mubr.bf16.gmra.mrb[0].mxu0 %v7994
      %v8108 = vpop.f32.mrb[0].mxu0
      %v8109 = vadd.f32 0.0, %v8108
      %v8110 = vpop.f32.mrb[0].mxu0
      %v8111 = vpop.f32.mrb[0].mxu0
      %v8112 = vadd.f32 0.0, %v8111
      %v8113 = vpop.f32.mrb[0].mxu0
      %8114 = vmatprep.mubr.bf16.mxu0 0
      %8115 = vmatmul.mubr.bf16.gmra.mrb[0].mxu0 %v7997
      %v8116 = vpop.f32.mrb[0].mxu0
      %v8117 = vadd.f32 0.0, %v8116
      %v8118 = vpop.f32.mrb[0].mxu0
      %v8119 = vpop.f32.mrb[0].mxu0
      %v8120 = vadd.f32 0.0, %v8119
      %v8121 = vpop.f32.mrb[0].mxu0
      %8122 = vmatprep.mubr.bf16.mxu0 0
      %8123 = vmatmul.mubr.bf16.gmra.mrb[0].mxu0 %v8000
      %v8124 = vpop.f32.mrb[0].mxu0
      %v8125 = vadd.f32 0.0, %v8124
      %v8126 = vpop.f32.mrb[0].mxu0
      %v8127 = vpop.f32.mrb[0].mxu0
      %v8128 = vadd.f32 0.0, %v8127
      %v8129 = vpop.f32.mrb[0].mxu0
      %8130 = vmatprep.mubr.bf16.mxu0 0
      %8131 = vmatmul.mubr.bf16.gmra.mrb[0].mxu0 %v8003
      %v8132 = vpop.f32.mrb[0].mxu0
      %v8133 = vadd.f32 0.0, %v8132
      %v8134 = vpop.f32.mrb[0].mxu0
      %v8135 = vpop.f32.mrb[0].mxu0
      %v8136 = vadd.f32 0.0, %v8135
      %v8137 = vpop.f32.mrb[0].mxu0
      %8138 = vmatprep.mubr.bf16.mxu0 0
      %8139 = vmatmul.mubr.bf16.gmra.mrb[0].mxu0 %v8006
      %v8140 = vpop.f32.mrb[0].mxu0
      %v8141 = vadd.f32 0.0, %v8140
      %v8142 = vpop.f32.mrb[0].mxu0
      %v8143 = vpop.f32.mrb[0].mxu0
      %v8144 = vadd.f32 0.0, %v8143
      %v8145 = vpop.f32.mrb[0].mxu0
      %8146 = vmatprep.mubr.bf16.mxu0 0
      %8147 = vmatmul.mubr.bf16.gmra.mrb[0].mxu0 %v8009
      %v8148 = vpop.f32.mrb[0].mxu0
      %v8149 = vadd.f32 0.0, %v8148
      %v8150 = vpop.f32.mrb[0].mxu0
      %v8151 = vpop.f32.mrb[0].mxu0
      %v8152 = vadd.f32 0.0, %v8151
      %v8153 = vpop.f32.mrb[0].mxu0
      %8154 = vmatprep.mubr.bf16.mxu0 0
      %8155 = vmatmul.mubr.bf16.gmra.mrb[0].mxu0 %v8012
      %v8156 = vpop.f32.mrb[0].mxu0
      %v8157 = vadd.f32 0.0, %v8156
      %v8158 = vpop.f32.mrb[0].mxu0
      %v8159 = vpop.f32.mrb[0].mxu0
      %v8160 = vadd.f32 0.0, %v8159
      %v8161 = vpop.f32.mrb[0].mxu0
      %8162 = vmatprep.mubr.bf16.mxu0 0
      %8163 = vmatmul.mubr.bf16.gmra.mrb[0].mxu0 %v8015
      %v8164 = vpop.f32.mrb[0].mxu0
      %v8165 = vadd.f32 0.0, %v8164
      %v8166 = vpop.f32.mrb[0].mxu0
      %v8167 = vpop.f32.mrb[0].mxu0
      %v8168 = vadd.f32 0.0, %v8167
      %v8169 = vpop.f32.mrb[0].mxu0
      %8170 = vmatprep.mubr.bf16.mxu0 0
      %8171 = vmatmul.mubr.bf16.gmra.mrb[0].mxu0 %v8018
      %v8172 = vpop.f32.mrb[0].mxu0
      %v8173 = vadd.f32 0.0, %v8172
      %v8174 = vpop.f32.mrb[0].mxu0
      %v8175 = vpop.f32.mrb[0].mxu0
      %v8176 = vadd.f32 0.0, %v8175
      %v8177 = vpop.f32.mrb[0].mxu0
      %8178 = vmatprep.mubr.bf16.mxu0 0
      %8179 = vmatmul.mubr.bf16.gmra.mrb[0].mxu0 %v8021
      %v8180 = vpop.f32.mrb[0].mxu0
      %v8181 = vadd.f32 0.0, %v8180
      %v8182 = vpop.f32.mrb[0].mxu0
      %v8183 = vpop.f32.mrb[0].mxu0
      %v8184 = vadd.f32 0.0, %v8183
      %v8185 = vpop.f32.mrb[0].mxu0
      %8186 = vdwg.mxu0
      %v8187 = vadd.f32 %v7769, %v8061
      %v8188 = vadd.f32 %v7772, %v8064
      %v8189 = vadd.f32 %v7777, %v8069
      %v8190 = vadd.f32 %v7780, %v8072
      %v8191 = vadd.f32 %v7785, %v8077
      %v8192 = vadd.f32 %v7788, %v8080
      %v8193 = vadd.f32 %v7793, %v8085
      %v8194 = vadd.f32 %v7796, %v8088
      %v8195 = vadd.f32 %v7801, %v8093
      %v8196 = vadd.f32 %v7804, %v8096
      %v8197 = vadd.f32 %v7809, %v8101
      %v8198 = vadd.f32 %v7812, %v8104
      %v8199 = vadd.f32 %v7817, %v8109
      %v8200 = vadd.f32 %v7820, %v8112
      %v8201 = vadd.f32 %v7825, %v8117
      %v8202 = vadd.f32 %v7828, %v8120
      %v8203 = vadd.f32 %v7833, %v8125
      %v8204 = vadd.f32 %v7836, %v8128
      %v8205 = vadd.f32 %v7841, %v8133
      %v8206 = vadd.f32 %v7844, %v8136
      %v8207 = vadd.f32 %v7849, %v8141
      %v8208 = vadd.f32 %v7852, %v8144
      %v8209 = vadd.f32 %v7857, %v8149
      %v8210 = vadd.f32 %v7860, %v8152
      %v8211 = vadd.f32 %v7865, %v8157
      %v8212 = vadd.f32 %v7868, %v8160
      %v8213 = vadd.f32 %v7873, %v8165
      %v8214 = vadd.f32 %v7876, %v8168
      %v8215 = vadd.f32 %v7881, %v8173
      %v8216 = vadd.f32 %v7884, %v8176
      %v8217 = vadd.f32 %v7889, %v8181
      %v8218 = vadd.f32 %v7892, %v8184
      %v8219 = vmul.f32 %v8187, %v4234
      %v8220 = vmul.f32 %v8188, %v4239
      %v8221 = vmul.f32 %v8189, %v4244
      %v8222 = vmul.f32 %v8190, %v4249
      %v8223 = vmul.f32 %v8191, %v4254
      %v8224 = vmul.f32 %v8192, %v4259
      %v8225 = vmul.f32 %v8193, %v4264
      %v8226 = vmul.f32 %v8194, %v4269
      %v8227 = vmul.f32 %v8195, %v4274
      %v8228 = vmul.f32 %v8196, %v4279
      %v8229 = vmul.f32 %v8197, %v4284
      %v8230 = vmul.f32 %v8198, %v4289
      %v8231 = vmul.f32 %v8199, %v4294
      %v8232 = vmul.f32 %v8200, %v4299
      %v8233 = vmul.f32 %v8201, %v4304
      %v8234 = vmul.f32 %v8202, %v4309
      %v8235 = vmul.f32 %v8203, %v4314
      %v8236 = vmul.f32 %v8204, %v4319
      %v8237 = vmul.f32 %v8205, %v4324
      %v8238 = vmul.f32 %v8206, %v4329
      %v8239 = vmul.f32 %v8207, %v4334
      %v8240 = vmul.f32 %v8208, %v4339
      %v8241 = vmul.f32 %v8209, %v4344
      %v8242 = vmul.f32 %v8210, %v4349
      %v8243 = vmul.f32 %v8211, %v4354
      %v8244 = vmul.f32 %v8212, %v4359
      %v8245 = vmul.f32 %v8213, %v4364
      %v8246 = vmul.f32 %v8214, %v4369
      %v8247 = vmul.f32 %v8215, %v4374
      %v8248 = vmul.f32 %v8216, %v4379
      %v8249 = vmul.f32 %v8217, %v4384
      %v8250 = vmul.f32 %v8218, %v4389
      %v8251 = vadd.f32 %v7373, %v8219
      %v8252 = vadd.f32 %v7374, %v8220
      %v8253 = vadd.f32 %v7375, %v8221
      %v8254 = vadd.f32 %v7376, %v8222
      %v8255 = vadd.f32 %v7377, %v8223
      %v8256 = vadd.f32 %v7378, %v8224
      %v8257 = vadd.f32 %v7379, %v8225
      %v8258 = vadd.f32 %v7380, %v8226
      %v8259 = vadd.f32 %v7381, %v8227
      %v8260 = vadd.f32 %v7382, %v8228
      %v8261 = vadd.f32 %v7383, %v8229
      %v8262 = vadd.f32 %v7384, %v8230
      %v8263 = vadd.f32 %v7385, %v8231
      %v8264 = vadd.f32 %v7386, %v8232
      %v8265 = vadd.f32 %v7387, %v8233
      %v8266 = vadd.f32 %v7388, %v8234
      %v8267 = vadd.f32 %v7389, %v8235
      %v8268 = vadd.f32 %v7390, %v8236
      %v8269 = vadd.f32 %v7391, %v8237
      %v8270 = vadd.f32 %v7392, %v8238
      %v8271 = vadd.f32 %v7393, %v8239
      %v8272 = vadd.f32 %v7394, %v8240
      %v8273 = vadd.f32 %v7395, %v8241
      %v8274 = vadd.f32 %v7396, %v8242
      %v8275 = vadd.f32 %v7397, %v8243
      %v8276 = vadd.f32 %v7398, %v8244
      %v8277 = vadd.f32 %v7399, %v8245
      %v8278 = vadd.f32 %v7400, %v8246
      %v8279 = vadd.f32 %v7401, %v8247
      %v8280 = vadd.f32 %v7402, %v8248
      %v8281 = vadd.f32 %v7403, %v8249
      %v8282 = vadd.f32 %v7404, %v8250
      %v8283 = vpack.c.bf16 %v585, %v584
      %v8284 = vpack.c.bf16 %v587, %v586
      %v8285 = vpack.c.bf16 %v589, %v588
      %v8286 = vpack.c.bf16 %v591, %v590
      %v8287 = vpack.c.bf16 %v593, %v592
      %v8288 = vpack.c.bf16 %v595, %v594
      %v8289 = vpack.c.bf16 %v597, %v596
      %v8290 = vpack.c.bf16 %v599, %v598
      %v8291 = vpack.c.bf16 %v601, %v600
      %v8292 = vpack.c.bf16 %v603, %v602
      %v8293 = vpack.c.bf16 %v605, %v604
      %v8294 = vpack.c.bf16 %v607, %v606
      %v8295 = vpack.c.bf16 %v609, %v608
      %v8296 = vpack.c.bf16 %v611, %v610
      %v8297 = vpack.c.bf16 %v613, %v612
      %v8298 = vpack.c.bf16 %v615, %v614
      %v8299 = vld [vmem:[%s16] sm:$0x3]
      %v8301 = vsel %vm680, %v8283, 0
      %v8304 = vsel %vm680, %v8284, 0
      %v8307 = vsel %vm680, %v8285, 0
      %v8310 = vsel %vm680, %v8286, 0
      %v8313 = vsel %vm680, %v8287, 0
      %v8316 = vsel %vm680, %v8288, 0
      %v8319 = vsel %vm680, %v8289, 0
      %v8322 = vsel %vm680, %v8290, 0
      %v8325 = vsel %vm680, %v8291, 0
      %v8328 = vsel %vm680, %v8292, 0
      %v8331 = vsel %vm680, %v8293, 0
      %v8334 = vsel %vm680, %v8294, 0
      %v8337 = vsel %vm680, %v8295, 0
      %v8340 = vsel %vm680, %v8296, 0
      %v8343 = vsel %vm680, %v8297, 0
      %v8346 = vsel %vm680, %v8298, 0
      %v8349 = vsel %vm1665, %v8299, 0
      %8351 = vmatprep.subr.bf16.mxu0 0
      %8352 = vmatpush1.bf16.msra.mxu0 %v8349
      %8353 = vmatprep.subr.bf16.mxu0 0
      %8354 = vmatpush1.bf16.msra.mxu0 0
      %8355 = vmatprep.subr.bf16.mxu0 0
      %8356 = vmatpush1.bf16.msra.mxu0 0
      %8357 = vmatprep.subr.bf16.mxu0 0
      %8358 = vmatpush1.bf16.msra.mxu0 0
      %8359 = vmatprep.subr.bf16.mxu0 0
      %8360 = vmatpush1.bf16.msra.mxu0 0
      %8361 = vmatprep.subr.bf16.mxu0 0
      %8362 = vmatpush1.bf16.msra.mxu0 0
      %8363 = vmatprep.subr.bf16.mxu0 0
      %8364 = vmatpush1.bf16.msra.mxu0 0
      %8365 = vmatprep.subr.bf16.mxu0 0
      %8366 = vmatpush1.bf16.msra.mxu0 0
      %8367 = vmatprep.subr.bf16.mxu0 0
      %8368 = vmatpush1.bf16.msra.mxu0 0
      %8369 = vmatprep.subr.bf16.mxu0 0
      %8370 = vmatpush1.bf16.msra.mxu0 0
      %8371 = vmatprep.subr.bf16.mxu0 0
      %8372 = vmatpush1.bf16.msra.mxu0 0
      %8373 = vmatprep.subr.bf16.mxu0 0
      %8374 = vmatpush1.bf16.msra.mxu0 0
      %8375 = vmatprep.subr.bf16.mxu0 0
      %8376 = vmatpush1.bf16.msra.mxu0 0
      %8377 = vmatprep.subr.bf16.mxu0 0
      %8378 = vmatpush1.bf16.msra.mxu0 0
      %8379 = vmatprep.subr.bf16.mxu0 0
      %8380 = vmatpush1.bf16.msra.mxu0 0
      %8381 = vmatprep.subr.bf16.mxu0 0
      %8382 = vmatpush1.bf16.msra.mxu0 0
      %8383 = vmatprep.mubr.bf16.mxu0 0
      %8384 = vmatmul.mubr.bf16.gmra.mrb[0].mxu0 %v8301
      %v8385 = vpop.f32.mrb[0].mxu0
      %v8386 = vadd.f32 %v8251, %v8385
      %v8387 = vpop.f32.mrb[0].mxu0
      %v8388 = vpop.f32.mrb[0].mxu0
      %v8389 = vadd.f32 %v8252, %v8388
      %v8390 = vpop.f32.mrb[0].mxu0
      %8391 = vmatprep.mubr.bf16.mxu0 0
      %8392 = vmatmul.mubr.bf16.gmra.mrb[0].mxu0 %v8304
      %v8393 = vpop.f32.mrb[0].mxu0
      %v8394 = vadd.f32 %v8253, %v8393
      %v8395 = vpop.f32.mrb[0].mxu0
      %v8396 = vpop.f32.mrb[0].mxu0
      %v8397 = vadd.f32 %v8254, %v8396
      %v8398 = vpop.f32.mrb[0].mxu0
      %8399 = vmatprep.mubr.bf16.mxu0 0
      %8400 = vmatmul.mubr.bf16.gmra.mrb[0].mxu0 %v8307
      %v8401 = vpop.f32.mrb[0].mxu0
      %v8402 = vadd.f32 %v8255, %v8401
      %v8403 = vpop.f32.mrb[0].mxu0
      %v8404 = vpop.f32.mrb[0].mxu0
      %v8405 = vadd.f32 %v8256, %v8404
      %v8406 = vpop.f32.mrb[0].mxu0
      %8407 = vmatprep.mubr.bf16.mxu0 0
      %8408 = vmatmul.mubr.bf16.gmra.mrb[0].mxu0 %v8310
      %v8409 = vpop.f32.mrb[0].mxu0
      %v8410 = vadd.f32 %v8257, %v8409
      %v8411 = vpop.f32.mrb[0].mxu0
      %v8412 = vpop.f32.mrb[0].mxu0
      %v8413 = vadd.f32 %v8258, %v8412
      %v8414 = vpop.f32.mrb[0].mxu0
      %8415 = vmatprep.mubr.bf16.mxu0 0
      %8416 = vmatmul.mubr.bf16.gmra.mrb[0].mxu0 %v8313
      %v8417 = vpop.f32.mrb[0].mxu0
      %v8418 = vadd.f32 %v8259, %v8417
      %v8419 = vpop.f32.mrb[0].mxu0
      %v8420 = vpop.f32.mrb[0].mxu0
      %v8421 = vadd.f32 %v8260, %v8420
      %v8422 = vpop.f32.mrb[0].mxu0
      %8423 = vmatprep.mubr.bf16.mxu0 0
      %8424 = vmatmul.mubr.bf16.gmra.mrb[0].mxu0 %v8316
      %v8425 = vpop.f32.mrb[0].mxu0
      %v8426 = vadd.f32 %v8261, %v8425
      %v8427 = vpop.f32.mrb[0].mxu0
      %v8428 = vpop.f32.mrb[0].mxu0
      %v8429 = vadd.f32 %v8262, %v8428
      %v8430 = vpop.f32.mrb[0].mxu0
      %8431 = vmatprep.mubr.bf16.mxu0 0
      %8432 = vmatmul.mubr.bf16.gmra.mrb[0].mxu0 %v8319
      %v8433 = vpop.f32.mrb[0].mxu0
      %v8434 = vadd.f32 %v8263, %v8433
      %v8435 = vpop.f32.mrb[0].mxu0
      %v8436 = vpop.f32.mrb[0].mxu0
      %v8437 = vadd.f32 %v8264, %v8436
      %v8438 = vpop.f32.mrb[0].mxu0
      %8439 = vmatprep.mubr.bf16.mxu0 0
      %8440 = vmatmul.mubr.bf16.gmra.mrb[0].mxu0 %v8322
      %v8441 = vpop.f32.mrb[0].mxu0
      %v8442 = vadd.f32 %v8265, %v8441
      %v8443 = vpop.f32.mrb[0].mxu0
      %v8444 = vpop.f32.mrb[0].mxu0
      %v8445 = vadd.f32 %v8266, %v8444
      %v8446 = vpop.f32.mrb[0].mxu0
      %8447 = vmatprep.mubr.bf16.mxu0 0
      %8448 = vmatmul.mubr.bf16.gmra.mrb[0].mxu0 %v8325
      %v8449 = vpop.f32.mrb[0].mxu0
      %v8450 = vadd.f32 %v8267, %v8449
      %v8451 = vpop.f32.mrb[0].mxu0
      %v8452 = vpop.f32.mrb[0].mxu0
      %v8453 = vadd.f32 %v8268, %v8452
      %v8454 = vpop.f32.mrb[0].mxu0
      %8455 = vmatprep.mubr.bf16.mxu0 0
      %8456 = vmatmul.mubr.bf16.gmra.mrb[0].mxu0 %v8328
      %v8457 = vpop.f32.mrb[0].mxu0
      %v8458 = vadd.f32 %v8269, %v8457
      %v8459 = vpop.f32.mrb[0].mxu0
      %v8460 = vpop.f32.mrb[0].mxu0
      %v8461 = vadd.f32 %v8270, %v8460
      %v8462 = vpop.f32.mrb[0].mxu0
      %8463 = vmatprep.mubr.bf16.mxu0 0
      %8464 = vmatmul.mubr.bf16.gmra.mrb[0].mxu0 %v8331
      %v8465 = vpop.f32.mrb[0].mxu0
      %v8466 = vadd.f32 %v8271, %v8465
      %v8467 = vpop.f32.mrb[0].mxu0
      %v8468 = vpop.f32.mrb[0].mxu0
      %v8469 = vadd.f32 %v8272, %v8468
      %v8470 = vpop.f32.mrb[0].mxu0
      %8471 = vmatprep.mubr.bf16.mxu0 0
      %8472 = vmatmul.mubr.bf16.gmra.mrb[0].mxu0 %v8334
      %v8473 = vpop.f32.mrb[0].mxu0
      %v8474 = vadd.f32 %v8273, %v8473
      %v8475 = vpop.f32.mrb[0].mxu0
      %v8476 = vpop.f32.mrb[0].mxu0
      %v8477 = vadd.f32 %v8274, %v8476
      %v8478 = vpop.f32.mrb[0].mxu0
      %8479 = vmatprep.mubr.bf16.mxu0 0
      %8480 = vmatmul.mubr.bf16.gmra.mrb[0].mxu0 %v8337
      %v8481 = vpop.f32.mrb[0].mxu0
      %v8482 = vadd.f32 %v8275, %v8481
      %v8483 = vpop.f32.mrb[0].mxu0
      %v8484 = vpop.f32.mrb[0].mxu0
      %v8485 = vadd.f32 %v8276, %v8484
      %v8486 = vpop.f32.mrb[0].mxu0
      %8487 = vmatprep.mubr.bf16.mxu0 0
      %8488 = vmatmul.mubr.bf16.gmra.mrb[0].mxu0 %v8340
      %v8489 = vpop.f32.mrb[0].mxu0
      %v8490 = vadd.f32 %v8277, %v8489
      %v8491 = vpop.f32.mrb[0].mxu0
      %v8492 = vpop.f32.mrb[0].mxu0
      %v8493 = vadd.f32 %v8278, %v8492
      %v8494 = vpop.f32.mrb[0].mxu0
      %8495 = vmatprep.mubr.bf16.mxu0 0
      %8496 = vmatmul.mubr.bf16.gmra.mrb[0].mxu0 %v8343
      %v8497 = vpop.f32.mrb[0].mxu0
      %v8498 = vadd.f32 %v8279, %v8497
      %v8499 = vpop.f32.mrb[0].mxu0
      %v8500 = vpop.f32.mrb[0].mxu0
      %v8501 = vadd.f32 %v8280, %v8500
      %v8502 = vpop.f32.mrb[0].mxu0
      %8503 = vmatprep.mubr.bf16.mxu0 0
      %8504 = vmatmul.mubr.bf16.gmra.mrb[0].mxu0 %v8346
      %v8505 = vpop.f32.mrb[0].mxu0
      %v8506 = vadd.f32 %v8281, %v8505
      %v8507 = vpop.f32.mrb[0].mxu0
      %v8508 = vpop.f32.mrb[0].mxu0
      %v8509 = vadd.f32 %v8282, %v8508
      %v8510 = vpop.f32.mrb[0].mxu0
      %8511 = vdwg.mxu0
      %8512 = vst.msk [vmem:[%s582] sm:$0xff] %vm687, %v8386
      %8513 = vst.msk [vmem:[%s582 + $0x8] sm:$0xff] %vm687, %v8389
      %8514 = vst.msk [vmem:[%s582 + $0x10] sm:$0xff] %vm687, %v8394
      %8515 = vst.msk [vmem:[%s582 + $0x18] sm:$0xff] %vm687, %v8397
      %8516 = vst.msk [vmem:[%s582 + $0x20] sm:$0xff] %vm687, %v8402
      %8517 = vst.msk [vmem:[%s582 + $0x28] sm:$0xff] %vm687, %v8405
      %8518 = vst.msk [vmem:[%s582 + $0x30] sm:$0xff] %vm687, %v8410
      %8519 = vst.msk [vmem:[%s582 + $0x38] sm:$0xff] %vm687, %v8413
      %8520 = vst.msk [vmem:[%s582 + $0x40] sm:$0xff] %vm687, %v8418
      %8521 = vst.msk [vmem:[%s582 + $0x48] sm:$0xff] %vm687, %v8421
      %8522 = vst.msk [vmem:[%s582 + $0x50] sm:$0xff] %vm687, %v8426
      %8523 = vst.msk [vmem:[%s582 + $0x58] sm:$0xff] %vm687, %v8429
      %8524 = vst.msk [vmem:[%s582 + $0x60] sm:$0xff] %vm687, %v8434
      %8525 = vst.msk [vmem:[%s582 + $0x68] sm:$0xff] %vm687, %v8437
      %8526 = vst.msk [vmem:[%s582 + $0x70] sm:$0xff] %vm687, %v8442
      %8527 = vst.msk [vmem:[%s582 + $0x78] sm:$0xff] %vm687, %v8445
      %8528 = vst.msk [vmem:[%s582 + $0x80] sm:$0xff] %vm687, %v8450
      %8529 = vst.msk [vmem:[%s582 + $0x88] sm:$0xff] %vm687, %v8453
      %8530 = vst.msk [vmem:[%s582 + $0x90] sm:$0xff] %vm687, %v8458
      %8531 = vst.msk [vmem:[%s582 + $0x98] sm:$0xff] %vm687, %v8461
      %8532 = vst.msk [vmem:[%s582 + $0xa0] sm:$0xff] %vm687, %v8466
      %8533 = vst.msk [vmem:[%s582 + $0xa8] sm:$0xff] %vm687, %v8469
      %8534 = vst.msk [vmem:[%s582 + $0xb0] sm:$0xff] %vm687, %v8474
      %8535 = vst.msk [vmem:[%s582 + $0xb8] sm:$0xff] %vm687, %v8477
      %8536 = vst.msk [vmem:[%s582 + $0xc0] sm:$0xff] %vm687, %v8482
      %8537 = vst.msk [vmem:[%s582 + $0xc8] sm:$0xff] %vm687, %v8485
      %8538 = vst.msk [vmem:[%s582 + $0xd0] sm:$0xff] %vm687, %v8490
      %8539 = vst.msk [vmem:[%s582 + $0xd8] sm:$0xff] %vm687, %v8493
      %8540 = vst.msk [vmem:[%s582 + $0xe0] sm:$0xff] %vm687, %v8498
      %8541 = vst.msk [vmem:[%s582 + $0xe8] sm:$0xff] %vm687, %v8501
      %8542 = vst.msk [vmem:[%s582 + $0xf0] sm:$0xff] %vm687, %v8506
      %8543 = vst.msk [vmem:[%s582 + $0xf8] sm:$0xff] %vm687, %v8509
      %p8544 = scmp.lt.s32.totalorder %s28, 1
      %s8545 = scalar_select %p8544, %s28, 1
      %s8546 = smul.addr %s8545, 32
      %s8547 = smul.addr %s8546, 8
      %s8548 = scalar_lea.vmem %s17, %s8547
      // Predicated region
      $region89: #{resnet_block_pallas.1} parent=87 // pred_check
        %p8549 = pneg %p418
      $region90: #{resnet_block_pallas.1} parent=87 // pred_check_branch
        %8551 = sbr.rel (%p8549) target = $region92
      $region91: #{resnet_block_pallas.1} parent=87 // pred_region
        _
      $region92: #{resnet_block_pallas.1} parent=87 // pred_fallthru
        _
    $region88: #{resnet_block_pallas.1} parent=5 // pred_fallthru
      _
    %p8552 = scmp.le.s32.totalorder 2, %s23
    // Predicated region
    $region93: #{resnet_block_pallas.1} parent=5 // pred_check
      %p8553 = pneg %p8552
    $region94: #{resnet_block_pallas.1} parent=5 // pred_check_branch
      %8555 = sbr.rel (%p8553) target = $region96
    $region95: #{resnet_block_pallas.1} parent=5 // pred_region
      %s8556 = ssub.s32 %s23, 2
      // Predicated region
      $region97: #{resnet_block_pallas.1} parent=95 // pred_check
        %p8557 = pneg %p424
      $region98: #{resnet_block_pallas.1} parent=95 // pred_check_branch
        %8559 = sbr.rel (%p8557) target = $region100
      $region99: #{resnet_block_pallas.1} parent=95 // pred_region
        %p8560 = scmp.lt.s32.totalorder %s29, 1
        %s8561 = scalar_select %p8560, %s29, 1
        %s8562 = smul.addr %s8561, 32
        %s8563 = smul.addr %s8562, 8
        %s8564 = scalar_lea.vmem %s17, %s8563
      $region100: #{resnet_block_pallas.1} parent=95 // pred_fallthru
        _
    $region96: #{resnet_block_pallas.1} parent=5 // pred_fallthru
      _
  $region6: #{resnet_block_pallas.1} parent=0 // loop_footer
    %s27 = sadd.s32 1, %s23
  $region7: #{resnet_block_pallas.1} parent=0 // loop_footer_branch
    %22 = sbr.rel target = $region3
  $region8: #{resnet_block_pallas.1} parent=0 // loop_exit
    _

</llo_original>
